<compile_context>
chip_gen: v7x
topology: tpu7x:2x2x1
jax: 0.10.0
libtpu: 0.0.40
codegen_flags: <defaults>
</compile_context>

<pallas_src>
import functools
import math

import jax
import jax.numpy as jnp
from jax import lax
from jax.experimental import pallas as pl
from jax.experimental.pallas import tpu as pltpu

_LN_EPS = 1e-5     # nn.LayerNorm default eps
_GVP_EPS = 1e-8    # eps used by the GVP LayerNorm module / _norm_no_nan

_VMEM_BLOCK_BUDGET = 12 * 1024 * 1024   # target bytes for double-buffered in+out blocks
_VMEM_LIMIT_BYTES = 32 * 1024 * 1024    # > v5e's 16 MiB scoped default, <= v7x physical
_MAX_PACK_WIDTH = 2048                  # cap packed lane width (16 vregs)
_MAX_ROWS_PER_STEP = 1 << 17

_HI = lax.Precision.HIGHEST


def _round_up(a, b):
    return -(-a // b) * b


def _pick_group(width, max_width=_MAX_PACK_WIDTH):
    """How many original rows to pack into the lane dim for a row of `width` features."""
    if width >= max_width:
        return 1
    g = 128 // math.gcd(width, 128)          # minimal g with (g*width) % 128 == 0
    if g * width <= max_width:
        return g
    return max(1, max_width // width)        # near-dense fallback for awkward widths


def _seg_matrices(width, n_seg, seg_len):
    """0/1 segment-sum matrix (width, n_seg) and its transpose, built from 2-D iota.

    a[l, g] = 1 iff lane l belongs to segment g (segments are `seg_len` contiguous lanes).
    Uses only int mul/compare (no integer division) for robust Mosaic lowering.
    """
    r = lax.broadcasted_iota(jnp.int32, (width, n_seg), 0)
    c = lax.broadcasted_iota(jnp.int32, (width, n_seg), 1) * seg_len
    a = ((r >= c) & (r < c + seg_len)).astype(jnp.float32)
    rt = lax.broadcasted_iota(jnp.int32, (n_seg, width), 1)
    ct = lax.broadcasted_iota(jnp.int32, (n_seg, width), 0) * seg_len
    at = ((rt >= ct) & (rt < ct + seg_len)).astype(jnp.float32)
    return a, at


def _dot(a, b, precision=_HI):
    return jnp.dot(a, b, preferred_element_type=jnp.float32, precision=precision)


def _packed_scalar_ln(x, gamma, beta, n_seg, seg_len, ln_eps):
    """LayerNorm over each length-`seg_len` lane segment (n_seg packed rows per block row)."""
    if n_seg == 1:
        mu = jnp.mean(x, axis=-1, keepdims=True)
        xc = x - mu
        var = jnp.mean(xc * xc, axis=-1, keepdims=True)
        return xc * lax.rsqrt(var + ln_eps) * gamma + beta
    a, at = _seg_matrices(n_seg * seg_len, n_seg, seg_len)
    inv_n = 1.0 / float(seg_len)
    mu = _dot(x, a) * inv_n                       # (rows_p, n_seg)
    xc = x - _dot(mu, at)                         # broadcast mean back across its segment
    var = _dot(xc * xc, a) * inv_n                # (rows_p, n_seg)
    inv = lax.rsqrt(var + ln_eps)                 # EUP rsqrt
    return xc * _dot(inv, at) * gamma + beta


def _scalar_ln_kernel(s_ref, g_ref, b_ref, o_ref, *, n_seg, seg_len, ln_eps):
    o_ref[...] = _packed_scalar_ln(
        s_ref[...].astype(jnp.float32),
        g_ref[...].astype(jnp.float32),
        b_ref[...].astype(jnp.float32),
        n_seg, seg_len, ln_eps).astype(o_ref.dtype)


def _gvp_ln_kernel(s_ref, v_ref, g_ref, b_ref, so_ref, vo_ref, *,
                   s_seg, s_len, v_seg, v_chan, v_dim, ln_eps, eps):
    # ---- scalar channels: LayerNorm over each packed segment of s_len lanes ----
    so_ref[...] = _packed_scalar_ln(
        s_ref[...].astype(jnp.float32),
        g_ref[...].astype(jnp.float32),
        b_ref[...].astype(jnp.float32),
        s_seg, s_len, ln_eps).astype(so_ref.dtype)

    # ---- vector channels ----
    # v_ref is (rows_p, v_seg*v_chan*v_dim), lane-dense; each group of v_dim lanes is one
    # vector channel, each group of v_chan*v_dim lanes is one original row.
    v = v_ref[...].astype(jnp.float32)
    wv = v_seg * v_chan * v_dim
    nch = v_seg * v_chan
    grp, grp_t = _seg_matrices(wv, nch, v_dim)           # component -> channel sums
    vn = _dot(v * v, grp) + eps                          # (rows_p, nch): ||v_c||^2 + eps
    mask = (vn > 2.0 * eps).astype(jnp.float32)
    if v_seg == 1:
        num = jnp.sum(vn * mask, axis=-1, keepdims=True)
        den = eps + jnp.sum(mask, axis=-1, keepdims=True)
        scale_c = mask * lax.rsqrt(num / den + eps)      # (rows_p, nch)
    else:
        seg, seg_t = _seg_matrices(nch, v_seg, v_chan)   # channel -> per-node sums
        num = _dot(vn * mask, seg)                       # (rows_p, v_seg)
        den = eps + _dot(mask, seg, precision=None)      # 0/1 counts: exact at any precision
        scale_c = mask * _dot(lax.rsqrt(num / den + eps), seg_t)
    vo_ref[...] = (v * _dot(scale_c, grp_t)).astype(vo_ref.dtype)


def _tile_rows(n_pad, gran, bytes_per_row):
    """Original rows per grid step, VMEM-budgeted and never a single step when splittable."""
    budget_rows = max(gran, (_VMEM_BLOCK_BUDGET // bytes_per_row) // gran * gran)
    budget_rows = min(budget_rows, _MAX_ROWS_PER_STEP)
    if n_pad <= gran:
        return n_pad                                     # single full-dims block (tiny input)
    half = _round_up(-(-n_pad // 2), gran)               # >= 2 grid steps for v7x megacore
    return max(gran, min(budget_rows, half))


def gvp_layer_norm(s, v=None, *, gamma=None, beta=None, ln_eps=_LN_EPS, eps=_GVP_EPS):
    """JAX/Pallas equivalent of gvp_modules.LayerNorm.forward on an (s, V) tuple.

    s: (..., S) scalar features.  v: (..., Vc, 3) vector features or None.
    gamma/beta: scalar_norm affine params (default torch init: ones/zeros).
    Returns (s_out, v_out) with v_out=None when v is None.
    """
    s = jnp.asarray(s)
    S = s.shape[-1]
    lead = s.shape[:-1]
    n = math.prod(lead) if lead else 1

    if gamma is None:
        gamma = jnp.ones((S,), jnp.float32)
    if beta is None:
        beta = jnp.zeros((S,), jnp.float32)

    gs = _pick_group(S)
    if v is not None:
        v = jnp.asarray(v)
        vc, vd = v.shape[-2], v.shape[-1]
        wv = vc * vd
        gv = _pick_group(wv)
        lcm_g = math.lcm(gs, gv)
    else:
        wv = 0
        lcm_g = gs

    n_pad = _round_up(n, lcm_g)
    s2 = s.reshape(n, S)
    if n_pad != n:
        # TODO(synk): zero-pad is an extra HBM copy; callers with n % lcm(Gs,Gv) == 0 hit the free path.
        s2 = jnp.pad(s2, ((0, n_pad - n), (0, 0)))
    s2 = s2.reshape(n_pad // gs, gs * S)                 # free contiguous reshape: lane packing

    g2 = jnp.tile(jnp.asarray(gamma).reshape(1, S), (1, gs))
    b2 = jnp.tile(jnp.asarray(beta).reshape(1, S), (1, gs))

    gran = 8 * lcm_g                                     # keeps packed row-block counts % 8 == 0
    tile = _tile_rows(n_pad, gran, 16 * (S + wv))        # f32 in+out, double-buffered
    grid = (pl.cdiv(n_pad, tile),)

    cparams = pltpu.CompilerParams(
        dimension_semantics=("parallel",),
        vmem_limit_bytes=_VMEM_LIMIT_BYTES,
    )

    def row_spec(rows, width):
        return pl.BlockSpec((rows, width), lambda i: (i, 0))

    def const_spec(width):
        return pl.BlockSpec((1, width), lambda i: (0, 0))

    if v is None:
        out = pl.pallas_call(
            functools.partial(_scalar_ln_kernel, n_seg=gs, seg_len=S, ln_eps=ln_eps),
            out_shape=jax.ShapeDtypeStruct((n_pad // gs, gs * S), s.dtype),
            grid=grid,
            in_specs=[row_spec(tile // gs, gs * S), const_spec(gs * S), const_spec(gs * S)],
            out_specs=row_spec(tile // gs, gs * S),
            compiler_params=cparams,
        )(s2, g2, b2)
        out = out.reshape(n_pad, S)[:n].reshape(s.shape)
        return out, None

    v2 = v.reshape(n, wv)
    if n_pad != n:
        v2 = jnp.pad(v2, ((0, n_pad - n), (0, 0)))
    v2 = v2.reshape(n_pad // gv, gv * wv)                # free contiguous reshape: lane packing

    s_out, v_out = pl.pallas_call(
        functools.partial(_gvp_ln_kernel, s_seg=gs, s_len=S,
                          v_seg=gv, v_chan=vc, v_dim=vd, ln_eps=ln_eps, eps=eps),
        out_shape=(jax.ShapeDtypeStruct((n_pad // gs, gs * S), s.dtype),
                   jax.ShapeDtypeStruct((n_pad // gv, gv * wv), v.dtype)),
        grid=grid,
        in_specs=[row_spec(tile // gs, gs * S),
                  row_spec(tile // gv, gv * wv),
                  const_spec(gs * S), const_spec(gs * S)],
        out_specs=(row_spec(tile // gs, gs * S),
                   row_spec(tile // gv, gv * wv)),
        compiler_params=cparams,
    )(s2, v2, g2, b2)

    s_out = s_out.reshape(n_pad, S)[:n].reshape(s.shape)
    v_out = v_out.reshape(n_pad, wv)[:n].reshape(v.shape)
    return s_out, v_out


if __name__ == "__main__":
    key = jax.random.PRNGKey(0)
    ks, _ = jax.random.split(key)

    # pure-JAX reference of the torch forward
    def reference(s, v):
        mu = jnp.mean(s, -1, keepdims=True)
        var = jnp.mean((s - mu) ** 2, -1, keepdims=True)
        s_n = (s - mu) / jnp.sqrt(var + _LN_EPS)
        if v is None:
            return s_n, None
        vn = jnp.sum(v * v, -1, keepdims=True) + _GVP_EPS
        mask = (vn > 2 * _GVP_EPS).astype(v.dtype)
        vn_m = jnp.sum(vn * mask, -2, keepdims=True) / (
            _GVP_EPS + jnp.sum(mask, -2, keepdims=True))
        vn_m = jnp.sqrt(vn_m + _GVP_EPS)
        return s_n, mask * (v / vn_m)

    def check(n_nodes, s_dim, v_dim, tag):
        k1, k2 = jax.random.split(jax.random.fold_in(key, n_nodes))
        s = jax.random.normal(k1, (n_nodes, s_dim), dtype=jnp.float32)
        v = jax.random.normal(k2, (n_nodes, v_dim, 3), dtype=jnp.float32)
        # zero out some vector channels to exercise the nonzero_mask branch
        v = v.at[0, 1].set(0.0)
        v = v.at[min(3, n_nodes - 1), :].set(0.0)
        s_out, v_out = jax.block_until_ready(gvp_layer_norm(s, v))
        s_ref, v_ref = reference(s, v)
        assert bool(jnp.allclose(s_out, s_ref, rtol=1.5e-3, atol=1e-4)), f"{tag}: scalar mismatch"
        assert bool(jnp.allclose(v_out, v_ref, rtol=1.5e-3, atol=1e-4)), f"{tag}: vector mismatch"

    # small, packing-friendly batch (n % lcm(Gs,Gv) == 0 -> free reshape path, single block)
    check(64, 32, 4, "n=64")
    # multi-step grid with a ragged last block
    check(600, 32, 4, "n=600")
    # row count that needs zero-padding to the packing granularity
    check(50, 32, 4, "n=50")

    # scalar-only path (module built with dims=(s, 0) / v is None)
    s = jax.random.normal(ks, (16, 32), dtype=jnp.float32)
    s_only, none_v = gvp_layer_norm(s, None)
    s_only = jax.block_until_ready(s_only)
    assert none_v is None
    s_ref_only, _ = reference(s, None)
    assert bool(jnp.allclose(s_only, s_ref_only, rtol=1.5e-3, atol=1e-4)), "scalar-only mismatch"

    print("KERNEL_OK")
</pallas_src>

<mosaic_0001>
module attributes {stable_mosaic.version = 11 : i64} {
  func.func @_gvp_ln_kernel(%arg0: i32, %arg1: memref<16x128xf32, #tpu.memory_space<vmem>>, %arg2: memref<2x384xf32, #tpu.memory_space<vmem>>, %arg3: memref<1x128xf32, #tpu.memory_space<vmem>>, %arg4: memref<1x128xf32, #tpu.memory_space<vmem>>, %arg5: memref<16x128xf32, #tpu.memory_space<vmem>>, %arg6: memref<2x384xf32, #tpu.memory_space<vmem>>) attributes {dimension_semantics = [#tpu.dimension_semantics<parallel>], iteration_bounds = array<i64: 1>, scalar_prefetch = 0 : i64, scratch_operands = 0 : i64, tpu.core_type = #tpu.core_type<tc>, window_params = [{transform_indices = @transform_0, window_bounds = array<i64: 16, 128>}, {transform_indices = @transform_1, window_bounds = array<i64: 2, 384>}, {pipeline_mode = #tpu.pipeline_mode<synchronous>, transform_indices = @transform_2, window_bounds = array<i64: 1, 128>}, {pipeline_mode = #tpu.pipeline_mode<synchronous>, transform_indices = @transform_3, window_bounds = array<i64: 1, 128>}, {transform_indices = @transform_4, window_bounds = array<i64: 16, 128>}, {transform_indices = @transform_5, window_bounds = array<i64: 2, 384>}]} {
    %c0 = arith.constant 0 : index
    %c0_0 = arith.constant 0 : index
    %0 = vector.load %arg1[%c0, %c0_0] : memref<16x128xf32, #tpu.memory_space<vmem>>, vector<16x128xf32>
    %c0_1 = arith.constant 0 : index
    %c0_2 = arith.constant 0 : index
    %1 = vector.load %arg3[%c0_1, %c0_2] : memref<1x128xf32, #tpu.memory_space<vmem>>, vector<1x128xf32>
    %c0_3 = arith.constant 0 : index
    %c0_4 = arith.constant 0 : index
    %2 = vector.load %arg4[%c0_3, %c0_4] : memref<1x128xf32, #tpu.memory_space<vmem>>, vector<1x128xf32>
    %3 = tpu.iota {dimensions = array<i32: 0>} : vector<128x4xi32>
    %4 = tpu.iota {dimensions = array<i32: 1>} : vector<128x4xi32>
    %c32_i32 = arith.constant 32 : i32
    %5 = vector.broadcast %c32_i32 : i32 to vector<128x4xi32>
    %6 = arith.muli %4, %5 : vector<128x4xi32>
    %7 = arith.cmpi sge, %3, %6 : vector<128x4xi32>
    %c32_i32_5 = arith.constant 32 : i32
    %8 = vector.broadcast %c32_i32_5 : i32 to vector<128x4xi32>
    %9 = arith.addi %6, %8 : vector<128x4xi32>
    %10 = arith.cmpi slt, %3, %9 : vector<128x4xi32>
    %11 = arith.andi %7, %10 : vector<128x4xi1>
    %12 = arith.extui %11 : vector<128x4xi1> to vector<128x4xi32>
    %13 = arith.sitofp %12 : vector<128x4xi32> to vector<128x4xf32>
    %14 = tpu.iota {dimensions = array<i32: 1>} : vector<4x128xi32>
    %15 = tpu.iota {dimensions = array<i32: 0>} : vector<4x128xi32>
    %c32_i32_6 = arith.constant 32 : i32
    %16 = vector.broadcast %c32_i32_6 : i32 to vector<4x128xi32>
    %17 = arith.muli %15, %16 : vector<4x128xi32>
    %18 = arith.cmpi sge, %14, %17 : vector<4x128xi32>
    %c32_i32_7 = arith.constant 32 : i32
    %19 = vector.broadcast %c32_i32_7 : i32 to vector<4x128xi32>
    %20 = arith.addi %17, %19 : vector<4x128xi32>
    %21 = arith.cmpi slt, %14, %20 : vector<4x128xi32>
    %22 = arith.andi %18, %21 : vector<4x128xi1>
    %23 = arith.extui %22 : vector<4x128xi1> to vector<4x128xi32>
    %24 = arith.sitofp %23 : vector<4x128xi32> to vector<4x128xf32>
    %cst = arith.constant dense<0.000000e+00> : vector<16x4xf32>
    %25 = tpu.matmul %0, %13, %cst {dimension_numbers = #tpu.dot_dimension_numbers<[1], [0], [0], [1], [0, 0, 1, 1], [], []>, precision = #tpu.contract_precision<fp32>} : vector<16x128xf32>, vector<128x4xf32>, vector<16x4xf32> -> vector<16x4xf32>
    %cst_8 = arith.constant 3.125000e-02 : f32
    %26 = vector.broadcast %cst_8 : f32 to vector<16x4xf32>
    %27 = arith.mulf %25, %26 : vector<16x4xf32>
    %cst_9 = arith.constant dense<0.000000e+00> : vector<16x128xf32>
    %28 = tpu.matmul %27, %24, %cst_9 {dimension_numbers = #tpu.dot_dimension_numbers<[1], [0], [0], [1], [0, 0, 1, 1], [], []>, precision = #tpu.contract_precision<fp32>} : vector<16x4xf32>, vector<4x128xf32>, vector<16x128xf32> -> vector<16x128xf32>
    %29 = arith.subf %0, %28 : vector<16x128xf32>
    %30 = arith.mulf %29, %29 : vector<16x128xf32>
    %cst_10 = arith.constant dense<0.000000e+00> : vector<16x4xf32>
    %31 = tpu.matmul %30, %13, %cst_10 {dimension_numbers = #tpu.dot_dimension_numbers<[1], [0], [0], [1], [0, 0, 1, 1], [], []>, precision = #tpu.contract_precision<fp32>} : vector<16x128xf32>, vector<128x4xf32>, vector<16x4xf32> -> vector<16x4xf32>
    %cst_11 = arith.constant 3.125000e-02 : f32
    %32 = vector.broadcast %cst_11 : f32 to vector<16x4xf32>
    %33 = arith.mulf %31, %32 : vector<16x4xf32>
    %cst_12 = arith.constant 9.99999974E-6 : f32
    %34 = vector.broadcast %cst_12 : f32 to vector<16x4xf32>
    %35 = arith.addf %33, %34 : vector<16x4xf32>
    %36 = math.rsqrt %35 : vector<16x4xf32>
    %cst_13 = arith.constant dense<0.000000e+00> : vector<16x128xf32>
    %37 = tpu.matmul %36, %24, %cst_13 {dimension_numbers = #tpu.dot_dimension_numbers<[1], [0], [0], [1], [0, 0, 1, 1], [], []>, precision = #tpu.contract_precision<fp32>} : vector<16x4xf32>, vector<4x128xf32>, vector<16x128xf32> -> vector<16x128xf32>
    %38 = arith.mulf %29, %37 : vector<16x128xf32>
    %39 = vector.broadcast %1 : vector<1x128xf32> to vector<16x128xf32>
    %40 = arith.mulf %38, %39 : vector<16x128xf32>
    %41 = vector.broadcast %2 : vector<1x128xf32> to vector<16x128xf32>
    %42 = arith.addf %40, %41 : vector<16x128xf32>
    %c0_14 = arith.constant 0 : index
    %c0_15 = arith.constant 0 : index
    %43 = vector.load %arg5[%c0_14, %c0_15] : memref<16x128xf32, #tpu.memory_space<vmem>>, vector<16x128xf32>
    tpu.vector_store %arg5[%c0_14, %c0_15], %42 {strides = array<i32>} : memref<16x128xf32, #tpu.memory_space<vmem>>, vector<16x128xf32>,
    %c0_16 = arith.constant 0 : index
    %c0_17 = arith.constant 0 : index
    %44 = vector.load %arg2[%c0_16, %c0_17] : memref<2x384xf32, #tpu.memory_space<vmem>>, vector<2x384xf32>
    %45 = tpu.iota {dimensions = array<i32: 0>} : vector<384x128xi32>
    %46 = tpu.iota {dimensions = array<i32: 1>} : vector<384x128xi32>
    %c3_i32 = arith.constant 3 : i32
    %47 = vector.broadcast %c3_i32 : i32 to vector<384x128xi32>
    %48 = arith.muli %46, %47 : vector<384x128xi32>
    %49 = arith.cmpi sge, %45, %48 : vector<384x128xi32>
    %c3_i32_18 = arith.constant 3 : i32
    %50 = vector.broadcast %c3_i32_18 : i32 to vector<384x128xi32>
    %51 = arith.addi %48, %50 : vector<384x128xi32>
    %52 = arith.cmpi slt, %45, %51 : vector<384x128xi32>
    %53 = arith.andi %49, %52 : vector<384x128xi1>
    %54 = arith.extui %53 : vector<384x128xi1> to vector<384x128xi32>
    %55 = arith.sitofp %54 : vector<384x128xi32> to vector<384x128xf32>
    %56 = tpu.iota {dimensions = array<i32: 1>} : vector<128x384xi32>
    %57 = tpu.iota {dimensions = array<i32: 0>} : vector<128x384xi32>
    %c3_i32_19 = arith.constant 3 : i32
    %58 = vector.broadcast %c3_i32_19 : i32 to vector<128x384xi32>
    %59 = arith.muli %57, %58 : vector<128x384xi32>
    %60 = arith.cmpi sge, %56, %59 : vector<128x384xi32>
    %c3_i32_20 = arith.constant 3 : i32
    %61 = vector.broadcast %c3_i32_20 : i32 to vector<128x384xi32>
    %62 = arith.addi %59, %61 : vector<128x384xi32>
    %63 = arith.cmpi slt, %56, %62 : vector<128x384xi32>
    %64 = arith.andi %60, %63 : vector<128x384xi1>
    %65 = arith.extui %64 : vector<128x384xi1> to vector<128x384xi32>
    %66 = arith.sitofp %65 : vector<128x384xi32> to vector<128x384xf32>
    %67 = arith.mulf %44, %44 : vector<2x384xf32>
    %cst_21 = arith.constant dense<0.000000e+00> : vector<2x128xf32>
    %68 = tpu.matmul %67, %55, %cst_21 {dimension_numbers = #tpu.dot_dimension_numbers<[1], [0], [0], [1], [0, 0, 1, 1], [], []>, precision = #tpu.contract_precision<fp32>} : vector<2x384xf32>, vector<384x128xf32>, vector<2x128xf32> -> vector<2x128xf32>
    %cst_22 = arith.constant 9.99999993E-9 : f32
    %69 = vector.broadcast %cst_22 : f32 to vector<2x128xf32>
    %70 = arith.addf %68, %69 : vector<2x128xf32>
    %cst_23 = arith.constant 2.000000e-08 : f32
    %71 = vector.broadcast %cst_23 : f32 to vector<2x128xf32>
    %72 = arith.cmpf ogt, %70, %71 : vector<2x128xf32>
    %73 = arith.extui %72 : vector<2x128xi1> to vector<2x128xi32>
    %74 = arith.sitofp %73 : vector<2x128xi32> to vector<2x128xf32>
    %75 = tpu.iota {dimensions = array<i32: 0>} : vector<128x32xi32>
    %76 = tpu.iota {dimensions = array<i32: 1>} : vector<128x32xi32>
    %c4_i32 = arith.constant 4 : i32
    %77 = vector.broadcast %c4_i32 : i32 to vector<128x32xi32>
    %78 = arith.muli %76, %77 : vector<128x32xi32>
    %79 = arith.cmpi sge, %75, %78 : vector<128x32xi32>
    %c4_i32_24 = arith.constant 4 : i32
    %80 = vector.broadcast %c4_i32_24 : i32 to vector<128x32xi32>
    %81 = arith.addi %78, %80 : vector<128x32xi32>
    %82 = arith.cmpi slt, %75, %81 : vector<128x32xi32>
    %83 = arith.andi %79, %82 : vector<128x32xi1>
    %84 = arith.extui %83 : vector<128x32xi1> to vector<128x32xi32>
    %85 = arith.sitofp %84 : vector<128x32xi32> to vector<128x32xf32>
    %86 = tpu.iota {dimensions = array<i32: 1>} : vector<32x128xi32>
    %87 = tpu.iota {dimensions = array<i32: 0>} : vector<32x128xi32>
    %c4_i32_25 = arith.constant 4 : i32
    %88 = vector.broadcast %c4_i32_25 : i32 to vector<32x128xi32>
    %89 = arith.muli %87, %88 : vector<32x128xi32>
    %90 = arith.cmpi sge, %86, %89 : vector<32x128xi32>
    %c4_i32_26 = arith.constant 4 : i32
    %91 = vector.broadcast %c4_i32_26 : i32 to vector<32x128xi32>
    %92 = arith.addi %89, %91 : vector<32x128xi32>
    %93 = arith.cmpi slt, %86, %92 : vector<32x128xi32>
    %94 = arith.andi %90, %93 : vector<32x128xi1>
    %95 = arith.extui %94 : vector<32x128xi1> to vector<32x128xi32>
    %96 = arith.sitofp %95 : vector<32x128xi32> to vector<32x128xf32>
    %97 = arith.mulf %70, %74 : vector<2x128xf32>
    %cst_27 = arith.constant dense<0.000000e+00> : vector<2x32xf32>
    %98 = tpu.matmul %97, %85, %cst_27 {dimension_numbers = #tpu.dot_dimension_numbers<[1], [0], [0], [1], [0, 0, 1, 1], [], []>, precision = #tpu.contract_precision<fp32>} : vector<2x128xf32>, vector<128x32xf32>, vector<2x32xf32> -> vector<2x32xf32>
    %cst_28 = arith.constant dense<0.000000e+00> : vector<2x32xf32>
    %99 = tpu.matmul %74, %85, %cst_28 {dimension_numbers = #tpu.dot_dimension_numbers<[1], [0], [0], [1], [0, 0, 1, 1], [], []>} : vector<2x128xf32>, vector<128x32xf32>, vector<2x32xf32> -> vector<2x32xf32>
    %cst_29 = arith.constant 9.99999993E-9 : f32
    %100 = vector.broadcast %cst_29 : f32 to vector<2x32xf32>
    %101 = arith.addf %100, %99 : vector<2x32xf32>
    %102 = arith.divf %98, %101 : vector<2x32xf32>
    %cst_30 = arith.constant 9.99999993E-9 : f32
    %103 = vector.broadcast %cst_30 : f32 to vector<2x32xf32>
    %104 = arith.addf %102, %103 : vector<2x32xf32>
    %105 = math.rsqrt %104 : vector<2x32xf32>
    %cst_31 = arith.constant dense<0.000000e+00> : vector<2x128xf32>
    %106 = tpu.matmul %105, %96, %cst_31 {dimension_numbers = #tpu.dot_dimension_numbers<[1], [0], [0], [1], [0, 0, 1, 1], [], []>, precision = #tpu.contract_precision<fp32>} : vector<2x32xf32>, vector<32x128xf32>, vector<2x128xf32> -> vector<2x128xf32>
    %107 = arith.mulf %74, %106 : vector<2x128xf32>
    %cst_32 = arith.constant dense<0.000000e+00> : vector<2x384xf32>
    %108 = tpu.matmul %107, %66, %cst_32 {dimension_numbers = #tpu.dot_dimension_numbers<[1], [0], [0], [1], [0, 0, 1, 1], [], []>, precision = #tpu.contract_precision<fp32>} : vector<2x128xf32>, vector<128x384xf32>, vector<2x384xf32> -> vector<2x384xf32>
    %109 = arith.mulf %44, %108 : vector<2x384xf32>
    %c0_33 = arith.constant 0 : index
    %c0_34 = arith.constant 0 : index
    %110 = vector.load %arg6[%c0_33, %c0_34] : memref<2x384xf32, #tpu.memory_space<vmem>>, vector<2x384xf32>
    tpu.vector_store %arg6[%c0_33, %c0_34], %109 {strides = array<i32>} : memref<2x384xf32, #tpu.memory_space<vmem>>, vector<2x384xf32>,
    return
  }
  func.func @transform_0(%arg0: i32) -> (i32, i32) {
    %c0_i32 = arith.constant 0 : i32
    %c0_i32_0 = arith.constant 0 : i32
    return %arg0, %c0_i32 : i32, i32
  }
  func.func @transform_1(%arg0: i32) -> (i32, i32) {
    %c0_i32 = arith.constant 0 : i32
    %c0_i32_0 = arith.constant 0 : i32
    return %arg0, %c0_i32 : i32, i32
  }
  func.func @transform_2(%arg0: i32) -> (i32, i32) {
    %c0_i32 = arith.constant 0 : i32
    %c0_i32_0 = arith.constant 0 : i32
    %c0_i32_1 = arith.constant 0 : i32
    return %c0_i32, %c0_i32_0 : i32, i32
  }
  func.func @transform_3(%arg0: i32) -> (i32, i32) {
    %c0_i32 = arith.constant 0 : i32
    %c0_i32_0 = arith.constant 0 : i32
    %c0_i32_1 = arith.constant 0 : i32
    return %c0_i32, %c0_i32_0 : i32, i32
  }
  func.func @transform_4(%arg0: i32) -> (i32, i32) {
    %c0_i32 = arith.constant 0 : i32
    %c0_i32_0 = arith.constant 0 : i32
    return %arg0, %c0_i32 : i32, i32
  }
  func.func @transform_5(%arg0: i32) -> (i32, i32) {
    %c0_i32 = arith.constant 0 : i32
    %c0_i32_0 = arith.constant 0 : i32
    return %arg0, %c0_i32 : i32, i32
  }
}

</mosaic_0001>

<llo_original>
// kernel: tpu_custom_call.1
$region0: #{tpu_custom_call.1}
  #allocation0 [shape = 'u32[]', space=smem, size = 0x4, offset = 0x4, fixed_abs, tag = 'smem constant byte address 0x4 - core index']
  #allocation1 [shape = 'u32[144,128]{1,0:T(1,128)}', space=vmem, size = 0x12000, scoped, tag = 'internal scratch']
  %s0 = inlined_call_operand.hbm [shape: f32[16,128], index: 0, kind: input, shape index: {}]
  %s1 = inlined_call_operand.hbm [shape: f32[2,384], index: 1, kind: input, shape index: {}]
  %s2 = inlined_call_operand.vmem [shape: f32[1,128], index: 2, kind: input, shape index: {}]
  %s3 = inlined_call_operand.vmem [shape: f32[1,128], index: 3, kind: input, shape index: {}]
  %s4 = inlined_call_operand.hbm [shape: f32[16,128], index: 4, kind: output, shape index: {0}]
  %s5 = inlined_call_operand.hbm [shape: f32[2,384], index: 5, kind: output, shape index: {1}]
  %6 = xla_tuple %s4, %s5
  %s7 = sld [smem:[#allocation0]]
  $region42: #{tpu_custom_call.1} parent=0
    _
  %s9 = ssub.s32 1, %s7
  %s10 = scalar_select 0, %s9, %s7
  $region1: #{tpu_custom_call.1} parent=0
    #allocation2 [shape = 'u8[8192]{0}', space=vmem, size = 0x2000, scoped, tag = 'input window, operand 0, single buffered']
    #allocation3 [shape = 's32[1]{0}', space=sflag, size = 0x4, scoped, tag = 'scoped memory for tpu_custom_call.1']
    #allocation4 [shape = 's32[1]{0}', space=sflag, size = 0x4, scoped, tag = 'scoped memory for tpu_custom_call.1']
    #allocation5 [shape = 'u8[3072]{0}', space=vmem, size = 0xc00, scoped, tag = 'input window, operand 1, single buffered']
    #allocation6 [shape = 's32[1]{0}', space=sflag, size = 0x4, scoped, tag = 'scoped memory for tpu_custom_call.1']
    #allocation7 [shape = 'u8[8192]{0}', space=vmem, size = 0x2000, scoped, tag = 'output window, operand 0, single buffered']
    #allocation8 [shape = 'u8[3072]{0}', space=vmem, size = 0xc00, scoped, tag = 'output window, operand 1, single buffered']
    #allocation9 [shape = 's32[1]{0}', space=sflag, size = 0x4, scoped, tag = 'scoped memory for tpu_custom_call.1']
    %11 = vsyncpa [#allocation3], 0
    %12 = vsyncpa [#allocation6], 0
    %13 = vsyncpa [#allocation4], 0
    %14 = vsyncpa [#allocation9], 0
    // Predicated region
    $region2: #{tpu_custom_call.1} parent=1 // pred_check
      _
    $region3: #{tpu_custom_call.1} parent=1 // pred_check_branch
      %16 = sbr.rel (0) target = $region5
    $region4: #{tpu_custom_call.1} parent=1 // pred_region
      %s18 = ssub.s32 256, 256
      %19 = vsyncadd [#allocation3], %s18
      %s20 = sshll.u32 [#allocation2], 4
      %s21 = int_to_ptr.vmem [resolvable:$true] %s20
      %26 = dma.hbm_to_vmem [thread:$0]  %s0, 256, %s21, [#allocation3], 128, 128, 8
    $region5: #{tpu_custom_call.1} parent=1 // pred_fallthru
      _
    // Predicated region
    $region6: #{tpu_custom_call.1} parent=1 // pred_check
      _
    $region7: #{tpu_custom_call.1} parent=1 // pred_check_branch
      %28 = sbr.rel (0) target = $region9
    $region8: #{tpu_custom_call.1} parent=1 // pred_region
      %s30 = ssub.s32 96, 96
      %31 = vsyncadd [#allocation6], %s30
      %s33 = sshll.u32 [#allocation5], 4
      %s34 = int_to_ptr.vmem [resolvable:$true] %s33
      %36 = dma.hbm_to_vmem [thread:$0]  %s1, 96, %s34, [#allocation6]
    $region9: #{tpu_custom_call.1} parent=1 // pred_fallthru
      _
    // Predicated region
    $region10: #{tpu_custom_call.1} parent=1 // pred_check
      _
    $region11: #{tpu_custom_call.1} parent=1 // pred_check_branch
      %38 = sbr.rel (0) target = $region13
    $region12: #{tpu_custom_call.1} parent=1 // pred_region
      _
    $region13: #{tpu_custom_call.1} parent=1 // pred_fallthru
      _
    // Predicated region
    $region14: #{tpu_custom_call.1} parent=1 // pred_check
      _
    $region15: #{tpu_custom_call.1} parent=1 // pred_check_branch
      %40 = sbr.rel (0) target = $region17
    $region16: #{tpu_custom_call.1} parent=1 // pred_region
      _
    $region17: #{tpu_custom_call.1} parent=1 // pred_fallthru
      _
    // Predicated region
    $region18: #{tpu_custom_call.1} parent=1 // pred_check
      _
    $region19: #{tpu_custom_call.1} parent=1 // pred_check_branch
      %42 = sbr.rel (0) target = $region21
    $region20: #{tpu_custom_call.1} parent=1 // pred_region
      %43 = dma.done [#allocation3], 256
    $region21: #{tpu_custom_call.1} parent=1 // pred_fallthru
      _
    // Predicated region
    $region22: #{tpu_custom_call.1} parent=1 // pred_check
      _
    $region23: #{tpu_custom_call.1} parent=1 // pred_check_branch
      %45 = sbr.rel (0) target = $region25
    $region24: #{tpu_custom_call.1} parent=1 // pred_region
      %46 = dma.done [#allocation6], 96
    $region25: #{tpu_custom_call.1} parent=1 // pred_fallthru
      _
    %v47 = vld [vmem:[#allocation2] sm:$0xff]
    %v48 = vld [vmem:[#allocation2 + $0x8] sm:$0xff]
    %v49 = vld [vmem:[%s2] sm:$0x1]
    %v50 = vld [vmem:[%s3] sm:$0x1]
    %v51 = vlaneseq
    %v52 = vshrl.u32 %v51, 7
    %v53 = vadd.s32 %v52, 8
    %v54 = vadd.s32 %v52, 16
    %v55 = vadd.s32 %v52, 24
    %v56 = vadd.s32 %v52, 32
    %v57 = vadd.s32 %v52, 40
    %v58 = vadd.s32 %v52, 48
    %v59 = vadd.s32 %v52, 56
    %v60 = vadd.s32 %v52, 64
    %v61 = vadd.s32 %v52, 72
    %v62 = vadd.s32 %v52, 80
    %v63 = vadd.s32 %v52, 88
    %v64 = vadd.s32 %v52, 96
    %v65 = vadd.s32 %v52, 104
    %v66 = vadd.s32 %v52, 112
    %v67 = vadd.s32 %v52, 120
    %v68 = vlaneseq
    %v69 = vand.u32 %v68, 127
    %v70 = vmul.u32 %v69, 32
    %vm71 = vcmp.ge.s32.totalorder %v52, %v70
    %vm72 = vcmp.ge.s32.totalorder %v53, %v70
    %vm73 = vcmp.ge.s32.totalorder %v54, %v70
    %vm74 = vcmp.ge.s32.totalorder %v55, %v70
    %vm75 = vcmp.ge.s32.totalorder %v56, %v70
    %vm76 = vcmp.ge.s32.totalorder %v57, %v70
    %vm77 = vcmp.ge.s32.totalorder %v58, %v70
    %vm78 = vcmp.ge.s32.totalorder %v59, %v70
    %vm79 = vcmp.ge.s32.totalorder %v60, %v70
    %vm80 = vcmp.ge.s32.totalorder %v61, %v70
    %vm81 = vcmp.ge.s32.totalorder %v62, %v70
    %vm82 = vcmp.ge.s32.totalorder %v63, %v70
    %vm83 = vcmp.ge.s32.totalorder %v64, %v70
    %vm84 = vcmp.ge.s32.totalorder %v65, %v70
    %vm85 = vcmp.ge.s32.totalorder %v66, %v70
    %vm86 = vcmp.ge.s32.totalorder %v67, %v70
    %v87 = vadd.s32 %v70, 32
    %vm88 = vcmp.lt.s32.totalorder %v52, %v87
    %vm89 = vcmp.lt.s32.totalorder %v53, %v87
    %vm90 = vcmp.lt.s32.totalorder %v54, %v87
    %vm91 = vcmp.lt.s32.totalorder %v55, %v87
    %vm92 = vcmp.lt.s32.totalorder %v56, %v87
    %vm93 = vcmp.lt.s32.totalorder %v57, %v87
    %vm94 = vcmp.lt.s32.totalorder %v58, %v87
    %vm95 = vcmp.lt.s32.totalorder %v59, %v87
    %vm96 = vcmp.lt.s32.totalorder %v60, %v87
    %vm97 = vcmp.lt.s32.totalorder %v61, %v87
    %vm98 = vcmp.lt.s32.totalorder %v62, %v87
    %vm99 = vcmp.lt.s32.totalorder %v63, %v87
    %vm100 = vcmp.lt.s32.totalorder %v64, %v87
    %vm101 = vcmp.lt.s32.totalorder %v65, %v87
    %vm102 = vcmp.lt.s32.totalorder %v66, %v87
    %vm103 = vcmp.lt.s32.totalorder %v67, %v87
    %vm104 = vmand %vm71, %vm88
    %vm105 = vmand %vm72, %vm89
    %vm106 = vmand %vm73, %vm90
    %vm107 = vmand %vm74, %vm91
    %vm108 = vmand %vm75, %vm92
    %vm109 = vmand %vm76, %vm93
    %vm110 = vmand %vm77, %vm94
    %vm111 = vmand %vm78, %vm95
    %vm112 = vmand %vm79, %vm96
    %vm113 = vmand %vm80, %vm97
    %vm114 = vmand %vm81, %vm98
    %vm115 = vmand %vm82, %vm99
    %vm116 = vmand %vm83, %vm100
    %vm117 = vmand %vm84, %vm101
    %vm118 = vmand %vm85, %vm102
    %vm119 = vmand %vm86, %vm103
    %v120 = vsel %vm104, 1, 0
    %v121 = vsel %vm105, 1, 0
    %v122 = vsel %vm106, 1, 0
    %v123 = vsel %vm107, 1, 0
    %v124 = vsel %vm108, 1, 0
    %v125 = vsel %vm109, 1, 0
    %v126 = vsel %vm110, 1, 0
    %v127 = vsel %vm111, 1, 0
    %v128 = vsel %vm112, 1, 0
    %v129 = vsel %vm113, 1, 0
    %v130 = vsel %vm114, 1, 0
    %v131 = vsel %vm115, 1, 0
    %v132 = vsel %vm116, 1, 0
    %v133 = vsel %vm117, 1, 0
    %v134 = vsel %vm118, 1, 0
    %v135 = vsel %vm119, 1, 0
    %v136 = vcvt.s32.f32 %v120
    %v137 = vcvt.s32.f32 %v121
    %v138 = vcvt.s32.f32 %v122
    %v139 = vcvt.s32.f32 %v123
    %v140 = vcvt.s32.f32 %v124
    %v141 = vcvt.s32.f32 %v125
    %v142 = vcvt.s32.f32 %v126
    %v143 = vcvt.s32.f32 %v127
    %v144 = vcvt.s32.f32 %v128
    %v145 = vcvt.s32.f32 %v129
    %v146 = vcvt.s32.f32 %v130
    %v147 = vcvt.s32.f32 %v131
    %v148 = vcvt.s32.f32 %v132
    %v149 = vcvt.s32.f32 %v133
    %v150 = vcvt.s32.f32 %v134
    %v151 = vcvt.s32.f32 %v135
    %v152 = vmul.u32 %v52, 32
    %vm153 = vcmp.ge.s32.totalorder %v69, %v152
    %v154 = vadd.s32 %v152, 32
    %vm155 = vcmp.lt.s32.totalorder %v69, %v154
    %vm156 = vmand %vm153, %vm155
    %v157 = vsel %vm156, 1, 0
    %v158 = vcvt.s32.f32 %v157
    %159 = vmatprep.subr.mxu0 0.0
    %v160 = vand.u32 %v136, 4294901760
    %161 = vmatpush1.msra.mxu0 %v160
    %162 = vmatprep.subr.mxu0 0.0
    %v163 = vand.u32 %v137, 4294901760
    %164 = vmatpush1.msra.mxu0 %v163
    %165 = vmatprep.subr.mxu0 0.0
    %v166 = vand.u32 %v138, 4294901760
    %167 = vmatpush1.msra.mxu0 %v166
    %168 = vmatprep.subr.mxu0 0.0
    %v169 = vand.u32 %v139, 4294901760
    %170 = vmatpush1.msra.mxu0 %v169
    %171 = vmatprep.subr.mxu0 0.0
    %v172 = vand.u32 %v140, 4294901760
    %173 = vmatpush1.msra.mxu0 %v172
    %174 = vmatprep.subr.mxu0 0.0
    %v175 = vand.u32 %v141, 4294901760
    %176 = vmatpush1.msra.mxu0 %v175
    %177 = vmatprep.subr.mxu0 0.0
    %v178 = vand.u32 %v142, 4294901760
    %179 = vmatpush1.msra.mxu0 %v178
    %180 = vmatprep.subr.mxu0 0.0
    %v181 = vand.u32 %v143, 4294901760
    %182 = vmatpush1.msra.mxu0 %v181
    %183 = vmatprep.subr.mxu0 0.0
    %v184 = vand.u32 %v144, 4294901760
    %185 = vmatpush1.msra.mxu0 %v184
    %186 = vmatprep.subr.mxu0 0.0
    %v187 = vand.u32 %v145, 4294901760
    %188 = vmatpush1.msra.mxu0 %v187
    %189 = vmatprep.subr.mxu0 0.0
    %v190 = vand.u32 %v146, 4294901760
    %191 = vmatpush1.msra.mxu0 %v190
    %192 = vmatprep.subr.mxu0 0.0
    %v193 = vand.u32 %v147, 4294901760
    %194 = vmatpush1.msra.mxu0 %v193
    %195 = vmatprep.subr.mxu0 0.0
    %v196 = vand.u32 %v148, 4294901760
    %197 = vmatpush1.msra.mxu0 %v196
    %198 = vmatprep.subr.mxu0 0.0
    %v199 = vand.u32 %v149, 4294901760
    %200 = vmatpush1.msra.mxu0 %v199
    %201 = vmatprep.subr.mxu0 0.0
    %v202 = vand.u32 %v150, 4294901760
    %203 = vmatpush1.msra.mxu0 %v202
    %204 = vmatprep.subr.mxu0 0.0
    %v205 = vand.u32 %v151, 4294901760
    %206 = vmatpush1.msra.mxu0 %v205
    %207 = vmatprep.subr.mxu0 0.0
    %208 = vmatpush1.msra.mxu0 0.0
    %209 = vmatprep.subr.mxu0 0.0
    %210 = vmatpush1.msra.mxu0 0.0
    %211 = vmatprep.subr.mxu0 0.0
    %212 = vmatpush1.msra.mxu0 0.0
    %213 = vmatprep.subr.mxu0 0.0
    %214 = vmatpush1.msra.mxu0 0.0
    %215 = vmatprep.subr.mxu0 0.0
    %216 = vmatpush1.msra.mxu0 0.0
    %217 = vmatprep.subr.mxu0 0.0
    %218 = vmatpush1.msra.mxu0 0.0
    %219 = vmatprep.subr.mxu0 0.0
    %220 = vmatpush1.msra.mxu0 0.0
    %221 = vmatprep.subr.mxu0 0.0
    %222 = vmatpush1.msra.mxu0 0.0
    %223 = vmatprep.subr.mxu0 0.0
    %224 = vmatpush1.msra.mxu0 0.0
    %225 = vmatprep.subr.mxu0 0.0
    %226 = vmatpush1.msra.mxu0 0.0
    %227 = vmatprep.subr.mxu0 0.0
    %228 = vmatpush1.msra.mxu0 0.0
    %229 = vmatprep.subr.mxu0 0.0
    %230 = vmatpush1.msra.mxu0 0.0
    %231 = vmatprep.subr.mxu0 0.0
    %232 = vmatpush1.msra.mxu0 0.0
    %233 = vmatprep.subr.mxu0 0.0
    %234 = vmatpush1.msra.mxu0 0.0
    %235 = vmatprep.subr.mxu0 0.0
    %236 = vmatpush1.msra.mxu0 0.0
    %237 = vmatprep.subr.mxu0 0.0
    %238 = vmatpush1.msra.mxu0 0.0
    %239 = vmatprep.mubr.f32.mxu0 0.0
    %v240 = vand.u32 %v47, 4294901760
    %v241 = vsub.f32 %v47, %v240
    %v242 = vand.u32 %v241, 4294901760
    %v243 = vsub.f32 %v241, %v242
    %v244 = vand.u32 %v243, 4294901760
    %245 = vmatmul.mubr.f32.gmra.mrb[0].mxu0 %v244
    %v246 = vpop.f32.mrb[0].mxu0
    %v247 = vadd.f32 0.0, %v246
    %v248 = vpop.f32.mrb[0].mxu0
    %249 = vmatprep.mubr.f32.mxu0 0.0
    %v250 = vand.u32 %v48, 4294901760
    %v251 = vsub.f32 %v48, %v250
    %v252 = vand.u32 %v251, 4294901760
    %v253 = vsub.f32 %v251, %v252
    %v254 = vand.u32 %v253, 4294901760
    %255 = vmatmul.mubr.f32.gmra.mrb[0].mxu0 %v254
    %v256 = vpop.f32.mrb[0].mxu0
    %v257 = vadd.f32 0.0, %v256
    %v258 = vpop.f32.mrb[0].mxu0
    %259 = vdwg.mxu0
    %260 = vmatprep.subr.mxu0 0.0
    %v261 = vand.u32 %v136, 4294901760
    %v262 = vsub.f32 %v136, %v261
    %v263 = vand.u32 %v262, 4294901760
    %v264 = vsub.f32 %v262, %v263
    %v265 = vand.u32 %v264, 4294901760
    %266 = vmatpush1.msra.mxu0 %v265
    %267 = vmatprep.subr.mxu0 0.0
    %v268 = vand.u32 %v137, 4294901760
    %v269 = vsub.f32 %v137, %v268
    %v270 = vand.u32 %v269, 4294901760
    %v271 = vsub.f32 %v269, %v270
    %v272 = vand.u32 %v271, 4294901760
    %273 = vmatpush1.msra.mxu0 %v272
    %274 = vmatprep.subr.mxu0 0.0
    %v275 = vand.u32 %v138, 4294901760
    %v276 = vsub.f32 %v138, %v275
    %v277 = vand.u32 %v276, 4294901760
    %v278 = vsub.f32 %v276, %v277
    %v279 = vand.u32 %v278, 4294901760
    %280 = vmatpush1.msra.mxu0 %v279
    %281 = vmatprep.subr.mxu0 0.0
    %v282 = vand.u32 %v139, 4294901760
    %v283 = vsub.f32 %v139, %v282
    %v284 = vand.u32 %v283, 4294901760
    %v285 = vsub.f32 %v283, %v284
    %v286 = vand.u32 %v285, 4294901760
    %287 = vmatpush1.msra.mxu0 %v286
    %288 = vmatprep.subr.mxu0 0.0
    %v289 = vand.u32 %v140, 4294901760
    %v290 = vsub.f32 %v140, %v289
    %v291 = vand.u32 %v290, 4294901760
    %v292 = vsub.f32 %v290, %v291
    %v293 = vand.u32 %v292, 4294901760
    %294 = vmatpush1.msra.mxu0 %v293
    %295 = vmatprep.subr.mxu0 0.0
    %v296 = vand.u32 %v141, 4294901760
    %v297 = vsub.f32 %v141, %v296
    %v298 = vand.u32 %v297, 4294901760
    %v299 = vsub.f32 %v297, %v298
    %v300 = vand.u32 %v299, 4294901760
    %301 = vmatpush1.msra.mxu0 %v300
    %302 = vmatprep.subr.mxu0 0.0
    %v303 = vand.u32 %v142, 4294901760
    %v304 = vsub.f32 %v142, %v303
    %v305 = vand.u32 %v304, 4294901760
    %v306 = vsub.f32 %v304, %v305
    %v307 = vand.u32 %v306, 4294901760
    %308 = vmatpush1.msra.mxu0 %v307
    %309 = vmatprep.subr.mxu0 0.0
    %v310 = vand.u32 %v143, 4294901760
    %v311 = vsub.f32 %v143, %v310
    %v312 = vand.u32 %v311, 4294901760
    %v313 = vsub.f32 %v311, %v312
    %v314 = vand.u32 %v313, 4294901760
    %315 = vmatpush1.msra.mxu0 %v314
    %316 = vmatprep.subr.mxu0 0.0
    %v317 = vand.u32 %v144, 4294901760
    %v318 = vsub.f32 %v144, %v317
    %v319 = vand.u32 %v318, 4294901760
    %v320 = vsub.f32 %v318, %v319
    %v321 = vand.u32 %v320, 4294901760
    %322 = vmatpush1.msra.mxu0 %v321
    %323 = vmatprep.subr.mxu0 0.0
    %v324 = vand.u32 %v145, 4294901760
    %v325 = vsub.f32 %v145, %v324
    %v326 = vand.u32 %v325, 4294901760
    %v327 = vsub.f32 %v325, %v326
    %v328 = vand.u32 %v327, 4294901760
    %329 = vmatpush1.msra.mxu0 %v328
    %330 = vmatprep.subr.mxu0 0.0
    %v331 = vand.u32 %v146, 4294901760
    %v332 = vsub.f32 %v146, %v331
    %v333 = vand.u32 %v332, 4294901760
    %v334 = vsub.f32 %v332, %v333
    %v335 = vand.u32 %v334, 4294901760
    %336 = vmatpush1.msra.mxu0 %v335
    %337 = vmatprep.subr.mxu0 0.0
    %v338 = vand.u32 %v147, 4294901760
    %v339 = vsub.f32 %v147, %v338
    %v340 = vand.u32 %v339, 4294901760
    %v341 = vsub.f32 %v339, %v340
    %v342 = vand.u32 %v341, 4294901760
    %343 = vmatpush1.msra.mxu0 %v342
    %344 = vmatprep.subr.mxu0 0.0
    %v345 = vand.u32 %v148, 4294901760
    %v346 = vsub.f32 %v148, %v345
    %v347 = vand.u32 %v346, 4294901760
    %v348 = vsub.f32 %v346, %v347
    %v349 = vand.u32 %v348, 4294901760
    %350 = vmatpush1.msra.mxu0 %v349
    %351 = vmatprep.subr.mxu0 0.0
    %v352 = vand.u32 %v149, 4294901760
    %v353 = vsub.f32 %v149, %v352
    %v354 = vand.u32 %v353, 4294901760
    %v355 = vsub.f32 %v353, %v354
    %v356 = vand.u32 %v355, 4294901760
    %357 = vmatpush1.msra.mxu0 %v356
    %358 = vmatprep.subr.mxu0 0.0
    %v359 = vand.u32 %v150, 4294901760
    %v360 = vsub.f32 %v150, %v359
    %v361 = vand.u32 %v360, 4294901760
    %v362 = vsub.f32 %v360, %v361
    %v363 = vand.u32 %v362, 4294901760
    %364 = vmatpush1.msra.mxu0 %v363
    %365 = vmatprep.subr.mxu0 0.0
    %v366 = vand.u32 %v151, 4294901760
    %v367 = vsub.f32 %v151, %v366
    %v368 = vand.u32 %v367, 4294901760
    %v369 = vsub.f32 %v367, %v368
    %v370 = vand.u32 %v369, 4294901760
    %371 = vmatpush1.msra.mxu0 %v370
    %372 = vmatprep.subr.mxu0 0.0
    %373 = vmatpush1.msra.mxu0 0.0
    %374 = vmatprep.subr.mxu0 0.0
    %375 = vmatpush1.msra.mxu0 0.0
    %376 = vmatprep.subr.mxu0 0.0
    %377 = vmatpush1.msra.mxu0 0.0
    %378 = vmatprep.subr.mxu0 0.0
    %379 = vmatpush1.msra.mxu0 0.0
    %380 = vmatprep.subr.mxu0 0.0
    %381 = vmatpush1.msra.mxu0 0.0
    %382 = vmatprep.subr.mxu0 0.0
    %383 = vmatpush1.msra.mxu0 0.0
    %384 = vmatprep.subr.mxu0 0.0
    %385 = vmatpush1.msra.mxu0 0.0
    %386 = vmatprep.subr.mxu0 0.0
    %387 = vmatpush1.msra.mxu0 0.0
    %388 = vmatprep.subr.mxu0 0.0
    %389 = vmatpush1.msra.mxu0 0.0
    %390 = vmatprep.subr.mxu0 0.0
    %391 = vmatpush1.msra.mxu0 0.0
    %392 = vmatprep.subr.mxu0 0.0
    %393 = vmatpush1.msra.mxu0 0.0
    %394 = vmatprep.subr.mxu0 0.0
    %395 = vmatpush1.msra.mxu0 0.0
    %396 = vmatprep.subr.mxu0 0.0
    %397 = vmatpush1.msra.mxu0 0.0
    %398 = vmatprep.subr.mxu0 0.0
    %399 = vmatpush1.msra.mxu0 0.0
    %400 = vmatprep.subr.mxu0 0.0
    %401 = vmatpush1.msra.mxu0 0.0
    %402 = vmatprep.subr.mxu0 0.0
    %403 = vmatpush1.msra.mxu0 0.0
    %404 = vmatprep.mubr.f32.mxu0 0.0
    %v405 = vand.u32 %v47, 4294901760
    %406 = vmatmul.mubr.f32.gmra.mrb[0].mxu0 %v405
    %v407 = vpop.f32.mrb[0].mxu0
    %v408 = vadd.f32 %v247, %v407
    %v409 = vpop.f32.mrb[0].mxu0
    %410 = vmatprep.mubr.f32.mxu0 0.0
    %v411 = vand.u32 %v48, 4294901760
    %412 = vmatmul.mubr.f32.gmra.mrb[0].mxu0 %v411
    %v413 = vpop.f32.mrb[0].mxu0
    %v414 = vadd.f32 %v257, %v413
    %v415 = vpop.f32.mrb[0].mxu0
    %416 = vdwg.mxu0
    %417 = vmatprep.subr.mxu0 0.0
    %v418 = vand.u32 %v136, 4294901760
    %v419 = vsub.f32 %v136, %v418
    %420 = vmatpush1.msra.mxu0 %v419
    %421 = vmatprep.subr.mxu0 0.0
    %v422 = vand.u32 %v137, 4294901760
    %v423 = vsub.f32 %v137, %v422
    %424 = vmatpush1.msra.mxu0 %v423
    %425 = vmatprep.subr.mxu0 0.0
    %v426 = vand.u32 %v138, 4294901760
    %v427 = vsub.f32 %v138, %v426
    %428 = vmatpush1.msra.mxu0 %v427
    %429 = vmatprep.subr.mxu0 0.0
    %v430 = vand.u32 %v139, 4294901760
    %v431 = vsub.f32 %v139, %v430
    %432 = vmatpush1.msra.mxu0 %v431
    %433 = vmatprep.subr.mxu0 0.0
    %v434 = vand.u32 %v140, 4294901760
    %v435 = vsub.f32 %v140, %v434
    %436 = vmatpush1.msra.mxu0 %v435
    %437 = vmatprep.subr.mxu0 0.0
    %v438 = vand.u32 %v141, 4294901760
    %v439 = vsub.f32 %v141, %v438
    %440 = vmatpush1.msra.mxu0 %v439
    %441 = vmatprep.subr.mxu0 0.0
    %v442 = vand.u32 %v142, 4294901760
    %v443 = vsub.f32 %v142, %v442
    %444 = vmatpush1.msra.mxu0 %v443
    %445 = vmatprep.subr.mxu0 0.0
    %v446 = vand.u32 %v143, 4294901760
    %v447 = vsub.f32 %v143, %v446
    %448 = vmatpush1.msra.mxu0 %v447
    %449 = vmatprep.subr.mxu0 0.0
    %v450 = vand.u32 %v144, 4294901760
    %v451 = vsub.f32 %v144, %v450
    %452 = vmatpush1.msra.mxu0 %v451
    %453 = vmatprep.subr.mxu0 0.0
    %v454 = vand.u32 %v145, 4294901760
    %v455 = vsub.f32 %v145, %v454
    %456 = vmatpush1.msra.mxu0 %v455
    %457 = vmatprep.subr.mxu0 0.0
    %v458 = vand.u32 %v146, 4294901760
    %v459 = vsub.f32 %v146, %v458
    %460 = vmatpush1.msra.mxu0 %v459
    %461 = vmatprep.subr.mxu0 0.0
    %v462 = vand.u32 %v147, 4294901760
    %v463 = vsub.f32 %v147, %v462
    %464 = vmatpush1.msra.mxu0 %v463
    %465 = vmatprep.subr.mxu0 0.0
    %v466 = vand.u32 %v148, 4294901760
    %v467 = vsub.f32 %v148, %v466
    %468 = vmatpush1.msra.mxu0 %v467
    %469 = vmatprep.subr.mxu0 0.0
    %v470 = vand.u32 %v149, 4294901760
    %v471 = vsub.f32 %v149, %v470
    %472 = vmatpush1.msra.mxu0 %v471
    %473 = vmatprep.subr.mxu0 0.0
    %v474 = vand.u32 %v150, 4294901760
    %v475 = vsub.f32 %v150, %v474
    %476 = vmatpush1.msra.mxu0 %v475
    %477 = vmatprep.subr.mxu0 0.0
    %v478 = vand.u32 %v151, 4294901760
    %v479 = vsub.f32 %v151, %v478
    %480 = vmatpush1.msra.mxu0 %v479
    %481 = vmatprep.subr.mxu0 0.0
    %482 = vmatpush1.msra.mxu0 0.0
    %483 = vmatprep.subr.mxu0 0.0
    %484 = vmatpush1.msra.mxu0 0.0
    %485 = vmatprep.subr.mxu0 0.0
    %486 = vmatpush1.msra.mxu0 0.0
    %487 = vmatprep.subr.mxu0 0.0
    %488 = vmatpush1.msra.mxu0 0.0
    %489 = vmatprep.subr.mxu0 0.0
    %490 = vmatpush1.msra.mxu0 0.0
    %491 = vmatprep.subr.mxu0 0.0
    %492 = vmatpush1.msra.mxu0 0.0
    %493 = vmatprep.subr.mxu0 0.0
    %494 = vmatpush1.msra.mxu0 0.0
    %495 = vmatprep.subr.mxu0 0.0
    %496 = vmatpush1.msra.mxu0 0.0
    %497 = vmatprep.subr.mxu0 0.0
    %498 = vmatpush1.msra.mxu0 0.0
    %499 = vmatprep.subr.mxu0 0.0
    %500 = vmatpush1.msra.mxu0 0.0
    %501 = vmatprep.subr.mxu0 0.0
    %502 = vmatpush1.msra.mxu0 0.0
    %503 = vmatprep.subr.mxu0 0.0
    %504 = vmatpush1.msra.mxu0 0.0
    %505 = vmatprep.subr.mxu0 0.0
    %506 = vmatpush1.msra.mxu0 0.0
    %507 = vmatprep.subr.mxu0 0.0
    %508 = vmatpush1.msra.mxu0 0.0
    %509 = vmatprep.subr.mxu0 0.0
    %510 = vmatpush1.msra.mxu0 0.0
    %511 = vmatprep.subr.mxu0 0.0
    %512 = vmatpush1.msra.mxu0 0.0
    %513 = vmatprep.mubr.f32.mxu0 0.0
    %v514 = vand.u32 %v47, 4294901760
    %v515 = vsub.f32 %v47, %v514
    %516 = vmatmul.mubr.f32.gmra.mrb[0].mxu0 %v515
    %v517 = vpop.f32.mrb[0].mxu0
    %v518 = vadd.f32 %v408, %v517
    %v519 = vpop.f32.mrb[0].mxu0
    %520 = vmatprep.mubr.f32.mxu0 0.0
    %v521 = vand.u32 %v48, 4294901760
    %v522 = vsub.f32 %v48, %v521
    %523 = vmatmul.mubr.f32.gmra.mrb[0].mxu0 %v522
    %v524 = vpop.f32.mrb[0].mxu0
    %v525 = vadd.f32 %v414, %v524
    %v526 = vpop.f32.mrb[0].mxu0
    %527 = vdwg.mxu0
    %528 = vmatprep.subr.mxu0 0.0
    %v529 = vand.u32 %v136, 4294901760
    %530 = vmatpush1.msra.mxu0 %v529
    %531 = vmatprep.subr.mxu0 0.0
    %v532 = vand.u32 %v137, 4294901760
    %533 = vmatpush1.msra.mxu0 %v532
    %534 = vmatprep.subr.mxu0 0.0
    %v535 = vand.u32 %v138, 4294901760
    %536 = vmatpush1.msra.mxu0 %v535
    %537 = vmatprep.subr.mxu0 0.0
    %v538 = vand.u32 %v139, 4294901760
    %539 = vmatpush1.msra.mxu0 %v538
    %540 = vmatprep.subr.mxu0 0.0
    %v541 = vand.u32 %v140, 4294901760
    %542 = vmatpush1.msra.mxu0 %v541
    %543 = vmatprep.subr.mxu0 0.0
    %v544 = vand.u32 %v141, 4294901760
    %545 = vmatpush1.msra.mxu0 %v544
    %546 = vmatprep.subr.mxu0 0.0
    %v547 = vand.u32 %v142, 4294901760
    %548 = vmatpush1.msra.mxu0 %v547
    %549 = vmatprep.subr.mxu0 0.0
    %v550 = vand.u32 %v143, 4294901760
    %551 = vmatpush1.msra.mxu0 %v550
    %552 = vmatprep.subr.mxu0 0.0
    %v553 = vand.u32 %v144, 4294901760
    %554 = vmatpush1.msra.mxu0 %v553
    %555 = vmatprep.subr.mxu0 0.0
    %v556 = vand.u32 %v145, 4294901760
    %557 = vmatpush1.msra.mxu0 %v556
    %558 = vmatprep.subr.mxu0 0.0
    %v559 = vand.u32 %v146, 4294901760
    %560 = vmatpush1.msra.mxu0 %v559
    %561 = vmatprep.subr.mxu0 0.0
    %v562 = vand.u32 %v147, 4294901760
    %563 = vmatpush1.msra.mxu0 %v562
    %564 = vmatprep.subr.mxu0 0.0
    %v565 = vand.u32 %v148, 4294901760
    %566 = vmatpush1.msra.mxu0 %v565
    %567 = vmatprep.subr.mxu0 0.0
    %v568 = vand.u32 %v149, 4294901760
    %569 = vmatpush1.msra.mxu0 %v568
    %570 = vmatprep.subr.mxu0 0.0
    %v571 = vand.u32 %v150, 4294901760
    %572 = vmatpush1.msra.mxu0 %v571
    %573 = vmatprep.subr.mxu0 0.0
    %v574 = vand.u32 %v151, 4294901760
    %575 = vmatpush1.msra.mxu0 %v574
    %576 = vmatprep.subr.mxu0 0.0
    %577 = vmatpush1.msra.mxu0 0.0
    %578 = vmatprep.subr.mxu0 0.0
    %579 = vmatpush1.msra.mxu0 0.0
    %580 = vmatprep.subr.mxu0 0.0
    %581 = vmatpush1.msra.mxu0 0.0
    %582 = vmatprep.subr.mxu0 0.0
    %583 = vmatpush1.msra.mxu0 0.0
    %584 = vmatprep.subr.mxu0 0.0
    %585 = vmatpush1.msra.mxu0 0.0
    %586 = vmatprep.subr.mxu0 0.0
    %587 = vmatpush1.msra.mxu0 0.0
    %588 = vmatprep.subr.mxu0 0.0
    %589 = vmatpush1.msra.mxu0 0.0
    %590 = vmatprep.subr.mxu0 0.0
    %591 = vmatpush1.msra.mxu0 0.0
    %592 = vmatprep.subr.mxu0 0.0
    %593 = vmatpush1.msra.mxu0 0.0
    %594 = vmatprep.subr.mxu0 0.0
    %595 = vmatpush1.msra.mxu0 0.0
    %596 = vmatprep.subr.mxu0 0.0
    %597 = vmatpush1.msra.mxu0 0.0
    %598 = vmatprep.subr.mxu0 0.0
    %599 = vmatpush1.msra.mxu0 0.0
    %600 = vmatprep.subr.mxu0 0.0
    %601 = vmatpush1.msra.mxu0 0.0
    %602 = vmatprep.subr.mxu0 0.0
    %603 = vmatpush1.msra.mxu0 0.0
    %604 = vmatprep.subr.mxu0 0.0
    %605 = vmatpush1.msra.mxu0 0.0
    %606 = vmatprep.subr.mxu0 0.0
    %607 = vmatpush1.msra.mxu0 0.0
    %608 = vmatprep.mubr.f32.mxu0 0.0
    %v609 = vand.u32 %v47, 4294901760
    %v610 = vsub.f32 %v47, %v609
    %v611 = vand.u32 %v610, 4294901760
    %612 = vmatmul.mubr.f32.gmra.mrb[0].mxu0 %v611
    %v613 = vpop.f32.mrb[0].mxu0
    %v614 = vadd.f32 %v518, %v613
    %v615 = vpop.f32.mrb[0].mxu0
    %616 = vmatprep.mubr.f32.mxu0 0.0
    %v617 = vand.u32 %v48, 4294901760
    %v618 = vsub.f32 %v48, %v617
    %v619 = vand.u32 %v618, 4294901760
    %620 = vmatmul.mubr.f32.gmra.mrb[0].mxu0 %v619
    %v621 = vpop.f32.mrb[0].mxu0
    %v622 = vadd.f32 %v525, %v621
    %v623 = vpop.f32.mrb[0].mxu0
    %624 = vdwg.mxu0
    %625 = vmatprep.subr.mxu0 0.0
    %v626 = vand.u32 %v136, 4294901760
    %v627 = vsub.f32 %v136, %v626
    %v628 = vand.u32 %v627, 4294901760
    %629 = vmatpush1.msra.mxu0 %v628
    %630 = vmatprep.subr.mxu0 0.0
    %v631 = vand.u32 %v137, 4294901760
    %v632 = vsub.f32 %v137, %v631
    %v633 = vand.u32 %v632, 4294901760
    %634 = vmatpush1.msra.mxu0 %v633
    %635 = vmatprep.subr.mxu0 0.0
    %v636 = vand.u32 %v138, 4294901760
    %v637 = vsub.f32 %v138, %v636
    %v638 = vand.u32 %v637, 4294901760
    %639 = vmatpush1.msra.mxu0 %v638
    %640 = vmatprep.subr.mxu0 0.0
    %v641 = vand.u32 %v139, 4294901760
    %v642 = vsub.f32 %v139, %v641
    %v643 = vand.u32 %v642, 4294901760
    %644 = vmatpush1.msra.mxu0 %v643
    %645 = vmatprep.subr.mxu0 0.0
    %v646 = vand.u32 %v140, 4294901760
    %v647 = vsub.f32 %v140, %v646
    %v648 = vand.u32 %v647, 4294901760
    %649 = vmatpush1.msra.mxu0 %v648
    %650 = vmatprep.subr.mxu0 0.0
    %v651 = vand.u32 %v141, 4294901760
    %v652 = vsub.f32 %v141, %v651
    %v653 = vand.u32 %v652, 4294901760
    %654 = vmatpush1.msra.mxu0 %v653
    %655 = vmatprep.subr.mxu0 0.0
    %v656 = vand.u32 %v142, 4294901760
    %v657 = vsub.f32 %v142, %v656
    %v658 = vand.u32 %v657, 4294901760
    %659 = vmatpush1.msra.mxu0 %v658
    %660 = vmatprep.subr.mxu0 0.0
    %v661 = vand.u32 %v143, 4294901760
    %v662 = vsub.f32 %v143, %v661
    %v663 = vand.u32 %v662, 4294901760
    %664 = vmatpush1.msra.mxu0 %v663
    %665 = vmatprep.subr.mxu0 0.0
    %v666 = vand.u32 %v144, 4294901760
    %v667 = vsub.f32 %v144, %v666
    %v668 = vand.u32 %v667, 4294901760
    %669 = vmatpush1.msra.mxu0 %v668
    %670 = vmatprep.subr.mxu0 0.0
    %v671 = vand.u32 %v145, 4294901760
    %v672 = vsub.f32 %v145, %v671
    %v673 = vand.u32 %v672, 4294901760
    %674 = vmatpush1.msra.mxu0 %v673
    %675 = vmatprep.subr.mxu0 0.0
    %v676 = vand.u32 %v146, 4294901760
    %v677 = vsub.f32 %v146, %v676
    %v678 = vand.u32 %v677, 4294901760
    %679 = vmatpush1.msra.mxu0 %v678
    %680 = vmatprep.subr.mxu0 0.0
    %v681 = vand.u32 %v147, 4294901760
    %v682 = vsub.f32 %v147, %v681
    %v683 = vand.u32 %v682, 4294901760
    %684 = vmatpush1.msra.mxu0 %v683
    %685 = vmatprep.subr.mxu0 0.0
    %v686 = vand.u32 %v148, 4294901760
    %v687 = vsub.f32 %v148, %v686
    %v688 = vand.u32 %v687, 4294901760
    %689 = vmatpush1.msra.mxu0 %v688
    %690 = vmatprep.subr.mxu0 0.0
    %v691 = vand.u32 %v149, 4294901760
    %v692 = vsub.f32 %v149, %v691
    %v693 = vand.u32 %v692, 4294901760
    %694 = vmatpush1.msra.mxu0 %v693
    %695 = vmatprep.subr.mxu0 0.0
    %v696 = vand.u32 %v150, 4294901760
    %v697 = vsub.f32 %v150, %v696
    %v698 = vand.u32 %v697, 4294901760
    %699 = vmatpush1.msra.mxu0 %v698
    %700 = vmatprep.subr.mxu0 0.0
    %v701 = vand.u32 %v151, 4294901760
    %v702 = vsub.f32 %v151, %v701
    %v703 = vand.u32 %v702, 4294901760
    %704 = vmatpush1.msra.mxu0 %v703
    %705 = vmatprep.subr.mxu0 0.0
    %706 = vmatpush1.msra.mxu0 0.0
    %707 = vmatprep.subr.mxu0 0.0
    %708 = vmatpush1.msra.mxu0 0.0
    %709 = vmatprep.subr.mxu0 0.0
    %710 = vmatpush1.msra.mxu0 0.0
    %711 = vmatprep.subr.mxu0 0.0
    %712 = vmatpush1.msra.mxu0 0.0
    %713 = vmatprep.subr.mxu0 0.0
    %714 = vmatpush1.msra.mxu0 0.0
    %715 = vmatprep.subr.mxu0 0.0
    %716 = vmatpush1.msra.mxu0 0.0
    %717 = vmatprep.subr.mxu0 0.0
    %718 = vmatpush1.msra.mxu0 0.0
    %719 = vmatprep.subr.mxu0 0.0
    %720 = vmatpush1.msra.mxu0 0.0
    %721 = vmatprep.subr.mxu0 0.0
    %722 = vmatpush1.msra.mxu0 0.0
    %723 = vmatprep.subr.mxu0 0.0
    %724 = vmatpush1.msra.mxu0 0.0
    %725 = vmatprep.subr.mxu0 0.0
    %726 = vmatpush1.msra.mxu0 0.0
    %727 = vmatprep.subr.mxu0 0.0
    %728 = vmatpush1.msra.mxu0 0.0
    %729 = vmatprep.subr.mxu0 0.0
    %730 = vmatpush1.msra.mxu0 0.0
    %731 = vmatprep.subr.mxu0 0.0
    %732 = vmatpush1.msra.mxu0 0.0
    %733 = vmatprep.subr.mxu0 0.0
    %734 = vmatpush1.msra.mxu0 0.0
    %735 = vmatprep.subr.mxu0 0.0
    %736 = vmatpush1.msra.mxu0 0.0
    %737 = vmatprep.mubr.f32.mxu0 0.0
    %v738 = vand.u32 %v47, 4294901760
    %739 = vmatmul.mubr.f32.gmra.mrb[0].mxu0 %v738
    %v740 = vpop.f32.mrb[0].mxu0
    %v741 = vadd.f32 %v614, %v740
    %v742 = vpop.f32.mrb[0].mxu0
    %743 = vmatprep.mubr.f32.mxu0 0.0
    %v744 = vand.u32 %v48, 4294901760
    %745 = vmatmul.mubr.f32.gmra.mrb[0].mxu0 %v744
    %v746 = vpop.f32.mrb[0].mxu0
    %v747 = vadd.f32 %v622, %v746
    %v748 = vpop.f32.mrb[0].mxu0
    %749 = vdwg.mxu0
    %750 = vmatprep.subr.mxu0 0.0
    %v751 = vand.u32 %v136, 4294901760
    %752 = vmatpush1.msra.mxu0 %v751
    %753 = vmatprep.subr.mxu0 0.0
    %v754 = vand.u32 %v137, 4294901760
    %755 = vmatpush1.msra.mxu0 %v754
    %756 = vmatprep.subr.mxu0 0.0
    %v757 = vand.u32 %v138, 4294901760
    %758 = vmatpush1.msra.mxu0 %v757
    %759 = vmatprep.subr.mxu0 0.0
    %v760 = vand.u32 %v139, 4294901760
    %761 = vmatpush1.msra.mxu0 %v760
    %762 = vmatprep.subr.mxu0 0.0
    %v763 = vand.u32 %v140, 4294901760
    %764 = vmatpush1.msra.mxu0 %v763
    %765 = vmatprep.subr.mxu0 0.0
    %v766 = vand.u32 %v141, 4294901760
    %767 = vmatpush1.msra.mxu0 %v766
    %768 = vmatprep.subr.mxu0 0.0
    %v769 = vand.u32 %v142, 4294901760
    %770 = vmatpush1.msra.mxu0 %v769
    %771 = vmatprep.subr.mxu0 0.0
    %v772 = vand.u32 %v143, 4294901760
    %773 = vmatpush1.msra.mxu0 %v772
    %774 = vmatprep.subr.mxu0 0.0
    %v775 = vand.u32 %v144, 4294901760
    %776 = vmatpush1.msra.mxu0 %v775
    %777 = vmatprep.subr.mxu0 0.0
    %v778 = vand.u32 %v145, 4294901760
    %779 = vmatpush1.msra.mxu0 %v778
    %780 = vmatprep.subr.mxu0 0.0
    %v781 = vand.u32 %v146, 4294901760
    %782 = vmatpush1.msra.mxu0 %v781
    %783 = vmatprep.subr.mxu0 0.0
    %v784 = vand.u32 %v147, 4294901760
    %785 = vmatpush1.msra.mxu0 %v784
    %786 = vmatprep.subr.mxu0 0.0
    %v787 = vand.u32 %v148, 4294901760
    %788 = vmatpush1.msra.mxu0 %v787
    %789 = vmatprep.subr.mxu0 0.0
    %v790 = vand.u32 %v149, 4294901760
    %791 = vmatpush1.msra.mxu0 %v790
    %792 = vmatprep.subr.mxu0 0.0
    %v793 = vand.u32 %v150, 4294901760
    %794 = vmatpush1.msra.mxu0 %v793
    %795 = vmatprep.subr.mxu0 0.0
    %v796 = vand.u32 %v151, 4294901760
    %797 = vmatpush1.msra.mxu0 %v796
    %798 = vmatprep.subr.mxu0 0.0
    %799 = vmatpush1.msra.mxu0 0.0
    %800 = vmatprep.subr.mxu0 0.0
    %801 = vmatpush1.msra.mxu0 0.0
    %802 = vmatprep.subr.mxu0 0.0
    %803 = vmatpush1.msra.mxu0 0.0
    %804 = vmatprep.subr.mxu0 0.0
    %805 = vmatpush1.msra.mxu0 0.0
    %806 = vmatprep.subr.mxu0 0.0
    %807 = vmatpush1.msra.mxu0 0.0
    %808 = vmatprep.subr.mxu0 0.0
    %809 = vmatpush1.msra.mxu0 0.0
    %810 = vmatprep.subr.mxu0 0.0
    %811 = vmatpush1.msra.mxu0 0.0
    %812 = vmatprep.subr.mxu0 0.0
    %813 = vmatpush1.msra.mxu0 0.0
    %814 = vmatprep.subr.mxu0 0.0
    %815 = vmatpush1.msra.mxu0 0.0
    %816 = vmatprep.subr.mxu0 0.0
    %817 = vmatpush1.msra.mxu0 0.0
    %818 = vmatprep.subr.mxu0 0.0
    %819 = vmatpush1.msra.mxu0 0.0
    %820 = vmatprep.subr.mxu0 0.0
    %821 = vmatpush1.msra.mxu0 0.0
    %822 = vmatprep.subr.mxu0 0.0
    %823 = vmatpush1.msra.mxu0 0.0
    %824 = vmatprep.subr.mxu0 0.0
    %825 = vmatpush1.msra.mxu0 0.0
    %826 = vmatprep.subr.mxu0 0.0
    %827 = vmatpush1.msra.mxu0 0.0
    %828 = vmatprep.subr.mxu0 0.0
    %829 = vmatpush1.msra.mxu0 0.0
    %830 = vmatprep.mubr.f32.mxu0 0.0
    %v831 = vand.u32 %v47, 4294901760
    %832 = vmatmul.mubr.f32.gmra.mrb[0].mxu0 %v831
    %v833 = vpop.f32.mrb[0].mxu0
    %v834 = vadd.f32 %v741, %v833
    %v835 = vpop.f32.mrb[0].mxu0
    %836 = vmatprep.mubr.f32.mxu0 0.0
    %v837 = vand.u32 %v48, 4294901760
    %838 = vmatmul.mubr.f32.gmra.mrb[0].mxu0 %v837
    %v839 = vpop.f32.mrb[0].mxu0
    %v840 = vadd.f32 %v747, %v839
    %v841 = vpop.f32.mrb[0].mxu0
    %842 = vdwg.mxu0
    %v843 = vmul.f32 %v834, 0.03125
    %v844 = vmul.f32 %v840, 0.03125
    %vm845 = vcmask 31744
    %v847 = vsel %vm845, %v843, 0
    %v850 = vsel %vm845, %v844, 0
    %vm852 = vcmask 1043456
    %v854 = vsel %vm852, %v158, 0
    %856 = vmatprep.subr.mxu0 0.0
    %v857 = vand.u32 %v854, 4294901760
    %858 = vmatpush1.msra.mxu0 %v857
    %859 = vmatprep.subr.mxu0 0.0
    %860 = vmatpush1.msra.mxu0 0.0
    %861 = vmatprep.subr.mxu0 0.0
    %862 = vmatpush1.msra.mxu0 0.0
    %863 = vmatprep.subr.mxu0 0.0
    %864 = vmatpush1.msra.mxu0 0.0
    %865 = vmatprep.subr.mxu0 0.0
    %866 = vmatpush1.msra.mxu0 0.0
    %867 = vmatprep.subr.mxu0 0.0
    %868 = vmatpush1.msra.mxu0 0.0
    %869 = vmatprep.subr.mxu0 0.0
    %870 = vmatpush1.msra.mxu0 0.0
    %871 = vmatprep.subr.mxu0 0.0
    %872 = vmatpush1.msra.mxu0 0.0
    %873 = vmatprep.subr.mxu0 0.0
    %874 = vmatpush1.msra.mxu0 0.0
    %875 = vmatprep.subr.mxu0 0.0
    %876 = vmatpush1.msra.mxu0 0.0
    %877 = vmatprep.subr.mxu0 0.0
    %878 = vmatpush1.msra.mxu0 0.0
    %879 = vmatprep.subr.mxu0 0.0
    %880 = vmatpush1.msra.mxu0 0.0
    %881 = vmatprep.subr.mxu0 0.0
    %882 = vmatpush1.msra.mxu0 0.0
    %883 = vmatprep.subr.mxu0 0.0
    %884 = vmatpush1.msra.mxu0 0.0
    %885 = vmatprep.subr.mxu0 0.0
    %886 = vmatpush1.msra.mxu0 0.0
    %887 = vmatprep.subr.mxu0 0.0
    %888 = vmatpush1.msra.mxu0 0.0
    %889 = vmatprep.subr.mxu0 0.0
    %890 = vmatpush1.msra.mxu0 0.0
    %891 = vmatprep.subr.mxu0 0.0
    %892 = vmatpush1.msra.mxu0 0.0
    %893 = vmatprep.subr.mxu0 0.0
    %894 = vmatpush1.msra.mxu0 0.0
    %895 = vmatprep.subr.mxu0 0.0
    %896 = vmatpush1.msra.mxu0 0.0
    %897 = vmatprep.subr.mxu0 0.0
    %898 = vmatpush1.msra.mxu0 0.0
    %899 = vmatprep.subr.mxu0 0.0
    %900 = vmatpush1.msra.mxu0 0.0
    %901 = vmatprep.subr.mxu0 0.0
    %902 = vmatpush1.msra.mxu0 0.0
    %903 = vmatprep.subr.mxu0 0.0
    %904 = vmatpush1.msra.mxu0 0.0
    %905 = vmatprep.subr.mxu0 0.0
    %906 = vmatpush1.msra.mxu0 0.0
    %907 = vmatprep.subr.mxu0 0.0
    %908 = vmatpush1.msra.mxu0 0.0
    %909 = vmatprep.subr.mxu0 0.0
    %910 = vmatpush1.msra.mxu0 0.0
    %911 = vmatprep.subr.mxu0 0.0
    %912 = vmatpush1.msra.mxu0 0.0
    %913 = vmatprep.subr.mxu0 0.0
    %914 = vmatpush1.msra.mxu0 0.0
    %915 = vmatprep.subr.mxu0 0.0
    %916 = vmatpush1.msra.mxu0 0.0
    %917 = vmatprep.subr.mxu0 0.0
    %918 = vmatpush1.msra.mxu0 0.0
    %919 = vmatprep.subr.mxu0 0.0
    %920 = vmatpush1.msra.mxu0 0.0
    %921 = vmatprep.mubr.f32.mxu0 0.0
    %v922 = vand.u32 %v847, 4294901760
    %v923 = vsub.f32 %v847, %v922
    %v924 = vand.u32 %v923, 4294901760
    %v925 = vsub.f32 %v923, %v924
    %v926 = vand.u32 %v925, 4294901760
    %927 = vmatmul.mubr.f32.gmra.mrb[0].mxu0 %v926
    %v928 = vpop.f32.mrb[0].mxu0
    %v929 = vadd.f32 0.0, %v928
    %v930 = vpop.f32.mrb[0].mxu0
    %931 = vmatprep.mubr.f32.mxu0 0.0
    %v932 = vand.u32 %v850, 4294901760
    %v933 = vsub.f32 %v850, %v932
    %v934 = vand.u32 %v933, 4294901760
    %v935 = vsub.f32 %v933, %v934
    %v936 = vand.u32 %v935, 4294901760
    %937 = vmatmul.mubr.f32.gmra.mrb[0].mxu0 %v936
    %v938 = vpop.f32.mrb[0].mxu0
    %v939 = vadd.f32 0.0, %v938
    %v940 = vpop.f32.mrb[0].mxu0
    %941 = vdwg.mxu0
    %942 = vmatprep.subr.mxu0 0.0
    %v943 = vand.u32 %v854, 4294901760
    %v944 = vsub.f32 %v854, %v943
    %v945 = vand.u32 %v944, 4294901760
    %v946 = vsub.f32 %v944, %v945
    %v947 = vand.u32 %v946, 4294901760
    %948 = vmatpush1.msra.mxu0 %v947
    %949 = vmatprep.subr.mxu0 0.0
    %950 = vmatpush1.msra.mxu0 0.0
    %951 = vmatprep.subr.mxu0 0.0
    %952 = vmatpush1.msra.mxu0 0.0
    %953 = vmatprep.subr.mxu0 0.0
    %954 = vmatpush1.msra.mxu0 0.0
    %955 = vmatprep.subr.mxu0 0.0
    %956 = vmatpush1.msra.mxu0 0.0
    %957 = vmatprep.subr.mxu0 0.0
    %958 = vmatpush1.msra.mxu0 0.0
    %959 = vmatprep.subr.mxu0 0.0
    %960 = vmatpush1.msra.mxu0 0.0
    %961 = vmatprep.subr.mxu0 0.0
    %962 = vmatpush1.msra.mxu0 0.0
    %963 = vmatprep.subr.mxu0 0.0
    %964 = vmatpush1.msra.mxu0 0.0
    %965 = vmatprep.subr.mxu0 0.0
    %966 = vmatpush1.msra.mxu0 0.0
    %967 = vmatprep.subr.mxu0 0.0
    %968 = vmatpush1.msra.mxu0 0.0
    %969 = vmatprep.subr.mxu0 0.0
    %970 = vmatpush1.msra.mxu0 0.0
    %971 = vmatprep.subr.mxu0 0.0
    %972 = vmatpush1.msra.mxu0 0.0
    %973 = vmatprep.subr.mxu0 0.0
    %974 = vmatpush1.msra.mxu0 0.0
    %975 = vmatprep.subr.mxu0 0.0
    %976 = vmatpush1.msra.mxu0 0.0
    %977 = vmatprep.subr.mxu0 0.0
    %978 = vmatpush1.msra.mxu0 0.0
    %979 = vmatprep.subr.mxu0 0.0
    %980 = vmatpush1.msra.mxu0 0.0
    %981 = vmatprep.subr.mxu0 0.0
    %982 = vmatpush1.msra.mxu0 0.0
    %983 = vmatprep.subr.mxu0 0.0
    %984 = vmatpush1.msra.mxu0 0.0
    %985 = vmatprep.subr.mxu0 0.0
    %986 = vmatpush1.msra.mxu0 0.0
    %987 = vmatprep.subr.mxu0 0.0
    %988 = vmatpush1.msra.mxu0 0.0
    %989 = vmatprep.subr.mxu0 0.0
    %990 = vmatpush1.msra.mxu0 0.0
    %991 = vmatprep.subr.mxu0 0.0
    %992 = vmatpush1.msra.mxu0 0.0
    %993 = vmatprep.subr.mxu0 0.0
    %994 = vmatpush1.msra.mxu0 0.0
    %995 = vmatprep.subr.mxu0 0.0
    %996 = vmatpush1.msra.mxu0 0.0
    %997 = vmatprep.subr.mxu0 0.0
    %998 = vmatpush1.msra.mxu0 0.0
    %999 = vmatprep.subr.mxu0 0.0
    %1000 = vmatpush1.msra.mxu0 0.0
    %1001 = vmatprep.subr.mxu0 0.0
    %1002 = vmatpush1.msra.mxu0 0.0
    %1003 = vmatprep.subr.mxu0 0.0
    %1004 = vmatpush1.msra.mxu0 0.0
    %1005 = vmatprep.subr.mxu0 0.0
    %1006 = vmatpush1.msra.mxu0 0.0
    %1007 = vmatprep.subr.mxu0 0.0
    %1008 = vmatpush1.msra.mxu0 0.0
    %1009 = vmatprep.subr.mxu0 0.0
    %1010 = vmatpush1.msra.mxu0 0.0
    %1011 = vmatprep.mubr.f32.mxu0 0.0
    %v1012 = vand.u32 %v847, 4294901760
    %1013 = vmatmul.mubr.f32.gmra.mrb[0].mxu0 %v1012
    %v1014 = vpop.f32.mrb[0].mxu0
    %v1015 = vadd.f32 %v929, %v1014
    %v1016 = vpop.f32.mrb[0].mxu0
    %1017 = vmatprep.mubr.f32.mxu0 0.0
    %v1018 = vand.u32 %v850, 4294901760
    %1019 = vmatmul.mubr.f32.gmra.mrb[0].mxu0 %v1018
    %v1020 = vpop.f32.mrb[0].mxu0
    %v1021 = vadd.f32 %v939, %v1020
    %v1022 = vpop.f32.mrb[0].mxu0
    %1023 = vdwg.mxu0
    %1024 = vmatprep.subr.mxu0 0.0
    %v1025 = vand.u32 %v854, 4294901760
    %v1026 = vsub.f32 %v854, %v1025
    %1027 = vmatpush1.msra.mxu0 %v1026
    %1028 = vmatprep.subr.mxu0 0.0
    %1029 = vmatpush1.msra.mxu0 0.0
    %1030 = vmatprep.subr.mxu0 0.0
    %1031 = vmatpush1.msra.mxu0 0.0
    %1032 = vmatprep.subr.mxu0 0.0
    %1033 = vmatpush1.msra.mxu0 0.0
    %1034 = vmatprep.subr.mxu0 0.0
    %1035 = vmatpush1.msra.mxu0 0.0
    %1036 = vmatprep.subr.mxu0 0.0
    %1037 = vmatpush1.msra.mxu0 0.0
    %1038 = vmatprep.subr.mxu0 0.0
    %1039 = vmatpush1.msra.mxu0 0.0
    %1040 = vmatprep.subr.mxu0 0.0
    %1041 = vmatpush1.msra.mxu0 0.0
    %1042 = vmatprep.subr.mxu0 0.0
    %1043 = vmatpush1.msra.mxu0 0.0
    %1044 = vmatprep.subr.mxu0 0.0
    %1045 = vmatpush1.msra.mxu0 0.0
    %1046 = vmatprep.subr.mxu0 0.0
    %1047 = vmatpush1.msra.mxu0 0.0
    %1048 = vmatprep.subr.mxu0 0.0
    %1049 = vmatpush1.msra.mxu0 0.0
    %1050 = vmatprep.subr.mxu0 0.0
    %1051 = vmatpush1.msra.mxu0 0.0
    %1052 = vmatprep.subr.mxu0 0.0
    %1053 = vmatpush1.msra.mxu0 0.0
    %1054 = vmatprep.subr.mxu0 0.0
    %1055 = vmatpush1.msra.mxu0 0.0
    %1056 = vmatprep.subr.mxu0 0.0
    %1057 = vmatpush1.msra.mxu0 0.0
    %1058 = vmatprep.subr.mxu0 0.0
    %1059 = vmatpush1.msra.mxu0 0.0
    %1060 = vmatprep.subr.mxu0 0.0
    %1061 = vmatpush1.msra.mxu0 0.0
    %1062 = vmatprep.subr.mxu0 0.0
    %1063 = vmatpush1.msra.mxu0 0.0
    %1064 = vmatprep.subr.mxu0 0.0
    %1065 = vmatpush1.msra.mxu0 0.0
    %1066 = vmatprep.subr.mxu0 0.0
    %1067 = vmatpush1.msra.mxu0 0.0
    %1068 = vmatprep.subr.mxu0 0.0
    %1069 = vmatpush1.msra.mxu0 0.0
    %1070 = vmatprep.subr.mxu0 0.0
    %1071 = vmatpush1.msra.mxu0 0.0
    %1072 = vmatprep.subr.mxu0 0.0
    %1073 = vmatpush1.msra.mxu0 0.0
    %1074 = vmatprep.subr.mxu0 0.0
    %1075 = vmatpush1.msra.mxu0 0.0
    %1076 = vmatprep.subr.mxu0 0.0
    %1077 = vmatpush1.msra.mxu0 0.0
    %1078 = vmatprep.subr.mxu0 0.0
    %1079 = vmatpush1.msra.mxu0 0.0
    %1080 = vmatprep.subr.mxu0 0.0
    %1081 = vmatpush1.msra.mxu0 0.0
    %1082 = vmatprep.subr.mxu0 0.0
    %1083 = vmatpush1.msra.mxu0 0.0
    %1084 = vmatprep.subr.mxu0 0.0
    %1085 = vmatpush1.msra.mxu0 0.0
    %1086 = vmatprep.subr.mxu0 0.0
    %1087 = vmatpush1.msra.mxu0 0.0
    %1088 = vmatprep.subr.mxu0 0.0
    %1089 = vmatpush1.msra.mxu0 0.0
    %1090 = vmatprep.mubr.f32.mxu0 0.0
    %v1091 = vand.u32 %v847, 4294901760
    %v1092 = vsub.f32 %v847, %v1091
    %1093 = vmatmul.mubr.f32.gmra.mrb[0].mxu0 %v1092
    %v1094 = vpop.f32.mrb[0].mxu0
    %v1095 = vadd.f32 %v1015, %v1094
    %v1096 = vpop.f32.mrb[0].mxu0
    %1097 = vmatprep.mubr.f32.mxu0 0.0
    %v1098 = vand.u32 %v850, 4294901760
    %v1099 = vsub.f32 %v850, %v1098
    %1100 = vmatmul.mubr.f32.gmra.mrb[0].mxu0 %v1099
    %v1101 = vpop.f32.mrb[0].mxu0
    %v1102 = vadd.f32 %v1021, %v1101
    %v1103 = vpop.f32.mrb[0].mxu0
    %1104 = vdwg.mxu0
    %1105 = vmatprep.subr.mxu0 0.0
    %v1106 = vand.u32 %v854, 4294901760
    %1107 = vmatpush1.msra.mxu0 %v1106
    %1108 = vmatprep.subr.mxu0 0.0
    %1109 = vmatpush1.msra.mxu0 0.0
    %1110 = vmatprep.subr.mxu0 0.0
    %1111 = vmatpush1.msra.mxu0 0.0
    %1112 = vmatprep.subr.mxu0 0.0
    %1113 = vmatpush1.msra.mxu0 0.0
    %1114 = vmatprep.subr.mxu0 0.0
    %1115 = vmatpush1.msra.mxu0 0.0
    %1116 = vmatprep.subr.mxu0 0.0
    %1117 = vmatpush1.msra.mxu0 0.0
    %1118 = vmatprep.subr.mxu0 0.0
    %1119 = vmatpush1.msra.mxu0 0.0
    %1120 = vmatprep.subr.mxu0 0.0
    %1121 = vmatpush1.msra.mxu0 0.0
    %1122 = vmatprep.subr.mxu0 0.0
    %1123 = vmatpush1.msra.mxu0 0.0
    %1124 = vmatprep.subr.mxu0 0.0
    %1125 = vmatpush1.msra.mxu0 0.0
    %1126 = vmatprep.subr.mxu0 0.0
    %1127 = vmatpush1.msra.mxu0 0.0
    %1128 = vmatprep.subr.mxu0 0.0
    %1129 = vmatpush1.msra.mxu0 0.0
    %1130 = vmatprep.subr.mxu0 0.0
    %1131 = vmatpush1.msra.mxu0 0.0
    %1132 = vmatprep.subr.mxu0 0.0
    %1133 = vmatpush1.msra.mxu0 0.0
    %1134 = vmatprep.subr.mxu0 0.0
    %1135 = vmatpush1.msra.mxu0 0.0
    %1136 = vmatprep.subr.mxu0 0.0
    %1137 = vmatpush1.msra.mxu0 0.0
    %1138 = vmatprep.subr.mxu0 0.0
    %1139 = vmatpush1.msra.mxu0 0.0
    %1140 = vmatprep.subr.mxu0 0.0
    %1141 = vmatpush1.msra.mxu0 0.0
    %1142 = vmatprep.subr.mxu0 0.0
    %1143 = vmatpush1.msra.mxu0 0.0
    %1144 = vmatprep.subr.mxu0 0.0
    %1145 = vmatpush1.msra.mxu0 0.0
    %1146 = vmatprep.subr.mxu0 0.0
    %1147 = vmatpush1.msra.mxu0 0.0
    %1148 = vmatprep.subr.mxu0 0.0
    %1149 = vmatpush1.msra.mxu0 0.0
    %1150 = vmatprep.subr.mxu0 0.0
    %1151 = vmatpush1.msra.mxu0 0.0
    %1152 = vmatprep.subr.mxu0 0.0
    %1153 = vmatpush1.msra.mxu0 0.0
    %1154 = vmatprep.subr.mxu0 0.0
    %1155 = vmatpush1.msra.mxu0 0.0
    %1156 = vmatprep.subr.mxu0 0.0
    %1157 = vmatpush1.msra.mxu0 0.0
    %1158 = vmatprep.subr.mxu0 0.0
    %1159 = vmatpush1.msra.mxu0 0.0
    %1160 = vmatprep.subr.mxu0 0.0
    %1161 = vmatpush1.msra.mxu0 0.0
    %1162 = vmatprep.subr.mxu0 0.0
    %1163 = vmatpush1.msra.mxu0 0.0
    %1164 = vmatprep.subr.mxu0 0.0
    %1165 = vmatpush1.msra.mxu0 0.0
    %1166 = vmatprep.subr.mxu0 0.0
    %1167 = vmatpush1.msra.mxu0 0.0
    %1168 = vmatprep.subr.mxu0 0.0
    %1169 = vmatpush1.msra.mxu0 0.0
    %1170 = vmatprep.mubr.f32.mxu0 0.0
    %v1171 = vand.u32 %v847, 4294901760
    %v1172 = vsub.f32 %v847, %v1171
    %v1173 = vand.u32 %v1172, 4294901760
    %1174 = vmatmul.mubr.f32.gmra.mrb[0].mxu0 %v1173
    %v1175 = vpop.f32.mrb[0].mxu0
    %v1176 = vadd.f32 %v1095, %v1175
    %v1177 = vpop.f32.mrb[0].mxu0
    %1178 = vmatprep.mubr.f32.mxu0 0.0
    %v1179 = vand.u32 %v850, 4294901760
    %v1180 = vsub.f32 %v850, %v1179
    %v1181 = vand.u32 %v1180, 4294901760
    %1182 = vmatmul.mubr.f32.gmra.mrb[0].mxu0 %v1181
    %v1183 = vpop.f32.mrb[0].mxu0
    %v1184 = vadd.f32 %v1102, %v1183
    %v1185 = vpop.f32.mrb[0].mxu0
    %1186 = vdwg.mxu0
    %1187 = vmatprep.subr.mxu0 0.0
    %v1188 = vand.u32 %v854, 4294901760
    %v1189 = vsub.f32 %v854, %v1188
    %v1190 = vand.u32 %v1189, 4294901760
    %1191 = vmatpush1.msra.mxu0 %v1190
    %1192 = vmatprep.subr.mxu0 0.0
    %1193 = vmatpush1.msra.mxu0 0.0
    %1194 = vmatprep.subr.mxu0 0.0
    %1195 = vmatpush1.msra.mxu0 0.0
    %1196 = vmatprep.subr.mxu0 0.0
    %1197 = vmatpush1.msra.mxu0 0.0
    %1198 = vmatprep.subr.mxu0 0.0
    %1199 = vmatpush1.msra.mxu0 0.0
    %1200 = vmatprep.subr.mxu0 0.0
    %1201 = vmatpush1.msra.mxu0 0.0
    %1202 = vmatprep.subr.mxu0 0.0
    %1203 = vmatpush1.msra.mxu0 0.0
    %1204 = vmatprep.subr.mxu0 0.0
    %1205 = vmatpush1.msra.mxu0 0.0
    %1206 = vmatprep.subr.mxu0 0.0
    %1207 = vmatpush1.msra.mxu0 0.0
    %1208 = vmatprep.subr.mxu0 0.0
    %1209 = vmatpush1.msra.mxu0 0.0
    %1210 = vmatprep.subr.mxu0 0.0
    %1211 = vmatpush1.msra.mxu0 0.0
    %1212 = vmatprep.subr.mxu0 0.0
    %1213 = vmatpush1.msra.mxu0 0.0
    %1214 = vmatprep.subr.mxu0 0.0
    %1215 = vmatpush1.msra.mxu0 0.0
    %1216 = vmatprep.subr.mxu0 0.0
    %1217 = vmatpush1.msra.mxu0 0.0
    %1218 = vmatprep.subr.mxu0 0.0
    %1219 = vmatpush1.msra.mxu0 0.0
    %1220 = vmatprep.subr.mxu0 0.0
    %1221 = vmatpush1.msra.mxu0 0.0
    %1222 = vmatprep.subr.mxu0 0.0
    %1223 = vmatpush1.msra.mxu0 0.0
    %1224 = vmatprep.subr.mxu0 0.0
    %1225 = vmatpush1.msra.mxu0 0.0
    %1226 = vmatprep.subr.mxu0 0.0
    %1227 = vmatpush1.msra.mxu0 0.0
    %1228 = vmatprep.subr.mxu0 0.0
    %1229 = vmatpush1.msra.mxu0 0.0
    %1230 = vmatprep.subr.mxu0 0.0
    %1231 = vmatpush1.msra.mxu0 0.0
    %1232 = vmatprep.subr.mxu0 0.0
    %1233 = vmatpush1.msra.mxu0 0.0
    %1234 = vmatprep.subr.mxu0 0.0
    %1235 = vmatpush1.msra.mxu0 0.0
    %1236 = vmatprep.subr.mxu0 0.0
    %1237 = vmatpush1.msra.mxu0 0.0
    %1238 = vmatprep.subr.mxu0 0.0
    %1239 = vmatpush1.msra.mxu0 0.0
    %1240 = vmatprep.subr.mxu0 0.0
    %1241 = vmatpush1.msra.mxu0 0.0
    %1242 = vmatprep.subr.mxu0 0.0
    %1243 = vmatpush1.msra.mxu0 0.0
    %1244 = vmatprep.subr.mxu0 0.0
    %1245 = vmatpush1.msra.mxu0 0.0
    %1246 = vmatprep.subr.mxu0 0.0
    %1247 = vmatpush1.msra.mxu0 0.0
    %1248 = vmatprep.subr.mxu0 0.0
    %1249 = vmatpush1.msra.mxu0 0.0
    %1250 = vmatprep.subr.mxu0 0.0
    %1251 = vmatpush1.msra.mxu0 0.0
    %1252 = vmatprep.subr.mxu0 0.0
    %1253 = vmatpush1.msra.mxu0 0.0
    %1254 = vmatprep.mubr.f32.mxu0 0.0
    %v1255 = vand.u32 %v847, 4294901760
    %1256 = vmatmul.mubr.f32.gmra.mrb[0].mxu0 %v1255
    %v1257 = vpop.f32.mrb[0].mxu0
    %v1258 = vadd.f32 %v1176, %v1257
    %v1259 = vpop.f32.mrb[0].mxu0
    %1260 = vmatprep.mubr.f32.mxu0 0.0
    %v1261 = vand.u32 %v850, 4294901760
    %1262 = vmatmul.mubr.f32.gmra.mrb[0].mxu0 %v1261
    %v1263 = vpop.f32.mrb[0].mxu0
    %v1264 = vadd.f32 %v1184, %v1263
    %v1265 = vpop.f32.mrb[0].mxu0
    %1266 = vdwg.mxu0
    %1267 = vmatprep.subr.mxu0 0.0
    %v1268 = vand.u32 %v854, 4294901760
    %1269 = vmatpush1.msra.mxu0 %v1268
    %1270 = vmatprep.subr.mxu0 0.0
    %1271 = vmatpush1.msra.mxu0 0.0
    %1272 = vmatprep.subr.mxu0 0.0
    %1273 = vmatpush1.msra.mxu0 0.0
    %1274 = vmatprep.subr.mxu0 0.0
    %1275 = vmatpush1.msra.mxu0 0.0
    %1276 = vmatprep.subr.mxu0 0.0
    %1277 = vmatpush1.msra.mxu0 0.0
    %1278 = vmatprep.subr.mxu0 0.0
    %1279 = vmatpush1.msra.mxu0 0.0
    %1280 = vmatprep.subr.mxu0 0.0
    %1281 = vmatpush1.msra.mxu0 0.0
    %1282 = vmatprep.subr.mxu0 0.0
    %1283 = vmatpush1.msra.mxu0 0.0
    %1284 = vmatprep.subr.mxu0 0.0
    %1285 = vmatpush1.msra.mxu0 0.0
    %1286 = vmatprep.subr.mxu0 0.0
    %1287 = vmatpush1.msra.mxu0 0.0
    %1288 = vmatprep.subr.mxu0 0.0
    %1289 = vmatpush1.msra.mxu0 0.0
    %1290 = vmatprep.subr.mxu0 0.0
    %1291 = vmatpush1.msra.mxu0 0.0
    %1292 = vmatprep.subr.mxu0 0.0
    %1293 = vmatpush1.msra.mxu0 0.0
    %1294 = vmatprep.subr.mxu0 0.0
    %1295 = vmatpush1.msra.mxu0 0.0
    %1296 = vmatprep.subr.mxu0 0.0
    %1297 = vmatpush1.msra.mxu0 0.0
    %1298 = vmatprep.subr.mxu0 0.0
    %1299 = vmatpush1.msra.mxu0 0.0
    %1300 = vmatprep.subr.mxu0 0.0
    %1301 = vmatpush1.msra.mxu0 0.0
    %1302 = vmatprep.subr.mxu0 0.0
    %1303 = vmatpush1.msra.mxu0 0.0
    %1304 = vmatprep.subr.mxu0 0.0
    %1305 = vmatpush1.msra.mxu0 0.0
    %1306 = vmatprep.subr.mxu0 0.0
    %1307 = vmatpush1.msra.mxu0 0.0
    %1308 = vmatprep.subr.mxu0 0.0
    %1309 = vmatpush1.msra.mxu0 0.0
    %1310 = vmatprep.subr.mxu0 0.0
    %1311 = vmatpush1.msra.mxu0 0.0
    %1312 = vmatprep.subr.mxu0 0.0
    %1313 = vmatpush1.msra.mxu0 0.0
    %1314 = vmatprep.subr.mxu0 0.0
    %1315 = vmatpush1.msra.mxu0 0.0
    %1316 = vmatprep.subr.mxu0 0.0
    %1317 = vmatpush1.msra.mxu0 0.0
    %1318 = vmatprep.subr.mxu0 0.0
    %1319 = vmatpush1.msra.mxu0 0.0
    %1320 = vmatprep.subr.mxu0 0.0
    %1321 = vmatpush1.msra.mxu0 0.0
    %1322 = vmatprep.subr.mxu0 0.0
    %1323 = vmatpush1.msra.mxu0 0.0
    %1324 = vmatprep.subr.mxu0 0.0
    %1325 = vmatpush1.msra.mxu0 0.0
    %1326 = vmatprep.subr.mxu0 0.0
    %1327 = vmatpush1.msra.mxu0 0.0
    %1328 = vmatprep.subr.mxu0 0.0
    %1329 = vmatpush1.msra.mxu0 0.0
    %1330 = vmatprep.subr.mxu0 0.0
    %1331 = vmatpush1.msra.mxu0 0.0
    %1332 = vmatprep.mubr.f32.mxu0 0.0
    %v1333 = vand.u32 %v847, 4294901760
    %1334 = vmatmul.mubr.f32.gmra.mrb[0].mxu0 %v1333
    %v1335 = vpop.f32.mrb[0].mxu0
    %v1336 = vadd.f32 %v1258, %v1335
    %v1337 = vpop.f32.mrb[0].mxu0
    %1338 = vmatprep.mubr.f32.mxu0 0.0
    %v1339 = vand.u32 %v850, 4294901760
    %1340 = vmatmul.mubr.f32.gmra.mrb[0].mxu0 %v1339
    %v1341 = vpop.f32.mrb[0].mxu0
    %v1342 = vadd.f32 %v1264, %v1341
    %v1343 = vpop.f32.mrb[0].mxu0
    %1344 = vdwg.mxu0
    %v1345 = vsub.f32 %v47, %v1336
    %v1346 = vsub.f32 %v48, %v1342
    %v1347 = vmul.f32 %v1345, %v1345
    %v1348 = vmul.f32 %v1346, %v1346
    %1349 = vmatprep.subr.mxu0 0.0
    %v1350 = vand.u32 %v136, 4294901760
    %1351 = vmatpush1.msra.mxu0 %v1350
    %1352 = vmatprep.subr.mxu0 0.0
    %v1353 = vand.u32 %v137, 4294901760
    %1354 = vmatpush1.msra.mxu0 %v1353
    %1355 = vmatprep.subr.mxu0 0.0
    %v1356 = vand.u32 %v138, 4294901760
    %1357 = vmatpush1.msra.mxu0 %v1356
    %1358 = vmatprep.subr.mxu0 0.0
    %v1359 = vand.u32 %v139, 4294901760
    %1360 = vmatpush1.msra.mxu0 %v1359
    %1361 = vmatprep.subr.mxu0 0.0
    %v1362 = vand.u32 %v140, 4294901760
    %1363 = vmatpush1.msra.mxu0 %v1362
    %1364 = vmatprep.subr.mxu0 0.0
    %v1365 = vand.u32 %v141, 4294901760
    %1366 = vmatpush1.msra.mxu0 %v1365
    %1367 = vmatprep.subr.mxu0 0.0
    %v1368 = vand.u32 %v142, 4294901760
    %1369 = vmatpush1.msra.mxu0 %v1368
    %1370 = vmatprep.subr.mxu0 0.0
    %v1371 = vand.u32 %v143, 4294901760
    %1372 = vmatpush1.msra.mxu0 %v1371
    %1373 = vmatprep.subr.mxu0 0.0
    %v1374 = vand.u32 %v144, 4294901760
    %1375 = vmatpush1.msra.mxu0 %v1374
    %1376 = vmatprep.subr.mxu0 0.0
    %v1377 = vand.u32 %v145, 4294901760
    %1378 = vmatpush1.msra.mxu0 %v1377
    %1379 = vmatprep.subr.mxu0 0.0
    %v1380 = vand.u32 %v146, 4294901760
    %1381 = vmatpush1.msra.mxu0 %v1380
    %1382 = vmatprep.subr.mxu0 0.0
    %v1383 = vand.u32 %v147, 4294901760
    %1384 = vmatpush1.msra.mxu0 %v1383
    %1385 = vmatprep.subr.mxu0 0.0
    %v1386 = vand.u32 %v148, 4294901760
    %1387 = vmatpush1.msra.mxu0 %v1386
    %1388 = vmatprep.subr.mxu0 0.0
    %v1389 = vand.u32 %v149, 4294901760
    %1390 = vmatpush1.msra.mxu0 %v1389
    %1391 = vmatprep.subr.mxu0 0.0
    %v1392 = vand.u32 %v150, 4294901760
    %1393 = vmatpush1.msra.mxu0 %v1392
    %1394 = vmatprep.subr.mxu0 0.0
    %v1395 = vand.u32 %v151, 4294901760
    %1396 = vmatpush1.msra.mxu0 %v1395
    %1397 = vmatprep.subr.mxu0 0.0
    %1398 = vmatpush1.msra.mxu0 0.0
    %1399 = vmatprep.subr.mxu0 0.0
    %1400 = vmatpush1.msra.mxu0 0.0
    %1401 = vmatprep.subr.mxu0 0.0
    %1402 = vmatpush1.msra.mxu0 0.0
    %1403 = vmatprep.subr.mxu0 0.0
    %1404 = vmatpush1.msra.mxu0 0.0
    %1405 = vmatprep.subr.mxu0 0.0
    %1406 = vmatpush1.msra.mxu0 0.0
    %1407 = vmatprep.subr.mxu0 0.0
    %1408 = vmatpush1.msra.mxu0 0.0
    %1409 = vmatprep.subr.mxu0 0.0
    %1410 = vmatpush1.msra.mxu0 0.0
    %1411 = vmatprep.subr.mxu0 0.0
    %1412 = vmatpush1.msra.mxu0 0.0
    %1413 = vmatprep.subr.mxu0 0.0
    %1414 = vmatpush1.msra.mxu0 0.0
    %1415 = vmatprep.subr.mxu0 0.0
    %1416 = vmatpush1.msra.mxu0 0.0
    %1417 = vmatprep.subr.mxu0 0.0
    %1418 = vmatpush1.msra.mxu0 0.0
    %1419 = vmatprep.subr.mxu0 0.0
    %1420 = vmatpush1.msra.mxu0 0.0
    %1421 = vmatprep.subr.mxu0 0.0
    %1422 = vmatpush1.msra.mxu0 0.0
    %1423 = vmatprep.subr.mxu0 0.0
    %1424 = vmatpush1.msra.mxu0 0.0
    %1425 = vmatprep.subr.mxu0 0.0
    %1426 = vmatpush1.msra.mxu0 0.0
    %1427 = vmatprep.subr.mxu0 0.0
    %1428 = vmatpush1.msra.mxu0 0.0
    %1429 = vmatprep.mubr.f32.mxu0 0.0
    %v1430 = vand.u32 %v1347, 4294901760
    %v1431 = vsub.f32 %v1347, %v1430
    %v1432 = vand.u32 %v1431, 4294901760
    %v1433 = vsub.f32 %v1431, %v1432
    %v1434 = vand.u32 %v1433, 4294901760
    %1435 = vmatmul.mubr.f32.gmra.mrb[0].mxu0 %v1434
    %v1436 = vpop.f32.mrb[0].mxu0
    %v1437 = vadd.f32 0.0, %v1436
    %v1438 = vpop.f32.mrb[0].mxu0
    %1439 = vmatprep.mubr.f32.mxu0 0.0
    %v1440 = vand.u32 %v1348, 4294901760
    %v1441 = vsub.f32 %v1348, %v1440
    %v1442 = vand.u32 %v1441, 4294901760
    %v1443 = vsub.f32 %v1441, %v1442
    %v1444 = vand.u32 %v1443, 4294901760
    %1445 = vmatmul.mubr.f32.gmra.mrb[0].mxu0 %v1444
    %v1446 = vpop.f32.mrb[0].mxu0
    %v1447 = vadd.f32 0.0, %v1446
    %v1448 = vpop.f32.mrb[0].mxu0
    %1449 = vdwg.mxu0
    %1450 = vmatprep.subr.mxu0 0.0
    %v1451 = vand.u32 %v136, 4294901760
    %v1452 = vsub.f32 %v136, %v1451
    %v1453 = vand.u32 %v1452, 4294901760
    %v1454 = vsub.f32 %v1452, %v1453
    %v1455 = vand.u32 %v1454, 4294901760
    %1456 = vmatpush1.msra.mxu0 %v1455
    %1457 = vmatprep.subr.mxu0 0.0
    %v1458 = vand.u32 %v137, 4294901760
    %v1459 = vsub.f32 %v137, %v1458
    %v1460 = vand.u32 %v1459, 4294901760
    %v1461 = vsub.f32 %v1459, %v1460
    %v1462 = vand.u32 %v1461, 4294901760
    %1463 = vmatpush1.msra.mxu0 %v1462
    %1464 = vmatprep.subr.mxu0 0.0
    %v1465 = vand.u32 %v138, 4294901760
    %v1466 = vsub.f32 %v138, %v1465
    %v1467 = vand.u32 %v1466, 4294901760
    %v1468 = vsub.f32 %v1466, %v1467
    %v1469 = vand.u32 %v1468, 4294901760
    %1470 = vmatpush1.msra.mxu0 %v1469
    %1471 = vmatprep.subr.mxu0 0.0
    %v1472 = vand.u32 %v139, 4294901760
    %v1473 = vsub.f32 %v139, %v1472
    %v1474 = vand.u32 %v1473, 4294901760
    %v1475 = vsub.f32 %v1473, %v1474
    %v1476 = vand.u32 %v1475, 4294901760
    %1477 = vmatpush1.msra.mxu0 %v1476
    %1478 = vmatprep.subr.mxu0 0.0
    %v1479 = vand.u32 %v140, 4294901760
    %v1480 = vsub.f32 %v140, %v1479
    %v1481 = vand.u32 %v1480, 4294901760
    %v1482 = vsub.f32 %v1480, %v1481
    %v1483 = vand.u32 %v1482, 4294901760
    %1484 = vmatpush1.msra.mxu0 %v1483
    %1485 = vmatprep.subr.mxu0 0.0
    %v1486 = vand.u32 %v141, 4294901760
    %v1487 = vsub.f32 %v141, %v1486
    %v1488 = vand.u32 %v1487, 4294901760
    %v1489 = vsub.f32 %v1487, %v1488
    %v1490 = vand.u32 %v1489, 4294901760
    %1491 = vmatpush1.msra.mxu0 %v1490
    %1492 = vmatprep.subr.mxu0 0.0
    %v1493 = vand.u32 %v142, 4294901760
    %v1494 = vsub.f32 %v142, %v1493
    %v1495 = vand.u32 %v1494, 4294901760
    %v1496 = vsub.f32 %v1494, %v1495
    %v1497 = vand.u32 %v1496, 4294901760
    %1498 = vmatpush1.msra.mxu0 %v1497
    %1499 = vmatprep.subr.mxu0 0.0
    %v1500 = vand.u32 %v143, 4294901760
    %v1501 = vsub.f32 %v143, %v1500
    %v1502 = vand.u32 %v1501, 4294901760
    %v1503 = vsub.f32 %v1501, %v1502
    %v1504 = vand.u32 %v1503, 4294901760
    %1505 = vmatpush1.msra.mxu0 %v1504
    %1506 = vmatprep.subr.mxu0 0.0
    %v1507 = vand.u32 %v144, 4294901760
    %v1508 = vsub.f32 %v144, %v1507
    %v1509 = vand.u32 %v1508, 4294901760
    %v1510 = vsub.f32 %v1508, %v1509
    %v1511 = vand.u32 %v1510, 4294901760
    %1512 = vmatpush1.msra.mxu0 %v1511
    %1513 = vmatprep.subr.mxu0 0.0
    %v1514 = vand.u32 %v145, 4294901760
    %v1515 = vsub.f32 %v145, %v1514
    %v1516 = vand.u32 %v1515, 4294901760
    %v1517 = vsub.f32 %v1515, %v1516
    %v1518 = vand.u32 %v1517, 4294901760
    %1519 = vmatpush1.msra.mxu0 %v1518
    %1520 = vmatprep.subr.mxu0 0.0
    %v1521 = vand.u32 %v146, 4294901760
    %v1522 = vsub.f32 %v146, %v1521
    %v1523 = vand.u32 %v1522, 4294901760
    %v1524 = vsub.f32 %v1522, %v1523
    %v1525 = vand.u32 %v1524, 4294901760
    %1526 = vmatpush1.msra.mxu0 %v1525
    %1527 = vmatprep.subr.mxu0 0.0
    %v1528 = vand.u32 %v147, 4294901760
    %v1529 = vsub.f32 %v147, %v1528
    %v1530 = vand.u32 %v1529, 4294901760
    %v1531 = vsub.f32 %v1529, %v1530
    %v1532 = vand.u32 %v1531, 4294901760
    %1533 = vmatpush1.msra.mxu0 %v1532
    %1534 = vmatprep.subr.mxu0 0.0
    %v1535 = vand.u32 %v148, 4294901760
    %v1536 = vsub.f32 %v148, %v1535
    %v1537 = vand.u32 %v1536, 4294901760
    %v1538 = vsub.f32 %v1536, %v1537
    %v1539 = vand.u32 %v1538, 4294901760
    %1540 = vmatpush1.msra.mxu0 %v1539
    %1541 = vmatprep.subr.mxu0 0.0
    %v1542 = vand.u32 %v149, 4294901760
    %v1543 = vsub.f32 %v149, %v1542
    %v1544 = vand.u32 %v1543, 4294901760
    %v1545 = vsub.f32 %v1543, %v1544
    %v1546 = vand.u32 %v1545, 4294901760
    %1547 = vmatpush1.msra.mxu0 %v1546
    %1548 = vmatprep.subr.mxu0 0.0
    %v1549 = vand.u32 %v150, 4294901760
    %v1550 = vsub.f32 %v150, %v1549
    %v1551 = vand.u32 %v1550, 4294901760
    %v1552 = vsub.f32 %v1550, %v1551
    %v1553 = vand.u32 %v1552, 4294901760
    %1554 = vmatpush1.msra.mxu0 %v1553
    %1555 = vmatprep.subr.mxu0 0.0
    %v1556 = vand.u32 %v151, 4294901760
    %v1557 = vsub.f32 %v151, %v1556
    %v1558 = vand.u32 %v1557, 4294901760
    %v1559 = vsub.f32 %v1557, %v1558
    %v1560 = vand.u32 %v1559, 4294901760
    %1561 = vmatpush1.msra.mxu0 %v1560
    %1562 = vmatprep.subr.mxu0 0.0
    %1563 = vmatpush1.msra.mxu0 0.0
    %1564 = vmatprep.subr.mxu0 0.0
    %1565 = vmatpush1.msra.mxu0 0.0
    %1566 = vmatprep.subr.mxu0 0.0
    %1567 = vmatpush1.msra.mxu0 0.0
    %1568 = vmatprep.subr.mxu0 0.0
    %1569 = vmatpush1.msra.mxu0 0.0
    %1570 = vmatprep.subr.mxu0 0.0
    %1571 = vmatpush1.msra.mxu0 0.0
    %1572 = vmatprep.subr.mxu0 0.0
    %1573 = vmatpush1.msra.mxu0 0.0
    %1574 = vmatprep.subr.mxu0 0.0
    %1575 = vmatpush1.msra.mxu0 0.0
    %1576 = vmatprep.subr.mxu0 0.0
    %1577 = vmatpush1.msra.mxu0 0.0
    %1578 = vmatprep.subr.mxu0 0.0
    %1579 = vmatpush1.msra.mxu0 0.0
    %1580 = vmatprep.subr.mxu0 0.0
    %1581 = vmatpush1.msra.mxu0 0.0
    %1582 = vmatprep.subr.mxu0 0.0
    %1583 = vmatpush1.msra.mxu0 0.0
    %1584 = vmatprep.subr.mxu0 0.0
    %1585 = vmatpush1.msra.mxu0 0.0
    %1586 = vmatprep.subr.mxu0 0.0
    %1587 = vmatpush1.msra.mxu0 0.0
    %1588 = vmatprep.subr.mxu0 0.0
    %1589 = vmatpush1.msra.mxu0 0.0
    %1590 = vmatprep.subr.mxu0 0.0
    %1591 = vmatpush1.msra.mxu0 0.0
    %1592 = vmatprep.subr.mxu0 0.0
    %1593 = vmatpush1.msra.mxu0 0.0
    %1594 = vmatprep.mubr.f32.mxu0 0.0
    %v1595 = vand.u32 %v1347, 4294901760
    %1596 = vmatmul.mubr.f32.gmra.mrb[0].mxu0 %v1595
    %v1597 = vpop.f32.mrb[0].mxu0
    %v1598 = vadd.f32 %v1437, %v1597
    %v1599 = vpop.f32.mrb[0].mxu0
    %1600 = vmatprep.mubr.f32.mxu0 0.0
    %v1601 = vand.u32 %v1348, 4294901760
    %1602 = vmatmul.mubr.f32.gmra.mrb[0].mxu0 %v1601
    %v1603 = vpop.f32.mrb[0].mxu0
    %v1604 = vadd.f32 %v1447, %v1603
    %v1605 = vpop.f32.mrb[0].mxu0
    %1606 = vdwg.mxu0
    %1607 = vmatprep.subr.mxu0 0.0
    %v1608 = vand.u32 %v136, 4294901760
    %v1609 = vsub.f32 %v136, %v1608
    %1610 = vmatpush1.msra.mxu0 %v1609
    %1611 = vmatprep.subr.mxu0 0.0
    %v1612 = vand.u32 %v137, 4294901760
    %v1613 = vsub.f32 %v137, %v1612
    %1614 = vmatpush1.msra.mxu0 %v1613
    %1615 = vmatprep.subr.mxu0 0.0
    %v1616 = vand.u32 %v138, 4294901760
    %v1617 = vsub.f32 %v138, %v1616
    %1618 = vmatpush1.msra.mxu0 %v1617
    %1619 = vmatprep.subr.mxu0 0.0
    %v1620 = vand.u32 %v139, 4294901760
    %v1621 = vsub.f32 %v139, %v1620
    %1622 = vmatpush1.msra.mxu0 %v1621
    %1623 = vmatprep.subr.mxu0 0.0
    %v1624 = vand.u32 %v140, 4294901760
    %v1625 = vsub.f32 %v140, %v1624
    %1626 = vmatpush1.msra.mxu0 %v1625
    %1627 = vmatprep.subr.mxu0 0.0
    %v1628 = vand.u32 %v141, 4294901760
    %v1629 = vsub.f32 %v141, %v1628
    %1630 = vmatpush1.msra.mxu0 %v1629
    %1631 = vmatprep.subr.mxu0 0.0
    %v1632 = vand.u32 %v142, 4294901760
    %v1633 = vsub.f32 %v142, %v1632
    %1634 = vmatpush1.msra.mxu0 %v1633
    %1635 = vmatprep.subr.mxu0 0.0
    %v1636 = vand.u32 %v143, 4294901760
    %v1637 = vsub.f32 %v143, %v1636
    %1638 = vmatpush1.msra.mxu0 %v1637
    %1639 = vmatprep.subr.mxu0 0.0
    %v1640 = vand.u32 %v144, 4294901760
    %v1641 = vsub.f32 %v144, %v1640
    %1642 = vmatpush1.msra.mxu0 %v1641
    %1643 = vmatprep.subr.mxu0 0.0
    %v1644 = vand.u32 %v145, 4294901760
    %v1645 = vsub.f32 %v145, %v1644
    %1646 = vmatpush1.msra.mxu0 %v1645
    %1647 = vmatprep.subr.mxu0 0.0
    %v1648 = vand.u32 %v146, 4294901760
    %v1649 = vsub.f32 %v146, %v1648
    %1650 = vmatpush1.msra.mxu0 %v1649
    %1651 = vmatprep.subr.mxu0 0.0
    %v1652 = vand.u32 %v147, 4294901760
    %v1653 = vsub.f32 %v147, %v1652
    %1654 = vmatpush1.msra.mxu0 %v1653
    %1655 = vmatprep.subr.mxu0 0.0
    %v1656 = vand.u32 %v148, 4294901760
    %v1657 = vsub.f32 %v148, %v1656
    %1658 = vmatpush1.msra.mxu0 %v1657
    %1659 = vmatprep.subr.mxu0 0.0
    %v1660 = vand.u32 %v149, 4294901760
    %v1661 = vsub.f32 %v149, %v1660
    %1662 = vmatpush1.msra.mxu0 %v1661
    %1663 = vmatprep.subr.mxu0 0.0
    %v1664 = vand.u32 %v150, 4294901760
    %v1665 = vsub.f32 %v150, %v1664
    %1666 = vmatpush1.msra.mxu0 %v1665
    %1667 = vmatprep.subr.mxu0 0.0
    %v1668 = vand.u32 %v151, 4294901760
    %v1669 = vsub.f32 %v151, %v1668
    %1670 = vmatpush1.msra.mxu0 %v1669
    %1671 = vmatprep.subr.mxu0 0.0
    %1672 = vmatpush1.msra.mxu0 0.0
    %1673 = vmatprep.subr.mxu0 0.0
    %1674 = vmatpush1.msra.mxu0 0.0
    %1675 = vmatprep.subr.mxu0 0.0
    %1676 = vmatpush1.msra.mxu0 0.0
    %1677 = vmatprep.subr.mxu0 0.0
    %1678 = vmatpush1.msra.mxu0 0.0
    %1679 = vmatprep.subr.mxu0 0.0
    %1680 = vmatpush1.msra.mxu0 0.0
    %1681 = vmatprep.subr.mxu0 0.0
    %1682 = vmatpush1.msra.mxu0 0.0
    %1683 = vmatprep.subr.mxu0 0.0
    %1684 = vmatpush1.msra.mxu0 0.0
    %1685 = vmatprep.subr.mxu0 0.0
    %1686 = vmatpush1.msra.mxu0 0.0
    %1687 = vmatprep.subr.mxu0 0.0
    %1688 = vmatpush1.msra.mxu0 0.0
    %1689 = vmatprep.subr.mxu0 0.0
    %1690 = vmatpush1.msra.mxu0 0.0
    %1691 = vmatprep.subr.mxu0 0.0
    %1692 = vmatpush1.msra.mxu0 0.0
    %1693 = vmatprep.subr.mxu0 0.0
    %1694 = vmatpush1.msra.mxu0 0.0
    %1695 = vmatprep.subr.mxu0 0.0
    %1696 = vmatpush1.msra.mxu0 0.0
    %1697 = vmatprep.subr.mxu0 0.0
    %1698 = vmatpush1.msra.mxu0 0.0
    %1699 = vmatprep.subr.mxu0 0.0
    %1700 = vmatpush1.msra.mxu0 0.0
    %1701 = vmatprep.subr.mxu0 0.0
    %1702 = vmatpush1.msra.mxu0 0.0
    %1703 = vmatprep.mubr.f32.mxu0 0.0
    %v1704 = vand.u32 %v1347, 4294901760
    %v1705 = vsub.f32 %v1347, %v1704
    %1706 = vmatmul.mubr.f32.gmra.mrb[0].mxu0 %v1705
    %v1707 = vpop.f32.mrb[0].mxu0
    %v1708 = vadd.f32 %v1598, %v1707
    %v1709 = vpop.f32.mrb[0].mxu0
    %1710 = vmatprep.mubr.f32.mxu0 0.0
    %v1711 = vand.u32 %v1348, 4294901760
    %v1712 = vsub.f32 %v1348, %v1711
    %1713 = vmatmul.mubr.f32.gmra.mrb[0].mxu0 %v1712
    %v1714 = vpop.f32.mrb[0].mxu0
    %v1715 = vadd.f32 %v1604, %v1714
    %v1716 = vpop.f32.mrb[0].mxu0
    %1717 = vdwg.mxu0
    %1718 = vmatprep.subr.mxu0 0.0
    %v1719 = vand.u32 %v136, 4294901760
    %1720 = vmatpush1.msra.mxu0 %v1719
    %1721 = vmatprep.subr.mxu0 0.0
    %v1722 = vand.u32 %v137, 4294901760
    %1723 = vmatpush1.msra.mxu0 %v1722
    %1724 = vmatprep.subr.mxu0 0.0
    %v1725 = vand.u32 %v138, 4294901760
    %1726 = vmatpush1.msra.mxu0 %v1725
    %1727 = vmatprep.subr.mxu0 0.0
    %v1728 = vand.u32 %v139, 4294901760
    %1729 = vmatpush1.msra.mxu0 %v1728
    %1730 = vmatprep.subr.mxu0 0.0
    %v1731 = vand.u32 %v140, 4294901760
    %1732 = vmatpush1.msra.mxu0 %v1731
    %1733 = vmatprep.subr.mxu0 0.0
    %v1734 = vand.u32 %v141, 4294901760
    %1735 = vmatpush1.msra.mxu0 %v1734
    %1736 = vmatprep.subr.mxu0 0.0
    %v1737 = vand.u32 %v142, 4294901760
    %1738 = vmatpush1.msra.mxu0 %v1737
    %1739 = vmatprep.subr.mxu0 0.0
    %v1740 = vand.u32 %v143, 4294901760
    %1741 = vmatpush1.msra.mxu0 %v1740
    %1742 = vmatprep.subr.mxu0 0.0
    %v1743 = vand.u32 %v144, 4294901760
    %1744 = vmatpush1.msra.mxu0 %v1743
    %1745 = vmatprep.subr.mxu0 0.0
    %v1746 = vand.u32 %v145, 4294901760
    %1747 = vmatpush1.msra.mxu0 %v1746
    %1748 = vmatprep.subr.mxu0 0.0
    %v1749 = vand.u32 %v146, 4294901760
    %1750 = vmatpush1.msra.mxu0 %v1749
    %1751 = vmatprep.subr.mxu0 0.0
    %v1752 = vand.u32 %v147, 4294901760
    %1753 = vmatpush1.msra.mxu0 %v1752
    %1754 = vmatprep.subr.mxu0 0.0
    %v1755 = vand.u32 %v148, 4294901760
    %1756 = vmatpush1.msra.mxu0 %v1755
    %1757 = vmatprep.subr.mxu0 0.0
    %v1758 = vand.u32 %v149, 4294901760
    %1759 = vmatpush1.msra.mxu0 %v1758
    %1760 = vmatprep.subr.mxu0 0.0
    %v1761 = vand.u32 %v150, 4294901760
    %1762 = vmatpush1.msra.mxu0 %v1761
    %1763 = vmatprep.subr.mxu0 0.0
    %v1764 = vand.u32 %v151, 4294901760
    %1765 = vmatpush1.msra.mxu0 %v1764
    %1766 = vmatprep.subr.mxu0 0.0
    %1767 = vmatpush1.msra.mxu0 0.0
    %1768 = vmatprep.subr.mxu0 0.0
    %1769 = vmatpush1.msra.mxu0 0.0
    %1770 = vmatprep.subr.mxu0 0.0
    %1771 = vmatpush1.msra.mxu0 0.0
    %1772 = vmatprep.subr.mxu0 0.0
    %1773 = vmatpush1.msra.mxu0 0.0
    %1774 = vmatprep.subr.mxu0 0.0
    %1775 = vmatpush1.msra.mxu0 0.0
    %1776 = vmatprep.subr.mxu0 0.0
    %1777 = vmatpush1.msra.mxu0 0.0
    %1778 = vmatprep.subr.mxu0 0.0
    %1779 = vmatpush1.msra.mxu0 0.0
    %1780 = vmatprep.subr.mxu0 0.0
    %1781 = vmatpush1.msra.mxu0 0.0
    %1782 = vmatprep.subr.mxu0 0.0
    %1783 = vmatpush1.msra.mxu0 0.0
    %1784 = vmatprep.subr.mxu0 0.0
    %1785 = vmatpush1.msra.mxu0 0.0
    %1786 = vmatprep.subr.mxu0 0.0
    %1787 = vmatpush1.msra.mxu0 0.0
    %1788 = vmatprep.subr.mxu0 0.0
    %1789 = vmatpush1.msra.mxu0 0.0
    %1790 = vmatprep.subr.mxu0 0.0
    %1791 = vmatpush1.msra.mxu0 0.0
    %1792 = vmatprep.subr.mxu0 0.0
    %1793 = vmatpush1.msra.mxu0 0.0
    %1794 = vmatprep.subr.mxu0 0.0
    %1795 = vmatpush1.msra.mxu0 0.0
    %1796 = vmatprep.subr.mxu0 0.0
    %1797 = vmatpush1.msra.mxu0 0.0
    %1798 = vmatprep.mubr.f32.mxu0 0.0
    %v1799 = vand.u32 %v1347, 4294901760
    %v1800 = vsub.f32 %v1347, %v1799
    %v1801 = vand.u32 %v1800, 4294901760
    %1802 = vmatmul.mubr.f32.gmra.mrb[0].mxu0 %v1801
    %v1803 = vpop.f32.mrb[0].mxu0
    %v1804 = vadd.f32 %v1708, %v1803
    %v1805 = vpop.f32.mrb[0].mxu0
    %1806 = vmatprep.mubr.f32.mxu0 0.0
    %v1807 = vand.u32 %v1348, 4294901760
    %v1808 = vsub.f32 %v1348, %v1807
    %v1809 = vand.u32 %v1808, 4294901760
    %1810 = vmatmul.mubr.f32.gmra.mrb[0].mxu0 %v1809
    %v1811 = vpop.f32.mrb[0].mxu0
    %v1812 = vadd.f32 %v1715, %v1811
    %v1813 = vpop.f32.mrb[0].mxu0
    %1814 = vdwg.mxu0
    %1815 = vmatprep.subr.mxu0 0.0
    %v1816 = vand.u32 %v136, 4294901760
    %v1817 = vsub.f32 %v136, %v1816
    %v1818 = vand.u32 %v1817, 4294901760
    %1819 = vmatpush1.msra.mxu0 %v1818
    %1820 = vmatprep.subr.mxu0 0.0
    %v1821 = vand.u32 %v137, 4294901760
    %v1822 = vsub.f32 %v137, %v1821
    %v1823 = vand.u32 %v1822, 4294901760
    %1824 = vmatpush1.msra.mxu0 %v1823
    %1825 = vmatprep.subr.mxu0 0.0
    %v1826 = vand.u32 %v138, 4294901760
    %v1827 = vsub.f32 %v138, %v1826
    %v1828 = vand.u32 %v1827, 4294901760
    %1829 = vmatpush1.msra.mxu0 %v1828
    %1830 = vmatprep.subr.mxu0 0.0
    %v1831 = vand.u32 %v139, 4294901760
    %v1832 = vsub.f32 %v139, %v1831
    %v1833 = vand.u32 %v1832, 4294901760
    %1834 = vmatpush1.msra.mxu0 %v1833
    %1835 = vmatprep.subr.mxu0 0.0
    %v1836 = vand.u32 %v140, 4294901760
    %v1837 = vsub.f32 %v140, %v1836
    %v1838 = vand.u32 %v1837, 4294901760
    %1839 = vmatpush1.msra.mxu0 %v1838
    %1840 = vmatprep.subr.mxu0 0.0
    %v1841 = vand.u32 %v141, 4294901760
    %v1842 = vsub.f32 %v141, %v1841
    %v1843 = vand.u32 %v1842, 4294901760
    %1844 = vmatpush1.msra.mxu0 %v1843
    %1845 = vmatprep.subr.mxu0 0.0
    %v1846 = vand.u32 %v142, 4294901760
    %v1847 = vsub.f32 %v142, %v1846
    %v1848 = vand.u32 %v1847, 4294901760
    %1849 = vmatpush1.msra.mxu0 %v1848
    %1850 = vmatprep.subr.mxu0 0.0
    %v1851 = vand.u32 %v143, 4294901760
    %v1852 = vsub.f32 %v143, %v1851
    %v1853 = vand.u32 %v1852, 4294901760
    %1854 = vmatpush1.msra.mxu0 %v1853
    %1855 = vmatprep.subr.mxu0 0.0
    %v1856 = vand.u32 %v144, 4294901760
    %v1857 = vsub.f32 %v144, %v1856
    %v1858 = vand.u32 %v1857, 4294901760
    %1859 = vmatpush1.msra.mxu0 %v1858
    %1860 = vmatprep.subr.mxu0 0.0
    %v1861 = vand.u32 %v145, 4294901760
    %v1862 = vsub.f32 %v145, %v1861
    %v1863 = vand.u32 %v1862, 4294901760
    %1864 = vmatpush1.msra.mxu0 %v1863
    %1865 = vmatprep.subr.mxu0 0.0
    %v1866 = vand.u32 %v146, 4294901760
    %v1867 = vsub.f32 %v146, %v1866
    %v1868 = vand.u32 %v1867, 4294901760
    %1869 = vmatpush1.msra.mxu0 %v1868
    %1870 = vmatprep.subr.mxu0 0.0
    %v1871 = vand.u32 %v147, 4294901760
    %v1872 = vsub.f32 %v147, %v1871
    %v1873 = vand.u32 %v1872, 4294901760
    %1874 = vmatpush1.msra.mxu0 %v1873
    %1875 = vmatprep.subr.mxu0 0.0
    %v1876 = vand.u32 %v148, 4294901760
    %v1877 = vsub.f32 %v148, %v1876
    %v1878 = vand.u32 %v1877, 4294901760
    %1879 = vmatpush1.msra.mxu0 %v1878
    %1880 = vmatprep.subr.mxu0 0.0
    %v1881 = vand.u32 %v149, 4294901760
    %v1882 = vsub.f32 %v149, %v1881
    %v1883 = vand.u32 %v1882, 4294901760
    %1884 = vmatpush1.msra.mxu0 %v1883
    %1885 = vmatprep.subr.mxu0 0.0
    %v1886 = vand.u32 %v150, 4294901760
    %v1887 = vsub.f32 %v150, %v1886
    %v1888 = vand.u32 %v1887, 4294901760
    %1889 = vmatpush1.msra.mxu0 %v1888
    %1890 = vmatprep.subr.mxu0 0.0
    %v1891 = vand.u32 %v151, 4294901760
    %v1892 = vsub.f32 %v151, %v1891
    %v1893 = vand.u32 %v1892, 4294901760
    %1894 = vmatpush1.msra.mxu0 %v1893
    %1895 = vmatprep.subr.mxu0 0.0
    %1896 = vmatpush1.msra.mxu0 0.0
    %1897 = vmatprep.subr.mxu0 0.0
    %1898 = vmatpush1.msra.mxu0 0.0
    %1899 = vmatprep.subr.mxu0 0.0
    %1900 = vmatpush1.msra.mxu0 0.0
    %1901 = vmatprep.subr.mxu0 0.0
    %1902 = vmatpush1.msra.mxu0 0.0
    %1903 = vmatprep.subr.mxu0 0.0
    %1904 = vmatpush1.msra.mxu0 0.0
    %1905 = vmatprep.subr.mxu0 0.0
    %1906 = vmatpush1.msra.mxu0 0.0
    %1907 = vmatprep.subr.mxu0 0.0
    %1908 = vmatpush1.msra.mxu0 0.0
    %1909 = vmatprep.subr.mxu0 0.0
    %1910 = vmatpush1.msra.mxu0 0.0
    %1911 = vmatprep.subr.mxu0 0.0
    %1912 = vmatpush1.msra.mxu0 0.0
    %1913 = vmatprep.subr.mxu0 0.0
    %1914 = vmatpush1.msra.mxu0 0.0
    %1915 = vmatprep.subr.mxu0 0.0
    %1916 = vmatpush1.msra.mxu0 0.0
    %1917 = vmatprep.subr.mxu0 0.0
    %1918 = vmatpush1.msra.mxu0 0.0
    %1919 = vmatprep.subr.mxu0 0.0
    %1920 = vmatpush1.msra.mxu0 0.0
    %1921 = vmatprep.subr.mxu0 0.0
    %1922 = vmatpush1.msra.mxu0 0.0
    %1923 = vmatprep.subr.mxu0 0.0
    %1924 = vmatpush1.msra.mxu0 0.0
    %1925 = vmatprep.subr.mxu0 0.0
    %1926 = vmatpush1.msra.mxu0 0.0
    %1927 = vmatprep.mubr.f32.mxu0 0.0
    %v1928 = vand.u32 %v1347, 4294901760
    %1929 = vmatmul.mubr.f32.gmra.mrb[0].mxu0 %v1928
    %v1930 = vpop.f32.mrb[0].mxu0
    %v1931 = vadd.f32 %v1804, %v1930
    %v1932 = vpop.f32.mrb[0].mxu0
    %1933 = vmatprep.mubr.f32.mxu0 0.0
    %v1934 = vand.u32 %v1348, 4294901760
    %1935 = vmatmul.mubr.f32.gmra.mrb[0].mxu0 %v1934
    %v1936 = vpop.f32.mrb[0].mxu0
    %v1937 = vadd.f32 %v1812, %v1936
    %v1938 = vpop.f32.mrb[0].mxu0
    %1939 = vdwg.mxu0
    %1940 = vmatprep.subr.mxu0 0.0
    %v1941 = vand.u32 %v136, 4294901760
    %1942 = vmatpush1.msra.mxu0 %v1941
    %1943 = vmatprep.subr.mxu0 0.0
    %v1944 = vand.u32 %v137, 4294901760
    %1945 = vmatpush1.msra.mxu0 %v1944
    %1946 = vmatprep.subr.mxu0 0.0
    %v1947 = vand.u32 %v138, 4294901760
    %1948 = vmatpush1.msra.mxu0 %v1947
    %1949 = vmatprep.subr.mxu0 0.0
    %v1950 = vand.u32 %v139, 4294901760
    %1951 = vmatpush1.msra.mxu0 %v1950
    %1952 = vmatprep.subr.mxu0 0.0
    %v1953 = vand.u32 %v140, 4294901760
    %1954 = vmatpush1.msra.mxu0 %v1953
    %1955 = vmatprep.subr.mxu0 0.0
    %v1956 = vand.u32 %v141, 4294901760
    %1957 = vmatpush1.msra.mxu0 %v1956
    %1958 = vmatprep.subr.mxu0 0.0
    %v1959 = vand.u32 %v142, 4294901760
    %1960 = vmatpush1.msra.mxu0 %v1959
    %1961 = vmatprep.subr.mxu0 0.0
    %v1962 = vand.u32 %v143, 4294901760
    %1963 = vmatpush1.msra.mxu0 %v1962
    %1964 = vmatprep.subr.mxu0 0.0
    %v1965 = vand.u32 %v144, 4294901760
    %1966 = vmatpush1.msra.mxu0 %v1965
    %1967 = vmatprep.subr.mxu0 0.0
    %v1968 = vand.u32 %v145, 4294901760
    %1969 = vmatpush1.msra.mxu0 %v1968
    %1970 = vmatprep.subr.mxu0 0.0
    %v1971 = vand.u32 %v146, 4294901760
    %1972 = vmatpush1.msra.mxu0 %v1971
    %1973 = vmatprep.subr.mxu0 0.0
    %v1974 = vand.u32 %v147, 4294901760
    %1975 = vmatpush1.msra.mxu0 %v1974
    %1976 = vmatprep.subr.mxu0 0.0
    %v1977 = vand.u32 %v148, 4294901760
    %1978 = vmatpush1.msra.mxu0 %v1977
    %1979 = vmatprep.subr.mxu0 0.0
    %v1980 = vand.u32 %v149, 4294901760
    %1981 = vmatpush1.msra.mxu0 %v1980
    %1982 = vmatprep.subr.mxu0 0.0
    %v1983 = vand.u32 %v150, 4294901760
    %1984 = vmatpush1.msra.mxu0 %v1983
    %1985 = vmatprep.subr.mxu0 0.0
    %v1986 = vand.u32 %v151, 4294901760
    %1987 = vmatpush1.msra.mxu0 %v1986
    %1988 = vmatprep.subr.mxu0 0.0
    %1989 = vmatpush1.msra.mxu0 0.0
    %1990 = vmatprep.subr.mxu0 0.0
    %1991 = vmatpush1.msra.mxu0 0.0
    %1992 = vmatprep.subr.mxu0 0.0
    %1993 = vmatpush1.msra.mxu0 0.0
    %1994 = vmatprep.subr.mxu0 0.0
    %1995 = vmatpush1.msra.mxu0 0.0
    %1996 = vmatprep.subr.mxu0 0.0
    %1997 = vmatpush1.msra.mxu0 0.0
    %1998 = vmatprep.subr.mxu0 0.0
    %1999 = vmatpush1.msra.mxu0 0.0
    %2000 = vmatprep.subr.mxu0 0.0
    %2001 = vmatpush1.msra.mxu0 0.0
    %2002 = vmatprep.subr.mxu0 0.0
    %2003 = vmatpush1.msra.mxu0 0.0
    %2004 = vmatprep.subr.mxu0 0.0
    %2005 = vmatpush1.msra.mxu0 0.0
    %2006 = vmatprep.subr.mxu0 0.0
    %2007 = vmatpush1.msra.mxu0 0.0
    %2008 = vmatprep.subr.mxu0 0.0
    %2009 = vmatpush1.msra.mxu0 0.0
    %2010 = vmatprep.subr.mxu0 0.0
    %2011 = vmatpush1.msra.mxu0 0.0
    %2012 = vmatprep.subr.mxu0 0.0
    %2013 = vmatpush1.msra.mxu0 0.0
    %2014 = vmatprep.subr.mxu0 0.0
    %2015 = vmatpush1.msra.mxu0 0.0
    %2016 = vmatprep.subr.mxu0 0.0
    %2017 = vmatpush1.msra.mxu0 0.0
    %2018 = vmatprep.subr.mxu0 0.0
    %2019 = vmatpush1.msra.mxu0 0.0
    %2020 = vmatprep.mubr.f32.mxu0 0.0
    %v2021 = vand.u32 %v1347, 4294901760
    %2022 = vmatmul.mubr.f32.gmra.mrb[0].mxu0 %v2021
    %v2023 = vpop.f32.mrb[0].mxu0
    %v2024 = vadd.f32 %v1931, %v2023
    %v2025 = vpop.f32.mrb[0].mxu0
    %2026 = vmatprep.mubr.f32.mxu0 0.0
    %v2027 = vand.u32 %v1348, 4294901760
    %2028 = vmatmul.mubr.f32.gmra.mrb[0].mxu0 %v2027
    %v2029 = vpop.f32.mrb[0].mxu0
    %v2030 = vadd.f32 %v1937, %v2029
    %v2031 = vpop.f32.mrb[0].mxu0
    %2032 = vdwg.mxu0
    %v2033 = vmul.f32 %v2024, 0.03125
    %v2034 = vmul.f32 %v2030, 0.03125
    %v2035 = vadd.f32 %v2033, 1e-05
    %v2036 = vadd.f32 %v2034, 1e-05
    %v2037 = vrsqrt.pop %v2035
    %v2038 = vrsqrt.pop %v2036
    %v2040 = vsel %vm845, %v2037, 0
    %v2043 = vsel %vm845, %v2038, 0
    %2045 = vmatprep.subr.mxu0 0.0
    %v2046 = vand.u32 %v854, 4294901760
    %2047 = vmatpush1.msra.mxu0 %v2046
    %2048 = vmatprep.subr.mxu0 0.0
    %2049 = vmatpush1.msra.mxu0 0.0
    %2050 = vmatprep.subr.mxu0 0.0
    %2051 = vmatpush1.msra.mxu0 0.0
    %2052 = vmatprep.subr.mxu0 0.0
    %2053 = vmatpush1.msra.mxu0 0.0
    %2054 = vmatprep.subr.mxu0 0.0
    %2055 = vmatpush1.msra.mxu0 0.0
    %2056 = vmatprep.subr.mxu0 0.0
    %2057 = vmatpush1.msra.mxu0 0.0
    %2058 = vmatprep.subr.mxu0 0.0
    %2059 = vmatpush1.msra.mxu0 0.0
    %2060 = vmatprep.subr.mxu0 0.0
    %2061 = vmatpush1.msra.mxu0 0.0
    %2062 = vmatprep.subr.mxu0 0.0
    %2063 = vmatpush1.msra.mxu0 0.0
    %2064 = vmatprep.subr.mxu0 0.0
    %2065 = vmatpush1.msra.mxu0 0.0
    %2066 = vmatprep.subr.mxu0 0.0
    %2067 = vmatpush1.msra.mxu0 0.0
    %2068 = vmatprep.subr.mxu0 0.0
    %2069 = vmatpush1.msra.mxu0 0.0
    %2070 = vmatprep.subr.mxu0 0.0
    %2071 = vmatpush1.msra.mxu0 0.0
    %2072 = vmatprep.subr.mxu0 0.0
    %2073 = vmatpush1.msra.mxu0 0.0
    %2074 = vmatprep.subr.mxu0 0.0
    %2075 = vmatpush1.msra.mxu0 0.0
    %2076 = vmatprep.subr.mxu0 0.0
    %2077 = vmatpush1.msra.mxu0 0.0
    %2078 = vmatprep.subr.mxu0 0.0
    %2079 = vmatpush1.msra.mxu0 0.0
    %2080 = vmatprep.subr.mxu0 0.0
    %2081 = vmatpush1.msra.mxu0 0.0
    %2082 = vmatprep.subr.mxu0 0.0
    %2083 = vmatpush1.msra.mxu0 0.0
    %2084 = vmatprep.subr.mxu0 0.0
    %2085 = vmatpush1.msra.mxu0 0.0
    %2086 = vmatprep.subr.mxu0 0.0
    %2087 = vmatpush1.msra.mxu0 0.0
    %2088 = vmatprep.subr.mxu0 0.0
    %2089 = vmatpush1.msra.mxu0 0.0
    %2090 = vmatprep.subr.mxu0 0.0
    %2091 = vmatpush1.msra.mxu0 0.0
    %2092 = vmatprep.subr.mxu0 0.0
    %2093 = vmatpush1.msra.mxu0 0.0
    %2094 = vmatprep.subr.mxu0 0.0
    %2095 = vmatpush1.msra.mxu0 0.0
    %2096 = vmatprep.subr.mxu0 0.0
    %2097 = vmatpush1.msra.mxu0 0.0
    %2098 = vmatprep.subr.mxu0 0.0
    %2099 = vmatpush1.msra.mxu0 0.0
    %2100 = vmatprep.subr.mxu0 0.0
    %2101 = vmatpush1.msra.mxu0 0.0
    %2102 = vmatprep.subr.mxu0 0.0
    %2103 = vmatpush1.msra.mxu0 0.0
    %2104 = vmatprep.subr.mxu0 0.0
    %2105 = vmatpush1.msra.mxu0 0.0
    %2106 = vmatprep.subr.mxu0 0.0
    %2107 = vmatpush1.msra.mxu0 0.0
    %2108 = vmatprep.subr.mxu0 0.0
    %2109 = vmatpush1.msra.mxu0 0.0
    %2110 = vmatprep.mubr.f32.mxu0 0.0
    %v2111 = vand.u32 %v2040, 4294901760
    %v2112 = vsub.f32 %v2040, %v2111
    %v2113 = vand.u32 %v2112, 4294901760
    %v2114 = vsub.f32 %v2112, %v2113
    %v2115 = vand.u32 %v2114, 4294901760
    %2116 = vmatmul.mubr.f32.gmra.mrb[0].mxu0 %v2115
    %v2117 = vpop.f32.mrb[0].mxu0
    %v2118 = vadd.f32 0.0, %v2117
    %v2119 = vpop.f32.mrb[0].mxu0
    %2120 = vmatprep.mubr.f32.mxu0 0.0
    %v2121 = vand.u32 %v2043, 4294901760
    %v2122 = vsub.f32 %v2043, %v2121
    %v2123 = vand.u32 %v2122, 4294901760
    %v2124 = vsub.f32 %v2122, %v2123
    %v2125 = vand.u32 %v2124, 4294901760
    %2126 = vmatmul.mubr.f32.gmra.mrb[0].mxu0 %v2125
    %v2127 = vpop.f32.mrb[0].mxu0
    %v2128 = vadd.f32 0.0, %v2127
    %v2129 = vpop.f32.mrb[0].mxu0
    %2130 = vdwg.mxu0
    %2131 = vmatprep.subr.mxu0 0.0
    %v2132 = vand.u32 %v854, 4294901760
    %v2133 = vsub.f32 %v854, %v2132
    %v2134 = vand.u32 %v2133, 4294901760
    %v2135 = vsub.f32 %v2133, %v2134
    %v2136 = vand.u32 %v2135, 4294901760
    %2137 = vmatpush1.msra.mxu0 %v2136
    %2138 = vmatprep.subr.mxu0 0.0
    %2139 = vmatpush1.msra.mxu0 0.0
    %2140 = vmatprep.subr.mxu0 0.0
    %2141 = vmatpush1.msra.mxu0 0.0
    %2142 = vmatprep.subr.mxu0 0.0
    %2143 = vmatpush1.msra.mxu0 0.0
    %2144 = vmatprep.subr.mxu0 0.0
    %2145 = vmatpush1.msra.mxu0 0.0
    %2146 = vmatprep.subr.mxu0 0.0
    %2147 = vmatpush1.msra.mxu0 0.0
    %2148 = vmatprep.subr.mxu0 0.0
    %2149 = vmatpush1.msra.mxu0 0.0
    %2150 = vmatprep.subr.mxu0 0.0
    %2151 = vmatpush1.msra.mxu0 0.0
    %2152 = vmatprep.subr.mxu0 0.0
    %2153 = vmatpush1.msra.mxu0 0.0
    %2154 = vmatprep.subr.mxu0 0.0
    %2155 = vmatpush1.msra.mxu0 0.0
    %2156 = vmatprep.subr.mxu0 0.0
    %2157 = vmatpush1.msra.mxu0 0.0
    %2158 = vmatprep.subr.mxu0 0.0
    %2159 = vmatpush1.msra.mxu0 0.0
    %2160 = vmatprep.subr.mxu0 0.0
    %2161 = vmatpush1.msra.mxu0 0.0
    %2162 = vmatprep.subr.mxu0 0.0
    %2163 = vmatpush1.msra.mxu0 0.0
    %2164 = vmatprep.subr.mxu0 0.0
    %2165 = vmatpush1.msra.mxu0 0.0
    %2166 = vmatprep.subr.mxu0 0.0
    %2167 = vmatpush1.msra.mxu0 0.0
    %2168 = vmatprep.subr.mxu0 0.0
    %2169 = vmatpush1.msra.mxu0 0.0
    %2170 = vmatprep.subr.mxu0 0.0
    %2171 = vmatpush1.msra.mxu0 0.0
    %2172 = vmatprep.subr.mxu0 0.0
    %2173 = vmatpush1.msra.mxu0 0.0
    %2174 = vmatprep.subr.mxu0 0.0
    %2175 = vmatpush1.msra.mxu0 0.0
    %2176 = vmatprep.subr.mxu0 0.0
    %2177 = vmatpush1.msra.mxu0 0.0
    %2178 = vmatprep.subr.mxu0 0.0
    %2179 = vmatpush1.msra.mxu0 0.0
    %2180 = vmatprep.subr.mxu0 0.0
    %2181 = vmatpush1.msra.mxu0 0.0
    %2182 = vmatprep.subr.mxu0 0.0
    %2183 = vmatpush1.msra.mxu0 0.0
    %2184 = vmatprep.subr.mxu0 0.0
    %2185 = vmatpush1.msra.mxu0 0.0
    %2186 = vmatprep.subr.mxu0 0.0
    %2187 = vmatpush1.msra.mxu0 0.0
    %2188 = vmatprep.subr.mxu0 0.0
    %2189 = vmatpush1.msra.mxu0 0.0
    %2190 = vmatprep.subr.mxu0 0.0
    %2191 = vmatpush1.msra.mxu0 0.0
    %2192 = vmatprep.subr.mxu0 0.0
    %2193 = vmatpush1.msra.mxu0 0.0
    %2194 = vmatprep.subr.mxu0 0.0
    %2195 = vmatpush1.msra.mxu0 0.0
    %2196 = vmatprep.subr.mxu0 0.0
    %2197 = vmatpush1.msra.mxu0 0.0
    %2198 = vmatprep.subr.mxu0 0.0
    %2199 = vmatpush1.msra.mxu0 0.0
    %2200 = vmatprep.mubr.f32.mxu0 0.0
    %v2201 = vand.u32 %v2040, 4294901760
    %2202 = vmatmul.mubr.f32.gmra.mrb[0].mxu0 %v2201
    %v2203 = vpop.f32.mrb[0].mxu0
    %v2204 = vadd.f32 %v2118, %v2203
    %v2205 = vpop.f32.mrb[0].mxu0
    %2206 = vmatprep.mubr.f32.mxu0 0.0
    %v2207 = vand.u32 %v2043, 4294901760
    %2208 = vmatmul.mubr.f32.gmra.mrb[0].mxu0 %v2207
    %v2209 = vpop.f32.mrb[0].mxu0
    %v2210 = vadd.f32 %v2128, %v2209
    %v2211 = vpop.f32.mrb[0].mxu0
    %2212 = vdwg.mxu0
    %2213 = vmatprep.subr.mxu0 0.0
    %v2214 = vand.u32 %v854, 4294901760
    %v2215 = vsub.f32 %v854, %v2214
    %2216 = vmatpush1.msra.mxu0 %v2215
    %2217 = vmatprep.subr.mxu0 0.0
    %2218 = vmatpush1.msra.mxu0 0.0
    %2219 = vmatprep.subr.mxu0 0.0
    %2220 = vmatpush1.msra.mxu0 0.0
    %2221 = vmatprep.subr.mxu0 0.0
    %2222 = vmatpush1.msra.mxu0 0.0
    %2223 = vmatprep.subr.mxu0 0.0
    %2224 = vmatpush1.msra.mxu0 0.0
    %2225 = vmatprep.subr.mxu0 0.0
    %2226 = vmatpush1.msra.mxu0 0.0
    %2227 = vmatprep.subr.mxu0 0.0
    %2228 = vmatpush1.msra.mxu0 0.0
    %2229 = vmatprep.subr.mxu0 0.0
    %2230 = vmatpush1.msra.mxu0 0.0
    %2231 = vmatprep.subr.mxu0 0.0
    %2232 = vmatpush1.msra.mxu0 0.0
    %2233 = vmatprep.subr.mxu0 0.0
    %2234 = vmatpush1.msra.mxu0 0.0
    %2235 = vmatprep.subr.mxu0 0.0
    %2236 = vmatpush1.msra.mxu0 0.0
    %2237 = vmatprep.subr.mxu0 0.0
    %2238 = vmatpush1.msra.mxu0 0.0
    %2239 = vmatprep.subr.mxu0 0.0
    %2240 = vmatpush1.msra.mxu0 0.0
    %2241 = vmatprep.subr.mxu0 0.0
    %2242 = vmatpush1.msra.mxu0 0.0
    %2243 = vmatprep.subr.mxu0 0.0
    %2244 = vmatpush1.msra.mxu0 0.0
    %2245 = vmatprep.subr.mxu0 0.0
    %2246 = vmatpush1.msra.mxu0 0.0
    %2247 = vmatprep.subr.mxu0 0.0
    %2248 = vmatpush1.msra.mxu0 0.0
    %2249 = vmatprep.subr.mxu0 0.0
    %2250 = vmatpush1.msra.mxu0 0.0
    %2251 = vmatprep.subr.mxu0 0.0
    %2252 = vmatpush1.msra.mxu0 0.0
    %2253 = vmatprep.subr.mxu0 0.0
    %2254 = vmatpush1.msra.mxu0 0.0
    %2255 = vmatprep.subr.mxu0 0.0
    %2256 = vmatpush1.msra.mxu0 0.0
    %2257 = vmatprep.subr.mxu0 0.0
    %2258 = vmatpush1.msra.mxu0 0.0
    %2259 = vmatprep.subr.mxu0 0.0
    %2260 = vmatpush1.msra.mxu0 0.0
    %2261 = vmatprep.subr.mxu0 0.0
    %2262 = vmatpush1.msra.mxu0 0.0
    %2263 = vmatprep.subr.mxu0 0.0
    %2264 = vmatpush1.msra.mxu0 0.0
    %2265 = vmatprep.subr.mxu0 0.0
    %2266 = vmatpush1.msra.mxu0 0.0
    %2267 = vmatprep.subr.mxu0 0.0
    %2268 = vmatpush1.msra.mxu0 0.0
    %2269 = vmatprep.subr.mxu0 0.0
    %2270 = vmatpush1.msra.mxu0 0.0
    %2271 = vmatprep.subr.mxu0 0.0
    %2272 = vmatpush1.msra.mxu0 0.0
    %2273 = vmatprep.subr.mxu0 0.0
    %2274 = vmatpush1.msra.mxu0 0.0
    %2275 = vmatprep.subr.mxu0 0.0
    %2276 = vmatpush1.msra.mxu0 0.0
    %2277 = vmatprep.subr.mxu0 0.0
    %2278 = vmatpush1.msra.mxu0 0.0
    %2279 = vmatprep.mubr.f32.mxu0 0.0
    %v2280 = vand.u32 %v2040, 4294901760
    %v2281 = vsub.f32 %v2040, %v2280
    %2282 = vmatmul.mubr.f32.gmra.mrb[0].mxu0 %v2281
    %v2283 = vpop.f32.mrb[0].mxu0
    %v2284 = vadd.f32 %v2204, %v2283
    %v2285 = vpop.f32.mrb[0].mxu0
    %2286 = vmatprep.mubr.f32.mxu0 0.0
    %v2287 = vand.u32 %v2043, 4294901760
    %v2288 = vsub.f32 %v2043, %v2287
    %2289 = vmatmul.mubr.f32.gmra.mrb[0].mxu0 %v2288
    %v2290 = vpop.f32.mrb[0].mxu0
    %v2291 = vadd.f32 %v2210, %v2290
    %v2292 = vpop.f32.mrb[0].mxu0
    %2293 = vdwg.mxu0
    %2294 = vmatprep.subr.mxu0 0.0
    %v2295 = vand.u32 %v854, 4294901760
    %2296 = vmatpush1.msra.mxu0 %v2295
    %2297 = vmatprep.subr.mxu0 0.0
    %2298 = vmatpush1.msra.mxu0 0.0
    %2299 = vmatprep.subr.mxu0 0.0
    %2300 = vmatpush1.msra.mxu0 0.0
    %2301 = vmatprep.subr.mxu0 0.0
    %2302 = vmatpush1.msra.mxu0 0.0
    %2303 = vmatprep.subr.mxu0 0.0
    %2304 = vmatpush1.msra.mxu0 0.0
    %2305 = vmatprep.subr.mxu0 0.0
    %2306 = vmatpush1.msra.mxu0 0.0
    %2307 = vmatprep.subr.mxu0 0.0
    %2308 = vmatpush1.msra.mxu0 0.0
    %2309 = vmatprep.subr.mxu0 0.0
    %2310 = vmatpush1.msra.mxu0 0.0
    %2311 = vmatprep.subr.mxu0 0.0
    %2312 = vmatpush1.msra.mxu0 0.0
    %2313 = vmatprep.subr.mxu0 0.0
    %2314 = vmatpush1.msra.mxu0 0.0
    %2315 = vmatprep.subr.mxu0 0.0
    %2316 = vmatpush1.msra.mxu0 0.0
    %2317 = vmatprep.subr.mxu0 0.0
    %2318 = vmatpush1.msra.mxu0 0.0
    %2319 = vmatprep.subr.mxu0 0.0
    %2320 = vmatpush1.msra.mxu0 0.0
    %2321 = vmatprep.subr.mxu0 0.0
    %2322 = vmatpush1.msra.mxu0 0.0
    %2323 = vmatprep.subr.mxu0 0.0
    %2324 = vmatpush1.msra.mxu0 0.0
    %2325 = vmatprep.subr.mxu0 0.0
    %2326 = vmatpush1.msra.mxu0 0.0
    %2327 = vmatprep.subr.mxu0 0.0
    %2328 = vmatpush1.msra.mxu0 0.0
    %2329 = vmatprep.subr.mxu0 0.0
    %2330 = vmatpush1.msra.mxu0 0.0
    %2331 = vmatprep.subr.mxu0 0.0
    %2332 = vmatpush1.msra.mxu0 0.0
    %2333 = vmatprep.subr.mxu0 0.0
    %2334 = vmatpush1.msra.mxu0 0.0
    %2335 = vmatprep.subr.mxu0 0.0
    %2336 = vmatpush1.msra.mxu0 0.0
    %2337 = vmatprep.subr.mxu0 0.0
    %2338 = vmatpush1.msra.mxu0 0.0
    %2339 = vmatprep.subr.mxu0 0.0
    %2340 = vmatpush1.msra.mxu0 0.0
    %2341 = vmatprep.subr.mxu0 0.0
    %2342 = vmatpush1.msra.mxu0 0.0
    %2343 = vmatprep.subr.mxu0 0.0
    %2344 = vmatpush1.msra.mxu0 0.0
    %2345 = vmatprep.subr.mxu0 0.0
    %2346 = vmatpush1.msra.mxu0 0.0
    %2347 = vmatprep.subr.mxu0 0.0
    %2348 = vmatpush1.msra.mxu0 0.0
    %2349 = vmatprep.subr.mxu0 0.0
    %2350 = vmatpush1.msra.mxu0 0.0
    %2351 = vmatprep.subr.mxu0 0.0
    %2352 = vmatpush1.msra.mxu0 0.0
    %2353 = vmatprep.subr.mxu0 0.0
    %2354 = vmatpush1.msra.mxu0 0.0
    %2355 = vmatprep.subr.mxu0 0.0
    %2356 = vmatpush1.msra.mxu0 0.0
    %2357 = vmatprep.subr.mxu0 0.0
    %2358 = vmatpush1.msra.mxu0 0.0
    %2359 = vmatprep.mubr.f32.mxu0 0.0
    %v2360 = vand.u32 %v2040, 4294901760
    %v2361 = vsub.f32 %v2040, %v2360
    %v2362 = vand.u32 %v2361, 4294901760
    %2363 = vmatmul.mubr.f32.gmra.mrb[0].mxu0 %v2362
    %v2364 = vpop.f32.mrb[0].mxu0
    %v2365 = vadd.f32 %v2284, %v2364
    %v2366 = vpop.f32.mrb[0].mxu0
    %2367 = vmatprep.mubr.f32.mxu0 0.0
    %v2368 = vand.u32 %v2043, 4294901760
    %v2369 = vsub.f32 %v2043, %v2368
    %v2370 = vand.u32 %v2369, 4294901760
    %2371 = vmatmul.mubr.f32.gmra.mrb[0].mxu0 %v2370
    %v2372 = vpop.f32.mrb[0].mxu0
    %v2373 = vadd.f32 %v2291, %v2372
    %v2374 = vpop.f32.mrb[0].mxu0
    %2375 = vdwg.mxu0
    %2376 = vmatprep.subr.mxu0 0.0
    %v2377 = vand.u32 %v854, 4294901760
    %v2378 = vsub.f32 %v854, %v2377
    %v2379 = vand.u32 %v2378, 4294901760
    %2380 = vmatpush1.msra.mxu0 %v2379
    %2381 = vmatprep.subr.mxu0 0.0
    %2382 = vmatpush1.msra.mxu0 0.0
    %2383 = vmatprep.subr.mxu0 0.0
    %2384 = vmatpush1.msra.mxu0 0.0
    %2385 = vmatprep.subr.mxu0 0.0
    %2386 = vmatpush1.msra.mxu0 0.0
    %2387 = vmatprep.subr.mxu0 0.0
    %2388 = vmatpush1.msra.mxu0 0.0
    %2389 = vmatprep.subr.mxu0 0.0
    %2390 = vmatpush1.msra.mxu0 0.0
    %2391 = vmatprep.subr.mxu0 0.0
    %2392 = vmatpush1.msra.mxu0 0.0
    %2393 = vmatprep.subr.mxu0 0.0
    %2394 = vmatpush1.msra.mxu0 0.0
    %2395 = vmatprep.subr.mxu0 0.0
    %2396 = vmatpush1.msra.mxu0 0.0
    %2397 = vmatprep.subr.mxu0 0.0
    %2398 = vmatpush1.msra.mxu0 0.0
    %2399 = vmatprep.subr.mxu0 0.0
    %2400 = vmatpush1.msra.mxu0 0.0
    %2401 = vmatprep.subr.mxu0 0.0
    %2402 = vmatpush1.msra.mxu0 0.0
    %2403 = vmatprep.subr.mxu0 0.0
    %2404 = vmatpush1.msra.mxu0 0.0
    %2405 = vmatprep.subr.mxu0 0.0
    %2406 = vmatpush1.msra.mxu0 0.0
    %2407 = vmatprep.subr.mxu0 0.0
    %2408 = vmatpush1.msra.mxu0 0.0
    %2409 = vmatprep.subr.mxu0 0.0
    %2410 = vmatpush1.msra.mxu0 0.0
    %2411 = vmatprep.subr.mxu0 0.0
    %2412 = vmatpush1.msra.mxu0 0.0
    %2413 = vmatprep.subr.mxu0 0.0
    %2414 = vmatpush1.msra.mxu0 0.0
    %2415 = vmatprep.subr.mxu0 0.0
    %2416 = vmatpush1.msra.mxu0 0.0
    %2417 = vmatprep.subr.mxu0 0.0
    %2418 = vmatpush1.msra.mxu0 0.0
    %2419 = vmatprep.subr.mxu0 0.0
    %2420 = vmatpush1.msra.mxu0 0.0
    %2421 = vmatprep.subr.mxu0 0.0
    %2422 = vmatpush1.msra.mxu0 0.0
    %2423 = vmatprep.subr.mxu0 0.0
    %2424 = vmatpush1.msra.mxu0 0.0
    %2425 = vmatprep.subr.mxu0 0.0
    %2426 = vmatpush1.msra.mxu0 0.0
    %2427 = vmatprep.subr.mxu0 0.0
    %2428 = vmatpush1.msra.mxu0 0.0
    %2429 = vmatprep.subr.mxu0 0.0
    %2430 = vmatpush1.msra.mxu0 0.0
    %2431 = vmatprep.subr.mxu0 0.0
    %2432 = vmatpush1.msra.mxu0 0.0
    %2433 = vmatprep.subr.mxu0 0.0
    %2434 = vmatpush1.msra.mxu0 0.0
    %2435 = vmatprep.subr.mxu0 0.0
    %2436 = vmatpush1.msra.mxu0 0.0
    %2437 = vmatprep.subr.mxu0 0.0
    %2438 = vmatpush1.msra.mxu0 0.0
    %2439 = vmatprep.subr.mxu0 0.0
    %2440 = vmatpush1.msra.mxu0 0.0
    %2441 = vmatprep.subr.mxu0 0.0
    %2442 = vmatpush1.msra.mxu0 0.0
    %2443 = vmatprep.mubr.f32.mxu0 0.0
    %v2444 = vand.u32 %v2040, 4294901760
    %2445 = vmatmul.mubr.f32.gmra.mrb[0].mxu0 %v2444
    %v2446 = vpop.f32.mrb[0].mxu0
    %v2447 = vadd.f32 %v2365, %v2446
    %v2448 = vpop.f32.mrb[0].mxu0
    %2449 = vmatprep.mubr.f32.mxu0 0.0
    %v2450 = vand.u32 %v2043, 4294901760
    %2451 = vmatmul.mubr.f32.gmra.mrb[0].mxu0 %v2450
    %v2452 = vpop.f32.mrb[0].mxu0
    %v2453 = vadd.f32 %v2373, %v2452
    %v2454 = vpop.f32.mrb[0].mxu0
    %2455 = vdwg.mxu0
    %2456 = vmatprep.subr.mxu0 0.0
    %v2457 = vand.u32 %v854, 4294901760
    %2458 = vmatpush1.msra.mxu0 %v2457
    %2459 = vmatprep.subr.mxu0 0.0
    %2460 = vmatpush1.msra.mxu0 0.0
    %2461 = vmatprep.subr.mxu0 0.0
    %2462 = vmatpush1.msra.mxu0 0.0
    %2463 = vmatprep.subr.mxu0 0.0
    %2464 = vmatpush1.msra.mxu0 0.0
    %2465 = vmatprep.subr.mxu0 0.0
    %2466 = vmatpush1.msra.mxu0 0.0
    %2467 = vmatprep.subr.mxu0 0.0
    %2468 = vmatpush1.msra.mxu0 0.0
    %2469 = vmatprep.subr.mxu0 0.0
    %2470 = vmatpush1.msra.mxu0 0.0
    %2471 = vmatprep.subr.mxu0 0.0
    %2472 = vmatpush1.msra.mxu0 0.0
    %2473 = vmatprep.subr.mxu0 0.0
    %2474 = vmatpush1.msra.mxu0 0.0
    %2475 = vmatprep.subr.mxu0 0.0
    %2476 = vmatpush1.msra.mxu0 0.0
    %2477 = vmatprep.subr.mxu0 0.0
    %2478 = vmatpush1.msra.mxu0 0.0
    %2479 = vmatprep.subr.mxu0 0.0
    %2480 = vmatpush1.msra.mxu0 0.0
    %2481 = vmatprep.subr.mxu0 0.0
    %2482 = vmatpush1.msra.mxu0 0.0
    %2483 = vmatprep.subr.mxu0 0.0
    %2484 = vmatpush1.msra.mxu0 0.0
    %2485 = vmatprep.subr.mxu0 0.0
    %2486 = vmatpush1.msra.mxu0 0.0
    %2487 = vmatprep.subr.mxu0 0.0
    %2488 = vmatpush1.msra.mxu0 0.0
    %2489 = vmatprep.subr.mxu0 0.0
    %2490 = vmatpush1.msra.mxu0 0.0
    %2491 = vmatprep.subr.mxu0 0.0
    %2492 = vmatpush1.msra.mxu0 0.0
    %2493 = vmatprep.subr.mxu0 0.0
    %2494 = vmatpush1.msra.mxu0 0.0
    %2495 = vmatprep.subr.mxu0 0.0
    %2496 = vmatpush1.msra.mxu0 0.0
    %2497 = vmatprep.subr.mxu0 0.0
    %2498 = vmatpush1.msra.mxu0 0.0
    %2499 = vmatprep.subr.mxu0 0.0
    %2500 = vmatpush1.msra.mxu0 0.0
    %2501 = vmatprep.subr.mxu0 0.0
    %2502 = vmatpush1.msra.mxu0 0.0
    %2503 = vmatprep.subr.mxu0 0.0
    %2504 = vmatpush1.msra.mxu0 0.0
    %2505 = vmatprep.subr.mxu0 0.0
    %2506 = vmatpush1.msra.mxu0 0.0
    %2507 = vmatprep.subr.mxu0 0.0
    %2508 = vmatpush1.msra.mxu0 0.0
    %2509 = vmatprep.subr.mxu0 0.0
    %2510 = vmatpush1.msra.mxu0 0.0
    %2511 = vmatprep.subr.mxu0 0.0
    %2512 = vmatpush1.msra.mxu0 0.0
    %2513 = vmatprep.subr.mxu0 0.0
    %2514 = vmatpush1.msra.mxu0 0.0
    %2515 = vmatprep.subr.mxu0 0.0
    %2516 = vmatpush1.msra.mxu0 0.0
    %2517 = vmatprep.subr.mxu0 0.0
    %2518 = vmatpush1.msra.mxu0 0.0
    %2519 = vmatprep.subr.mxu0 0.0
    %2520 = vmatpush1.msra.mxu0 0.0
    %2521 = vmatprep.mubr.f32.mxu0 0.0
    %v2522 = vand.u32 %v2040, 4294901760
    %2523 = vmatmul.mubr.f32.gmra.mrb[0].mxu0 %v2522
    %v2524 = vpop.f32.mrb[0].mxu0
    %v2525 = vadd.f32 %v2447, %v2524
    %v2526 = vpop.f32.mrb[0].mxu0
    %2527 = vmatprep.mubr.f32.mxu0 0.0
    %v2528 = vand.u32 %v2043, 4294901760
    %2529 = vmatmul.mubr.f32.gmra.mrb[0].mxu0 %v2528
    %v2530 = vpop.f32.mrb[0].mxu0
    %v2531 = vadd.f32 %v2453, %v2530
    %v2532 = vpop.f32.mrb[0].mxu0
    %2533 = vdwg.mxu0
    %v2534 = vmul.f32 %v1345, %v2525
    %v2535 = vmul.f32 %v1346, %v2531
    %v2537 = vlaneseq
    %v2538 = vshrl.u32 %v2537, 7
    %v2539 = vsub.s32 0, %v2538
    %v2540 = vrot.slane %v49, %v2539
    %v2542 = vmul.f32 %v2534, %v2540
    %v2543 = vmul.f32 %v2535, %v2540
    %v2545 = vlaneseq
    %v2546 = vshrl.u32 %v2545, 7
    %v2547 = vsub.s32 0, %v2546
    %v2548 = vrot.slane %v50, %v2547
    %v2550 = vadd.f32 %v2542, %v2548
    %v2551 = vadd.f32 %v2543, %v2548
    %2552 = vst [vmem:[#allocation7] sm:$0xff] %v2550
    %2553 = vst [vmem:[#allocation7 + $0x8] sm:$0xff] %v2551
    %v2554 = vld [vmem:[#allocation5] sm:$0x3f]
    %v2555 = vadd.s32 %v52, 128
    %v2556 = vadd.s32 %v52, 136
    %v2557 = vadd.s32 %v52, 144
    %v2558 = vadd.s32 %v52, 152
    %v2559 = vadd.s32 %v52, 160
    %v2560 = vadd.s32 %v52, 168
    %v2561 = vadd.s32 %v52, 176
    %v2562 = vadd.s32 %v52, 184
    %v2563 = vadd.s32 %v52, 192
    %v2564 = vadd.s32 %v52, 200
    %v2565 = vadd.s32 %v52, 208
    %v2566 = vadd.s32 %v52, 216
    %v2567 = vadd.s32 %v52, 224
    %v2568 = vadd.s32 %v52, 232
    %v2569 = vadd.s32 %v52, 240
    %v2570 = vadd.s32 %v52, 248
    %v2571 = vadd.s32 %v52, 256
    %v2572 = vadd.s32 %v52, 264
    %v2573 = vadd.s32 %v52, 272
    %v2574 = vadd.s32 %v52, 280
    %v2575 = vadd.s32 %v52, 288
    %v2576 = vadd.s32 %v52, 296
    %v2577 = vadd.s32 %v52, 304
    %v2578 = vadd.s32 %v52, 312
    %v2579 = vadd.s32 %v52, 320
    %v2580 = vadd.s32 %v52, 328
    %v2581 = vadd.s32 %v52, 336
    %v2582 = vadd.s32 %v52, 344
    %v2583 = vadd.s32 %v52, 352
    %v2584 = vadd.s32 %v52, 360
    %v2585 = vadd.s32 %v52, 368
    %v2586 = vadd.s32 %v52, 376
    %v2587 = vmul.u32 %v69, 3
    %vm2588 = vcmp.ge.s32.totalorder %v52, %v2587
    %vm2589 = vcmp.ge.s32.totalorder %v53, %v2587
    %vm2590 = vcmp.ge.s32.totalorder %v54, %v2587
    %vm2591 = vcmp.ge.s32.totalorder %v55, %v2587
    %vm2592 = vcmp.ge.s32.totalorder %v56, %v2587
    %vm2593 = vcmp.ge.s32.totalorder %v57, %v2587
    %vm2594 = vcmp.ge.s32.totalorder %v58, %v2587
    %vm2595 = vcmp.ge.s32.totalorder %v59, %v2587
    %vm2596 = vcmp.ge.s32.totalorder %v60, %v2587
    %vm2597 = vcmp.ge.s32.totalorder %v61, %v2587
    %vm2598 = vcmp.ge.s32.totalorder %v62, %v2587
    %vm2599 = vcmp.ge.s32.totalorder %v63, %v2587
    %vm2600 = vcmp.ge.s32.totalorder %v64, %v2587
    %vm2601 = vcmp.ge.s32.totalorder %v65, %v2587
    %vm2602 = vcmp.ge.s32.totalorder %v66, %v2587
    %vm2603 = vcmp.ge.s32.totalorder %v67, %v2587
    %vm2604 = vcmp.ge.s32.totalorder %v2555, %v2587
    %vm2605 = vcmp.ge.s32.totalorder %v2556, %v2587
    %vm2606 = vcmp.ge.s32.totalorder %v2557, %v2587
    %vm2607 = vcmp.ge.s32.totalorder %v2558, %v2587
    %vm2608 = vcmp.ge.s32.totalorder %v2559, %v2587
    %vm2609 = vcmp.ge.s32.totalorder %v2560, %v2587
    %vm2610 = vcmp.ge.s32.totalorder %v2561, %v2587
    %vm2611 = vcmp.ge.s32.totalorder %v2562, %v2587
    %vm2612 = vcmp.ge.s32.totalorder %v2563, %v2587
    %vm2613 = vcmp.ge.s32.totalorder %v2564, %v2587
    %vm2614 = vcmp.ge.s32.totalorder %v2565, %v2587
    %vm2615 = vcmp.ge.s32.totalorder %v2566, %v2587
    %vm2616 = vcmp.ge.s32.totalorder %v2567, %v2587
    %vm2617 = vcmp.ge.s32.totalorder %v2568, %v2587
    %vm2618 = vcmp.ge.s32.totalorder %v2569, %v2587
    %vm2619 = vcmp.ge.s32.totalorder %v2570, %v2587
    %vm2620 = vcmp.ge.s32.totalorder %v2571, %v2587
    %vm2621 = vcmp.ge.s32.totalorder %v2572, %v2587
    %vm2622 = vcmp.ge.s32.totalorder %v2573, %v2587
    %vm2623 = vcmp.ge.s32.totalorder %v2574, %v2587
    %vm2624 = vcmp.ge.s32.totalorder %v2575, %v2587
    %vm2625 = vcmp.ge.s32.totalorder %v2576, %v2587
    %vm2626 = vcmp.ge.s32.totalorder %v2577, %v2587
    %vm2627 = vcmp.ge.s32.totalorder %v2578, %v2587
    %vm2628 = vcmp.ge.s32.totalorder %v2579, %v2587
    %vm2629 = vcmp.ge.s32.totalorder %v2580, %v2587
    %vm2630 = vcmp.ge.s32.totalorder %v2581, %v2587
    %vm2631 = vcmp.ge.s32.totalorder %v2582, %v2587
    %vm2632 = vcmp.ge.s32.totalorder %v2583, %v2587
    %vm2633 = vcmp.ge.s32.totalorder %v2584, %v2587
    %vm2634 = vcmp.ge.s32.totalorder %v2585, %v2587
    %vm2635 = vcmp.ge.s32.totalorder %v2586, %v2587
    %v2636 = vadd.s32 %v2587, 3
    %vm2637 = vcmp.lt.s32.totalorder %v52, %v2636
    %vm2638 = vcmp.lt.s32.totalorder %v53, %v2636
    %vm2639 = vcmp.lt.s32.totalorder %v54, %v2636
    %vm2640 = vcmp.lt.s32.totalorder %v55, %v2636
    %vm2641 = vcmp.lt.s32.totalorder %v56, %v2636
    %vm2642 = vcmp.lt.s32.totalorder %v57, %v2636
    %vm2643 = vcmp.lt.s32.totalorder %v58, %v2636
    %vm2644 = vcmp.lt.s32.totalorder %v59, %v2636
    %vm2645 = vcmp.lt.s32.totalorder %v60, %v2636
    %vm2646 = vcmp.lt.s32.totalorder %v61, %v2636
    %vm2647 = vcmp.lt.s32.totalorder %v62, %v2636
    %vm2648 = vcmp.lt.s32.totalorder %v63, %v2636
    %vm2649 = vcmp.lt.s32.totalorder %v64, %v2636
    %vm2650 = vcmp.lt.s32.totalorder %v65, %v2636
    %vm2651 = vcmp.lt.s32.totalorder %v66, %v2636
    %vm2652 = vcmp.lt.s32.totalorder %v67, %v2636
    %vm2653 = vcmp.lt.s32.totalorder %v2555, %v2636
    %vm2654 = vcmp.lt.s32.totalorder %v2556, %v2636
    %vm2655 = vcmp.lt.s32.totalorder %v2557, %v2636
    %vm2656 = vcmp.lt.s32.totalorder %v2558, %v2636
    %vm2657 = vcmp.lt.s32.totalorder %v2559, %v2636
    %vm2658 = vcmp.lt.s32.totalorder %v2560, %v2636
    %vm2659 = vcmp.lt.s32.totalorder %v2561, %v2636
    %vm2660 = vcmp.lt.s32.totalorder %v2562, %v2636
    %vm2661 = vcmp.lt.s32.totalorder %v2563, %v2636
    %vm2662 = vcmp.lt.s32.totalorder %v2564, %v2636
    %vm2663 = vcmp.lt.s32.totalorder %v2565, %v2636
    %vm2664 = vcmp.lt.s32.totalorder %v2566, %v2636
    %vm2665 = vcmp.lt.s32.totalorder %v2567, %v2636
    %vm2666 = vcmp.lt.s32.totalorder %v2568, %v2636
    %vm2667 = vcmp.lt.s32.totalorder %v2569, %v2636
    %vm2668 = vcmp.lt.s32.totalorder %v2570, %v2636
    %vm2669 = vcmp.lt.s32.totalorder %v2571, %v2636
    %vm2670 = vcmp.lt.s32.totalorder %v2572, %v2636
    %vm2671 = vcmp.lt.s32.totalorder %v2573, %v2636
    %vm2672 = vcmp.lt.s32.totalorder %v2574, %v2636
    %vm2673 = vcmp.lt.s32.totalorder %v2575, %v2636
    %vm2674 = vcmp.lt.s32.totalorder %v2576, %v2636
    %vm2675 = vcmp.lt.s32.totalorder %v2577, %v2636
    %vm2676 = vcmp.lt.s32.totalorder %v2578, %v2636
    %vm2677 = vcmp.lt.s32.totalorder %v2579, %v2636
    %vm2678 = vcmp.lt.s32.totalorder %v2580, %v2636
    %vm2679 = vcmp.lt.s32.totalorder %v2581, %v2636
    %vm2680 = vcmp.lt.s32.totalorder %v2582, %v2636
    %vm2681 = vcmp.lt.s32.totalorder %v2583, %v2636
    %vm2682 = vcmp.lt.s32.totalorder %v2584, %v2636
    %vm2683 = vcmp.lt.s32.totalorder %v2585, %v2636
    %vm2684 = vcmp.lt.s32.totalorder %v2586, %v2636
    %vm2685 = vmand %vm2588, %vm2637
    %vm2686 = vmand %vm2589, %vm2638
    %vm2687 = vmand %vm2590, %vm2639
    %vm2688 = vmand %vm2591, %vm2640
    %vm2689 = vmand %vm2592, %vm2641
    %vm2690 = vmand %vm2593, %vm2642
    %vm2691 = vmand %vm2594, %vm2643
    %vm2692 = vmand %vm2595, %vm2644
    %vm2693 = vmand %vm2596, %vm2645
    %vm2694 = vmand %vm2597, %vm2646
    %vm2695 = vmand %vm2598, %vm2647
    %vm2696 = vmand %vm2599, %vm2648
    %vm2697 = vmand %vm2600, %vm2649
    %vm2698 = vmand %vm2601, %vm2650
    %vm2699 = vmand %vm2602, %vm2651
    %vm2700 = vmand %vm2603, %vm2652
    %vm2701 = vmand %vm2604, %vm2653
    %vm2702 = vmand %vm2605, %vm2654
    %vm2703 = vmand %vm2606, %vm2655
    %vm2704 = vmand %vm2607, %vm2656
    %vm2705 = vmand %vm2608, %vm2657
    %vm2706 = vmand %vm2609, %vm2658
    %vm2707 = vmand %vm2610, %vm2659
    %vm2708 = vmand %vm2611, %vm2660
    %vm2709 = vmand %vm2612, %vm2661
    %vm2710 = vmand %vm2613, %vm2662
    %vm2711 = vmand %vm2614, %vm2663
    %vm2712 = vmand %vm2615, %vm2664
    %vm2713 = vmand %vm2616, %vm2665
    %vm2714 = vmand %vm2617, %vm2666
    %vm2715 = vmand %vm2618, %vm2667
    %vm2716 = vmand %vm2619, %vm2668
    %vm2717 = vmand %vm2620, %vm2669
    %vm2718 = vmand %vm2621, %vm2670
    %vm2719 = vmand %vm2622, %vm2671
    %vm2720 = vmand %vm2623, %vm2672
    %vm2721 = vmand %vm2624, %vm2673
    %vm2722 = vmand %vm2625, %vm2674
    %vm2723 = vmand %vm2626, %vm2675
    %vm2724 = vmand %vm2627, %vm2676
    %vm2725 = vmand %vm2628, %vm2677
    %vm2726 = vmand %vm2629, %vm2678
    %vm2727 = vmand %vm2630, %vm2679
    %vm2728 = vmand %vm2631, %vm2680
    %vm2729 = vmand %vm2632, %vm2681
    %vm2730 = vmand %vm2633, %vm2682
    %vm2731 = vmand %vm2634, %vm2683
    %vm2732 = vmand %vm2635, %vm2684
    %v2733 = vsel %vm2685, 1, 0
    %v2734 = vsel %vm2686, 1, 0
    %v2735 = vsel %vm2687, 1, 0
    %v2736 = vsel %vm2688, 1, 0
    %v2737 = vsel %vm2689, 1, 0
    %v2738 = vsel %vm2690, 1, 0
    %v2739 = vsel %vm2691, 1, 0
    %v2740 = vsel %vm2692, 1, 0
    %v2741 = vsel %vm2693, 1, 0
    %v2742 = vsel %vm2694, 1, 0
    %v2743 = vsel %vm2695, 1, 0
    %v2744 = vsel %vm2696, 1, 0
    %v2745 = vsel %vm2697, 1, 0
    %v2746 = vsel %vm2698, 1, 0
    %v2747 = vsel %vm2699, 1, 0
    %v2748 = vsel %vm2700, 1, 0
    %v2749 = vsel %vm2701, 1, 0
    %v2750 = vsel %vm2702, 1, 0
    %v2751 = vsel %vm2703, 1, 0
    %v2752 = vsel %vm2704, 1, 0
    %v2753 = vsel %vm2705, 1, 0
    %v2754 = vsel %vm2706, 1, 0
    %v2755 = vsel %vm2707, 1, 0
    %v2756 = vsel %vm2708, 1, 0
    %v2757 = vsel %vm2709, 1, 0
    %v2758 = vsel %vm2710, 1, 0
    %v2759 = vsel %vm2711, 1, 0
    %v2760 = vsel %vm2712, 1, 0
    %v2761 = vsel %vm2713, 1, 0
    %v2762 = vsel %vm2714, 1, 0
    %v2763 = vsel %vm2715, 1, 0
    %v2764 = vsel %vm2716, 1, 0
    %v2765 = vsel %vm2717, 1, 0
    %v2766 = vsel %vm2718, 1, 0
    %v2767 = vsel %vm2719, 1, 0
    %v2768 = vsel %vm2720, 1, 0
    %v2769 = vsel %vm2721, 1, 0
    %v2770 = vsel %vm2722, 1, 0
    %v2771 = vsel %vm2723, 1, 0
    %v2772 = vsel %vm2724, 1, 0
    %v2773 = vsel %vm2725, 1, 0
    %v2774 = vsel %vm2726, 1, 0
    %v2775 = vsel %vm2727, 1, 0
    %v2776 = vsel %vm2728, 1, 0
    %v2777 = vsel %vm2729, 1, 0
    %v2778 = vsel %vm2730, 1, 0
    %v2779 = vsel %vm2731, 1, 0
    %v2780 = vsel %vm2732, 1, 0
    %v2781 = vcvt.s32.f32 %v2733
    %v2782 = vcvt.s32.f32 %v2734
    %v2783 = vcvt.s32.f32 %v2735
    %v2784 = vcvt.s32.f32 %v2736
    %v2785 = vcvt.s32.f32 %v2737
    %v2786 = vcvt.s32.f32 %v2738
    %v2787 = vcvt.s32.f32 %v2739
    %v2788 = vcvt.s32.f32 %v2740
    %v2789 = vcvt.s32.f32 %v2741
    %v2790 = vcvt.s32.f32 %v2742
    %v2791 = vcvt.s32.f32 %v2743
    %v2792 = vcvt.s32.f32 %v2744
    %v2793 = vcvt.s32.f32 %v2745
    %v2794 = vcvt.s32.f32 %v2746
    %v2795 = vcvt.s32.f32 %v2747
    %v2796 = vcvt.s32.f32 %v2748
    %v2797 = vcvt.s32.f32 %v2749
    %v2798 = vcvt.s32.f32 %v2750
    %v2799 = vcvt.s32.f32 %v2751
    %v2800 = vcvt.s32.f32 %v2752
    %v2801 = vcvt.s32.f32 %v2753
    %v2802 = vcvt.s32.f32 %v2754
    %v2803 = vcvt.s32.f32 %v2755
    %v2804 = vcvt.s32.f32 %v2756
    %v2805 = vcvt.s32.f32 %v2757
    %v2806 = vcvt.s32.f32 %v2758
    %v2807 = vcvt.s32.f32 %v2759
    %v2808 = vcvt.s32.f32 %v2760
    %v2809 = vcvt.s32.f32 %v2761
    %v2810 = vcvt.s32.f32 %v2762
    %v2811 = vcvt.s32.f32 %v2763
    %v2812 = vcvt.s32.f32 %v2764
    %v2813 = vcvt.s32.f32 %v2765
    %v2814 = vcvt.s32.f32 %v2766
    %v2815 = vcvt.s32.f32 %v2767
    %v2816 = vcvt.s32.f32 %v2768
    %v2817 = vcvt.s32.f32 %v2769
    %v2818 = vcvt.s32.f32 %v2770
    %v2819 = vcvt.s32.f32 %v2771
    %v2820 = vcvt.s32.f32 %v2772
    %v2821 = vcvt.s32.f32 %v2773
    %v2822 = vcvt.s32.f32 %v2774
    %v2823 = vcvt.s32.f32 %v2775
    %v2824 = vcvt.s32.f32 %v2776
    %v2825 = vcvt.s32.f32 %v2777
    %v2826 = vcvt.s32.f32 %v2778
    %v2827 = vcvt.s32.f32 %v2779
    %v2828 = vcvt.s32.f32 %v2780
    %v2829 = vadd.s32 %v69, 128
    %v2830 = vadd.s32 %v69, 256
    %v2831 = vmul.u32 %v52, 3
    %v2832 = vmul.u32 %v53, 3
    %v2833 = vmul.u32 %v54, 3
    %v2834 = vmul.u32 %v55, 3
    %v2835 = vmul.u32 %v56, 3
    %v2836 = vmul.u32 %v57, 3
    %v2837 = vmul.u32 %v58, 3
    %v2838 = vmul.u32 %v59, 3
    %v2839 = vmul.u32 %v60, 3
    %v2840 = vmul.u32 %v61, 3
    %v2841 = vmul.u32 %v62, 3
    %v2842 = vmul.u32 %v63, 3
    %v2843 = vmul.u32 %v64, 3
    %v2844 = vmul.u32 %v65, 3
    %v2845 = vmul.u32 %v66, 3
    %v2846 = vmul.u32 %v67, 3
    %vm2847 = vcmp.ge.s32.totalorder %v69, %v2831
    %vm2848 = vcmp.ge.s32.totalorder %v2829, %v2831
    %vm2849 = vcmp.ge.s32.totalorder %v2830, %v2831
    %vm2850 = vcmp.ge.s32.totalorder %v69, %v2832
    %vm2851 = vcmp.ge.s32.totalorder %v2829, %v2832
    %vm2852 = vcmp.ge.s32.totalorder %v2830, %v2832
    %vm2853 = vcmp.ge.s32.totalorder %v69, %v2833
    %vm2854 = vcmp.ge.s32.totalorder %v2829, %v2833
    %vm2855 = vcmp.ge.s32.totalorder %v2830, %v2833
    %vm2856 = vcmp.ge.s32.totalorder %v69, %v2834
    %vm2857 = vcmp.ge.s32.totalorder %v2829, %v2834
    %vm2858 = vcmp.ge.s32.totalorder %v2830, %v2834
    %vm2859 = vcmp.ge.s32.totalorder %v69, %v2835
    %vm2860 = vcmp.ge.s32.totalorder %v2829, %v2835
    %vm2861 = vcmp.ge.s32.totalorder %v2830, %v2835
    %vm2862 = vcmp.ge.s32.totalorder %v69, %v2836
    %vm2863 = vcmp.ge.s32.totalorder %v2829, %v2836
    %vm2864 = vcmp.ge.s32.totalorder %v2830, %v2836
    %vm2865 = vcmp.ge.s32.totalorder %v69, %v2837
    %vm2866 = vcmp.ge.s32.totalorder %v2829, %v2837
    %vm2867 = vcmp.ge.s32.totalorder %v2830, %v2837
    %vm2868 = vcmp.ge.s32.totalorder %v69, %v2838
    %vm2869 = vcmp.ge.s32.totalorder %v2829, %v2838
    %vm2870 = vcmp.ge.s32.totalorder %v2830, %v2838
    %vm2871 = vcmp.ge.s32.totalorder %v69, %v2839
    %vm2872 = vcmp.ge.s32.totalorder %v2829, %v2839
    %vm2873 = vcmp.ge.s32.totalorder %v2830, %v2839
    %vm2874 = vcmp.ge.s32.totalorder %v69, %v2840
    %vm2875 = vcmp.ge.s32.totalorder %v2829, %v2840
    %vm2876 = vcmp.ge.s32.totalorder %v2830, %v2840
    %vm2877 = vcmp.ge.s32.totalorder %v69, %v2841
    %vm2878 = vcmp.ge.s32.totalorder %v2829, %v2841
    %vm2879 = vcmp.ge.s32.totalorder %v2830, %v2841
    %vm2880 = vcmp.ge.s32.totalorder %v69, %v2842
    %vm2881 = vcmp.ge.s32.totalorder %v2829, %v2842
    %vm2882 = vcmp.ge.s32.totalorder %v2830, %v2842
    %vm2883 = vcmp.ge.s32.totalorder %v69, %v2843
    %vm2884 = vcmp.ge.s32.totalorder %v2829, %v2843
    %vm2885 = vcmp.ge.s32.totalorder %v2830, %v2843
    %vm2886 = vcmp.ge.s32.totalorder %v69, %v2844
    %vm2887 = vcmp.ge.s32.totalorder %v2829, %v2844
    %vm2888 = vcmp.ge.s32.totalorder %v2830, %v2844
    %vm2889 = vcmp.ge.s32.totalorder %v69, %v2845
    %vm2890 = vcmp.ge.s32.totalorder %v2829, %v2845
    %vm2891 = vcmp.ge.s32.totalorder %v2830, %v2845
    %vm2892 = vcmp.ge.s32.totalorder %v69, %v2846
    %vm2893 = vcmp.ge.s32.totalorder %v2829, %v2846
    %vm2894 = vcmp.ge.s32.totalorder %v2830, %v2846
    %v2895 = vadd.s32 %v2831, 3
    %v2896 = vadd.s32 %v2832, 3
    %v2897 = vadd.s32 %v2833, 3
    %v2898 = vadd.s32 %v2834, 3
    %v2899 = vadd.s32 %v2835, 3
    %v2900 = vadd.s32 %v2836, 3
    %v2901 = vadd.s32 %v2837, 3
    %v2902 = vadd.s32 %v2838, 3
    %v2903 = vadd.s32 %v2839, 3
    %v2904 = vadd.s32 %v2840, 3
    %v2905 = vadd.s32 %v2841, 3
    %v2906 = vadd.s32 %v2842, 3
    %v2907 = vadd.s32 %v2843, 3
    %v2908 = vadd.s32 %v2844, 3
    %v2909 = vadd.s32 %v2845, 3
    %v2910 = vadd.s32 %v2846, 3
    %vm2911 = vcmp.lt.s32.totalorder %v69, %v2895
    %vm2912 = vcmp.lt.s32.totalorder %v2829, %v2895
    %vm2913 = vcmp.lt.s32.totalorder %v2830, %v2895
    %vm2914 = vcmp.lt.s32.totalorder %v69, %v2896
    %vm2915 = vcmp.lt.s32.totalorder %v2829, %v2896
    %vm2916 = vcmp.lt.s32.totalorder %v2830, %v2896
    %vm2917 = vcmp.lt.s32.totalorder %v69, %v2897
    %vm2918 = vcmp.lt.s32.totalorder %v2829, %v2897
    %vm2919 = vcmp.lt.s32.totalorder %v2830, %v2897
    %vm2920 = vcmp.lt.s32.totalorder %v69, %v2898
    %vm2921 = vcmp.lt.s32.totalorder %v2829, %v2898
    %vm2922 = vcmp.lt.s32.totalorder %v2830, %v2898
    %vm2923 = vcmp.lt.s32.totalorder %v69, %v2899
    %vm2924 = vcmp.lt.s32.totalorder %v2829, %v2899
    %vm2925 = vcmp.lt.s32.totalorder %v2830, %v2899
    %vm2926 = vcmp.lt.s32.totalorder %v69, %v2900
    %vm2927 = vcmp.lt.s32.totalorder %v2829, %v2900
    %vm2928 = vcmp.lt.s32.totalorder %v2830, %v2900
    %vm2929 = vcmp.lt.s32.totalorder %v69, %v2901
    %vm2930 = vcmp.lt.s32.totalorder %v2829, %v2901
    %vm2931 = vcmp.lt.s32.totalorder %v2830, %v2901
    %vm2932 = vcmp.lt.s32.totalorder %v69, %v2902
    %vm2933 = vcmp.lt.s32.totalorder %v2829, %v2902
    %vm2934 = vcmp.lt.s32.totalorder %v2830, %v2902
    %vm2935 = vcmp.lt.s32.totalorder %v69, %v2903
    %vm2936 = vcmp.lt.s32.totalorder %v2829, %v2903
    %vm2937 = vcmp.lt.s32.totalorder %v2830, %v2903
    %vm2938 = vcmp.lt.s32.totalorder %v69, %v2904
    %vm2939 = vcmp.lt.s32.totalorder %v2829, %v2904
    %vm2940 = vcmp.lt.s32.totalorder %v2830, %v2904
    %vm2941 = vcmp.lt.s32.totalorder %v69, %v2905
    %vm2942 = vcmp.lt.s32.totalorder %v2829, %v2905
    %vm2943 = vcmp.lt.s32.totalorder %v2830, %v2905
    %vm2944 = vcmp.lt.s32.totalorder %v69, %v2906
    %vm2945 = vcmp.lt.s32.totalorder %v2829, %v2906
    %vm2946 = vcmp.lt.s32.totalorder %v2830, %v2906
    %vm2947 = vcmp.lt.s32.totalorder %v69, %v2907
    %vm2948 = vcmp.lt.s32.totalorder %v2829, %v2907
    %vm2949 = vcmp.lt.s32.totalorder %v2830, %v2907
    %vm2950 = vcmp.lt.s32.totalorder %v69, %v2908
    %vm2951 = vcmp.lt.s32.totalorder %v2829, %v2908
    %vm2952 = vcmp.lt.s32.totalorder %v2830, %v2908
    %vm2953 = vcmp.lt.s32.totalorder %v69, %v2909
    %vm2954 = vcmp.lt.s32.totalorder %v2829, %v2909
    %vm2955 = vcmp.lt.s32.totalorder %v2830, %v2909
    %vm2956 = vcmp.lt.s32.totalorder %v69, %v2910
    %vm2957 = vcmp.lt.s32.totalorder %v2829, %v2910
    %vm2958 = vcmp.lt.s32.totalorder %v2830, %v2910
    %vm2959 = vmand %vm2847, %vm2911
    %vm2960 = vmand %vm2848, %vm2912
    %vm2961 = vmand %vm2849, %vm2913
    %vm2962 = vmand %vm2850, %vm2914
    %vm2963 = vmand %vm2851, %vm2915
    %vm2964 = vmand %vm2852, %vm2916
    %vm2965 = vmand %vm2853, %vm2917
    %vm2966 = vmand %vm2854, %vm2918
    %vm2967 = vmand %vm2855, %vm2919
    %vm2968 = vmand %vm2856, %vm2920
    %vm2969 = vmand %vm2857, %vm2921
    %vm2970 = vmand %vm2858, %vm2922
    %vm2971 = vmand %vm2859, %vm2923
    %vm2972 = vmand %vm2860, %vm2924
    %vm2973 = vmand %vm2861, %vm2925
    %vm2974 = vmand %vm2862, %vm2926
    %vm2975 = vmand %vm2863, %vm2927
    %vm2976 = vmand %vm2864, %vm2928
    %vm2977 = vmand %vm2865, %vm2929
    %vm2978 = vmand %vm2866, %vm2930
    %vm2979 = vmand %vm2867, %vm2931
    %vm2980 = vmand %vm2868, %vm2932
    %vm2981 = vmand %vm2869, %vm2933
    %vm2982 = vmand %vm2870, %vm2934
    %vm2983 = vmand %vm2871, %vm2935
    %vm2984 = vmand %vm2872, %vm2936
    %vm2985 = vmand %vm2873, %vm2937
    %vm2986 = vmand %vm2874, %vm2938
    %vm2987 = vmand %vm2875, %vm2939
    %vm2988 = vmand %vm2876, %vm2940
    %vm2989 = vmand %vm2877, %vm2941
    %vm2990 = vmand %vm2878, %vm2942
    %vm2991 = vmand %vm2879, %vm2943
    %vm2992 = vmand %vm2880, %vm2944
    %vm2993 = vmand %vm2881, %vm2945
    %vm2994 = vmand %vm2882, %vm2946
    %vm2995 = vmand %vm2883, %vm2947
    %vm2996 = vmand %vm2884, %vm2948
    %vm2997 = vmand %vm2885, %vm2949
    %vm2998 = vmand %vm2886, %vm2950
    %vm2999 = vmand %vm2887, %vm2951
    %vm3000 = vmand %vm2888, %vm2952
    %vm3001 = vmand %vm2889, %vm2953
    %vm3002 = vmand %vm2890, %vm2954
    %vm3003 = vmand %vm2891, %vm2955
    %vm3004 = vmand %vm2892, %vm2956
    %vm3005 = vmand %vm2893, %vm2957
    %vm3006 = vmand %vm2894, %vm2958
    %v3007 = vsel %vm2959, 1, 0
    %v3008 = vsel %vm2960, 1, 0
    %v3009 = vsel %vm2961, 1, 0
    %v3010 = vsel %vm2962, 1, 0
    %v3011 = vsel %vm2963, 1, 0
    %v3012 = vsel %vm2964, 1, 0
    %v3013 = vsel %vm2965, 1, 0
    %v3014 = vsel %vm2966, 1, 0
    %v3015 = vsel %vm2967, 1, 0
    %v3016 = vsel %vm2968, 1, 0
    %v3017 = vsel %vm2969, 1, 0
    %v3018 = vsel %vm2970, 1, 0
    %v3019 = vsel %vm2971, 1, 0
    %v3020 = vsel %vm2972, 1, 0
    %v3021 = vsel %vm2973, 1, 0
    %v3022 = vsel %vm2974, 1, 0
    %v3023 = vsel %vm2975, 1, 0
    %v3024 = vsel %vm2976, 1, 0
    %v3025 = vsel %vm2977, 1, 0
    %v3026 = vsel %vm2978, 1, 0
    %v3027 = vsel %vm2979, 1, 0
    %v3028 = vsel %vm2980, 1, 0
    %v3029 = vsel %vm2981, 1, 0
    %v3030 = vsel %vm2982, 1, 0
    %v3031 = vsel %vm2983, 1, 0
    %v3032 = vsel %vm2984, 1, 0
    %v3033 = vsel %vm2985, 1, 0
    %v3034 = vsel %vm2986, 1, 0
    %v3035 = vsel %vm2987, 1, 0
    %v3036 = vsel %vm2988, 1, 0
    %v3037 = vsel %vm2989, 1, 0
    %v3038 = vsel %vm2990, 1, 0
    %v3039 = vsel %vm2991, 1, 0
    %v3040 = vsel %vm2992, 1, 0
    %v3041 = vsel %vm2993, 1, 0
    %v3042 = vsel %vm2994, 1, 0
    %v3043 = vsel %vm2995, 1, 0
    %v3044 = vsel %vm2996, 1, 0
    %v3045 = vsel %vm2997, 1, 0
    %v3046 = vsel %vm2998, 1, 0
    %v3047 = vsel %vm2999, 1, 0
    %v3048 = vsel %vm3000, 1, 0
    %v3049 = vsel %vm3001, 1, 0
    %v3050 = vsel %vm3002, 1, 0
    %v3051 = vsel %vm3003, 1, 0
    %v3052 = vsel %vm3004, 1, 0
    %v3053 = vsel %vm3005, 1, 0
    %v3054 = vsel %vm3006, 1, 0
    %v3055 = vcvt.s32.f32 %v3007
    %v3056 = vcvt.s32.f32 %v3008
    %v3057 = vcvt.s32.f32 %v3009
    %v3058 = vcvt.s32.f32 %v3010
    %v3059 = vcvt.s32.f32 %v3011
    %v3060 = vcvt.s32.f32 %v3012
    %v3061 = vcvt.s32.f32 %v3013
    %v3062 = vcvt.s32.f32 %v3014
    %v3063 = vcvt.s32.f32 %v3015
    %v3064 = vcvt.s32.f32 %v3016
    %v3065 = vcvt.s32.f32 %v3017
    %v3066 = vcvt.s32.f32 %v3018
    %v3067 = vcvt.s32.f32 %v3019
    %v3068 = vcvt.s32.f32 %v3020
    %v3069 = vcvt.s32.f32 %v3021
    %v3070 = vcvt.s32.f32 %v3022
    %v3071 = vcvt.s32.f32 %v3023
    %v3072 = vcvt.s32.f32 %v3024
    %v3073 = vcvt.s32.f32 %v3025
    %v3074 = vcvt.s32.f32 %v3026
    %v3075 = vcvt.s32.f32 %v3027
    %v3076 = vcvt.s32.f32 %v3028
    %v3077 = vcvt.s32.f32 %v3029
    %v3078 = vcvt.s32.f32 %v3030
    %v3079 = vcvt.s32.f32 %v3031
    %v3080 = vcvt.s32.f32 %v3032
    %v3081 = vcvt.s32.f32 %v3033
    %v3082 = vcvt.s32.f32 %v3034
    %v3083 = vcvt.s32.f32 %v3035
    %v3084 = vcvt.s32.f32 %v3036
    %v3085 = vcvt.s32.f32 %v3037
    %v3086 = vcvt.s32.f32 %v3038
    %v3087 = vcvt.s32.f32 %v3039
    %v3088 = vcvt.s32.f32 %v3040
    %v3089 = vcvt.s32.f32 %v3041
    %v3090 = vcvt.s32.f32 %v3042
    %v3091 = vcvt.s32.f32 %v3043
    %v3092 = vcvt.s32.f32 %v3044
    %v3093 = vcvt.s32.f32 %v3045
    %v3094 = vcvt.s32.f32 %v3046
    %v3095 = vcvt.s32.f32 %v3047
    %v3096 = vcvt.s32.f32 %v3048
    %v3097 = vcvt.s32.f32 %v3049
    %v3098 = vcvt.s32.f32 %v3050
    %v3099 = vcvt.s32.f32 %v3051
    %v3100 = vcvt.s32.f32 %v3052
    %v3101 = vcvt.s32.f32 %v3053
    %v3102 = vcvt.s32.f32 %v3054
    %v3103 = vmul.f32 %v2554, %v2554
    %v3105 = vcombine.high %v3103, %v3103
    %v3107 = vunpack.c.l.s4 1983009808
    %v3108 = vunpack.c.0.s8 %v3107
    %v3109 = vlaneseq
    %v3110 = vshrl.u32 %v3109, 7
    %v3111 = vsub.s32 %v3108, %v3110
    %v3112 = vrot.slane %v3103, %v3111
    %v3114 = vunpack.c.l.s4 1983009808
    %v3115 = vunpack.c.0.s8 %v3114
    %v3116 = vlaneseq
    %v3117 = vshrl.u32 %v3116, 7
    %v3118 = vsub.s32 %v3115, %v3117
    %v3119 = vrot.slane %v3105, %v3118
    %v3120 = vcombine.high %v3112, %v3112
    %3124 = vmatprep.subr.mxu0 0.0
    %v3125 = vand.u32 %v2781, 4294901760
    %3126 = vmatpush1.msra.mxu0 %v3125
    %3127 = vmatprep.subr.mxu0 0.0
    %v3128 = vand.u32 %v2782, 4294901760
    %3129 = vmatpush1.msra.mxu0 %v3128
    %3130 = vmatprep.subr.mxu0 0.0
    %v3131 = vand.u32 %v2783, 4294901760
    %3132 = vmatpush1.msra.mxu0 %v3131
    %3133 = vmatprep.subr.mxu0 0.0
    %v3134 = vand.u32 %v2784, 4294901760
    %3135 = vmatpush1.msra.mxu0 %v3134
    %3136 = vmatprep.subr.mxu0 0.0
    %v3137 = vand.u32 %v2785, 4294901760
    %3138 = vmatpush1.msra.mxu0 %v3137
    %3139 = vmatprep.subr.mxu0 0.0
    %v3140 = vand.u32 %v2786, 4294901760
    %3141 = vmatpush1.msra.mxu0 %v3140
    %3142 = vmatprep.subr.mxu0 0.0
    %v3143 = vand.u32 %v2787, 4294901760
    %3144 = vmatpush1.msra.mxu0 %v3143
    %3145 = vmatprep.subr.mxu0 0.0
    %v3146 = vand.u32 %v2788, 4294901760
    %3147 = vmatpush1.msra.mxu0 %v3146
    %3148 = vmatprep.subr.mxu0 0.0
    %v3149 = vand.u32 %v2789, 4294901760
    %3150 = vmatpush1.msra.mxu0 %v3149
    %3151 = vmatprep.subr.mxu0 0.0
    %v3152 = vand.u32 %v2790, 4294901760
    %3153 = vmatpush1.msra.mxu0 %v3152
    %3154 = vmatprep.subr.mxu0 0.0
    %v3155 = vand.u32 %v2791, 4294901760
    %3156 = vmatpush1.msra.mxu0 %v3155
    %3157 = vmatprep.subr.mxu0 0.0
    %v3158 = vand.u32 %v2792, 4294901760
    %3159 = vmatpush1.msra.mxu0 %v3158
    %3160 = vmatprep.subr.mxu0 0.0
    %v3161 = vand.u32 %v2793, 4294901760
    %3162 = vmatpush1.msra.mxu0 %v3161
    %3163 = vmatprep.subr.mxu0 0.0
    %v3164 = vand.u32 %v2794, 4294901760
    %3165 = vmatpush1.msra.mxu0 %v3164
    %3166 = vmatprep.subr.mxu0 0.0
    %v3167 = vand.u32 %v2795, 4294901760
    %3168 = vmatpush1.msra.mxu0 %v3167
    %3169 = vmatprep.subr.mxu0 0.0
    %v3170 = vand.u32 %v2796, 4294901760
    %3171 = vmatpush1.msra.mxu0 %v3170
    %3172 = vmatprep.subr.mxu0 0.0
    %v3173 = vand.u32 %v2797, 4294901760
    %3174 = vmatpush1.msra.mxu0 %v3173
    %3175 = vmatprep.subr.mxu0 0.0
    %v3176 = vand.u32 %v2798, 4294901760
    %3177 = vmatpush1.msra.mxu0 %v3176
    %3178 = vmatprep.subr.mxu0 0.0
    %v3179 = vand.u32 %v2799, 4294901760
    %3180 = vmatpush1.msra.mxu0 %v3179
    %3181 = vmatprep.subr.mxu0 0.0
    %v3182 = vand.u32 %v2800, 4294901760
    %3183 = vmatpush1.msra.mxu0 %v3182
    %3184 = vmatprep.subr.mxu0 0.0
    %v3185 = vand.u32 %v2801, 4294901760
    %3186 = vmatpush1.msra.mxu0 %v3185
    %3187 = vmatprep.subr.mxu0 0.0
    %v3188 = vand.u32 %v2802, 4294901760
    %3189 = vmatpush1.msra.mxu0 %v3188
    %3190 = vmatprep.subr.mxu0 0.0
    %v3191 = vand.u32 %v2803, 4294901760
    %3192 = vmatpush1.msra.mxu0 %v3191
    %3193 = vmatprep.subr.mxu0 0.0
    %v3194 = vand.u32 %v2804, 4294901760
    %3195 = vmatpush1.msra.mxu0 %v3194
    %3196 = vmatprep.subr.mxu0 0.0
    %v3197 = vand.u32 %v2805, 4294901760
    %3198 = vmatpush1.msra.mxu0 %v3197
    %3199 = vmatprep.subr.mxu0 0.0
    %v3200 = vand.u32 %v2806, 4294901760
    %3201 = vmatpush1.msra.mxu0 %v3200
    %3202 = vmatprep.subr.mxu0 0.0
    %v3203 = vand.u32 %v2807, 4294901760
    %3204 = vmatpush1.msra.mxu0 %v3203
    %3205 = vmatprep.subr.mxu0 0.0
    %v3206 = vand.u32 %v2808, 4294901760
    %3207 = vmatpush1.msra.mxu0 %v3206
    %3208 = vmatprep.subr.mxu0 0.0
    %v3209 = vand.u32 %v2809, 4294901760
    %3210 = vmatpush1.msra.mxu0 %v3209
    %3211 = vmatprep.subr.mxu0 0.0
    %v3212 = vand.u32 %v2810, 4294901760
    %3213 = vmatpush1.msra.mxu0 %v3212
    %3214 = vmatprep.subr.mxu0 0.0
    %v3215 = vand.u32 %v2811, 4294901760
    %3216 = vmatpush1.msra.mxu0 %v3215
    %3217 = vmatprep.subr.mxu0 0.0
    %v3218 = vand.u32 %v2812, 4294901760
    %3219 = vmatpush1.msra.mxu0 %v3218
    %v3220 = vand.u32 %v3120, 4294901760
    %v3221 = vsub.f32 %v3120, %v3220
    %v3222 = vand.u32 %v3221, 4294901760
    %v3223 = vsub.f32 %v3221, %v3222
    %v3224 = vand.u32 %v3223, 4294901760
    %3225 = vmatprep.mubr.f32.mxu0 %v3224
    %v3226 = vand.u32 %v3112, 4294901760
    %v3227 = vsub.f32 %v3112, %v3226
    %v3228 = vand.u32 %v3227, 4294901760
    %v3229 = vsub.f32 %v3227, %v3228
    %v3230 = vand.u32 %v3229, 4294901760
    %3231 = vmatmul.mubr.f32.gmra.mrb[0].mxu0 %v3230
    %v3232 = vpop.f32.mrb[0].mxu0
    %v3233 = vadd.f32 1e-08, %v3232
    %v3234 = vpop.f32.mrb[0].mxu0
    %3235 = vdwg.mxu0
    %3236 = vmatprep.subr.mxu0 0.0
    %v3237 = vand.u32 %v2781, 4294901760
    %v3238 = vsub.f32 %v2781, %v3237
    %v3239 = vand.u32 %v3238, 4294901760
    %v3240 = vsub.f32 %v3238, %v3239
    %v3241 = vand.u32 %v3240, 4294901760
    %3242 = vmatpush1.msra.mxu0 %v3241
    %3243 = vmatprep.subr.mxu0 0.0
    %v3244 = vand.u32 %v2782, 4294901760
    %v3245 = vsub.f32 %v2782, %v3244
    %v3246 = vand.u32 %v3245, 4294901760
    %v3247 = vsub.f32 %v3245, %v3246
    %v3248 = vand.u32 %v3247, 4294901760
    %3249 = vmatpush1.msra.mxu0 %v3248
    %3250 = vmatprep.subr.mxu0 0.0
    %v3251 = vand.u32 %v2783, 4294901760
    %v3252 = vsub.f32 %v2783, %v3251
    %v3253 = vand.u32 %v3252, 4294901760
    %v3254 = vsub.f32 %v3252, %v3253
    %v3255 = vand.u32 %v3254, 4294901760
    %3256 = vmatpush1.msra.mxu0 %v3255
    %3257 = vmatprep.subr.mxu0 0.0
    %v3258 = vand.u32 %v2784, 4294901760
    %v3259 = vsub.f32 %v2784, %v3258
    %v3260 = vand.u32 %v3259, 4294901760
    %v3261 = vsub.f32 %v3259, %v3260
    %v3262 = vand.u32 %v3261, 4294901760
    %3263 = vmatpush1.msra.mxu0 %v3262
    %3264 = vmatprep.subr.mxu0 0.0
    %v3265 = vand.u32 %v2785, 4294901760
    %v3266 = vsub.f32 %v2785, %v3265
    %v3267 = vand.u32 %v3266, 4294901760
    %v3268 = vsub.f32 %v3266, %v3267
    %v3269 = vand.u32 %v3268, 4294901760
    %3270 = vmatpush1.msra.mxu0 %v3269
    %3271 = vmatprep.subr.mxu0 0.0
    %v3272 = vand.u32 %v2786, 4294901760
    %v3273 = vsub.f32 %v2786, %v3272
    %v3274 = vand.u32 %v3273, 4294901760
    %v3275 = vsub.f32 %v3273, %v3274
    %v3276 = vand.u32 %v3275, 4294901760
    %3277 = vmatpush1.msra.mxu0 %v3276
    %3278 = vmatprep.subr.mxu0 0.0
    %v3279 = vand.u32 %v2787, 4294901760
    %v3280 = vsub.f32 %v2787, %v3279
    %v3281 = vand.u32 %v3280, 4294901760
    %v3282 = vsub.f32 %v3280, %v3281
    %v3283 = vand.u32 %v3282, 4294901760
    %3284 = vmatpush1.msra.mxu0 %v3283
    %3285 = vmatprep.subr.mxu0 0.0
    %v3286 = vand.u32 %v2788, 4294901760
    %v3287 = vsub.f32 %v2788, %v3286
    %v3288 = vand.u32 %v3287, 4294901760
    %v3289 = vsub.f32 %v3287, %v3288
    %v3290 = vand.u32 %v3289, 4294901760
    %3291 = vmatpush1.msra.mxu0 %v3290
    %3292 = vmatprep.subr.mxu0 0.0
    %v3293 = vand.u32 %v2789, 4294901760
    %v3294 = vsub.f32 %v2789, %v3293
    %v3295 = vand.u32 %v3294, 4294901760
    %v3296 = vsub.f32 %v3294, %v3295
    %v3297 = vand.u32 %v3296, 4294901760
    %3298 = vmatpush1.msra.mxu0 %v3297
    %3299 = vmatprep.subr.mxu0 0.0
    %v3300 = vand.u32 %v2790, 4294901760
    %v3301 = vsub.f32 %v2790, %v3300
    %v3302 = vand.u32 %v3301, 4294901760
    %v3303 = vsub.f32 %v3301, %v3302
    %v3304 = vand.u32 %v3303, 4294901760
    %3305 = vmatpush1.msra.mxu0 %v3304
    %3306 = vmatprep.subr.mxu0 0.0
    %v3307 = vand.u32 %v2791, 4294901760
    %v3308 = vsub.f32 %v2791, %v3307
    %v3309 = vand.u32 %v3308, 4294901760
    %v3310 = vsub.f32 %v3308, %v3309
    %v3311 = vand.u32 %v3310, 4294901760
    %3312 = vmatpush1.msra.mxu0 %v3311
    %3313 = vmatprep.subr.mxu0 0.0
    %v3314 = vand.u32 %v2792, 4294901760
    %v3315 = vsub.f32 %v2792, %v3314
    %v3316 = vand.u32 %v3315, 4294901760
    %v3317 = vsub.f32 %v3315, %v3316
    %v3318 = vand.u32 %v3317, 4294901760
    %3319 = vmatpush1.msra.mxu0 %v3318
    %3320 = vmatprep.subr.mxu0 0.0
    %v3321 = vand.u32 %v2793, 4294901760
    %v3322 = vsub.f32 %v2793, %v3321
    %v3323 = vand.u32 %v3322, 4294901760
    %v3324 = vsub.f32 %v3322, %v3323
    %v3325 = vand.u32 %v3324, 4294901760
    %3326 = vmatpush1.msra.mxu0 %v3325
    %3327 = vmatprep.subr.mxu0 0.0
    %v3328 = vand.u32 %v2794, 4294901760
    %v3329 = vsub.f32 %v2794, %v3328
    %v3330 = vand.u32 %v3329, 4294901760
    %v3331 = vsub.f32 %v3329, %v3330
    %v3332 = vand.u32 %v3331, 4294901760
    %3333 = vmatpush1.msra.mxu0 %v3332
    %3334 = vmatprep.subr.mxu0 0.0
    %v3335 = vand.u32 %v2795, 4294901760
    %v3336 = vsub.f32 %v2795, %v3335
    %v3337 = vand.u32 %v3336, 4294901760
    %v3338 = vsub.f32 %v3336, %v3337
    %v3339 = vand.u32 %v3338, 4294901760
    %3340 = vmatpush1.msra.mxu0 %v3339
    %3341 = vmatprep.subr.mxu0 0.0
    %v3342 = vand.u32 %v2796, 4294901760
    %v3343 = vsub.f32 %v2796, %v3342
    %v3344 = vand.u32 %v3343, 4294901760
    %v3345 = vsub.f32 %v3343, %v3344
    %v3346 = vand.u32 %v3345, 4294901760
    %3347 = vmatpush1.msra.mxu0 %v3346
    %3348 = vmatprep.subr.mxu0 0.0
    %v3349 = vand.u32 %v2797, 4294901760
    %v3350 = vsub.f32 %v2797, %v3349
    %v3351 = vand.u32 %v3350, 4294901760
    %v3352 = vsub.f32 %v3350, %v3351
    %v3353 = vand.u32 %v3352, 4294901760
    %3354 = vmatpush1.msra.mxu0 %v3353
    %3355 = vmatprep.subr.mxu0 0.0
    %v3356 = vand.u32 %v2798, 4294901760
    %v3357 = vsub.f32 %v2798, %v3356
    %v3358 = vand.u32 %v3357, 4294901760
    %v3359 = vsub.f32 %v3357, %v3358
    %v3360 = vand.u32 %v3359, 4294901760
    %3361 = vmatpush1.msra.mxu0 %v3360
    %3362 = vmatprep.subr.mxu0 0.0
    %v3363 = vand.u32 %v2799, 4294901760
    %v3364 = vsub.f32 %v2799, %v3363
    %v3365 = vand.u32 %v3364, 4294901760
    %v3366 = vsub.f32 %v3364, %v3365
    %v3367 = vand.u32 %v3366, 4294901760
    %3368 = vmatpush1.msra.mxu0 %v3367
    %3369 = vmatprep.subr.mxu0 0.0
    %v3370 = vand.u32 %v2800, 4294901760
    %v3371 = vsub.f32 %v2800, %v3370
    %v3372 = vand.u32 %v3371, 4294901760
    %v3373 = vsub.f32 %v3371, %v3372
    %v3374 = vand.u32 %v3373, 4294901760
    %3375 = vmatpush1.msra.mxu0 %v3374
    %3376 = vmatprep.subr.mxu0 0.0
    %v3377 = vand.u32 %v2801, 4294901760
    %v3378 = vsub.f32 %v2801, %v3377
    %v3379 = vand.u32 %v3378, 4294901760
    %v3380 = vsub.f32 %v3378, %v3379
    %v3381 = vand.u32 %v3380, 4294901760
    %3382 = vmatpush1.msra.mxu0 %v3381
    %3383 = vmatprep.subr.mxu0 0.0
    %v3384 = vand.u32 %v2802, 4294901760
    %v3385 = vsub.f32 %v2802, %v3384
    %v3386 = vand.u32 %v3385, 4294901760
    %v3387 = vsub.f32 %v3385, %v3386
    %v3388 = vand.u32 %v3387, 4294901760
    %3389 = vmatpush1.msra.mxu0 %v3388
    %3390 = vmatprep.subr.mxu0 0.0
    %v3391 = vand.u32 %v2803, 4294901760
    %v3392 = vsub.f32 %v2803, %v3391
    %v3393 = vand.u32 %v3392, 4294901760
    %v3394 = vsub.f32 %v3392, %v3393
    %v3395 = vand.u32 %v3394, 4294901760
    %3396 = vmatpush1.msra.mxu0 %v3395
    %3397 = vmatprep.subr.mxu0 0.0
    %v3398 = vand.u32 %v2804, 4294901760
    %v3399 = vsub.f32 %v2804, %v3398
    %v3400 = vand.u32 %v3399, 4294901760
    %v3401 = vsub.f32 %v3399, %v3400
    %v3402 = vand.u32 %v3401, 4294901760
    %3403 = vmatpush1.msra.mxu0 %v3402
    %3404 = vmatprep.subr.mxu0 0.0
    %v3405 = vand.u32 %v2805, 4294901760
    %v3406 = vsub.f32 %v2805, %v3405
    %v3407 = vand.u32 %v3406, 4294901760
    %v3408 = vsub.f32 %v3406, %v3407
    %v3409 = vand.u32 %v3408, 4294901760
    %3410 = vmatpush1.msra.mxu0 %v3409
    %3411 = vmatprep.subr.mxu0 0.0
    %v3412 = vand.u32 %v2806, 4294901760
    %v3413 = vsub.f32 %v2806, %v3412
    %v3414 = vand.u32 %v3413, 4294901760
    %v3415 = vsub.f32 %v3413, %v3414
    %v3416 = vand.u32 %v3415, 4294901760
    %3417 = vmatpush1.msra.mxu0 %v3416
    %3418 = vmatprep.subr.mxu0 0.0
    %v3419 = vand.u32 %v2807, 4294901760
    %v3420 = vsub.f32 %v2807, %v3419
    %v3421 = vand.u32 %v3420, 4294901760
    %v3422 = vsub.f32 %v3420, %v3421
    %v3423 = vand.u32 %v3422, 4294901760
    %3424 = vmatpush1.msra.mxu0 %v3423
    %3425 = vmatprep.subr.mxu0 0.0
    %v3426 = vand.u32 %v2808, 4294901760
    %v3427 = vsub.f32 %v2808, %v3426
    %v3428 = vand.u32 %v3427, 4294901760
    %v3429 = vsub.f32 %v3427, %v3428
    %v3430 = vand.u32 %v3429, 4294901760
    %3431 = vmatpush1.msra.mxu0 %v3430
    %3432 = vmatprep.subr.mxu0 0.0
    %v3433 = vand.u32 %v2809, 4294901760
    %v3434 = vsub.f32 %v2809, %v3433
    %v3435 = vand.u32 %v3434, 4294901760
    %v3436 = vsub.f32 %v3434, %v3435
    %v3437 = vand.u32 %v3436, 4294901760
    %3438 = vmatpush1.msra.mxu0 %v3437
    %3439 = vmatprep.subr.mxu0 0.0
    %v3440 = vand.u32 %v2810, 4294901760
    %v3441 = vsub.f32 %v2810, %v3440
    %v3442 = vand.u32 %v3441, 4294901760
    %v3443 = vsub.f32 %v3441, %v3442
    %v3444 = vand.u32 %v3443, 4294901760
    %3445 = vmatpush1.msra.mxu0 %v3444
    %3446 = vmatprep.subr.mxu0 0.0
    %v3447 = vand.u32 %v2811, 4294901760
    %v3448 = vsub.f32 %v2811, %v3447
    %v3449 = vand.u32 %v3448, 4294901760
    %v3450 = vsub.f32 %v3448, %v3449
    %v3451 = vand.u32 %v3450, 4294901760
    %3452 = vmatpush1.msra.mxu0 %v3451
    %3453 = vmatprep.subr.mxu0 0.0
    %v3454 = vand.u32 %v2812, 4294901760
    %v3455 = vsub.f32 %v2812, %v3454
    %v3456 = vand.u32 %v3455, 4294901760
    %v3457 = vsub.f32 %v3455, %v3456
    %v3458 = vand.u32 %v3457, 4294901760
    %3459 = vmatpush1.msra.mxu0 %v3458
    %v3460 = vand.u32 %v3120, 4294901760
    %3461 = vmatprep.mubr.f32.mxu0 %v3460
    %v3462 = vand.u32 %v3112, 4294901760
    %3463 = vmatmul.mubr.f32.gmra.mrb[0].mxu0 %v3462
    %v3464 = vpop.f32.mrb[0].mxu0
    %v3465 = vadd.f32 %v3233, %v3464
    %v3466 = vpop.f32.mrb[0].mxu0
    %3467 = vdwg.mxu0
    %3468 = vmatprep.subr.mxu0 0.0
    %v3469 = vand.u32 %v2781, 4294901760
    %v3470 = vsub.f32 %v2781, %v3469
    %3471 = vmatpush1.msra.mxu0 %v3470
    %3472 = vmatprep.subr.mxu0 0.0
    %v3473 = vand.u32 %v2782, 4294901760
    %v3474 = vsub.f32 %v2782, %v3473
    %3475 = vmatpush1.msra.mxu0 %v3474
    %3476 = vmatprep.subr.mxu0 0.0
    %v3477 = vand.u32 %v2783, 4294901760
    %v3478 = vsub.f32 %v2783, %v3477
    %3479 = vmatpush1.msra.mxu0 %v3478
    %3480 = vmatprep.subr.mxu0 0.0
    %v3481 = vand.u32 %v2784, 4294901760
    %v3482 = vsub.f32 %v2784, %v3481
    %3483 = vmatpush1.msra.mxu0 %v3482
    %3484 = vmatprep.subr.mxu0 0.0
    %v3485 = vand.u32 %v2785, 4294901760
    %v3486 = vsub.f32 %v2785, %v3485
    %3487 = vmatpush1.msra.mxu0 %v3486
    %3488 = vmatprep.subr.mxu0 0.0
    %v3489 = vand.u32 %v2786, 4294901760
    %v3490 = vsub.f32 %v2786, %v3489
    %3491 = vmatpush1.msra.mxu0 %v3490
    %3492 = vmatprep.subr.mxu0 0.0
    %v3493 = vand.u32 %v2787, 4294901760
    %v3494 = vsub.f32 %v2787, %v3493
    %3495 = vmatpush1.msra.mxu0 %v3494
    %3496 = vmatprep.subr.mxu0 0.0
    %v3497 = vand.u32 %v2788, 4294901760
    %v3498 = vsub.f32 %v2788, %v3497
    %3499 = vmatpush1.msra.mxu0 %v3498
    %3500 = vmatprep.subr.mxu0 0.0
    %v3501 = vand.u32 %v2789, 4294901760
    %v3502 = vsub.f32 %v2789, %v3501
    %3503 = vmatpush1.msra.mxu0 %v3502
    %3504 = vmatprep.subr.mxu0 0.0
    %v3505 = vand.u32 %v2790, 4294901760
    %v3506 = vsub.f32 %v2790, %v3505
    %3507 = vmatpush1.msra.mxu0 %v3506
    %3508 = vmatprep.subr.mxu0 0.0
    %v3509 = vand.u32 %v2791, 4294901760
    %v3510 = vsub.f32 %v2791, %v3509
    %3511 = vmatpush1.msra.mxu0 %v3510
    %3512 = vmatprep.subr.mxu0 0.0
    %v3513 = vand.u32 %v2792, 4294901760
    %v3514 = vsub.f32 %v2792, %v3513
    %3515 = vmatpush1.msra.mxu0 %v3514
    %3516 = vmatprep.subr.mxu0 0.0
    %v3517 = vand.u32 %v2793, 4294901760
    %v3518 = vsub.f32 %v2793, %v3517
    %3519 = vmatpush1.msra.mxu0 %v3518
    %3520 = vmatprep.subr.mxu0 0.0
    %v3521 = vand.u32 %v2794, 4294901760
    %v3522 = vsub.f32 %v2794, %v3521
    %3523 = vmatpush1.msra.mxu0 %v3522
    %3524 = vmatprep.subr.mxu0 0.0
    %v3525 = vand.u32 %v2795, 4294901760
    %v3526 = vsub.f32 %v2795, %v3525
    %3527 = vmatpush1.msra.mxu0 %v3526
    %3528 = vmatprep.subr.mxu0 0.0
    %v3529 = vand.u32 %v2796, 4294901760
    %v3530 = vsub.f32 %v2796, %v3529
    %3531 = vmatpush1.msra.mxu0 %v3530
    %3532 = vmatprep.subr.mxu0 0.0
    %v3533 = vand.u32 %v2797, 4294901760
    %v3534 = vsub.f32 %v2797, %v3533
    %3535 = vmatpush1.msra.mxu0 %v3534
    %3536 = vmatprep.subr.mxu0 0.0
    %v3537 = vand.u32 %v2798, 4294901760
    %v3538 = vsub.f32 %v2798, %v3537
    %3539 = vmatpush1.msra.mxu0 %v3538
    %3540 = vmatprep.subr.mxu0 0.0
    %v3541 = vand.u32 %v2799, 4294901760
    %v3542 = vsub.f32 %v2799, %v3541
    %3543 = vmatpush1.msra.mxu0 %v3542
    %3544 = vmatprep.subr.mxu0 0.0
    %v3545 = vand.u32 %v2800, 4294901760
    %v3546 = vsub.f32 %v2800, %v3545
    %3547 = vmatpush1.msra.mxu0 %v3546
    %3548 = vmatprep.subr.mxu0 0.0
    %v3549 = vand.u32 %v2801, 4294901760
    %v3550 = vsub.f32 %v2801, %v3549
    %3551 = vmatpush1.msra.mxu0 %v3550
    %3552 = vmatprep.subr.mxu0 0.0
    %v3553 = vand.u32 %v2802, 4294901760
    %v3554 = vsub.f32 %v2802, %v3553
    %3555 = vmatpush1.msra.mxu0 %v3554
    %3556 = vmatprep.subr.mxu0 0.0
    %v3557 = vand.u32 %v2803, 4294901760
    %v3558 = vsub.f32 %v2803, %v3557
    %3559 = vmatpush1.msra.mxu0 %v3558
    %3560 = vmatprep.subr.mxu0 0.0
    %v3561 = vand.u32 %v2804, 4294901760
    %v3562 = vsub.f32 %v2804, %v3561
    %3563 = vmatpush1.msra.mxu0 %v3562
    %3564 = vmatprep.subr.mxu0 0.0
    %v3565 = vand.u32 %v2805, 4294901760
    %v3566 = vsub.f32 %v2805, %v3565
    %3567 = vmatpush1.msra.mxu0 %v3566
    %3568 = vmatprep.subr.mxu0 0.0
    %v3569 = vand.u32 %v2806, 4294901760
    %v3570 = vsub.f32 %v2806, %v3569
    %3571 = vmatpush1.msra.mxu0 %v3570
    %3572 = vmatprep.subr.mxu0 0.0
    %v3573 = vand.u32 %v2807, 4294901760
    %v3574 = vsub.f32 %v2807, %v3573
    %3575 = vmatpush1.msra.mxu0 %v3574
    %3576 = vmatprep.subr.mxu0 0.0
    %v3577 = vand.u32 %v2808, 4294901760
    %v3578 = vsub.f32 %v2808, %v3577
    %3579 = vmatpush1.msra.mxu0 %v3578
    %3580 = vmatprep.subr.mxu0 0.0
    %v3581 = vand.u32 %v2809, 4294901760
    %v3582 = vsub.f32 %v2809, %v3581
    %3583 = vmatpush1.msra.mxu0 %v3582
    %3584 = vmatprep.subr.mxu0 0.0
    %v3585 = vand.u32 %v2810, 4294901760
    %v3586 = vsub.f32 %v2810, %v3585
    %3587 = vmatpush1.msra.mxu0 %v3586
    %3588 = vmatprep.subr.mxu0 0.0
    %v3589 = vand.u32 %v2811, 4294901760
    %v3590 = vsub.f32 %v2811, %v3589
    %3591 = vmatpush1.msra.mxu0 %v3590
    %3592 = vmatprep.subr.mxu0 0.0
    %v3593 = vand.u32 %v2812, 4294901760
    %v3594 = vsub.f32 %v2812, %v3593
    %3595 = vmatpush1.msra.mxu0 %v3594
    %v3596 = vand.u32 %v3120, 4294901760
    %v3597 = vsub.f32 %v3120, %v3596
    %3598 = vmatprep.mubr.f32.mxu0 %v3597
    %v3599 = vand.u32 %v3112, 4294901760
    %v3600 = vsub.f32 %v3112, %v3599
    %3601 = vmatmul.mubr.f32.gmra.mrb[0].mxu0 %v3600
    %v3602 = vpop.f32.mrb[0].mxu0
    %v3603 = vadd.f32 %v3465, %v3602
    %v3604 = vpop.f32.mrb[0].mxu0
    %3605 = vdwg.mxu0
    %3606 = vmatprep.subr.mxu0 0.0
    %v3607 = vand.u32 %v2781, 4294901760
    %3608 = vmatpush1.msra.mxu0 %v3607
    %3609 = vmatprep.subr.mxu0 0.0
    %v3610 = vand.u32 %v2782, 4294901760
    %3611 = vmatpush1.msra.mxu0 %v3610
    %3612 = vmatprep.subr.mxu0 0.0
    %v3613 = vand.u32 %v2783, 4294901760
    %3614 = vmatpush1.msra.mxu0 %v3613
    %3615 = vmatprep.subr.mxu0 0.0
    %v3616 = vand.u32 %v2784, 4294901760
    %3617 = vmatpush1.msra.mxu0 %v3616
    %3618 = vmatprep.subr.mxu0 0.0
    %v3619 = vand.u32 %v2785, 4294901760
    %3620 = vmatpush1.msra.mxu0 %v3619
    %3621 = vmatprep.subr.mxu0 0.0
    %v3622 = vand.u32 %v2786, 4294901760
    %3623 = vmatpush1.msra.mxu0 %v3622
    %3624 = vmatprep.subr.mxu0 0.0
    %v3625 = vand.u32 %v2787, 4294901760
    %3626 = vmatpush1.msra.mxu0 %v3625
    %3627 = vmatprep.subr.mxu0 0.0
    %v3628 = vand.u32 %v2788, 4294901760
    %3629 = vmatpush1.msra.mxu0 %v3628
    %3630 = vmatprep.subr.mxu0 0.0
    %v3631 = vand.u32 %v2789, 4294901760
    %3632 = vmatpush1.msra.mxu0 %v3631
    %3633 = vmatprep.subr.mxu0 0.0
    %v3634 = vand.u32 %v2790, 4294901760
    %3635 = vmatpush1.msra.mxu0 %v3634
    %3636 = vmatprep.subr.mxu0 0.0
    %v3637 = vand.u32 %v2791, 4294901760
    %3638 = vmatpush1.msra.mxu0 %v3637
    %3639 = vmatprep.subr.mxu0 0.0
    %v3640 = vand.u32 %v2792, 4294901760
    %3641 = vmatpush1.msra.mxu0 %v3640
    %3642 = vmatprep.subr.mxu0 0.0
    %v3643 = vand.u32 %v2793, 4294901760
    %3644 = vmatpush1.msra.mxu0 %v3643
    %3645 = vmatprep.subr.mxu0 0.0
    %v3646 = vand.u32 %v2794, 4294901760
    %3647 = vmatpush1.msra.mxu0 %v3646
    %3648 = vmatprep.subr.mxu0 0.0
    %v3649 = vand.u32 %v2795, 4294901760
    %3650 = vmatpush1.msra.mxu0 %v3649
    %3651 = vmatprep.subr.mxu0 0.0
    %v3652 = vand.u32 %v2796, 4294901760
    %3653 = vmatpush1.msra.mxu0 %v3652
    %3654 = vmatprep.subr.mxu0 0.0
    %v3655 = vand.u32 %v2797, 4294901760
    %3656 = vmatpush1.msra.mxu0 %v3655
    %3657 = vmatprep.subr.mxu0 0.0
    %v3658 = vand.u32 %v2798, 4294901760
    %3659 = vmatpush1.msra.mxu0 %v3658
    %3660 = vmatprep.subr.mxu0 0.0
    %v3661 = vand.u32 %v2799, 4294901760
    %3662 = vmatpush1.msra.mxu0 %v3661
    %3663 = vmatprep.subr.mxu0 0.0
    %v3664 = vand.u32 %v2800, 4294901760
    %3665 = vmatpush1.msra.mxu0 %v3664
    %3666 = vmatprep.subr.mxu0 0.0
    %v3667 = vand.u32 %v2801, 4294901760
    %3668 = vmatpush1.msra.mxu0 %v3667
    %3669 = vmatprep.subr.mxu0 0.0
    %v3670 = vand.u32 %v2802, 4294901760
    %3671 = vmatpush1.msra.mxu0 %v3670
    %3672 = vmatprep.subr.mxu0 0.0
    %v3673 = vand.u32 %v2803, 4294901760
    %3674 = vmatpush1.msra.mxu0 %v3673
    %3675 = vmatprep.subr.mxu0 0.0
    %v3676 = vand.u32 %v2804, 4294901760
    %3677 = vmatpush1.msra.mxu0 %v3676
    %3678 = vmatprep.subr.mxu0 0.0
    %v3679 = vand.u32 %v2805, 4294901760
    %3680 = vmatpush1.msra.mxu0 %v3679
    %3681 = vmatprep.subr.mxu0 0.0
    %v3682 = vand.u32 %v2806, 4294901760
    %3683 = vmatpush1.msra.mxu0 %v3682
    %3684 = vmatprep.subr.mxu0 0.0
    %v3685 = vand.u32 %v2807, 4294901760
    %3686 = vmatpush1.msra.mxu0 %v3685
    %3687 = vmatprep.subr.mxu0 0.0
    %v3688 = vand.u32 %v2808, 4294901760
    %3689 = vmatpush1.msra.mxu0 %v3688
    %3690 = vmatprep.subr.mxu0 0.0
    %v3691 = vand.u32 %v2809, 4294901760
    %3692 = vmatpush1.msra.mxu0 %v3691
    %3693 = vmatprep.subr.mxu0 0.0
    %v3694 = vand.u32 %v2810, 4294901760
    %3695 = vmatpush1.msra.mxu0 %v3694
    %3696 = vmatprep.subr.mxu0 0.0
    %v3697 = vand.u32 %v2811, 4294901760
    %3698 = vmatpush1.msra.mxu0 %v3697
    %3699 = vmatprep.subr.mxu0 0.0
    %v3700 = vand.u32 %v2812, 4294901760
    %3701 = vmatpush1.msra.mxu0 %v3700
    %v3702 = vand.u32 %v3120, 4294901760
    %v3703 = vsub.f32 %v3120, %v3702
    %v3704 = vand.u32 %v3703, 4294901760
    %3705 = vmatprep.mubr.f32.mxu0 %v3704
    %v3706 = vand.u32 %v3112, 4294901760
    %v3707 = vsub.f32 %v3112, %v3706
    %v3708 = vand.u32 %v3707, 4294901760
    %3709 = vmatmul.mubr.f32.gmra.mrb[0].mxu0 %v3708
    %v3710 = vpop.f32.mrb[0].mxu0
    %v3711 = vadd.f32 %v3603, %v3710
    %v3712 = vpop.f32.mrb[0].mxu0
    %3713 = vdwg.mxu0
    %3714 = vmatprep.subr.mxu0 0.0
    %v3715 = vand.u32 %v2781, 4294901760
    %v3716 = vsub.f32 %v2781, %v3715
    %v3717 = vand.u32 %v3716, 4294901760
    %3718 = vmatpush1.msra.mxu0 %v3717
    %3719 = vmatprep.subr.mxu0 0.0
    %v3720 = vand.u32 %v2782, 4294901760
    %v3721 = vsub.f32 %v2782, %v3720
    %v3722 = vand.u32 %v3721, 4294901760
    %3723 = vmatpush1.msra.mxu0 %v3722
    %3724 = vmatprep.subr.mxu0 0.0
    %v3725 = vand.u32 %v2783, 4294901760
    %v3726 = vsub.f32 %v2783, %v3725
    %v3727 = vand.u32 %v3726, 4294901760
    %3728 = vmatpush1.msra.mxu0 %v3727
    %3729 = vmatprep.subr.mxu0 0.0
    %v3730 = vand.u32 %v2784, 4294901760
    %v3731 = vsub.f32 %v2784, %v3730
    %v3732 = vand.u32 %v3731, 4294901760
    %3733 = vmatpush1.msra.mxu0 %v3732
    %3734 = vmatprep.subr.mxu0 0.0
    %v3735 = vand.u32 %v2785, 4294901760
    %v3736 = vsub.f32 %v2785, %v3735
    %v3737 = vand.u32 %v3736, 4294901760
    %3738 = vmatpush1.msra.mxu0 %v3737
    %3739 = vmatprep.subr.mxu0 0.0
    %v3740 = vand.u32 %v2786, 4294901760
    %v3741 = vsub.f32 %v2786, %v3740
    %v3742 = vand.u32 %v3741, 4294901760
    %3743 = vmatpush1.msra.mxu0 %v3742
    %3744 = vmatprep.subr.mxu0 0.0
    %v3745 = vand.u32 %v2787, 4294901760
    %v3746 = vsub.f32 %v2787, %v3745
    %v3747 = vand.u32 %v3746, 4294901760
    %3748 = vmatpush1.msra.mxu0 %v3747
    %3749 = vmatprep.subr.mxu0 0.0
    %v3750 = vand.u32 %v2788, 4294901760
    %v3751 = vsub.f32 %v2788, %v3750
    %v3752 = vand.u32 %v3751, 4294901760
    %3753 = vmatpush1.msra.mxu0 %v3752
    %3754 = vmatprep.subr.mxu0 0.0
    %v3755 = vand.u32 %v2789, 4294901760
    %v3756 = vsub.f32 %v2789, %v3755
    %v3757 = vand.u32 %v3756, 4294901760
    %3758 = vmatpush1.msra.mxu0 %v3757
    %3759 = vmatprep.subr.mxu0 0.0
    %v3760 = vand.u32 %v2790, 4294901760
    %v3761 = vsub.f32 %v2790, %v3760
    %v3762 = vand.u32 %v3761, 4294901760
    %3763 = vmatpush1.msra.mxu0 %v3762
    %3764 = vmatprep.subr.mxu0 0.0
    %v3765 = vand.u32 %v2791, 4294901760
    %v3766 = vsub.f32 %v2791, %v3765
    %v3767 = vand.u32 %v3766, 4294901760
    %3768 = vmatpush1.msra.mxu0 %v3767
    %3769 = vmatprep.subr.mxu0 0.0
    %v3770 = vand.u32 %v2792, 4294901760
    %v3771 = vsub.f32 %v2792, %v3770
    %v3772 = vand.u32 %v3771, 4294901760
    %3773 = vmatpush1.msra.mxu0 %v3772
    %3774 = vmatprep.subr.mxu0 0.0
    %v3775 = vand.u32 %v2793, 4294901760
    %v3776 = vsub.f32 %v2793, %v3775
    %v3777 = vand.u32 %v3776, 4294901760
    %3778 = vmatpush1.msra.mxu0 %v3777
    %3779 = vmatprep.subr.mxu0 0.0
    %v3780 = vand.u32 %v2794, 4294901760
    %v3781 = vsub.f32 %v2794, %v3780
    %v3782 = vand.u32 %v3781, 4294901760
    %3783 = vmatpush1.msra.mxu0 %v3782
    %3784 = vmatprep.subr.mxu0 0.0
    %v3785 = vand.u32 %v2795, 4294901760
    %v3786 = vsub.f32 %v2795, %v3785
    %v3787 = vand.u32 %v3786, 4294901760
    %3788 = vmatpush1.msra.mxu0 %v3787
    %3789 = vmatprep.subr.mxu0 0.0
    %v3790 = vand.u32 %v2796, 4294901760
    %v3791 = vsub.f32 %v2796, %v3790
    %v3792 = vand.u32 %v3791, 4294901760
    %3793 = vmatpush1.msra.mxu0 %v3792
    %3794 = vmatprep.subr.mxu0 0.0
    %v3795 = vand.u32 %v2797, 4294901760
    %v3796 = vsub.f32 %v2797, %v3795
    %v3797 = vand.u32 %v3796, 4294901760
    %3798 = vmatpush1.msra.mxu0 %v3797
    %3799 = vmatprep.subr.mxu0 0.0
    %v3800 = vand.u32 %v2798, 4294901760
    %v3801 = vsub.f32 %v2798, %v3800
    %v3802 = vand.u32 %v3801, 4294901760
    %3803 = vmatpush1.msra.mxu0 %v3802
    %3804 = vmatprep.subr.mxu0 0.0
    %v3805 = vand.u32 %v2799, 4294901760
    %v3806 = vsub.f32 %v2799, %v3805
    %v3807 = vand.u32 %v3806, 4294901760
    %3808 = vmatpush1.msra.mxu0 %v3807
    %3809 = vmatprep.subr.mxu0 0.0
    %v3810 = vand.u32 %v2800, 4294901760
    %v3811 = vsub.f32 %v2800, %v3810
    %v3812 = vand.u32 %v3811, 4294901760
    %3813 = vmatpush1.msra.mxu0 %v3812
    %3814 = vmatprep.subr.mxu0 0.0
    %v3815 = vand.u32 %v2801, 4294901760
    %v3816 = vsub.f32 %v2801, %v3815
    %v3817 = vand.u32 %v3816, 4294901760
    %3818 = vmatpush1.msra.mxu0 %v3817
    %3819 = vmatprep.subr.mxu0 0.0
    %v3820 = vand.u32 %v2802, 4294901760
    %v3821 = vsub.f32 %v2802, %v3820
    %v3822 = vand.u32 %v3821, 4294901760
    %3823 = vmatpush1.msra.mxu0 %v3822
    %3824 = vmatprep.subr.mxu0 0.0
    %v3825 = vand.u32 %v2803, 4294901760
    %v3826 = vsub.f32 %v2803, %v3825
    %v3827 = vand.u32 %v3826, 4294901760
    %3828 = vmatpush1.msra.mxu0 %v3827
    %3829 = vmatprep.subr.mxu0 0.0
    %v3830 = vand.u32 %v2804, 4294901760
    %v3831 = vsub.f32 %v2804, %v3830
    %v3832 = vand.u32 %v3831, 4294901760
    %3833 = vmatpush1.msra.mxu0 %v3832
    %3834 = vmatprep.subr.mxu0 0.0
    %v3835 = vand.u32 %v2805, 4294901760
    %v3836 = vsub.f32 %v2805, %v3835
    %v3837 = vand.u32 %v3836, 4294901760
    %3838 = vmatpush1.msra.mxu0 %v3837
    %3839 = vmatprep.subr.mxu0 0.0
    %v3840 = vand.u32 %v2806, 4294901760
    %v3841 = vsub.f32 %v2806, %v3840
    %v3842 = vand.u32 %v3841, 4294901760
    %3843 = vmatpush1.msra.mxu0 %v3842
    %3844 = vmatprep.subr.mxu0 0.0
    %v3845 = vand.u32 %v2807, 4294901760
    %v3846 = vsub.f32 %v2807, %v3845
    %v3847 = vand.u32 %v3846, 4294901760
    %3848 = vmatpush1.msra.mxu0 %v3847
    %3849 = vmatprep.subr.mxu0 0.0
    %v3850 = vand.u32 %v2808, 4294901760
    %v3851 = vsub.f32 %v2808, %v3850
    %v3852 = vand.u32 %v3851, 4294901760
    %3853 = vmatpush1.msra.mxu0 %v3852
    %3854 = vmatprep.subr.mxu0 0.0
    %v3855 = vand.u32 %v2809, 4294901760
    %v3856 = vsub.f32 %v2809, %v3855
    %v3857 = vand.u32 %v3856, 4294901760
    %3858 = vmatpush1.msra.mxu0 %v3857
    %3859 = vmatprep.subr.mxu0 0.0
    %v3860 = vand.u32 %v2810, 4294901760
    %v3861 = vsub.f32 %v2810, %v3860
    %v3862 = vand.u32 %v3861, 4294901760
    %3863 = vmatpush1.msra.mxu0 %v3862
    %3864 = vmatprep.subr.mxu0 0.0
    %v3865 = vand.u32 %v2811, 4294901760
    %v3866 = vsub.f32 %v2811, %v3865
    %v3867 = vand.u32 %v3866, 4294901760
    %3868 = vmatpush1.msra.mxu0 %v3867
    %3869 = vmatprep.subr.mxu0 0.0
    %v3870 = vand.u32 %v2812, 4294901760
    %v3871 = vsub.f32 %v2812, %v3870
    %v3872 = vand.u32 %v3871, 4294901760
    %3873 = vmatpush1.msra.mxu0 %v3872
    %v3874 = vand.u32 %v3120, 4294901760
    %3875 = vmatprep.mubr.f32.mxu0 %v3874
    %v3876 = vand.u32 %v3112, 4294901760
    %3877 = vmatmul.mubr.f32.gmra.mrb[0].mxu0 %v3876
    %v3878 = vpop.f32.mrb[0].mxu0
    %v3879 = vadd.f32 %v3711, %v3878
    %v3880 = vpop.f32.mrb[0].mxu0
    %3881 = vdwg.mxu0
    %3882 = vmatprep.subr.mxu0 0.0
    %v3883 = vand.u32 %v2781, 4294901760
    %3884 = vmatpush1.msra.mxu0 %v3883
    %3885 = vmatprep.subr.mxu0 0.0
    %v3886 = vand.u32 %v2782, 4294901760
    %3887 = vmatpush1.msra.mxu0 %v3886
    %3888 = vmatprep.subr.mxu0 0.0
    %v3889 = vand.u32 %v2783, 4294901760
    %3890 = vmatpush1.msra.mxu0 %v3889
    %3891 = vmatprep.subr.mxu0 0.0
    %v3892 = vand.u32 %v2784, 4294901760
    %3893 = vmatpush1.msra.mxu0 %v3892
    %3894 = vmatprep.subr.mxu0 0.0
    %v3895 = vand.u32 %v2785, 4294901760
    %3896 = vmatpush1.msra.mxu0 %v3895
    %3897 = vmatprep.subr.mxu0 0.0
    %v3898 = vand.u32 %v2786, 4294901760
    %3899 = vmatpush1.msra.mxu0 %v3898
    %3900 = vmatprep.subr.mxu0 0.0
    %v3901 = vand.u32 %v2787, 4294901760
    %3902 = vmatpush1.msra.mxu0 %v3901
    %3903 = vmatprep.subr.mxu0 0.0
    %v3904 = vand.u32 %v2788, 4294901760
    %3905 = vmatpush1.msra.mxu0 %v3904
    %3906 = vmatprep.subr.mxu0 0.0
    %v3907 = vand.u32 %v2789, 4294901760
    %3908 = vmatpush1.msra.mxu0 %v3907
    %3909 = vmatprep.subr.mxu0 0.0
    %v3910 = vand.u32 %v2790, 4294901760
    %3911 = vmatpush1.msra.mxu0 %v3910
    %3912 = vmatprep.subr.mxu0 0.0
    %v3913 = vand.u32 %v2791, 4294901760
    %3914 = vmatpush1.msra.mxu0 %v3913
    %3915 = vmatprep.subr.mxu0 0.0
    %v3916 = vand.u32 %v2792, 4294901760
    %3917 = vmatpush1.msra.mxu0 %v3916
    %3918 = vmatprep.subr.mxu0 0.0
    %v3919 = vand.u32 %v2793, 4294901760
    %3920 = vmatpush1.msra.mxu0 %v3919
    %3921 = vmatprep.subr.mxu0 0.0
    %v3922 = vand.u32 %v2794, 4294901760
    %3923 = vmatpush1.msra.mxu0 %v3922
    %3924 = vmatprep.subr.mxu0 0.0
    %v3925 = vand.u32 %v2795, 4294901760
    %3926 = vmatpush1.msra.mxu0 %v3925
    %3927 = vmatprep.subr.mxu0 0.0
    %v3928 = vand.u32 %v2796, 4294901760
    %3929 = vmatpush1.msra.mxu0 %v3928
    %3930 = vmatprep.subr.mxu0 0.0
    %v3931 = vand.u32 %v2797, 4294901760
    %3932 = vmatpush1.msra.mxu0 %v3931
    %3933 = vmatprep.subr.mxu0 0.0
    %v3934 = vand.u32 %v2798, 4294901760
    %3935 = vmatpush1.msra.mxu0 %v3934
    %3936 = vmatprep.subr.mxu0 0.0
    %v3937 = vand.u32 %v2799, 4294901760
    %3938 = vmatpush1.msra.mxu0 %v3937
    %3939 = vmatprep.subr.mxu0 0.0
    %v3940 = vand.u32 %v2800, 4294901760
    %3941 = vmatpush1.msra.mxu0 %v3940
    %3942 = vmatprep.subr.mxu0 0.0
    %v3943 = vand.u32 %v2801, 4294901760
    %3944 = vmatpush1.msra.mxu0 %v3943
    %3945 = vmatprep.subr.mxu0 0.0
    %v3946 = vand.u32 %v2802, 4294901760
    %3947 = vmatpush1.msra.mxu0 %v3946
    %3948 = vmatprep.subr.mxu0 0.0
    %v3949 = vand.u32 %v2803, 4294901760
    %3950 = vmatpush1.msra.mxu0 %v3949
    %3951 = vmatprep.subr.mxu0 0.0
    %v3952 = vand.u32 %v2804, 4294901760
    %3953 = vmatpush1.msra.mxu0 %v3952
    %3954 = vmatprep.subr.mxu0 0.0
    %v3955 = vand.u32 %v2805, 4294901760
    %3956 = vmatpush1.msra.mxu0 %v3955
    %3957 = vmatprep.subr.mxu0 0.0
    %v3958 = vand.u32 %v2806, 4294901760
    %3959 = vmatpush1.msra.mxu0 %v3958
    %3960 = vmatprep.subr.mxu0 0.0
    %v3961 = vand.u32 %v2807, 4294901760
    %3962 = vmatpush1.msra.mxu0 %v3961
    %3963 = vmatprep.subr.mxu0 0.0
    %v3964 = vand.u32 %v2808, 4294901760
    %3965 = vmatpush1.msra.mxu0 %v3964
    %3966 = vmatprep.subr.mxu0 0.0
    %v3967 = vand.u32 %v2809, 4294901760
    %3968 = vmatpush1.msra.mxu0 %v3967
    %3969 = vmatprep.subr.mxu0 0.0
    %v3970 = vand.u32 %v2810, 4294901760
    %3971 = vmatpush1.msra.mxu0 %v3970
    %3972 = vmatprep.subr.mxu0 0.0
    %v3973 = vand.u32 %v2811, 4294901760
    %3974 = vmatpush1.msra.mxu0 %v3973
    %3975 = vmatprep.subr.mxu0 0.0
    %v3976 = vand.u32 %v2812, 4294901760
    %3977 = vmatpush1.msra.mxu0 %v3976
    %v3978 = vand.u32 %v3120, 4294901760
    %3979 = vmatprep.mubr.f32.mxu0 %v3978
    %v3980 = vand.u32 %v3112, 4294901760
    %3981 = vmatmul.mubr.f32.gmra.mrb[0].mxu0 %v3980
    %v3982 = vpop.f32.mrb[0].mxu0
    %v3983 = vadd.f32 %v3879, %v3982
    %v3984 = vpop.f32.mrb[0].mxu0
    %3985 = vdwg.mxu0
    %3986 = vmatprep.subr.mxu0 0.0
    %v3987 = vand.u32 %v2813, 4294901760
    %3988 = vmatpush1.msra.mxu0 %v3987
    %3989 = vmatprep.subr.mxu0 0.0
    %v3990 = vand.u32 %v2814, 4294901760
    %3991 = vmatpush1.msra.mxu0 %v3990
    %3992 = vmatprep.subr.mxu0 0.0
    %v3993 = vand.u32 %v2815, 4294901760
    %3994 = vmatpush1.msra.mxu0 %v3993
    %3995 = vmatprep.subr.mxu0 0.0
    %v3996 = vand.u32 %v2816, 4294901760
    %3997 = vmatpush1.msra.mxu0 %v3996
    %3998 = vmatprep.subr.mxu0 0.0
    %v3999 = vand.u32 %v2817, 4294901760
    %4000 = vmatpush1.msra.mxu0 %v3999
    %4001 = vmatprep.subr.mxu0 0.0
    %v4002 = vand.u32 %v2818, 4294901760
    %4003 = vmatpush1.msra.mxu0 %v4002
    %4004 = vmatprep.subr.mxu0 0.0
    %v4005 = vand.u32 %v2819, 4294901760
    %4006 = vmatpush1.msra.mxu0 %v4005
    %4007 = vmatprep.subr.mxu0 0.0
    %v4008 = vand.u32 %v2820, 4294901760
    %4009 = vmatpush1.msra.mxu0 %v4008
    %4010 = vmatprep.subr.mxu0 0.0
    %v4011 = vand.u32 %v2821, 4294901760
    %4012 = vmatpush1.msra.mxu0 %v4011
    %4013 = vmatprep.subr.mxu0 0.0
    %v4014 = vand.u32 %v2822, 4294901760
    %4015 = vmatpush1.msra.mxu0 %v4014
    %4016 = vmatprep.subr.mxu0 0.0
    %v4017 = vand.u32 %v2823, 4294901760
    %4018 = vmatpush1.msra.mxu0 %v4017
    %4019 = vmatprep.subr.mxu0 0.0
    %v4020 = vand.u32 %v2824, 4294901760
    %4021 = vmatpush1.msra.mxu0 %v4020
    %4022 = vmatprep.subr.mxu0 0.0
    %v4023 = vand.u32 %v2825, 4294901760
    %4024 = vmatpush1.msra.mxu0 %v4023
    %4025 = vmatprep.subr.mxu0 0.0
    %v4026 = vand.u32 %v2826, 4294901760
    %4027 = vmatpush1.msra.mxu0 %v4026
    %4028 = vmatprep.subr.mxu0 0.0
    %v4029 = vand.u32 %v2827, 4294901760
    %4030 = vmatpush1.msra.mxu0 %v4029
    %4031 = vmatprep.subr.mxu0 0.0
    %v4032 = vand.u32 %v2828, 4294901760
    %4033 = vmatpush1.msra.mxu0 %v4032
    %4034 = vmatprep.subr.mxu0 0.0
    %4035 = vmatpush1.msra.mxu0 0.0
    %4036 = vmatprep.subr.mxu0 0.0
    %4037 = vmatpush1.msra.mxu0 0.0
    %4038 = vmatprep.subr.mxu0 0.0
    %4039 = vmatpush1.msra.mxu0 0.0
    %4040 = vmatprep.subr.mxu0 0.0
    %4041 = vmatpush1.msra.mxu0 0.0
    %4042 = vmatprep.subr.mxu0 0.0
    %4043 = vmatpush1.msra.mxu0 0.0
    %4044 = vmatprep.subr.mxu0 0.0
    %4045 = vmatpush1.msra.mxu0 0.0
    %4046 = vmatprep.subr.mxu0 0.0
    %4047 = vmatpush1.msra.mxu0 0.0
    %4048 = vmatprep.subr.mxu0 0.0
    %4049 = vmatpush1.msra.mxu0 0.0
    %4050 = vmatprep.subr.mxu0 0.0
    %4051 = vmatpush1.msra.mxu0 0.0
    %4052 = vmatprep.subr.mxu0 0.0
    %4053 = vmatpush1.msra.mxu0 0.0
    %4054 = vmatprep.subr.mxu0 0.0
    %4055 = vmatpush1.msra.mxu0 0.0
    %4056 = vmatprep.subr.mxu0 0.0
    %4057 = vmatpush1.msra.mxu0 0.0
    %4058 = vmatprep.subr.mxu0 0.0
    %4059 = vmatpush1.msra.mxu0 0.0
    %4060 = vmatprep.subr.mxu0 0.0
    %4061 = vmatpush1.msra.mxu0 0.0
    %4062 = vmatprep.subr.mxu0 0.0
    %4063 = vmatpush1.msra.mxu0 0.0
    %4064 = vmatprep.subr.mxu0 0.0
    %4065 = vmatpush1.msra.mxu0 0.0
    %4066 = vmatprep.mubr.f32.mxu0 0.0
    %v4067 = vand.u32 %v3119, 4294901760
    %v4068 = vsub.f32 %v3119, %v4067
    %v4069 = vand.u32 %v4068, 4294901760
    %v4070 = vsub.f32 %v4068, %v4069
    %v4071 = vand.u32 %v4070, 4294901760
    %4072 = vmatmul.mubr.f32.gmra.mrb[0].mxu0 %v4071
    %v4073 = vpop.f32.mrb[0].mxu0
    %v4074 = vadd.f32 %v3983, %v4073
    %v4075 = vpop.f32.mrb[0].mxu0
    %4076 = vdwg.mxu0
    %4077 = vmatprep.subr.mxu0 0.0
    %v4078 = vand.u32 %v2813, 4294901760
    %v4079 = vsub.f32 %v2813, %v4078
    %v4080 = vand.u32 %v4079, 4294901760
    %v4081 = vsub.f32 %v4079, %v4080
    %v4082 = vand.u32 %v4081, 4294901760
    %4083 = vmatpush1.msra.mxu0 %v4082
    %4084 = vmatprep.subr.mxu0 0.0
    %v4085 = vand.u32 %v2814, 4294901760
    %v4086 = vsub.f32 %v2814, %v4085
    %v4087 = vand.u32 %v4086, 4294901760
    %v4088 = vsub.f32 %v4086, %v4087
    %v4089 = vand.u32 %v4088, 4294901760
    %4090 = vmatpush1.msra.mxu0 %v4089
    %4091 = vmatprep.subr.mxu0 0.0
    %v4092 = vand.u32 %v2815, 4294901760
    %v4093 = vsub.f32 %v2815, %v4092
    %v4094 = vand.u32 %v4093, 4294901760
    %v4095 = vsub.f32 %v4093, %v4094
    %v4096 = vand.u32 %v4095, 4294901760
    %4097 = vmatpush1.msra.mxu0 %v4096
    %4098 = vmatprep.subr.mxu0 0.0
    %v4099 = vand.u32 %v2816, 4294901760
    %v4100 = vsub.f32 %v2816, %v4099
    %v4101 = vand.u32 %v4100, 4294901760
    %v4102 = vsub.f32 %v4100, %v4101
    %v4103 = vand.u32 %v4102, 4294901760
    %4104 = vmatpush1.msra.mxu0 %v4103
    %4105 = vmatprep.subr.mxu0 0.0
    %v4106 = vand.u32 %v2817, 4294901760
    %v4107 = vsub.f32 %v2817, %v4106
    %v4108 = vand.u32 %v4107, 4294901760
    %v4109 = vsub.f32 %v4107, %v4108
    %v4110 = vand.u32 %v4109, 4294901760
    %4111 = vmatpush1.msra.mxu0 %v4110
    %4112 = vmatprep.subr.mxu0 0.0
    %v4113 = vand.u32 %v2818, 4294901760
    %v4114 = vsub.f32 %v2818, %v4113
    %v4115 = vand.u32 %v4114, 4294901760
    %v4116 = vsub.f32 %v4114, %v4115
    %v4117 = vand.u32 %v4116, 4294901760
    %4118 = vmatpush1.msra.mxu0 %v4117
    %4119 = vmatprep.subr.mxu0 0.0
    %v4120 = vand.u32 %v2819, 4294901760
    %v4121 = vsub.f32 %v2819, %v4120
    %v4122 = vand.u32 %v4121, 4294901760
    %v4123 = vsub.f32 %v4121, %v4122
    %v4124 = vand.u32 %v4123, 4294901760
    %4125 = vmatpush1.msra.mxu0 %v4124
    %4126 = vmatprep.subr.mxu0 0.0
    %v4127 = vand.u32 %v2820, 4294901760
    %v4128 = vsub.f32 %v2820, %v4127
    %v4129 = vand.u32 %v4128, 4294901760
    %v4130 = vsub.f32 %v4128, %v4129
    %v4131 = vand.u32 %v4130, 4294901760
    %4132 = vmatpush1.msra.mxu0 %v4131
    %4133 = vmatprep.subr.mxu0 0.0
    %v4134 = vand.u32 %v2821, 4294901760
    %v4135 = vsub.f32 %v2821, %v4134
    %v4136 = vand.u32 %v4135, 4294901760
    %v4137 = vsub.f32 %v4135, %v4136
    %v4138 = vand.u32 %v4137, 4294901760
    %4139 = vmatpush1.msra.mxu0 %v4138
    %4140 = vmatprep.subr.mxu0 0.0
    %v4141 = vand.u32 %v2822, 4294901760
    %v4142 = vsub.f32 %v2822, %v4141
    %v4143 = vand.u32 %v4142, 4294901760
    %v4144 = vsub.f32 %v4142, %v4143
    %v4145 = vand.u32 %v4144, 4294901760
    %4146 = vmatpush1.msra.mxu0 %v4145
    %4147 = vmatprep.subr.mxu0 0.0
    %v4148 = vand.u32 %v2823, 4294901760
    %v4149 = vsub.f32 %v2823, %v4148
    %v4150 = vand.u32 %v4149, 4294901760
    %v4151 = vsub.f32 %v4149, %v4150
    %v4152 = vand.u32 %v4151, 4294901760
    %4153 = vmatpush1.msra.mxu0 %v4152
    %4154 = vmatprep.subr.mxu0 0.0
    %v4155 = vand.u32 %v2824, 4294901760
    %v4156 = vsub.f32 %v2824, %v4155
    %v4157 = vand.u32 %v4156, 4294901760
    %v4158 = vsub.f32 %v4156, %v4157
    %v4159 = vand.u32 %v4158, 4294901760
    %4160 = vmatpush1.msra.mxu0 %v4159
    %4161 = vmatprep.subr.mxu0 0.0
    %v4162 = vand.u32 %v2825, 4294901760
    %v4163 = vsub.f32 %v2825, %v4162
    %v4164 = vand.u32 %v4163, 4294901760
    %v4165 = vsub.f32 %v4163, %v4164
    %v4166 = vand.u32 %v4165, 4294901760
    %4167 = vmatpush1.msra.mxu0 %v4166
    %4168 = vmatprep.subr.mxu0 0.0
    %v4169 = vand.u32 %v2826, 4294901760
    %v4170 = vsub.f32 %v2826, %v4169
    %v4171 = vand.u32 %v4170, 4294901760
    %v4172 = vsub.f32 %v4170, %v4171
    %v4173 = vand.u32 %v4172, 4294901760
    %4174 = vmatpush1.msra.mxu0 %v4173
    %4175 = vmatprep.subr.mxu0 0.0
    %v4176 = vand.u32 %v2827, 4294901760
    %v4177 = vsub.f32 %v2827, %v4176
    %v4178 = vand.u32 %v4177, 4294901760
    %v4179 = vsub.f32 %v4177, %v4178
    %v4180 = vand.u32 %v4179, 4294901760
    %4181 = vmatpush1.msra.mxu0 %v4180
    %4182 = vmatprep.subr.mxu0 0.0
    %v4183 = vand.u32 %v2828, 4294901760
    %v4184 = vsub.f32 %v2828, %v4183
    %v4185 = vand.u32 %v4184, 4294901760
    %v4186 = vsub.f32 %v4184, %v4185
    %v4187 = vand.u32 %v4186, 4294901760
    %4188 = vmatpush1.msra.mxu0 %v4187
    %4189 = vmatprep.subr.mxu0 0.0
    %4190 = vmatpush1.msra.mxu0 0.0
    %4191 = vmatprep.subr.mxu0 0.0
    %4192 = vmatpush1.msra.mxu0 0.0
    %4193 = vmatprep.subr.mxu0 0.0
    %4194 = vmatpush1.msra.mxu0 0.0
    %4195 = vmatprep.subr.mxu0 0.0
    %4196 = vmatpush1.msra.mxu0 0.0
    %4197 = vmatprep.subr.mxu0 0.0
    %4198 = vmatpush1.msra.mxu0 0.0
    %4199 = vmatprep.subr.mxu0 0.0
    %4200 = vmatpush1.msra.mxu0 0.0
    %4201 = vmatprep.subr.mxu0 0.0
    %4202 = vmatpush1.msra.mxu0 0.0
    %4203 = vmatprep.subr.mxu0 0.0
    %4204 = vmatpush1.msra.mxu0 0.0
    %4205 = vmatprep.subr.mxu0 0.0
    %4206 = vmatpush1.msra.mxu0 0.0
    %4207 = vmatprep.subr.mxu0 0.0
    %4208 = vmatpush1.msra.mxu0 0.0
    %4209 = vmatprep.subr.mxu0 0.0
    %4210 = vmatpush1.msra.mxu0 0.0
    %4211 = vmatprep.subr.mxu0 0.0
    %4212 = vmatpush1.msra.mxu0 0.0
    %4213 = vmatprep.subr.mxu0 0.0
    %4214 = vmatpush1.msra.mxu0 0.0
    %4215 = vmatprep.subr.mxu0 0.0
    %4216 = vmatpush1.msra.mxu0 0.0
    %4217 = vmatprep.subr.mxu0 0.0
    %4218 = vmatpush1.msra.mxu0 0.0
    %4219 = vmatprep.subr.mxu0 0.0
    %4220 = vmatpush1.msra.mxu0 0.0
    %4221 = vmatprep.mubr.f32.mxu0 0.0
    %v4222 = vand.u32 %v3119, 4294901760
    %4223 = vmatmul.mubr.f32.gmra.mrb[0].mxu0 %v4222
    %v4224 = vpop.f32.mrb[0].mxu0
    %v4225 = vadd.f32 %v4074, %v4224
    %v4226 = vpop.f32.mrb[0].mxu0
    %4227 = vdwg.mxu0
    %4228 = vmatprep.subr.mxu0 0.0
    %v4229 = vand.u32 %v2813, 4294901760
    %v4230 = vsub.f32 %v2813, %v4229
    %4231 = vmatpush1.msra.mxu0 %v4230
    %4232 = vmatprep.subr.mxu0 0.0
    %v4233 = vand.u32 %v2814, 4294901760
    %v4234 = vsub.f32 %v2814, %v4233
    %4235 = vmatpush1.msra.mxu0 %v4234
    %4236 = vmatprep.subr.mxu0 0.0
    %v4237 = vand.u32 %v2815, 4294901760
    %v4238 = vsub.f32 %v2815, %v4237
    %4239 = vmatpush1.msra.mxu0 %v4238
    %4240 = vmatprep.subr.mxu0 0.0
    %v4241 = vand.u32 %v2816, 4294901760
    %v4242 = vsub.f32 %v2816, %v4241
    %4243 = vmatpush1.msra.mxu0 %v4242
    %4244 = vmatprep.subr.mxu0 0.0
    %v4245 = vand.u32 %v2817, 4294901760
    %v4246 = vsub.f32 %v2817, %v4245
    %4247 = vmatpush1.msra.mxu0 %v4246
    %4248 = vmatprep.subr.mxu0 0.0
    %v4249 = vand.u32 %v2818, 4294901760
    %v4250 = vsub.f32 %v2818, %v4249
    %4251 = vmatpush1.msra.mxu0 %v4250
    %4252 = vmatprep.subr.mxu0 0.0
    %v4253 = vand.u32 %v2819, 4294901760
    %v4254 = vsub.f32 %v2819, %v4253
    %4255 = vmatpush1.msra.mxu0 %v4254
    %4256 = vmatprep.subr.mxu0 0.0
    %v4257 = vand.u32 %v2820, 4294901760
    %v4258 = vsub.f32 %v2820, %v4257
    %4259 = vmatpush1.msra.mxu0 %v4258
    %4260 = vmatprep.subr.mxu0 0.0
    %v4261 = vand.u32 %v2821, 4294901760
    %v4262 = vsub.f32 %v2821, %v4261
    %4263 = vmatpush1.msra.mxu0 %v4262
    %4264 = vmatprep.subr.mxu0 0.0
    %v4265 = vand.u32 %v2822, 4294901760
    %v4266 = vsub.f32 %v2822, %v4265
    %4267 = vmatpush1.msra.mxu0 %v4266
    %4268 = vmatprep.subr.mxu0 0.0
    %v4269 = vand.u32 %v2823, 4294901760
    %v4270 = vsub.f32 %v2823, %v4269
    %4271 = vmatpush1.msra.mxu0 %v4270
    %4272 = vmatprep.subr.mxu0 0.0
    %v4273 = vand.u32 %v2824, 4294901760
    %v4274 = vsub.f32 %v2824, %v4273
    %4275 = vmatpush1.msra.mxu0 %v4274
    %4276 = vmatprep.subr.mxu0 0.0
    %v4277 = vand.u32 %v2825, 4294901760
    %v4278 = vsub.f32 %v2825, %v4277
    %4279 = vmatpush1.msra.mxu0 %v4278
    %4280 = vmatprep.subr.mxu0 0.0
    %v4281 = vand.u32 %v2826, 4294901760
    %v4282 = vsub.f32 %v2826, %v4281
    %4283 = vmatpush1.msra.mxu0 %v4282
    %4284 = vmatprep.subr.mxu0 0.0
    %v4285 = vand.u32 %v2827, 4294901760
    %v4286 = vsub.f32 %v2827, %v4285
    %4287 = vmatpush1.msra.mxu0 %v4286
    %4288 = vmatprep.subr.mxu0 0.0
    %v4289 = vand.u32 %v2828, 4294901760
    %v4290 = vsub.f32 %v2828, %v4289
    %4291 = vmatpush1.msra.mxu0 %v4290
    %4292 = vmatprep.subr.mxu0 0.0
    %4293 = vmatpush1.msra.mxu0 0.0
    %4294 = vmatprep.subr.mxu0 0.0
    %4295 = vmatpush1.msra.mxu0 0.0
    %4296 = vmatprep.subr.mxu0 0.0
    %4297 = vmatpush1.msra.mxu0 0.0
    %4298 = vmatprep.subr.mxu0 0.0
    %4299 = vmatpush1.msra.mxu0 0.0
    %4300 = vmatprep.subr.mxu0 0.0
    %4301 = vmatpush1.msra.mxu0 0.0
    %4302 = vmatprep.subr.mxu0 0.0
    %4303 = vmatpush1.msra.mxu0 0.0
    %4304 = vmatprep.subr.mxu0 0.0
    %4305 = vmatpush1.msra.mxu0 0.0
    %4306 = vmatprep.subr.mxu0 0.0
    %4307 = vmatpush1.msra.mxu0 0.0
    %4308 = vmatprep.subr.mxu0 0.0
    %4309 = vmatpush1.msra.mxu0 0.0
    %4310 = vmatprep.subr.mxu0 0.0
    %4311 = vmatpush1.msra.mxu0 0.0
    %4312 = vmatprep.subr.mxu0 0.0
    %4313 = vmatpush1.msra.mxu0 0.0
    %4314 = vmatprep.subr.mxu0 0.0
    %4315 = vmatpush1.msra.mxu0 0.0
    %4316 = vmatprep.subr.mxu0 0.0
    %4317 = vmatpush1.msra.mxu0 0.0
    %4318 = vmatprep.subr.mxu0 0.0
    %4319 = vmatpush1.msra.mxu0 0.0
    %4320 = vmatprep.subr.mxu0 0.0
    %4321 = vmatpush1.msra.mxu0 0.0
    %4322 = vmatprep.subr.mxu0 0.0
    %4323 = vmatpush1.msra.mxu0 0.0
    %4324 = vmatprep.mubr.f32.mxu0 0.0
    %v4325 = vand.u32 %v3119, 4294901760
    %v4326 = vsub.f32 %v3119, %v4325
    %4327 = vmatmul.mubr.f32.gmra.mrb[0].mxu0 %v4326
    %v4328 = vpop.f32.mrb[0].mxu0
    %v4329 = vadd.f32 %v4225, %v4328
    %v4330 = vpop.f32.mrb[0].mxu0
    %4331 = vdwg.mxu0
    %4332 = vmatprep.subr.mxu0 0.0
    %v4333 = vand.u32 %v2813, 4294901760
    %4334 = vmatpush1.msra.mxu0 %v4333
    %4335 = vmatprep.subr.mxu0 0.0
    %v4336 = vand.u32 %v2814, 4294901760
    %4337 = vmatpush1.msra.mxu0 %v4336
    %4338 = vmatprep.subr.mxu0 0.0
    %v4339 = vand.u32 %v2815, 4294901760
    %4340 = vmatpush1.msra.mxu0 %v4339
    %4341 = vmatprep.subr.mxu0 0.0
    %v4342 = vand.u32 %v2816, 4294901760
    %4343 = vmatpush1.msra.mxu0 %v4342
    %4344 = vmatprep.subr.mxu0 0.0
    %v4345 = vand.u32 %v2817, 4294901760
    %4346 = vmatpush1.msra.mxu0 %v4345
    %4347 = vmatprep.subr.mxu0 0.0
    %v4348 = vand.u32 %v2818, 4294901760
    %4349 = vmatpush1.msra.mxu0 %v4348
    %4350 = vmatprep.subr.mxu0 0.0
    %v4351 = vand.u32 %v2819, 4294901760
    %4352 = vmatpush1.msra.mxu0 %v4351
    %4353 = vmatprep.subr.mxu0 0.0
    %v4354 = vand.u32 %v2820, 4294901760
    %4355 = vmatpush1.msra.mxu0 %v4354
    %4356 = vmatprep.subr.mxu0 0.0
    %v4357 = vand.u32 %v2821, 4294901760
    %4358 = vmatpush1.msra.mxu0 %v4357
    %4359 = vmatprep.subr.mxu0 0.0
    %v4360 = vand.u32 %v2822, 4294901760
    %4361 = vmatpush1.msra.mxu0 %v4360
    %4362 = vmatprep.subr.mxu0 0.0
    %v4363 = vand.u32 %v2823, 4294901760
    %4364 = vmatpush1.msra.mxu0 %v4363
    %4365 = vmatprep.subr.mxu0 0.0
    %v4366 = vand.u32 %v2824, 4294901760
    %4367 = vmatpush1.msra.mxu0 %v4366
    %4368 = vmatprep.subr.mxu0 0.0
    %v4369 = vand.u32 %v2825, 4294901760
    %4370 = vmatpush1.msra.mxu0 %v4369
    %4371 = vmatprep.subr.mxu0 0.0
    %v4372 = vand.u32 %v2826, 4294901760
    %4373 = vmatpush1.msra.mxu0 %v4372
    %4374 = vmatprep.subr.mxu0 0.0
    %v4375 = vand.u32 %v2827, 4294901760
    %4376 = vmatpush1.msra.mxu0 %v4375
    %4377 = vmatprep.subr.mxu0 0.0
    %v4378 = vand.u32 %v2828, 4294901760
    %4379 = vmatpush1.msra.mxu0 %v4378
    %4380 = vmatprep.subr.mxu0 0.0
    %4381 = vmatpush1.msra.mxu0 0.0
    %4382 = vmatprep.subr.mxu0 0.0
    %4383 = vmatpush1.msra.mxu0 0.0
    %4384 = vmatprep.subr.mxu0 0.0
    %4385 = vmatpush1.msra.mxu0 0.0
    %4386 = vmatprep.subr.mxu0 0.0
    %4387 = vmatpush1.msra.mxu0 0.0
    %4388 = vmatprep.subr.mxu0 0.0
    %4389 = vmatpush1.msra.mxu0 0.0
    %4390 = vmatprep.subr.mxu0 0.0
    %4391 = vmatpush1.msra.mxu0 0.0
    %4392 = vmatprep.subr.mxu0 0.0
    %4393 = vmatpush1.msra.mxu0 0.0
    %4394 = vmatprep.subr.mxu0 0.0
    %4395 = vmatpush1.msra.mxu0 0.0
    %4396 = vmatprep.subr.mxu0 0.0
    %4397 = vmatpush1.msra.mxu0 0.0
    %4398 = vmatprep.subr.mxu0 0.0
    %4399 = vmatpush1.msra.mxu0 0.0
    %4400 = vmatprep.subr.mxu0 0.0
    %4401 = vmatpush1.msra.mxu0 0.0
    %4402 = vmatprep.subr.mxu0 0.0
    %4403 = vmatpush1.msra.mxu0 0.0
    %4404 = vmatprep.subr.mxu0 0.0
    %4405 = vmatpush1.msra.mxu0 0.0
    %4406 = vmatprep.subr.mxu0 0.0
    %4407 = vmatpush1.msra.mxu0 0.0
    %4408 = vmatprep.subr.mxu0 0.0
    %4409 = vmatpush1.msra.mxu0 0.0
    %4410 = vmatprep.subr.mxu0 0.0
    %4411 = vmatpush1.msra.mxu0 0.0
    %4412 = vmatprep.mubr.f32.mxu0 0.0
    %v4413 = vand.u32 %v3119, 4294901760
    %v4414 = vsub.f32 %v3119, %v4413
    %v4415 = vand.u32 %v4414, 4294901760
    %4416 = vmatmul.mubr.f32.gmra.mrb[0].mxu0 %v4415
    %v4417 = vpop.f32.mrb[0].mxu0
    %v4418 = vadd.f32 %v4329, %v4417
    %v4419 = vpop.f32.mrb[0].mxu0
    %4420 = vdwg.mxu0
    %4421 = vmatprep.subr.mxu0 0.0
    %v4422 = vand.u32 %v2813, 4294901760
    %v4423 = vsub.f32 %v2813, %v4422
    %v4424 = vand.u32 %v4423, 4294901760
    %4425 = vmatpush1.msra.mxu0 %v4424
    %4426 = vmatprep.subr.mxu0 0.0
    %v4427 = vand.u32 %v2814, 4294901760
    %v4428 = vsub.f32 %v2814, %v4427
    %v4429 = vand.u32 %v4428, 4294901760
    %4430 = vmatpush1.msra.mxu0 %v4429
    %4431 = vmatprep.subr.mxu0 0.0
    %v4432 = vand.u32 %v2815, 4294901760
    %v4433 = vsub.f32 %v2815, %v4432
    %v4434 = vand.u32 %v4433, 4294901760
    %4435 = vmatpush1.msra.mxu0 %v4434
    %4436 = vmatprep.subr.mxu0 0.0
    %v4437 = vand.u32 %v2816, 4294901760
    %v4438 = vsub.f32 %v2816, %v4437
    %v4439 = vand.u32 %v4438, 4294901760
    %4440 = vmatpush1.msra.mxu0 %v4439
    %4441 = vmatprep.subr.mxu0 0.0
    %v4442 = vand.u32 %v2817, 4294901760
    %v4443 = vsub.f32 %v2817, %v4442
    %v4444 = vand.u32 %v4443, 4294901760
    %4445 = vmatpush1.msra.mxu0 %v4444
    %4446 = vmatprep.subr.mxu0 0.0
    %v4447 = vand.u32 %v2818, 4294901760
    %v4448 = vsub.f32 %v2818, %v4447
    %v4449 = vand.u32 %v4448, 4294901760
    %4450 = vmatpush1.msra.mxu0 %v4449
    %4451 = vmatprep.subr.mxu0 0.0
    %v4452 = vand.u32 %v2819, 4294901760
    %v4453 = vsub.f32 %v2819, %v4452
    %v4454 = vand.u32 %v4453, 4294901760
    %4455 = vmatpush1.msra.mxu0 %v4454
    %4456 = vmatprep.subr.mxu0 0.0
    %v4457 = vand.u32 %v2820, 4294901760
    %v4458 = vsub.f32 %v2820, %v4457
    %v4459 = vand.u32 %v4458, 4294901760
    %4460 = vmatpush1.msra.mxu0 %v4459
    %4461 = vmatprep.subr.mxu0 0.0
    %v4462 = vand.u32 %v2821, 4294901760
    %v4463 = vsub.f32 %v2821, %v4462
    %v4464 = vand.u32 %v4463, 4294901760
    %4465 = vmatpush1.msra.mxu0 %v4464
    %4466 = vmatprep.subr.mxu0 0.0
    %v4467 = vand.u32 %v2822, 4294901760
    %v4468 = vsub.f32 %v2822, %v4467
    %v4469 = vand.u32 %v4468, 4294901760
    %4470 = vmatpush1.msra.mxu0 %v4469
    %4471 = vmatprep.subr.mxu0 0.0
    %v4472 = vand.u32 %v2823, 4294901760
    %v4473 = vsub.f32 %v2823, %v4472
    %v4474 = vand.u32 %v4473, 4294901760
    %4475 = vmatpush1.msra.mxu0 %v4474
    %4476 = vmatprep.subr.mxu0 0.0
    %v4477 = vand.u32 %v2824, 4294901760
    %v4478 = vsub.f32 %v2824, %v4477
    %v4479 = vand.u32 %v4478, 4294901760
    %4480 = vmatpush1.msra.mxu0 %v4479
    %4481 = vmatprep.subr.mxu0 0.0
    %v4482 = vand.u32 %v2825, 4294901760
    %v4483 = vsub.f32 %v2825, %v4482
    %v4484 = vand.u32 %v4483, 4294901760
    %4485 = vmatpush1.msra.mxu0 %v4484
    %4486 = vmatprep.subr.mxu0 0.0
    %v4487 = vand.u32 %v2826, 4294901760
    %v4488 = vsub.f32 %v2826, %v4487
    %v4489 = vand.u32 %v4488, 4294901760
    %4490 = vmatpush1.msra.mxu0 %v4489
    %4491 = vmatprep.subr.mxu0 0.0
    %v4492 = vand.u32 %v2827, 4294901760
    %v4493 = vsub.f32 %v2827, %v4492
    %v4494 = vand.u32 %v4493, 4294901760
    %4495 = vmatpush1.msra.mxu0 %v4494
    %4496 = vmatprep.subr.mxu0 0.0
    %v4497 = vand.u32 %v2828, 4294901760
    %v4498 = vsub.f32 %v2828, %v4497
    %v4499 = vand.u32 %v4498, 4294901760
    %4500 = vmatpush1.msra.mxu0 %v4499
    %4501 = vmatprep.subr.mxu0 0.0
    %4502 = vmatpush1.msra.mxu0 0.0
    %4503 = vmatprep.subr.mxu0 0.0
    %4504 = vmatpush1.msra.mxu0 0.0
    %4505 = vmatprep.subr.mxu0 0.0
    %4506 = vmatpush1.msra.mxu0 0.0
    %4507 = vmatprep.subr.mxu0 0.0
    %4508 = vmatpush1.msra.mxu0 0.0
    %4509 = vmatprep.subr.mxu0 0.0
    %4510 = vmatpush1.msra.mxu0 0.0
    %4511 = vmatprep.subr.mxu0 0.0
    %4512 = vmatpush1.msra.mxu0 0.0
    %4513 = vmatprep.subr.mxu0 0.0
    %4514 = vmatpush1.msra.mxu0 0.0
    %4515 = vmatprep.subr.mxu0 0.0
    %4516 = vmatpush1.msra.mxu0 0.0
    %4517 = vmatprep.subr.mxu0 0.0
    %4518 = vmatpush1.msra.mxu0 0.0
    %4519 = vmatprep.subr.mxu0 0.0
    %4520 = vmatpush1.msra.mxu0 0.0
    %4521 = vmatprep.subr.mxu0 0.0
    %4522 = vmatpush1.msra.mxu0 0.0
    %4523 = vmatprep.subr.mxu0 0.0
    %4524 = vmatpush1.msra.mxu0 0.0
    %4525 = vmatprep.subr.mxu0 0.0
    %4526 = vmatpush1.msra.mxu0 0.0
    %4527 = vmatprep.subr.mxu0 0.0
    %4528 = vmatpush1.msra.mxu0 0.0
    %4529 = vmatprep.subr.mxu0 0.0
    %4530 = vmatpush1.msra.mxu0 0.0
    %4531 = vmatprep.subr.mxu0 0.0
    %4532 = vmatpush1.msra.mxu0 0.0
    %4533 = vmatprep.mubr.f32.mxu0 0.0
    %v4534 = vand.u32 %v3119, 4294901760
    %4535 = vmatmul.mubr.f32.gmra.mrb[0].mxu0 %v4534
    %v4536 = vpop.f32.mrb[0].mxu0
    %v4537 = vadd.f32 %v4418, %v4536
    %v4538 = vpop.f32.mrb[0].mxu0
    %4539 = vdwg.mxu0
    %4540 = vmatprep.subr.mxu0 0.0
    %v4541 = vand.u32 %v2813, 4294901760
    %4542 = vmatpush1.msra.mxu0 %v4541
    %4543 = vmatprep.subr.mxu0 0.0
    %v4544 = vand.u32 %v2814, 4294901760
    %4545 = vmatpush1.msra.mxu0 %v4544
    %4546 = vmatprep.subr.mxu0 0.0
    %v4547 = vand.u32 %v2815, 4294901760
    %4548 = vmatpush1.msra.mxu0 %v4547
    %4549 = vmatprep.subr.mxu0 0.0
    %v4550 = vand.u32 %v2816, 4294901760
    %4551 = vmatpush1.msra.mxu0 %v4550
    %4552 = vmatprep.subr.mxu0 0.0
    %v4553 = vand.u32 %v2817, 4294901760
    %4554 = vmatpush1.msra.mxu0 %v4553
    %4555 = vmatprep.subr.mxu0 0.0
    %v4556 = vand.u32 %v2818, 4294901760
    %4557 = vmatpush1.msra.mxu0 %v4556
    %4558 = vmatprep.subr.mxu0 0.0
    %v4559 = vand.u32 %v2819, 4294901760
    %4560 = vmatpush1.msra.mxu0 %v4559
    %4561 = vmatprep.subr.mxu0 0.0
    %v4562 = vand.u32 %v2820, 4294901760
    %4563 = vmatpush1.msra.mxu0 %v4562
    %4564 = vmatprep.subr.mxu0 0.0
    %v4565 = vand.u32 %v2821, 4294901760
    %4566 = vmatpush1.msra.mxu0 %v4565
    %4567 = vmatprep.subr.mxu0 0.0
    %v4568 = vand.u32 %v2822, 4294901760
    %4569 = vmatpush1.msra.mxu0 %v4568
    %4570 = vmatprep.subr.mxu0 0.0
    %v4571 = vand.u32 %v2823, 4294901760
    %4572 = vmatpush1.msra.mxu0 %v4571
    %4573 = vmatprep.subr.mxu0 0.0
    %v4574 = vand.u32 %v2824, 4294901760
    %4575 = vmatpush1.msra.mxu0 %v4574
    %4576 = vmatprep.subr.mxu0 0.0
    %v4577 = vand.u32 %v2825, 4294901760
    %4578 = vmatpush1.msra.mxu0 %v4577
    %4579 = vmatprep.subr.mxu0 0.0
    %v4580 = vand.u32 %v2826, 4294901760
    %4581 = vmatpush1.msra.mxu0 %v4580
    %4582 = vmatprep.subr.mxu0 0.0
    %v4583 = vand.u32 %v2827, 4294901760
    %4584 = vmatpush1.msra.mxu0 %v4583
    %4585 = vmatprep.subr.mxu0 0.0
    %v4586 = vand.u32 %v2828, 4294901760
    %4587 = vmatpush1.msra.mxu0 %v4586
    %4588 = vmatprep.subr.mxu0 0.0
    %4589 = vmatpush1.msra.mxu0 0.0
    %4590 = vmatprep.subr.mxu0 0.0
    %4591 = vmatpush1.msra.mxu0 0.0
    %4592 = vmatprep.subr.mxu0 0.0
    %4593 = vmatpush1.msra.mxu0 0.0
    %4594 = vmatprep.subr.mxu0 0.0
    %4595 = vmatpush1.msra.mxu0 0.0
    %4596 = vmatprep.subr.mxu0 0.0
    %4597 = vmatpush1.msra.mxu0 0.0
    %4598 = vmatprep.subr.mxu0 0.0
    %4599 = vmatpush1.msra.mxu0 0.0
    %4600 = vmatprep.subr.mxu0 0.0
    %4601 = vmatpush1.msra.mxu0 0.0
    %4602 = vmatprep.subr.mxu0 0.0
    %4603 = vmatpush1.msra.mxu0 0.0
    %4604 = vmatprep.subr.mxu0 0.0
    %4605 = vmatpush1.msra.mxu0 0.0
    %4606 = vmatprep.subr.mxu0 0.0
    %4607 = vmatpush1.msra.mxu0 0.0
    %4608 = vmatprep.subr.mxu0 0.0
    %4609 = vmatpush1.msra.mxu0 0.0
    %4610 = vmatprep.subr.mxu0 0.0
    %4611 = vmatpush1.msra.mxu0 0.0
    %4612 = vmatprep.subr.mxu0 0.0
    %4613 = vmatpush1.msra.mxu0 0.0
    %4614 = vmatprep.subr.mxu0 0.0
    %4615 = vmatpush1.msra.mxu0 0.0
    %4616 = vmatprep.subr.mxu0 0.0
    %4617 = vmatpush1.msra.mxu0 0.0
    %4618 = vmatprep.subr.mxu0 0.0
    %4619 = vmatpush1.msra.mxu0 0.0
    %4620 = vmatprep.mubr.f32.mxu0 0.0
    %v4621 = vand.u32 %v3119, 4294901760
    %4622 = vmatmul.mubr.f32.gmra.mrb[0].mxu0 %v4621
    %v4623 = vpop.f32.mrb[0].mxu0
    %v4624 = vadd.f32 %v4537, %v4623
    %v4625 = vpop.f32.mrb[0].mxu0
    %4626 = vdwg.mxu0
    %vm4627 = vcmp.gt.f32.partialorder %v4624, 2e-08
    %v4628 = vsel %vm4627, 1, 0
    %v4629 = vcvt.s32.f32 %v4628
    %v4630 = vmul.u32 %v69, 4
    %vm4631 = vcmp.ge.s32.totalorder %v52, %v4630
    %vm4632 = vcmp.ge.s32.totalorder %v53, %v4630
    %vm4633 = vcmp.ge.s32.totalorder %v54, %v4630
    %vm4634 = vcmp.ge.s32.totalorder %v55, %v4630
    %vm4635 = vcmp.ge.s32.totalorder %v56, %v4630
    %vm4636 = vcmp.ge.s32.totalorder %v57, %v4630
    %vm4637 = vcmp.ge.s32.totalorder %v58, %v4630
    %vm4638 = vcmp.ge.s32.totalorder %v59, %v4630
    %vm4639 = vcmp.ge.s32.totalorder %v60, %v4630
    %vm4640 = vcmp.ge.s32.totalorder %v61, %v4630
    %vm4641 = vcmp.ge.s32.totalorder %v62, %v4630
    %vm4642 = vcmp.ge.s32.totalorder %v63, %v4630
    %vm4643 = vcmp.ge.s32.totalorder %v64, %v4630
    %vm4644 = vcmp.ge.s32.totalorder %v65, %v4630
    %vm4645 = vcmp.ge.s32.totalorder %v66, %v4630
    %vm4646 = vcmp.ge.s32.totalorder %v67, %v4630
    %v4647 = vadd.s32 %v4630, 4
    %vm4648 = vcmp.lt.s32.totalorder %v52, %v4647
    %vm4649 = vcmp.lt.s32.totalorder %v53, %v4647
    %vm4650 = vcmp.lt.s32.totalorder %v54, %v4647
    %vm4651 = vcmp.lt.s32.totalorder %v55, %v4647
    %vm4652 = vcmp.lt.s32.totalorder %v56, %v4647
    %vm4653 = vcmp.lt.s32.totalorder %v57, %v4647
    %vm4654 = vcmp.lt.s32.totalorder %v58, %v4647
    %vm4655 = vcmp.lt.s32.totalorder %v59, %v4647
    %vm4656 = vcmp.lt.s32.totalorder %v60, %v4647
    %vm4657 = vcmp.lt.s32.totalorder %v61, %v4647
    %vm4658 = vcmp.lt.s32.totalorder %v62, %v4647
    %vm4659 = vcmp.lt.s32.totalorder %v63, %v4647
    %vm4660 = vcmp.lt.s32.totalorder %v64, %v4647
    %vm4661 = vcmp.lt.s32.totalorder %v65, %v4647
    %vm4662 = vcmp.lt.s32.totalorder %v66, %v4647
    %vm4663 = vcmp.lt.s32.totalorder %v67, %v4647
    %vm4664 = vmand %vm4631, %vm4648
    %vm4665 = vmand %vm4632, %vm4649
    %vm4666 = vmand %vm4633, %vm4650
    %vm4667 = vmand %vm4634, %vm4651
    %vm4668 = vmand %vm4635, %vm4652
    %vm4669 = vmand %vm4636, %vm4653
    %vm4670 = vmand %vm4637, %vm4654
    %vm4671 = vmand %vm4638, %vm4655
    %vm4672 = vmand %vm4639, %vm4656
    %vm4673 = vmand %vm4640, %vm4657
    %vm4674 = vmand %vm4641, %vm4658
    %vm4675 = vmand %vm4642, %vm4659
    %vm4676 = vmand %vm4643, %vm4660
    %vm4677 = vmand %vm4644, %vm4661
    %vm4678 = vmand %vm4645, %vm4662
    %vm4679 = vmand %vm4646, %vm4663
    %v4680 = vsel %vm4664, 1, 0
    %v4681 = vsel %vm4665, 1, 0
    %v4682 = vsel %vm4666, 1, 0
    %v4683 = vsel %vm4667, 1, 0
    %v4684 = vsel %vm4668, 1, 0
    %v4685 = vsel %vm4669, 1, 0
    %v4686 = vsel %vm4670, 1, 0
    %v4687 = vsel %vm4671, 1, 0
    %v4688 = vsel %vm4672, 1, 0
    %v4689 = vsel %vm4673, 1, 0
    %v4690 = vsel %vm4674, 1, 0
    %v4691 = vsel %vm4675, 1, 0
    %v4692 = vsel %vm4676, 1, 0
    %v4693 = vsel %vm4677, 1, 0
    %v4694 = vsel %vm4678, 1, 0
    %v4695 = vsel %vm4679, 1, 0
    %v4696 = vcvt.s32.f32 %v4680
    %v4697 = vcvt.s32.f32 %v4681
    %v4698 = vcvt.s32.f32 %v4682
    %v4699 = vcvt.s32.f32 %v4683
    %v4700 = vcvt.s32.f32 %v4684
    %v4701 = vcvt.s32.f32 %v4685
    %v4702 = vcvt.s32.f32 %v4686
    %v4703 = vcvt.s32.f32 %v4687
    %v4704 = vcvt.s32.f32 %v4688
    %v4705 = vcvt.s32.f32 %v4689
    %v4706 = vcvt.s32.f32 %v4690
    %v4707 = vcvt.s32.f32 %v4691
    %v4708 = vcvt.s32.f32 %v4692
    %v4709 = vcvt.s32.f32 %v4693
    %v4710 = vcvt.s32.f32 %v4694
    %v4711 = vcvt.s32.f32 %v4695
    %v4712 = vmul.u32 %v52, 4
    %v4713 = vmul.u32 %v53, 4
    %v4714 = vmul.u32 %v54, 4
    %v4715 = vmul.u32 %v55, 4
    %vm4716 = vcmp.ge.s32.totalorder %v69, %v4712
    %vm4717 = vcmp.ge.s32.totalorder %v69, %v4713
    %vm4718 = vcmp.ge.s32.totalorder %v69, %v4714
    %vm4719 = vcmp.ge.s32.totalorder %v69, %v4715
    %v4720 = vadd.s32 %v4712, 4
    %v4721 = vadd.s32 %v4713, 4
    %v4722 = vadd.s32 %v4714, 4
    %v4723 = vadd.s32 %v4715, 4
    %vm4724 = vcmp.lt.s32.totalorder %v69, %v4720
    %vm4725 = vcmp.lt.s32.totalorder %v69, %v4721
    %vm4726 = vcmp.lt.s32.totalorder %v69, %v4722
    %vm4727 = vcmp.lt.s32.totalorder %v69, %v4723
    %vm4728 = vmand %vm4716, %vm4724
    %vm4729 = vmand %vm4717, %vm4725
    %vm4730 = vmand %vm4718, %vm4726
    %vm4731 = vmand %vm4719, %vm4727
    %v4732 = vsel %vm4728, 1, 0
    %v4733 = vsel %vm4729, 1, 0
    %v4734 = vsel %vm4730, 1, 0
    %v4735 = vsel %vm4731, 1, 0
    %v4736 = vcvt.s32.f32 %v4732
    %v4737 = vcvt.s32.f32 %v4733
    %v4738 = vcvt.s32.f32 %v4734
    %v4739 = vcvt.s32.f32 %v4735
    %v4740 = vmul.f32 %v4624, %v4629
    %4741 = vmatprep.subr.mxu0 0.0
    %v4742 = vand.u32 %v4696, 4294901760
    %4743 = vmatpush1.msra.mxu0 %v4742
    %4744 = vmatprep.subr.mxu0 0.0
    %v4745 = vand.u32 %v4697, 4294901760
    %4746 = vmatpush1.msra.mxu0 %v4745
    %4747 = vmatprep.subr.mxu0 0.0
    %v4748 = vand.u32 %v4698, 4294901760
    %4749 = vmatpush1.msra.mxu0 %v4748
    %4750 = vmatprep.subr.mxu0 0.0
    %v4751 = vand.u32 %v4699, 4294901760
    %4752 = vmatpush1.msra.mxu0 %v4751
    %4753 = vmatprep.subr.mxu0 0.0
    %v4754 = vand.u32 %v4700, 4294901760
    %4755 = vmatpush1.msra.mxu0 %v4754
    %4756 = vmatprep.subr.mxu0 0.0
    %v4757 = vand.u32 %v4701, 4294901760
    %4758 = vmatpush1.msra.mxu0 %v4757
    %4759 = vmatprep.subr.mxu0 0.0
    %v4760 = vand.u32 %v4702, 4294901760
    %4761 = vmatpush1.msra.mxu0 %v4760
    %4762 = vmatprep.subr.mxu0 0.0
    %v4763 = vand.u32 %v4703, 4294901760
    %4764 = vmatpush1.msra.mxu0 %v4763
    %4765 = vmatprep.subr.mxu0 0.0
    %v4766 = vand.u32 %v4704, 4294901760
    %4767 = vmatpush1.msra.mxu0 %v4766
    %4768 = vmatprep.subr.mxu0 0.0
    %v4769 = vand.u32 %v4705, 4294901760
    %4770 = vmatpush1.msra.mxu0 %v4769
    %4771 = vmatprep.subr.mxu0 0.0
    %v4772 = vand.u32 %v4706, 4294901760
    %4773 = vmatpush1.msra.mxu0 %v4772
    %4774 = vmatprep.subr.mxu0 0.0
    %v4775 = vand.u32 %v4707, 4294901760
    %4776 = vmatpush1.msra.mxu0 %v4775
    %4777 = vmatprep.subr.mxu0 0.0
    %v4778 = vand.u32 %v4708, 4294901760
    %4779 = vmatpush1.msra.mxu0 %v4778
    %4780 = vmatprep.subr.mxu0 0.0
    %v4781 = vand.u32 %v4709, 4294901760
    %4782 = vmatpush1.msra.mxu0 %v4781
    %4783 = vmatprep.subr.mxu0 0.0
    %v4784 = vand.u32 %v4710, 4294901760
    %4785 = vmatpush1.msra.mxu0 %v4784
    %4786 = vmatprep.subr.mxu0 0.0
    %v4787 = vand.u32 %v4711, 4294901760
    %4788 = vmatpush1.msra.mxu0 %v4787
    %4789 = vmatprep.subr.mxu0 0.0
    %4790 = vmatpush1.msra.mxu0 0.0
    %4791 = vmatprep.subr.mxu0 0.0
    %4792 = vmatpush1.msra.mxu0 0.0
    %4793 = vmatprep.subr.mxu0 0.0
    %4794 = vmatpush1.msra.mxu0 0.0
    %4795 = vmatprep.subr.mxu0 0.0
    %4796 = vmatpush1.msra.mxu0 0.0
    %4797 = vmatprep.subr.mxu0 0.0
    %4798 = vmatpush1.msra.mxu0 0.0
    %4799 = vmatprep.subr.mxu0 0.0
    %4800 = vmatpush1.msra.mxu0 0.0
    %4801 = vmatprep.subr.mxu0 0.0
    %4802 = vmatpush1.msra.mxu0 0.0
    %4803 = vmatprep.subr.mxu0 0.0
    %4804 = vmatpush1.msra.mxu0 0.0
    %4805 = vmatprep.subr.mxu0 0.0
    %4806 = vmatpush1.msra.mxu0 0.0
    %4807 = vmatprep.subr.mxu0 0.0
    %4808 = vmatpush1.msra.mxu0 0.0
    %4809 = vmatprep.subr.mxu0 0.0
    %4810 = vmatpush1.msra.mxu0 0.0
    %4811 = vmatprep.subr.mxu0 0.0
    %4812 = vmatpush1.msra.mxu0 0.0
    %4813 = vmatprep.subr.mxu0 0.0
    %4814 = vmatpush1.msra.mxu0 0.0
    %4815 = vmatprep.subr.mxu0 0.0
    %4816 = vmatpush1.msra.mxu0 0.0
    %4817 = vmatprep.subr.mxu0 0.0
    %4818 = vmatpush1.msra.mxu0 0.0
    %4819 = vmatprep.subr.mxu0 0.0
    %4820 = vmatpush1.msra.mxu0 0.0
    %4821 = vmatprep.mubr.f32.mxu0 0.0
    %v4822 = vand.u32 %v4740, 4294901760
    %v4823 = vsub.f32 %v4740, %v4822
    %v4824 = vand.u32 %v4823, 4294901760
    %v4825 = vsub.f32 %v4823, %v4824
    %v4826 = vand.u32 %v4825, 4294901760
    %4827 = vmatmul.mubr.f32.gmra.mrb[0].mxu0 %v4826
    %v4828 = vpop.f32.mrb[0].mxu0
    %v4829 = vadd.f32 0.0, %v4828
    %v4830 = vpop.f32.mrb[0].mxu0
    %4831 = vdwg.mxu0
    %4832 = vmatprep.subr.mxu0 0.0
    %v4833 = vand.u32 %v4696, 4294901760
    %v4834 = vsub.f32 %v4696, %v4833
    %v4835 = vand.u32 %v4834, 4294901760
    %v4836 = vsub.f32 %v4834, %v4835
    %v4837 = vand.u32 %v4836, 4294901760
    %4838 = vmatpush1.msra.mxu0 %v4837
    %4839 = vmatprep.subr.mxu0 0.0
    %v4840 = vand.u32 %v4697, 4294901760
    %v4841 = vsub.f32 %v4697, %v4840
    %v4842 = vand.u32 %v4841, 4294901760
    %v4843 = vsub.f32 %v4841, %v4842
    %v4844 = vand.u32 %v4843, 4294901760
    %4845 = vmatpush1.msra.mxu0 %v4844
    %4846 = vmatprep.subr.mxu0 0.0
    %v4847 = vand.u32 %v4698, 4294901760
    %v4848 = vsub.f32 %v4698, %v4847
    %v4849 = vand.u32 %v4848, 4294901760
    %v4850 = vsub.f32 %v4848, %v4849
    %v4851 = vand.u32 %v4850, 4294901760
    %4852 = vmatpush1.msra.mxu0 %v4851
    %4853 = vmatprep.subr.mxu0 0.0
    %v4854 = vand.u32 %v4699, 4294901760
    %v4855 = vsub.f32 %v4699, %v4854
    %v4856 = vand.u32 %v4855, 4294901760
    %v4857 = vsub.f32 %v4855, %v4856
    %v4858 = vand.u32 %v4857, 4294901760
    %4859 = vmatpush1.msra.mxu0 %v4858
    %4860 = vmatprep.subr.mxu0 0.0
    %v4861 = vand.u32 %v4700, 4294901760
    %v4862 = vsub.f32 %v4700, %v4861
    %v4863 = vand.u32 %v4862, 4294901760
    %v4864 = vsub.f32 %v4862, %v4863
    %v4865 = vand.u32 %v4864, 4294901760
    %4866 = vmatpush1.msra.mxu0 %v4865
    %4867 = vmatprep.subr.mxu0 0.0
    %v4868 = vand.u32 %v4701, 4294901760
    %v4869 = vsub.f32 %v4701, %v4868
    %v4870 = vand.u32 %v4869, 4294901760
    %v4871 = vsub.f32 %v4869, %v4870
    %v4872 = vand.u32 %v4871, 4294901760
    %4873 = vmatpush1.msra.mxu0 %v4872
    %4874 = vmatprep.subr.mxu0 0.0
    %v4875 = vand.u32 %v4702, 4294901760
    %v4876 = vsub.f32 %v4702, %v4875
    %v4877 = vand.u32 %v4876, 4294901760
    %v4878 = vsub.f32 %v4876, %v4877
    %v4879 = vand.u32 %v4878, 4294901760
    %4880 = vmatpush1.msra.mxu0 %v4879
    %4881 = vmatprep.subr.mxu0 0.0
    %v4882 = vand.u32 %v4703, 4294901760
    %v4883 = vsub.f32 %v4703, %v4882
    %v4884 = vand.u32 %v4883, 4294901760
    %v4885 = vsub.f32 %v4883, %v4884
    %v4886 = vand.u32 %v4885, 4294901760
    %4887 = vmatpush1.msra.mxu0 %v4886
    %4888 = vmatprep.subr.mxu0 0.0
    %v4889 = vand.u32 %v4704, 4294901760
    %v4890 = vsub.f32 %v4704, %v4889
    %v4891 = vand.u32 %v4890, 4294901760
    %v4892 = vsub.f32 %v4890, %v4891
    %v4893 = vand.u32 %v4892, 4294901760
    %4894 = vmatpush1.msra.mxu0 %v4893
    %4895 = vmatprep.subr.mxu0 0.0
    %v4896 = vand.u32 %v4705, 4294901760
    %v4897 = vsub.f32 %v4705, %v4896
    %v4898 = vand.u32 %v4897, 4294901760
    %v4899 = vsub.f32 %v4897, %v4898
    %v4900 = vand.u32 %v4899, 4294901760
    %4901 = vmatpush1.msra.mxu0 %v4900
    %4902 = vmatprep.subr.mxu0 0.0
    %v4903 = vand.u32 %v4706, 4294901760
    %v4904 = vsub.f32 %v4706, %v4903
    %v4905 = vand.u32 %v4904, 4294901760
    %v4906 = vsub.f32 %v4904, %v4905
    %v4907 = vand.u32 %v4906, 4294901760
    %4908 = vmatpush1.msra.mxu0 %v4907
    %4909 = vmatprep.subr.mxu0 0.0
    %v4910 = vand.u32 %v4707, 4294901760
    %v4911 = vsub.f32 %v4707, %v4910
    %v4912 = vand.u32 %v4911, 4294901760
    %v4913 = vsub.f32 %v4911, %v4912
    %v4914 = vand.u32 %v4913, 4294901760
    %4915 = vmatpush1.msra.mxu0 %v4914
    %4916 = vmatprep.subr.mxu0 0.0
    %v4917 = vand.u32 %v4708, 4294901760
    %v4918 = vsub.f32 %v4708, %v4917
    %v4919 = vand.u32 %v4918, 4294901760
    %v4920 = vsub.f32 %v4918, %v4919
    %v4921 = vand.u32 %v4920, 4294901760
    %4922 = vmatpush1.msra.mxu0 %v4921
    %4923 = vmatprep.subr.mxu0 0.0
    %v4924 = vand.u32 %v4709, 4294901760
    %v4925 = vsub.f32 %v4709, %v4924
    %v4926 = vand.u32 %v4925, 4294901760
    %v4927 = vsub.f32 %v4925, %v4926
    %v4928 = vand.u32 %v4927, 4294901760
    %4929 = vmatpush1.msra.mxu0 %v4928
    %4930 = vmatprep.subr.mxu0 0.0
    %v4931 = vand.u32 %v4710, 4294901760
    %v4932 = vsub.f32 %v4710, %v4931
    %v4933 = vand.u32 %v4932, 4294901760
    %v4934 = vsub.f32 %v4932, %v4933
    %v4935 = vand.u32 %v4934, 4294901760
    %4936 = vmatpush1.msra.mxu0 %v4935
    %4937 = vmatprep.subr.mxu0 0.0
    %v4938 = vand.u32 %v4711, 4294901760
    %v4939 = vsub.f32 %v4711, %v4938
    %v4940 = vand.u32 %v4939, 4294901760
    %v4941 = vsub.f32 %v4939, %v4940
    %v4942 = vand.u32 %v4941, 4294901760
    %4943 = vmatpush1.msra.mxu0 %v4942
    %4944 = vmatprep.subr.mxu0 0.0
    %4945 = vmatpush1.msra.mxu0 0.0
    %4946 = vmatprep.subr.mxu0 0.0
    %4947 = vmatpush1.msra.mxu0 0.0
    %4948 = vmatprep.subr.mxu0 0.0
    %4949 = vmatpush1.msra.mxu0 0.0
    %4950 = vmatprep.subr.mxu0 0.0
    %4951 = vmatpush1.msra.mxu0 0.0
    %4952 = vmatprep.subr.mxu0 0.0
    %4953 = vmatpush1.msra.mxu0 0.0
    %4954 = vmatprep.subr.mxu0 0.0
    %4955 = vmatpush1.msra.mxu0 0.0
    %4956 = vmatprep.subr.mxu0 0.0
    %4957 = vmatpush1.msra.mxu0 0.0
    %4958 = vmatprep.subr.mxu0 0.0
    %4959 = vmatpush1.msra.mxu0 0.0
    %4960 = vmatprep.subr.mxu0 0.0
    %4961 = vmatpush1.msra.mxu0 0.0
    %4962 = vmatprep.subr.mxu0 0.0
    %4963 = vmatpush1.msra.mxu0 0.0
    %4964 = vmatprep.subr.mxu0 0.0
    %4965 = vmatpush1.msra.mxu0 0.0
    %4966 = vmatprep.subr.mxu0 0.0
    %4967 = vmatpush1.msra.mxu0 0.0
    %4968 = vmatprep.subr.mxu0 0.0
    %4969 = vmatpush1.msra.mxu0 0.0
    %4970 = vmatprep.subr.mxu0 0.0
    %4971 = vmatpush1.msra.mxu0 0.0
    %4972 = vmatprep.subr.mxu0 0.0
    %4973 = vmatpush1.msra.mxu0 0.0
    %4974 = vmatprep.subr.mxu0 0.0
    %4975 = vmatpush1.msra.mxu0 0.0
    %4976 = vmatprep.mubr.f32.mxu0 0.0
    %v4977 = vand.u32 %v4740, 4294901760
    %4978 = vmatmul.mubr.f32.gmra.mrb[0].mxu0 %v4977
    %v4979 = vpop.f32.mrb[0].mxu0
    %v4980 = vadd.f32 %v4829, %v4979
    %v4981 = vpop.f32.mrb[0].mxu0
    %4982 = vdwg.mxu0
    %4983 = vmatprep.subr.mxu0 0.0
    %v4984 = vand.u32 %v4696, 4294901760
    %v4985 = vsub.f32 %v4696, %v4984
    %4986 = vmatpush1.msra.mxu0 %v4985
    %4987 = vmatprep.subr.mxu0 0.0
    %v4988 = vand.u32 %v4697, 4294901760
    %v4989 = vsub.f32 %v4697, %v4988
    %4990 = vmatpush1.msra.mxu0 %v4989
    %4991 = vmatprep.subr.mxu0 0.0
    %v4992 = vand.u32 %v4698, 4294901760
    %v4993 = vsub.f32 %v4698, %v4992
    %4994 = vmatpush1.msra.mxu0 %v4993
    %4995 = vmatprep.subr.mxu0 0.0
    %v4996 = vand.u32 %v4699, 4294901760
    %v4997 = vsub.f32 %v4699, %v4996
    %4998 = vmatpush1.msra.mxu0 %v4997
    %4999 = vmatprep.subr.mxu0 0.0
    %v5000 = vand.u32 %v4700, 4294901760
    %v5001 = vsub.f32 %v4700, %v5000
    %5002 = vmatpush1.msra.mxu0 %v5001
    %5003 = vmatprep.subr.mxu0 0.0
    %v5004 = vand.u32 %v4701, 4294901760
    %v5005 = vsub.f32 %v4701, %v5004
    %5006 = vmatpush1.msra.mxu0 %v5005
    %5007 = vmatprep.subr.mxu0 0.0
    %v5008 = vand.u32 %v4702, 4294901760
    %v5009 = vsub.f32 %v4702, %v5008
    %5010 = vmatpush1.msra.mxu0 %v5009
    %5011 = vmatprep.subr.mxu0 0.0
    %v5012 = vand.u32 %v4703, 4294901760
    %v5013 = vsub.f32 %v4703, %v5012
    %5014 = vmatpush1.msra.mxu0 %v5013
    %5015 = vmatprep.subr.mxu0 0.0
    %v5016 = vand.u32 %v4704, 4294901760
    %v5017 = vsub.f32 %v4704, %v5016
    %5018 = vmatpush1.msra.mxu0 %v5017
    %5019 = vmatprep.subr.mxu0 0.0
    %v5020 = vand.u32 %v4705, 4294901760
    %v5021 = vsub.f32 %v4705, %v5020
    %5022 = vmatpush1.msra.mxu0 %v5021
    %5023 = vmatprep.subr.mxu0 0.0
    %v5024 = vand.u32 %v4706, 4294901760
    %v5025 = vsub.f32 %v4706, %v5024
    %5026 = vmatpush1.msra.mxu0 %v5025
    %5027 = vmatprep.subr.mxu0 0.0
    %v5028 = vand.u32 %v4707, 4294901760
    %v5029 = vsub.f32 %v4707, %v5028
    %5030 = vmatpush1.msra.mxu0 %v5029
    %5031 = vmatprep.subr.mxu0 0.0
    %v5032 = vand.u32 %v4708, 4294901760
    %v5033 = vsub.f32 %v4708, %v5032
    %5034 = vmatpush1.msra.mxu0 %v5033
    %5035 = vmatprep.subr.mxu0 0.0
    %v5036 = vand.u32 %v4709, 4294901760
    %v5037 = vsub.f32 %v4709, %v5036
    %5038 = vmatpush1.msra.mxu0 %v5037
    %5039 = vmatprep.subr.mxu0 0.0
    %v5040 = vand.u32 %v4710, 4294901760
    %v5041 = vsub.f32 %v4710, %v5040
    %5042 = vmatpush1.msra.mxu0 %v5041
    %5043 = vmatprep.subr.mxu0 0.0
    %v5044 = vand.u32 %v4711, 4294901760
    %v5045 = vsub.f32 %v4711, %v5044
    %5046 = vmatpush1.msra.mxu0 %v5045
    %5047 = vmatprep.subr.mxu0 0.0
    %5048 = vmatpush1.msra.mxu0 0.0
    %5049 = vmatprep.subr.mxu0 0.0
    %5050 = vmatpush1.msra.mxu0 0.0
    %5051 = vmatprep.subr.mxu0 0.0
    %5052 = vmatpush1.msra.mxu0 0.0
    %5053 = vmatprep.subr.mxu0 0.0
    %5054 = vmatpush1.msra.mxu0 0.0
    %5055 = vmatprep.subr.mxu0 0.0
    %5056 = vmatpush1.msra.mxu0 0.0
    %5057 = vmatprep.subr.mxu0 0.0
    %5058 = vmatpush1.msra.mxu0 0.0
    %5059 = vmatprep.subr.mxu0 0.0
    %5060 = vmatpush1.msra.mxu0 0.0
    %5061 = vmatprep.subr.mxu0 0.0
    %5062 = vmatpush1.msra.mxu0 0.0
    %5063 = vmatprep.subr.mxu0 0.0
    %5064 = vmatpush1.msra.mxu0 0.0
    %5065 = vmatprep.subr.mxu0 0.0
    %5066 = vmatpush1.msra.mxu0 0.0
    %5067 = vmatprep.subr.mxu0 0.0
    %5068 = vmatpush1.msra.mxu0 0.0
    %5069 = vmatprep.subr.mxu0 0.0
    %5070 = vmatpush1.msra.mxu0 0.0
    %5071 = vmatprep.subr.mxu0 0.0
    %5072 = vmatpush1.msra.mxu0 0.0
    %5073 = vmatprep.subr.mxu0 0.0
    %5074 = vmatpush1.msra.mxu0 0.0
    %5075 = vmatprep.subr.mxu0 0.0
    %5076 = vmatpush1.msra.mxu0 0.0
    %5077 = vmatprep.subr.mxu0 0.0
    %5078 = vmatpush1.msra.mxu0 0.0
    %5079 = vmatprep.mubr.f32.mxu0 0.0
    %v5080 = vand.u32 %v4740, 4294901760
    %v5081 = vsub.f32 %v4740, %v5080
    %5082 = vmatmul.mubr.f32.gmra.mrb[0].mxu0 %v5081
    %v5083 = vpop.f32.mrb[0].mxu0
    %v5084 = vadd.f32 %v4980, %v5083
    %v5085 = vpop.f32.mrb[0].mxu0
    %5086 = vdwg.mxu0
    %5087 = vmatprep.subr.mxu0 0.0
    %v5088 = vand.u32 %v4696, 4294901760
    %5089 = vmatpush1.msra.mxu0 %v5088
    %5090 = vmatprep.subr.mxu0 0.0
    %v5091 = vand.u32 %v4697, 4294901760
    %5092 = vmatpush1.msra.mxu0 %v5091
    %5093 = vmatprep.subr.mxu0 0.0
    %v5094 = vand.u32 %v4698, 4294901760
    %5095 = vmatpush1.msra.mxu0 %v5094
    %5096 = vmatprep.subr.mxu0 0.0
    %v5097 = vand.u32 %v4699, 4294901760
    %5098 = vmatpush1.msra.mxu0 %v5097
    %5099 = vmatprep.subr.mxu0 0.0
    %v5100 = vand.u32 %v4700, 4294901760
    %5101 = vmatpush1.msra.mxu0 %v5100
    %5102 = vmatprep.subr.mxu0 0.0
    %v5103 = vand.u32 %v4701, 4294901760
    %5104 = vmatpush1.msra.mxu0 %v5103
    %5105 = vmatprep.subr.mxu0 0.0
    %v5106 = vand.u32 %v4702, 4294901760
    %5107 = vmatpush1.msra.mxu0 %v5106
    %5108 = vmatprep.subr.mxu0 0.0
    %v5109 = vand.u32 %v4703, 4294901760
    %5110 = vmatpush1.msra.mxu0 %v5109
    %5111 = vmatprep.subr.mxu0 0.0
    %v5112 = vand.u32 %v4704, 4294901760
    %5113 = vmatpush1.msra.mxu0 %v5112
    %5114 = vmatprep.subr.mxu0 0.0
    %v5115 = vand.u32 %v4705, 4294901760
    %5116 = vmatpush1.msra.mxu0 %v5115
    %5117 = vmatprep.subr.mxu0 0.0
    %v5118 = vand.u32 %v4706, 4294901760
    %5119 = vmatpush1.msra.mxu0 %v5118
    %5120 = vmatprep.subr.mxu0 0.0
    %v5121 = vand.u32 %v4707, 4294901760
    %5122 = vmatpush1.msra.mxu0 %v5121
    %5123 = vmatprep.subr.mxu0 0.0
    %v5124 = vand.u32 %v4708, 4294901760
    %5125 = vmatpush1.msra.mxu0 %v5124
    %5126 = vmatprep.subr.mxu0 0.0
    %v5127 = vand.u32 %v4709, 4294901760
    %5128 = vmatpush1.msra.mxu0 %v5127
    %5129 = vmatprep.subr.mxu0 0.0
    %v5130 = vand.u32 %v4710, 4294901760
    %5131 = vmatpush1.msra.mxu0 %v5130
    %5132 = vmatprep.subr.mxu0 0.0
    %v5133 = vand.u32 %v4711, 4294901760
    %5134 = vmatpush1.msra.mxu0 %v5133
    %5135 = vmatprep.subr.mxu0 0.0
    %5136 = vmatpush1.msra.mxu0 0.0
    %5137 = vmatprep.subr.mxu0 0.0
    %5138 = vmatpush1.msra.mxu0 0.0
    %5139 = vmatprep.subr.mxu0 0.0
    %5140 = vmatpush1.msra.mxu0 0.0
    %5141 = vmatprep.subr.mxu0 0.0
    %5142 = vmatpush1.msra.mxu0 0.0
    %5143 = vmatprep.subr.mxu0 0.0
    %5144 = vmatpush1.msra.mxu0 0.0
    %5145 = vmatprep.subr.mxu0 0.0
    %5146 = vmatpush1.msra.mxu0 0.0
    %5147 = vmatprep.subr.mxu0 0.0
    %5148 = vmatpush1.msra.mxu0 0.0
    %5149 = vmatprep.subr.mxu0 0.0
    %5150 = vmatpush1.msra.mxu0 0.0
    %5151 = vmatprep.subr.mxu0 0.0
    %5152 = vmatpush1.msra.mxu0 0.0
    %5153 = vmatprep.subr.mxu0 0.0
    %5154 = vmatpush1.msra.mxu0 0.0
    %5155 = vmatprep.subr.mxu0 0.0
    %5156 = vmatpush1.msra.mxu0 0.0
    %5157 = vmatprep.subr.mxu0 0.0
    %5158 = vmatpush1.msra.mxu0 0.0
    %5159 = vmatprep.subr.mxu0 0.0
    %5160 = vmatpush1.msra.mxu0 0.0
    %5161 = vmatprep.subr.mxu0 0.0
    %5162 = vmatpush1.msra.mxu0 0.0
    %5163 = vmatprep.subr.mxu0 0.0
    %5164 = vmatpush1.msra.mxu0 0.0
    %5165 = vmatprep.subr.mxu0 0.0
    %5166 = vmatpush1.msra.mxu0 0.0
    %5167 = vmatprep.mubr.f32.mxu0 0.0
    %v5168 = vand.u32 %v4740, 4294901760
    %v5169 = vsub.f32 %v4740, %v5168
    %v5170 = vand.u32 %v5169, 4294901760
    %5171 = vmatmul.mubr.f32.gmra.mrb[0].mxu0 %v5170
    %v5172 = vpop.f32.mrb[0].mxu0
    %v5173 = vadd.f32 %v5084, %v5172
    %v5174 = vpop.f32.mrb[0].mxu0
    %5175 = vdwg.mxu0
    %5176 = vmatprep.subr.mxu0 0.0
    %v5177 = vand.u32 %v4696, 4294901760
    %v5178 = vsub.f32 %v4696, %v5177
    %v5179 = vand.u32 %v5178, 4294901760
    %5180 = vmatpush1.msra.mxu0 %v5179
    %5181 = vmatprep.subr.mxu0 0.0
    %v5182 = vand.u32 %v4697, 4294901760
    %v5183 = vsub.f32 %v4697, %v5182
    %v5184 = vand.u32 %v5183, 4294901760
    %5185 = vmatpush1.msra.mxu0 %v5184
    %5186 = vmatprep.subr.mxu0 0.0
    %v5187 = vand.u32 %v4698, 4294901760
    %v5188 = vsub.f32 %v4698, %v5187
    %v5189 = vand.u32 %v5188, 4294901760
    %5190 = vmatpush1.msra.mxu0 %v5189
    %5191 = vmatprep.subr.mxu0 0.0
    %v5192 = vand.u32 %v4699, 4294901760
    %v5193 = vsub.f32 %v4699, %v5192
    %v5194 = vand.u32 %v5193, 4294901760
    %5195 = vmatpush1.msra.mxu0 %v5194
    %5196 = vmatprep.subr.mxu0 0.0
    %v5197 = vand.u32 %v4700, 4294901760
    %v5198 = vsub.f32 %v4700, %v5197
    %v5199 = vand.u32 %v5198, 4294901760
    %5200 = vmatpush1.msra.mxu0 %v5199
    %5201 = vmatprep.subr.mxu0 0.0
    %v5202 = vand.u32 %v4701, 4294901760
    %v5203 = vsub.f32 %v4701, %v5202
    %v5204 = vand.u32 %v5203, 4294901760
    %5205 = vmatpush1.msra.mxu0 %v5204
    %5206 = vmatprep.subr.mxu0 0.0
    %v5207 = vand.u32 %v4702, 4294901760
    %v5208 = vsub.f32 %v4702, %v5207
    %v5209 = vand.u32 %v5208, 4294901760
    %5210 = vmatpush1.msra.mxu0 %v5209
    %5211 = vmatprep.subr.mxu0 0.0
    %v5212 = vand.u32 %v4703, 4294901760
    %v5213 = vsub.f32 %v4703, %v5212
    %v5214 = vand.u32 %v5213, 4294901760
    %5215 = vmatpush1.msra.mxu0 %v5214
    %5216 = vmatprep.subr.mxu0 0.0
    %v5217 = vand.u32 %v4704, 4294901760
    %v5218 = vsub.f32 %v4704, %v5217
    %v5219 = vand.u32 %v5218, 4294901760
    %5220 = vmatpush1.msra.mxu0 %v5219
    %5221 = vmatprep.subr.mxu0 0.0
    %v5222 = vand.u32 %v4705, 4294901760
    %v5223 = vsub.f32 %v4705, %v5222
    %v5224 = vand.u32 %v5223, 4294901760
    %5225 = vmatpush1.msra.mxu0 %v5224
    %5226 = vmatprep.subr.mxu0 0.0
    %v5227 = vand.u32 %v4706, 4294901760
    %v5228 = vsub.f32 %v4706, %v5227
    %v5229 = vand.u32 %v5228, 4294901760
    %5230 = vmatpush1.msra.mxu0 %v5229
    %5231 = vmatprep.subr.mxu0 0.0
    %v5232 = vand.u32 %v4707, 4294901760
    %v5233 = vsub.f32 %v4707, %v5232
    %v5234 = vand.u32 %v5233, 4294901760
    %5235 = vmatpush1.msra.mxu0 %v5234
    %5236 = vmatprep.subr.mxu0 0.0
    %v5237 = vand.u32 %v4708, 4294901760
    %v5238 = vsub.f32 %v4708, %v5237
    %v5239 = vand.u32 %v5238, 4294901760
    %5240 = vmatpush1.msra.mxu0 %v5239
    %5241 = vmatprep.subr.mxu0 0.0
    %v5242 = vand.u32 %v4709, 4294901760
    %v5243 = vsub.f32 %v4709, %v5242
    %v5244 = vand.u32 %v5243, 4294901760
    %5245 = vmatpush1.msra.mxu0 %v5244
    %5246 = vmatprep.subr.mxu0 0.0
    %v5247 = vand.u32 %v4710, 4294901760
    %v5248 = vsub.f32 %v4710, %v5247
    %v5249 = vand.u32 %v5248, 4294901760
    %5250 = vmatpush1.msra.mxu0 %v5249
    %5251 = vmatprep.subr.mxu0 0.0
    %v5252 = vand.u32 %v4711, 4294901760
    %v5253 = vsub.f32 %v4711, %v5252
    %v5254 = vand.u32 %v5253, 4294901760
    %5255 = vmatpush1.msra.mxu0 %v5254
    %5256 = vmatprep.subr.mxu0 0.0
    %5257 = vmatpush1.msra.mxu0 0.0
    %5258 = vmatprep.subr.mxu0 0.0
    %5259 = vmatpush1.msra.mxu0 0.0
    %5260 = vmatprep.subr.mxu0 0.0
    %5261 = vmatpush1.msra.mxu0 0.0
    %5262 = vmatprep.subr.mxu0 0.0
    %5263 = vmatpush1.msra.mxu0 0.0
    %5264 = vmatprep.subr.mxu0 0.0
    %5265 = vmatpush1.msra.mxu0 0.0
    %5266 = vmatprep.subr.mxu0 0.0
    %5267 = vmatpush1.msra.mxu0 0.0
    %5268 = vmatprep.subr.mxu0 0.0
    %5269 = vmatpush1.msra.mxu0 0.0
    %5270 = vmatprep.subr.mxu0 0.0
    %5271 = vmatpush1.msra.mxu0 0.0
    %5272 = vmatprep.subr.mxu0 0.0
    %5273 = vmatpush1.msra.mxu0 0.0
    %5274 = vmatprep.subr.mxu0 0.0
    %5275 = vmatpush1.msra.mxu0 0.0
    %5276 = vmatprep.subr.mxu0 0.0
    %5277 = vmatpush1.msra.mxu0 0.0
    %5278 = vmatprep.subr.mxu0 0.0
    %5279 = vmatpush1.msra.mxu0 0.0
    %5280 = vmatprep.subr.mxu0 0.0
    %5281 = vmatpush1.msra.mxu0 0.0
    %5282 = vmatprep.subr.mxu0 0.0
    %5283 = vmatpush1.msra.mxu0 0.0
    %5284 = vmatprep.subr.mxu0 0.0
    %5285 = vmatpush1.msra.mxu0 0.0
    %5286 = vmatprep.subr.mxu0 0.0
    %5287 = vmatpush1.msra.mxu0 0.0
    %5288 = vmatprep.mubr.f32.mxu0 0.0
    %v5289 = vand.u32 %v4740, 4294901760
    %5290 = vmatmul.mubr.f32.gmra.mrb[0].mxu0 %v5289
    %v5291 = vpop.f32.mrb[0].mxu0
    %v5292 = vadd.f32 %v5173, %v5291
    %v5293 = vpop.f32.mrb[0].mxu0
    %5294 = vdwg.mxu0
    %5295 = vmatprep.subr.mxu0 0.0
    %v5296 = vand.u32 %v4696, 4294901760
    %5297 = vmatpush1.msra.mxu0 %v5296
    %5298 = vmatprep.subr.mxu0 0.0
    %v5299 = vand.u32 %v4697, 4294901760
    %5300 = vmatpush1.msra.mxu0 %v5299
    %5301 = vmatprep.subr.mxu0 0.0
    %v5302 = vand.u32 %v4698, 4294901760
    %5303 = vmatpush1.msra.mxu0 %v5302
    %5304 = vmatprep.subr.mxu0 0.0
    %v5305 = vand.u32 %v4699, 4294901760
    %5306 = vmatpush1.msra.mxu0 %v5305
    %5307 = vmatprep.subr.mxu0 0.0
    %v5308 = vand.u32 %v4700, 4294901760
    %5309 = vmatpush1.msra.mxu0 %v5308
    %5310 = vmatprep.subr.mxu0 0.0
    %v5311 = vand.u32 %v4701, 4294901760
    %5312 = vmatpush1.msra.mxu0 %v5311
    %5313 = vmatprep.subr.mxu0 0.0
    %v5314 = vand.u32 %v4702, 4294901760
    %5315 = vmatpush1.msra.mxu0 %v5314
    %5316 = vmatprep.subr.mxu0 0.0
    %v5317 = vand.u32 %v4703, 4294901760
    %5318 = vmatpush1.msra.mxu0 %v5317
    %5319 = vmatprep.subr.mxu0 0.0
    %v5320 = vand.u32 %v4704, 4294901760
    %5321 = vmatpush1.msra.mxu0 %v5320
    %5322 = vmatprep.subr.mxu0 0.0
    %v5323 = vand.u32 %v4705, 4294901760
    %5324 = vmatpush1.msra.mxu0 %v5323
    %5325 = vmatprep.subr.mxu0 0.0
    %v5326 = vand.u32 %v4706, 4294901760
    %5327 = vmatpush1.msra.mxu0 %v5326
    %5328 = vmatprep.subr.mxu0 0.0
    %v5329 = vand.u32 %v4707, 4294901760
    %5330 = vmatpush1.msra.mxu0 %v5329
    %5331 = vmatprep.subr.mxu0 0.0
    %v5332 = vand.u32 %v4708, 4294901760
    %5333 = vmatpush1.msra.mxu0 %v5332
    %5334 = vmatprep.subr.mxu0 0.0
    %v5335 = vand.u32 %v4709, 4294901760
    %5336 = vmatpush1.msra.mxu0 %v5335
    %5337 = vmatprep.subr.mxu0 0.0
    %v5338 = vand.u32 %v4710, 4294901760
    %5339 = vmatpush1.msra.mxu0 %v5338
    %5340 = vmatprep.subr.mxu0 0.0
    %v5341 = vand.u32 %v4711, 4294901760
    %5342 = vmatpush1.msra.mxu0 %v5341
    %5343 = vmatprep.subr.mxu0 0.0
    %5344 = vmatpush1.msra.mxu0 0.0
    %5345 = vmatprep.subr.mxu0 0.0
    %5346 = vmatpush1.msra.mxu0 0.0
    %5347 = vmatprep.subr.mxu0 0.0
    %5348 = vmatpush1.msra.mxu0 0.0
    %5349 = vmatprep.subr.mxu0 0.0
    %5350 = vmatpush1.msra.mxu0 0.0
    %5351 = vmatprep.subr.mxu0 0.0
    %5352 = vmatpush1.msra.mxu0 0.0
    %5353 = vmatprep.subr.mxu0 0.0
    %5354 = vmatpush1.msra.mxu0 0.0
    %5355 = vmatprep.subr.mxu0 0.0
    %5356 = vmatpush1.msra.mxu0 0.0
    %5357 = vmatprep.subr.mxu0 0.0
    %5358 = vmatpush1.msra.mxu0 0.0
    %5359 = vmatprep.subr.mxu0 0.0
    %5360 = vmatpush1.msra.mxu0 0.0
    %5361 = vmatprep.subr.mxu0 0.0
    %5362 = vmatpush1.msra.mxu0 0.0
    %5363 = vmatprep.subr.mxu0 0.0
    %5364 = vmatpush1.msra.mxu0 0.0
    %5365 = vmatprep.subr.mxu0 0.0
    %5366 = vmatpush1.msra.mxu0 0.0
    %5367 = vmatprep.subr.mxu0 0.0
    %5368 = vmatpush1.msra.mxu0 0.0
    %5369 = vmatprep.subr.mxu0 0.0
    %5370 = vmatpush1.msra.mxu0 0.0
    %5371 = vmatprep.subr.mxu0 0.0
    %5372 = vmatpush1.msra.mxu0 0.0
    %5373 = vmatprep.subr.mxu0 0.0
    %5374 = vmatpush1.msra.mxu0 0.0
    %5375 = vmatprep.mubr.f32.mxu0 0.0
    %v5376 = vand.u32 %v4740, 4294901760
    %5377 = vmatmul.mubr.f32.gmra.mrb[0].mxu0 %v5376
    %v5378 = vpop.f32.mrb[0].mxu0
    %v5379 = vadd.f32 %v5292, %v5378
    %v5380 = vpop.f32.mrb[0].mxu0
    %5381 = vdwg.mxu0
    %5382 = vmatprep.subr.mxu0 0.0
    %5383 = vmatpush1.msra.mxu0 %v4696
    %5384 = vmatprep.subr.mxu0 0.0
    %5385 = vmatpush1.msra.mxu0 %v4697
    %5386 = vmatprep.subr.mxu0 0.0
    %5387 = vmatpush1.msra.mxu0 %v4698
    %5388 = vmatprep.subr.mxu0 0.0
    %5389 = vmatpush1.msra.mxu0 %v4699
    %5390 = vmatprep.subr.mxu0 0.0
    %5391 = vmatpush1.msra.mxu0 %v4700
    %5392 = vmatprep.subr.mxu0 0.0
    %5393 = vmatpush1.msra.mxu0 %v4701
    %5394 = vmatprep.subr.mxu0 0.0
    %5395 = vmatpush1.msra.mxu0 %v4702
    %5396 = vmatprep.subr.mxu0 0.0
    %5397 = vmatpush1.msra.mxu0 %v4703
    %5398 = vmatprep.subr.mxu0 0.0
    %5399 = vmatpush1.msra.mxu0 %v4704
    %5400 = vmatprep.subr.mxu0 0.0
    %5401 = vmatpush1.msra.mxu0 %v4705
    %5402 = vmatprep.subr.mxu0 0.0
    %5403 = vmatpush1.msra.mxu0 %v4706
    %5404 = vmatprep.subr.mxu0 0.0
    %5405 = vmatpush1.msra.mxu0 %v4707
    %5406 = vmatprep.subr.mxu0 0.0
    %5407 = vmatpush1.msra.mxu0 %v4708
    %5408 = vmatprep.subr.mxu0 0.0
    %5409 = vmatpush1.msra.mxu0 %v4709
    %5410 = vmatprep.subr.mxu0 0.0
    %5411 = vmatpush1.msra.mxu0 %v4710
    %5412 = vmatprep.subr.mxu0 0.0
    %5413 = vmatpush1.msra.mxu0 %v4711
    %5414 = vmatprep.subr.mxu0 0.0
    %5415 = vmatpush1.msra.mxu0 0.0
    %5416 = vmatprep.subr.mxu0 0.0
    %5417 = vmatpush1.msra.mxu0 0.0
    %5418 = vmatprep.subr.mxu0 0.0
    %5419 = vmatpush1.msra.mxu0 0.0
    %5420 = vmatprep.subr.mxu0 0.0
    %5421 = vmatpush1.msra.mxu0 0.0
    %5422 = vmatprep.subr.mxu0 0.0
    %5423 = vmatpush1.msra.mxu0 0.0
    %5424 = vmatprep.subr.mxu0 0.0
    %5425 = vmatpush1.msra.mxu0 0.0
    %5426 = vmatprep.subr.mxu0 0.0
    %5427 = vmatpush1.msra.mxu0 0.0
    %5428 = vmatprep.subr.mxu0 0.0
    %5429 = vmatpush1.msra.mxu0 0.0
    %5430 = vmatprep.subr.mxu0 0.0
    %5431 = vmatpush1.msra.mxu0 0.0
    %5432 = vmatprep.subr.mxu0 0.0
    %5433 = vmatpush1.msra.mxu0 0.0
    %5434 = vmatprep.subr.mxu0 0.0
    %5435 = vmatpush1.msra.mxu0 0.0
    %5436 = vmatprep.subr.mxu0 0.0
    %5437 = vmatpush1.msra.mxu0 0.0
    %5438 = vmatprep.subr.mxu0 0.0
    %5439 = vmatpush1.msra.mxu0 0.0
    %5440 = vmatprep.subr.mxu0 0.0
    %5441 = vmatpush1.msra.mxu0 0.0
    %5442 = vmatprep.subr.mxu0 0.0
    %5443 = vmatpush1.msra.mxu0 0.0
    %5444 = vmatprep.subr.mxu0 0.0
    %5445 = vmatpush1.msra.mxu0 0.0
    %5446 = vmatprep.mubr.f32.mxu0 0.0
    %5447 = vmatmul.mubr.f32.gmra.mrb[0].mxu0 %v4629
    %v5448 = vpop.f32.mrb[0].mxu0
    %v5449 = vadd.f32 1e-08, %v5448
    %v5450 = vpop.f32.mrb[0].mxu0
    %5451 = vdwg.mxu0
    %v5452 = vrcp.pop %v5449
    %v5453 = vmul.f32 %v5379, %v5452
    %v5454 = vadd.f32 %v5453, 1e-08
    %v5455 = vrsqrt.pop %v5454
    %vm5456 = vcmask 261120
    %v5458 = vsel %vm5456, %v5455, 0
    %5460 = vmatprep.subr.mxu0 0.0
    %v5461 = vand.u32 %v4736, 4294901760
    %5462 = vmatpush1.msra.mxu0 %v5461
    %5463 = vmatprep.subr.mxu0 0.0
    %v5464 = vand.u32 %v4737, 4294901760
    %5465 = vmatpush1.msra.mxu0 %v5464
    %5466 = vmatprep.subr.mxu0 0.0
    %v5467 = vand.u32 %v4738, 4294901760
    %5468 = vmatpush1.msra.mxu0 %v5467
    %5469 = vmatprep.subr.mxu0 0.0
    %v5470 = vand.u32 %v4739, 4294901760
    %5471 = vmatpush1.msra.mxu0 %v5470
    %5472 = vmatprep.subr.mxu0 0.0
    %5473 = vmatpush1.msra.mxu0 0.0
    %5474 = vmatprep.subr.mxu0 0.0
    %5475 = vmatpush1.msra.mxu0 0.0
    %5476 = vmatprep.subr.mxu0 0.0
    %5477 = vmatpush1.msra.mxu0 0.0
    %5478 = vmatprep.subr.mxu0 0.0
    %5479 = vmatpush1.msra.mxu0 0.0
    %5480 = vmatprep.subr.mxu0 0.0
    %5481 = vmatpush1.msra.mxu0 0.0
    %5482 = vmatprep.subr.mxu0 0.0
    %5483 = vmatpush1.msra.mxu0 0.0
    %5484 = vmatprep.subr.mxu0 0.0
    %5485 = vmatpush1.msra.mxu0 0.0
    %5486 = vmatprep.subr.mxu0 0.0
    %5487 = vmatpush1.msra.mxu0 0.0
    %5488 = vmatprep.subr.mxu0 0.0
    %5489 = vmatpush1.msra.mxu0 0.0
    %5490 = vmatprep.subr.mxu0 0.0
    %5491 = vmatpush1.msra.mxu0 0.0
    %5492 = vmatprep.subr.mxu0 0.0
    %5493 = vmatpush1.msra.mxu0 0.0
    %5494 = vmatprep.subr.mxu0 0.0
    %5495 = vmatpush1.msra.mxu0 0.0
    %5496 = vmatprep.subr.mxu0 0.0
    %5497 = vmatpush1.msra.mxu0 0.0
    %5498 = vmatprep.subr.mxu0 0.0
    %5499 = vmatpush1.msra.mxu0 0.0
    %5500 = vmatprep.subr.mxu0 0.0
    %5501 = vmatpush1.msra.mxu0 0.0
    %5502 = vmatprep.subr.mxu0 0.0
    %5503 = vmatpush1.msra.mxu0 0.0
    %5504 = vmatprep.subr.mxu0 0.0
    %5505 = vmatpush1.msra.mxu0 0.0
    %5506 = vmatprep.subr.mxu0 0.0
    %5507 = vmatpush1.msra.mxu0 0.0
    %5508 = vmatprep.subr.mxu0 0.0
    %5509 = vmatpush1.msra.mxu0 0.0
    %5510 = vmatprep.subr.mxu0 0.0
    %5511 = vmatpush1.msra.mxu0 0.0
    %5512 = vmatprep.subr.mxu0 0.0
    %5513 = vmatpush1.msra.mxu0 0.0
    %5514 = vmatprep.subr.mxu0 0.0
    %5515 = vmatpush1.msra.mxu0 0.0
    %5516 = vmatprep.subr.mxu0 0.0
    %5517 = vmatpush1.msra.mxu0 0.0
    %5518 = vmatprep.subr.mxu0 0.0
    %5519 = vmatpush1.msra.mxu0 0.0
    %5520 = vmatprep.subr.mxu0 0.0
    %5521 = vmatpush1.msra.mxu0 0.0
    %5522 = vmatprep.subr.mxu0 0.0
    %5523 = vmatpush1.msra.mxu0 0.0
    %5524 = vmatprep.subr.mxu0 0.0
    %5525 = vmatpush1.msra.mxu0 0.0
    %5526 = vmatprep.subr.mxu0 0.0
    %5527 = vmatpush1.msra.mxu0 0.0
    %5528 = vmatprep.mubr.f32.mxu0 0.0
    %v5529 = vand.u32 %v5458, 4294901760
    %v5530 = vsub.f32 %v5458, %v5529
    %v5531 = vand.u32 %v5530, 4294901760
    %v5532 = vsub.f32 %v5530, %v5531
    %v5533 = vand.u32 %v5532, 4294901760
    %5534 = vmatmul.mubr.f32.gmra.mrb[0].mxu0 %v5533
    %v5535 = vpop.f32.mrb[0].mxu0
    %v5536 = vadd.f32 0.0, %v5535
    %v5537 = vpop.f32.mrb[0].mxu0
    %5538 = vdwg.mxu0
    %5539 = vmatprep.subr.mxu0 0.0
    %v5540 = vand.u32 %v4736, 4294901760
    %v5541 = vsub.f32 %v4736, %v5540
    %v5542 = vand.u32 %v5541, 4294901760
    %v5543 = vsub.f32 %v5541, %v5542
    %v5544 = vand.u32 %v5543, 4294901760
    %5545 = vmatpush1.msra.mxu0 %v5544
    %5546 = vmatprep.subr.mxu0 0.0
    %v5547 = vand.u32 %v4737, 4294901760
    %v5548 = vsub.f32 %v4737, %v5547
    %v5549 = vand.u32 %v5548, 4294901760
    %v5550 = vsub.f32 %v5548, %v5549
    %v5551 = vand.u32 %v5550, 4294901760
    %5552 = vmatpush1.msra.mxu0 %v5551
    %5553 = vmatprep.subr.mxu0 0.0
    %v5554 = vand.u32 %v4738, 4294901760
    %v5555 = vsub.f32 %v4738, %v5554
    %v5556 = vand.u32 %v5555, 4294901760
    %v5557 = vsub.f32 %v5555, %v5556
    %v5558 = vand.u32 %v5557, 4294901760
    %5559 = vmatpush1.msra.mxu0 %v5558
    %5560 = vmatprep.subr.mxu0 0.0
    %v5561 = vand.u32 %v4739, 4294901760
    %v5562 = vsub.f32 %v4739, %v5561
    %v5563 = vand.u32 %v5562, 4294901760
    %v5564 = vsub.f32 %v5562, %v5563
    %v5565 = vand.u32 %v5564, 4294901760
    %5566 = vmatpush1.msra.mxu0 %v5565
    %5567 = vmatprep.subr.mxu0 0.0
    %5568 = vmatpush1.msra.mxu0 0.0
    %5569 = vmatprep.subr.mxu0 0.0
    %5570 = vmatpush1.msra.mxu0 0.0
    %5571 = vmatprep.subr.mxu0 0.0
    %5572 = vmatpush1.msra.mxu0 0.0
    %5573 = vmatprep.subr.mxu0 0.0
    %5574 = vmatpush1.msra.mxu0 0.0
    %5575 = vmatprep.subr.mxu0 0.0
    %5576 = vmatpush1.msra.mxu0 0.0
    %5577 = vmatprep.subr.mxu0 0.0
    %5578 = vmatpush1.msra.mxu0 0.0
    %5579 = vmatprep.subr.mxu0 0.0
    %5580 = vmatpush1.msra.mxu0 0.0
    %5581 = vmatprep.subr.mxu0 0.0
    %5582 = vmatpush1.msra.mxu0 0.0
    %5583 = vmatprep.subr.mxu0 0.0
    %5584 = vmatpush1.msra.mxu0 0.0
    %5585 = vmatprep.subr.mxu0 0.0
    %5586 = vmatpush1.msra.mxu0 0.0
    %5587 = vmatprep.subr.mxu0 0.0
    %5588 = vmatpush1.msra.mxu0 0.0
    %5589 = vmatprep.subr.mxu0 0.0
    %5590 = vmatpush1.msra.mxu0 0.0
    %5591 = vmatprep.subr.mxu0 0.0
    %5592 = vmatpush1.msra.mxu0 0.0
    %5593 = vmatprep.subr.mxu0 0.0
    %5594 = vmatpush1.msra.mxu0 0.0
    %5595 = vmatprep.subr.mxu0 0.0
    %5596 = vmatpush1.msra.mxu0 0.0
    %5597 = vmatprep.subr.mxu0 0.0
    %5598 = vmatpush1.msra.mxu0 0.0
    %5599 = vmatprep.subr.mxu0 0.0
    %5600 = vmatpush1.msra.mxu0 0.0
    %5601 = vmatprep.subr.mxu0 0.0
    %5602 = vmatpush1.msra.mxu0 0.0
    %5603 = vmatprep.subr.mxu0 0.0
    %5604 = vmatpush1.msra.mxu0 0.0
    %5605 = vmatprep.subr.mxu0 0.0
    %5606 = vmatpush1.msra.mxu0 0.0
    %5607 = vmatprep.subr.mxu0 0.0
    %5608 = vmatpush1.msra.mxu0 0.0
    %5609 = vmatprep.subr.mxu0 0.0
    %5610 = vmatpush1.msra.mxu0 0.0
    %5611 = vmatprep.subr.mxu0 0.0
    %5612 = vmatpush1.msra.mxu0 0.0
    %5613 = vmatprep.subr.mxu0 0.0
    %5614 = vmatpush1.msra.mxu0 0.0
    %5615 = vmatprep.subr.mxu0 0.0
    %5616 = vmatpush1.msra.mxu0 0.0
    %5617 = vmatprep.subr.mxu0 0.0
    %5618 = vmatpush1.msra.mxu0 0.0
    %5619 = vmatprep.subr.mxu0 0.0
    %5620 = vmatpush1.msra.mxu0 0.0
    %5621 = vmatprep.subr.mxu0 0.0
    %5622 = vmatpush1.msra.mxu0 0.0
    %5623 = vmatprep.mubr.f32.mxu0 0.0
    %v5624 = vand.u32 %v5458, 4294901760
    %5625 = vmatmul.mubr.f32.gmra.mrb[0].mxu0 %v5624
    %v5626 = vpop.f32.mrb[0].mxu0
    %v5627 = vadd.f32 %v5536, %v5626
    %v5628 = vpop.f32.mrb[0].mxu0
    %5629 = vdwg.mxu0
    %5630 = vmatprep.subr.mxu0 0.0
    %v5631 = vand.u32 %v4736, 4294901760
    %v5632 = vsub.f32 %v4736, %v5631
    %5633 = vmatpush1.msra.mxu0 %v5632
    %5634 = vmatprep.subr.mxu0 0.0
    %v5635 = vand.u32 %v4737, 4294901760
    %v5636 = vsub.f32 %v4737, %v5635
    %5637 = vmatpush1.msra.mxu0 %v5636
    %5638 = vmatprep.subr.mxu0 0.0
    %v5639 = vand.u32 %v4738, 4294901760
    %v5640 = vsub.f32 %v4738, %v5639
    %5641 = vmatpush1.msra.mxu0 %v5640
    %5642 = vmatprep.subr.mxu0 0.0
    %v5643 = vand.u32 %v4739, 4294901760
    %v5644 = vsub.f32 %v4739, %v5643
    %5645 = vmatpush1.msra.mxu0 %v5644
    %5646 = vmatprep.subr.mxu0 0.0
    %5647 = vmatpush1.msra.mxu0 0.0
    %5648 = vmatprep.subr.mxu0 0.0
    %5649 = vmatpush1.msra.mxu0 0.0
    %5650 = vmatprep.subr.mxu0 0.0
    %5651 = vmatpush1.msra.mxu0 0.0
    %5652 = vmatprep.subr.mxu0 0.0
    %5653 = vmatpush1.msra.mxu0 0.0
    %5654 = vmatprep.subr.mxu0 0.0
    %5655 = vmatpush1.msra.mxu0 0.0
    %5656 = vmatprep.subr.mxu0 0.0
    %5657 = vmatpush1.msra.mxu0 0.0
    %5658 = vmatprep.subr.mxu0 0.0
    %5659 = vmatpush1.msra.mxu0 0.0
    %5660 = vmatprep.subr.mxu0 0.0
    %5661 = vmatpush1.msra.mxu0 0.0
    %5662 = vmatprep.subr.mxu0 0.0
    %5663 = vmatpush1.msra.mxu0 0.0
    %5664 = vmatprep.subr.mxu0 0.0
    %5665 = vmatpush1.msra.mxu0 0.0
    %5666 = vmatprep.subr.mxu0 0.0
    %5667 = vmatpush1.msra.mxu0 0.0
    %5668 = vmatprep.subr.mxu0 0.0
    %5669 = vmatpush1.msra.mxu0 0.0
    %5670 = vmatprep.subr.mxu0 0.0
    %5671 = vmatpush1.msra.mxu0 0.0
    %5672 = vmatprep.subr.mxu0 0.0
    %5673 = vmatpush1.msra.mxu0 0.0
    %5674 = vmatprep.subr.mxu0 0.0
    %5675 = vmatpush1.msra.mxu0 0.0
    %5676 = vmatprep.subr.mxu0 0.0
    %5677 = vmatpush1.msra.mxu0 0.0
    %5678 = vmatprep.subr.mxu0 0.0
    %5679 = vmatpush1.msra.mxu0 0.0
    %5680 = vmatprep.subr.mxu0 0.0
    %5681 = vmatpush1.msra.mxu0 0.0
    %5682 = vmatprep.subr.mxu0 0.0
    %5683 = vmatpush1.msra.mxu0 0.0
    %5684 = vmatprep.subr.mxu0 0.0
    %5685 = vmatpush1.msra.mxu0 0.0
    %5686 = vmatprep.subr.mxu0 0.0
    %5687 = vmatpush1.msra.mxu0 0.0
    %5688 = vmatprep.subr.mxu0 0.0
    %5689 = vmatpush1.msra.mxu0 0.0
    %5690 = vmatprep.subr.mxu0 0.0
    %5691 = vmatpush1.msra.mxu0 0.0
    %5692 = vmatprep.subr.mxu0 0.0
    %5693 = vmatpush1.msra.mxu0 0.0
    %5694 = vmatprep.subr.mxu0 0.0
    %5695 = vmatpush1.msra.mxu0 0.0
    %5696 = vmatprep.subr.mxu0 0.0
    %5697 = vmatpush1.msra.mxu0 0.0
    %5698 = vmatprep.subr.mxu0 0.0
    %5699 = vmatpush1.msra.mxu0 0.0
    %5700 = vmatprep.subr.mxu0 0.0
    %5701 = vmatpush1.msra.mxu0 0.0
    %5702 = vmatprep.mubr.f32.mxu0 0.0
    %v5703 = vand.u32 %v5458, 4294901760
    %v5704 = vsub.f32 %v5458, %v5703
    %5705 = vmatmul.mubr.f32.gmra.mrb[0].mxu0 %v5704
    %v5706 = vpop.f32.mrb[0].mxu0
    %v5707 = vadd.f32 %v5627, %v5706
    %v5708 = vpop.f32.mrb[0].mxu0
    %5709 = vdwg.mxu0
    %5710 = vmatprep.subr.mxu0 0.0
    %v5711 = vand.u32 %v4736, 4294901760
    %5712 = vmatpush1.msra.mxu0 %v5711
    %5713 = vmatprep.subr.mxu0 0.0
    %v5714 = vand.u32 %v4737, 4294901760
    %5715 = vmatpush1.msra.mxu0 %v5714
    %5716 = vmatprep.subr.mxu0 0.0
    %v5717 = vand.u32 %v4738, 4294901760
    %5718 = vmatpush1.msra.mxu0 %v5717
    %5719 = vmatprep.subr.mxu0 0.0
    %v5720 = vand.u32 %v4739, 4294901760
    %5721 = vmatpush1.msra.mxu0 %v5720
    %5722 = vmatprep.subr.mxu0 0.0
    %5723 = vmatpush1.msra.mxu0 0.0
    %5724 = vmatprep.subr.mxu0 0.0
    %5725 = vmatpush1.msra.mxu0 0.0
    %5726 = vmatprep.subr.mxu0 0.0
    %5727 = vmatpush1.msra.mxu0 0.0
    %5728 = vmatprep.subr.mxu0 0.0
    %5729 = vmatpush1.msra.mxu0 0.0
    %5730 = vmatprep.subr.mxu0 0.0
    %5731 = vmatpush1.msra.mxu0 0.0
    %5732 = vmatprep.subr.mxu0 0.0
    %5733 = vmatpush1.msra.mxu0 0.0
    %5734 = vmatprep.subr.mxu0 0.0
    %5735 = vmatpush1.msra.mxu0 0.0
    %5736 = vmatprep.subr.mxu0 0.0
    %5737 = vmatpush1.msra.mxu0 0.0
    %5738 = vmatprep.subr.mxu0 0.0
    %5739 = vmatpush1.msra.mxu0 0.0
    %5740 = vmatprep.subr.mxu0 0.0
    %5741 = vmatpush1.msra.mxu0 0.0
    %5742 = vmatprep.subr.mxu0 0.0
    %5743 = vmatpush1.msra.mxu0 0.0
    %5744 = vmatprep.subr.mxu0 0.0
    %5745 = vmatpush1.msra.mxu0 0.0
    %5746 = vmatprep.subr.mxu0 0.0
    %5747 = vmatpush1.msra.mxu0 0.0
    %5748 = vmatprep.subr.mxu0 0.0
    %5749 = vmatpush1.msra.mxu0 0.0
    %5750 = vmatprep.subr.mxu0 0.0
    %5751 = vmatpush1.msra.mxu0 0.0
    %5752 = vmatprep.subr.mxu0 0.0
    %5753 = vmatpush1.msra.mxu0 0.0
    %5754 = vmatprep.subr.mxu0 0.0
    %5755 = vmatpush1.msra.mxu0 0.0
    %5756 = vmatprep.subr.mxu0 0.0
    %5757 = vmatpush1.msra.mxu0 0.0
    %5758 = vmatprep.subr.mxu0 0.0
    %5759 = vmatpush1.msra.mxu0 0.0
    %5760 = vmatprep.subr.mxu0 0.0
    %5761 = vmatpush1.msra.mxu0 0.0
    %5762 = vmatprep.subr.mxu0 0.0
    %5763 = vmatpush1.msra.mxu0 0.0
    %5764 = vmatprep.subr.mxu0 0.0
    %5765 = vmatpush1.msra.mxu0 0.0
    %5766 = vmatprep.subr.mxu0 0.0
    %5767 = vmatpush1.msra.mxu0 0.0
    %5768 = vmatprep.subr.mxu0 0.0
    %5769 = vmatpush1.msra.mxu0 0.0
    %5770 = vmatprep.subr.mxu0 0.0
    %5771 = vmatpush1.msra.mxu0 0.0
    %5772 = vmatprep.subr.mxu0 0.0
    %5773 = vmatpush1.msra.mxu0 0.0
    %5774 = vmatprep.subr.mxu0 0.0
    %5775 = vmatpush1.msra.mxu0 0.0
    %5776 = vmatprep.subr.mxu0 0.0
    %5777 = vmatpush1.msra.mxu0 0.0
    %5778 = vmatprep.mubr.f32.mxu0 0.0
    %v5779 = vand.u32 %v5458, 4294901760
    %v5780 = vsub.f32 %v5458, %v5779
    %v5781 = vand.u32 %v5780, 4294901760
    %5782 = vmatmul.mubr.f32.gmra.mrb[0].mxu0 %v5781
    %v5783 = vpop.f32.mrb[0].mxu0
    %v5784 = vadd.f32 %v5707, %v5783
    %v5785 = vpop.f32.mrb[0].mxu0
    %5786 = vdwg.mxu0
    %5787 = vmatprep.subr.mxu0 0.0
    %v5788 = vand.u32 %v4736, 4294901760
    %v5789 = vsub.f32 %v4736, %v5788
    %v5790 = vand.u32 %v5789, 4294901760
    %5791 = vmatpush1.msra.mxu0 %v5790
    %5792 = vmatprep.subr.mxu0 0.0
    %v5793 = vand.u32 %v4737, 4294901760
    %v5794 = vsub.f32 %v4737, %v5793
    %v5795 = vand.u32 %v5794, 4294901760
    %5796 = vmatpush1.msra.mxu0 %v5795
    %5797 = vmatprep.subr.mxu0 0.0
    %v5798 = vand.u32 %v4738, 4294901760
    %v5799 = vsub.f32 %v4738, %v5798
    %v5800 = vand.u32 %v5799, 4294901760
    %5801 = vmatpush1.msra.mxu0 %v5800
    %5802 = vmatprep.subr.mxu0 0.0
    %v5803 = vand.u32 %v4739, 4294901760
    %v5804 = vsub.f32 %v4739, %v5803
    %v5805 = vand.u32 %v5804, 4294901760
    %5806 = vmatpush1.msra.mxu0 %v5805
    %5807 = vmatprep.subr.mxu0 0.0
    %5808 = vmatpush1.msra.mxu0 0.0
    %5809 = vmatprep.subr.mxu0 0.0
    %5810 = vmatpush1.msra.mxu0 0.0
    %5811 = vmatprep.subr.mxu0 0.0
    %5812 = vmatpush1.msra.mxu0 0.0
    %5813 = vmatprep.subr.mxu0 0.0
    %5814 = vmatpush1.msra.mxu0 0.0
    %5815 = vmatprep.subr.mxu0 0.0
    %5816 = vmatpush1.msra.mxu0 0.0
    %5817 = vmatprep.subr.mxu0 0.0
    %5818 = vmatpush1.msra.mxu0 0.0
    %5819 = vmatprep.subr.mxu0 0.0
    %5820 = vmatpush1.msra.mxu0 0.0
    %5821 = vmatprep.subr.mxu0 0.0
    %5822 = vmatpush1.msra.mxu0 0.0
    %5823 = vmatprep.subr.mxu0 0.0
    %5824 = vmatpush1.msra.mxu0 0.0
    %5825 = vmatprep.subr.mxu0 0.0
    %5826 = vmatpush1.msra.mxu0 0.0
    %5827 = vmatprep.subr.mxu0 0.0
    %5828 = vmatpush1.msra.mxu0 0.0
    %5829 = vmatprep.subr.mxu0 0.0
    %5830 = vmatpush1.msra.mxu0 0.0
    %5831 = vmatprep.subr.mxu0 0.0
    %5832 = vmatpush1.msra.mxu0 0.0
    %5833 = vmatprep.subr.mxu0 0.0
    %5834 = vmatpush1.msra.mxu0 0.0
    %5835 = vmatprep.subr.mxu0 0.0
    %5836 = vmatpush1.msra.mxu0 0.0
    %5837 = vmatprep.subr.mxu0 0.0
    %5838 = vmatpush1.msra.mxu0 0.0
    %5839 = vmatprep.subr.mxu0 0.0
    %5840 = vmatpush1.msra.mxu0 0.0
    %5841 = vmatprep.subr.mxu0 0.0
    %5842 = vmatpush1.msra.mxu0 0.0
    %5843 = vmatprep.subr.mxu0 0.0
    %5844 = vmatpush1.msra.mxu0 0.0
    %5845 = vmatprep.subr.mxu0 0.0
    %5846 = vmatpush1.msra.mxu0 0.0
    %5847 = vmatprep.subr.mxu0 0.0
    %5848 = vmatpush1.msra.mxu0 0.0
    %5849 = vmatprep.subr.mxu0 0.0
    %5850 = vmatpush1.msra.mxu0 0.0
    %5851 = vmatprep.subr.mxu0 0.0
    %5852 = vmatpush1.msra.mxu0 0.0
    %5853 = vmatprep.subr.mxu0 0.0
    %5854 = vmatpush1.msra.mxu0 0.0
    %5855 = vmatprep.subr.mxu0 0.0
    %5856 = vmatpush1.msra.mxu0 0.0
    %5857 = vmatprep.subr.mxu0 0.0
    %5858 = vmatpush1.msra.mxu0 0.0
    %5859 = vmatprep.subr.mxu0 0.0
    %5860 = vmatpush1.msra.mxu0 0.0
    %5861 = vmatprep.subr.mxu0 0.0
    %5862 = vmatpush1.msra.mxu0 0.0
    %5863 = vmatprep.mubr.f32.mxu0 0.0
    %v5864 = vand.u32 %v5458, 4294901760
    %5865 = vmatmul.mubr.f32.gmra.mrb[0].mxu0 %v5864
    %v5866 = vpop.f32.mrb[0].mxu0
    %v5867 = vadd.f32 %v5784, %v5866
    %v5868 = vpop.f32.mrb[0].mxu0
    %5869 = vdwg.mxu0
    %5870 = vmatprep.subr.mxu0 0.0
    %v5871 = vand.u32 %v4736, 4294901760
    %5872 = vmatpush1.msra.mxu0 %v5871
    %5873 = vmatprep.subr.mxu0 0.0
    %v5874 = vand.u32 %v4737, 4294901760
    %5875 = vmatpush1.msra.mxu0 %v5874
    %5876 = vmatprep.subr.mxu0 0.0
    %v5877 = vand.u32 %v4738, 4294901760
    %5878 = vmatpush1.msra.mxu0 %v5877
    %5879 = vmatprep.subr.mxu0 0.0
    %v5880 = vand.u32 %v4739, 4294901760
    %5881 = vmatpush1.msra.mxu0 %v5880
    %5882 = vmatprep.subr.mxu0 0.0
    %5883 = vmatpush1.msra.mxu0 0.0
    %5884 = vmatprep.subr.mxu0 0.0
    %5885 = vmatpush1.msra.mxu0 0.0
    %5886 = vmatprep.subr.mxu0 0.0
    %5887 = vmatpush1.msra.mxu0 0.0
    %5888 = vmatprep.subr.mxu0 0.0
    %5889 = vmatpush1.msra.mxu0 0.0
    %5890 = vmatprep.subr.mxu0 0.0
    %5891 = vmatpush1.msra.mxu0 0.0
    %5892 = vmatprep.subr.mxu0 0.0
    %5893 = vmatpush1.msra.mxu0 0.0
    %5894 = vmatprep.subr.mxu0 0.0
    %5895 = vmatpush1.msra.mxu0 0.0
    %5896 = vmatprep.subr.mxu0 0.0
    %5897 = vmatpush1.msra.mxu0 0.0
    %5898 = vmatprep.subr.mxu0 0.0
    %5899 = vmatpush1.msra.mxu0 0.0
    %5900 = vmatprep.subr.mxu0 0.0
    %5901 = vmatpush1.msra.mxu0 0.0
    %5902 = vmatprep.subr.mxu0 0.0
    %5903 = vmatpush1.msra.mxu0 0.0
    %5904 = vmatprep.subr.mxu0 0.0
    %5905 = vmatpush1.msra.mxu0 0.0
    %5906 = vmatprep.subr.mxu0 0.0
    %5907 = vmatpush1.msra.mxu0 0.0
    %5908 = vmatprep.subr.mxu0 0.0
    %5909 = vmatpush1.msra.mxu0 0.0
    %5910 = vmatprep.subr.mxu0 0.0
    %5911 = vmatpush1.msra.mxu0 0.0
    %5912 = vmatprep.subr.mxu0 0.0
    %5913 = vmatpush1.msra.mxu0 0.0
    %5914 = vmatprep.subr.mxu0 0.0
    %5915 = vmatpush1.msra.mxu0 0.0
    %5916 = vmatprep.subr.mxu0 0.0
    %5917 = vmatpush1.msra.mxu0 0.0
    %5918 = vmatprep.subr.mxu0 0.0
    %5919 = vmatpush1.msra.mxu0 0.0
    %5920 = vmatprep.subr.mxu0 0.0
    %5921 = vmatpush1.msra.mxu0 0.0
    %5922 = vmatprep.subr.mxu0 0.0
    %5923 = vmatpush1.msra.mxu0 0.0
    %5924 = vmatprep.subr.mxu0 0.0
    %5925 = vmatpush1.msra.mxu0 0.0
    %5926 = vmatprep.subr.mxu0 0.0
    %5927 = vmatpush1.msra.mxu0 0.0
    %5928 = vmatprep.subr.mxu0 0.0
    %5929 = vmatpush1.msra.mxu0 0.0
    %5930 = vmatprep.subr.mxu0 0.0
    %5931 = vmatpush1.msra.mxu0 0.0
    %5932 = vmatprep.subr.mxu0 0.0
    %5933 = vmatpush1.msra.mxu0 0.0
    %5934 = vmatprep.subr.mxu0 0.0
    %5935 = vmatpush1.msra.mxu0 0.0
    %5936 = vmatprep.subr.mxu0 0.0
    %5937 = vmatpush1.msra.mxu0 0.0
    %5938 = vmatprep.mubr.f32.mxu0 0.0
    %v5939 = vand.u32 %v5458, 4294901760
    %5940 = vmatmul.mubr.f32.gmra.mrb[0].mxu0 %v5939
    %v5941 = vpop.f32.mrb[0].mxu0
    %v5942 = vadd.f32 %v5867, %v5941
    %v5943 = vpop.f32.mrb[0].mxu0
    %5944 = vdwg.mxu0
    %v5945 = vmul.f32 %v4629, %v5942
    %v5946 = vand.u32 %v3056, 4294901760
    %5947 = vmatprep.subr.mxu0 %v5946
    %v5948 = vand.u32 %v3055, 4294901760
    %5949 = vmatpush1.msra.mxu0 %v5948
    %v5950 = vand.u32 %v3059, 4294901760
    %5951 = vmatprep.subr.mxu0 %v5950
    %v5952 = vand.u32 %v3058, 4294901760
    %5953 = vmatpush1.msra.mxu0 %v5952
    %v5954 = vand.u32 %v3062, 4294901760
    %5955 = vmatprep.subr.mxu0 %v5954
    %v5956 = vand.u32 %v3061, 4294901760
    %5957 = vmatpush1.msra.mxu0 %v5956
    %v5958 = vand.u32 %v3065, 4294901760
    %5959 = vmatprep.subr.mxu0 %v5958
    %v5960 = vand.u32 %v3064, 4294901760
    %5961 = vmatpush1.msra.mxu0 %v5960
    %v5962 = vand.u32 %v3068, 4294901760
    %5963 = vmatprep.subr.mxu0 %v5962
    %v5964 = vand.u32 %v3067, 4294901760
    %5965 = vmatpush1.msra.mxu0 %v5964
    %v5966 = vand.u32 %v3071, 4294901760
    %5967 = vmatprep.subr.mxu0 %v5966
    %v5968 = vand.u32 %v3070, 4294901760
    %5969 = vmatpush1.msra.mxu0 %v5968
    %v5970 = vand.u32 %v3074, 4294901760
    %5971 = vmatprep.subr.mxu0 %v5970
    %v5972 = vand.u32 %v3073, 4294901760
    %5973 = vmatpush1.msra.mxu0 %v5972
    %v5974 = vand.u32 %v3077, 4294901760
    %5975 = vmatprep.subr.mxu0 %v5974
    %v5976 = vand.u32 %v3076, 4294901760
    %5977 = vmatpush1.msra.mxu0 %v5976
    %v5978 = vand.u32 %v3080, 4294901760
    %5979 = vmatprep.subr.mxu0 %v5978
    %v5980 = vand.u32 %v3079, 4294901760
    %5981 = vmatpush1.msra.mxu0 %v5980
    %v5982 = vand.u32 %v3083, 4294901760
    %5983 = vmatprep.subr.mxu0 %v5982
    %v5984 = vand.u32 %v3082, 4294901760
    %5985 = vmatpush1.msra.mxu0 %v5984
    %v5986 = vand.u32 %v3086, 4294901760
    %5987 = vmatprep.subr.mxu0 %v5986
    %v5988 = vand.u32 %v3085, 4294901760
    %5989 = vmatpush1.msra.mxu0 %v5988
    %v5990 = vand.u32 %v3089, 4294901760
    %5991 = vmatprep.subr.mxu0 %v5990
    %v5992 = vand.u32 %v3088, 4294901760
    %5993 = vmatpush1.msra.mxu0 %v5992
    %v5994 = vand.u32 %v3092, 4294901760
    %5995 = vmatprep.subr.mxu0 %v5994
    %v5996 = vand.u32 %v3091, 4294901760
    %5997 = vmatpush1.msra.mxu0 %v5996
    %v5998 = vand.u32 %v3095, 4294901760
    %5999 = vmatprep.subr.mxu0 %v5998
    %v6000 = vand.u32 %v3094, 4294901760
    %6001 = vmatpush1.msra.mxu0 %v6000
    %v6002 = vand.u32 %v3098, 4294901760
    %6003 = vmatprep.subr.mxu0 %v6002
    %v6004 = vand.u32 %v3097, 4294901760
    %6005 = vmatpush1.msra.mxu0 %v6004
    %v6006 = vand.u32 %v3101, 4294901760
    %6007 = vmatprep.subr.mxu0 %v6006
    %v6008 = vand.u32 %v3100, 4294901760
    %6009 = vmatpush1.msra.mxu0 %v6008
    %6010 = vmatprep.subr.mxu0 0.0
    %6011 = vmatpush1.msra.mxu0 0.0
    %6012 = vmatprep.subr.mxu0 0.0
    %6013 = vmatpush1.msra.mxu0 0.0
    %6014 = vmatprep.subr.mxu0 0.0
    %6015 = vmatpush1.msra.mxu0 0.0
    %6016 = vmatprep.subr.mxu0 0.0
    %6017 = vmatpush1.msra.mxu0 0.0
    %6018 = vmatprep.subr.mxu0 0.0
    %6019 = vmatpush1.msra.mxu0 0.0
    %6020 = vmatprep.subr.mxu0 0.0
    %6021 = vmatpush1.msra.mxu0 0.0
    %6022 = vmatprep.subr.mxu0 0.0
    %6023 = vmatpush1.msra.mxu0 0.0
    %6024 = vmatprep.subr.mxu0 0.0
    %6025 = vmatpush1.msra.mxu0 0.0
    %6026 = vmatprep.subr.mxu0 0.0
    %6027 = vmatpush1.msra.mxu0 0.0
    %6028 = vmatprep.subr.mxu0 0.0
    %6029 = vmatpush1.msra.mxu0 0.0
    %6030 = vmatprep.subr.mxu0 0.0
    %6031 = vmatpush1.msra.mxu0 0.0
    %6032 = vmatprep.subr.mxu0 0.0
    %6033 = vmatpush1.msra.mxu0 0.0
    %6034 = vmatprep.subr.mxu0 0.0
    %6035 = vmatpush1.msra.mxu0 0.0
    %6036 = vmatprep.subr.mxu0 0.0
    %6037 = vmatpush1.msra.mxu0 0.0
    %6038 = vmatprep.subr.mxu0 0.0
    %6039 = vmatpush1.msra.mxu0 0.0
    %6040 = vmatprep.subr.mxu0 0.0
    %6041 = vmatpush1.msra.mxu0 0.0
    %6042 = vmatprep.mubr.f32.mxu0 0.0
    %v6043 = vand.u32 %v5945, 4294901760
    %v6044 = vsub.f32 %v5945, %v6043
    %v6045 = vand.u32 %v6044, 4294901760
    %v6046 = vsub.f32 %v6044, %v6045
    %v6047 = vand.u32 %v6046, 4294901760
    %6048 = vmatmul.mubr.f32.gmra.mrb[0].mxu0 %v6047
    %v6049 = vpop.f32.mrb[0].mxu0
    %v6050 = vadd.f32 0.0, %v6049
    %v6051 = vpop.f32.mrb[0].mxu0
    %v6052 = vadd.f32 0.0, %v6051
    %6053 = vdwg.mxu0
    %v6054 = vand.u32 %v3056, 4294901760
    %v6055 = vsub.f32 %v3056, %v6054
    %v6056 = vand.u32 %v6055, 4294901760
    %v6057 = vsub.f32 %v6055, %v6056
    %v6058 = vand.u32 %v6057, 4294901760
    %6059 = vmatprep.subr.mxu0 %v6058
    %v6060 = vand.u32 %v3055, 4294901760
    %v6061 = vsub.f32 %v3055, %v6060
    %v6062 = vand.u32 %v6061, 4294901760
    %v6063 = vsub.f32 %v6061, %v6062
    %v6064 = vand.u32 %v6063, 4294901760
    %6065 = vmatpush1.msra.mxu0 %v6064
    %v6066 = vand.u32 %v3059, 4294901760
    %v6067 = vsub.f32 %v3059, %v6066
    %v6068 = vand.u32 %v6067, 4294901760
    %v6069 = vsub.f32 %v6067, %v6068
    %v6070 = vand.u32 %v6069, 4294901760
    %6071 = vmatprep.subr.mxu0 %v6070
    %v6072 = vand.u32 %v3058, 4294901760
    %v6073 = vsub.f32 %v3058, %v6072
    %v6074 = vand.u32 %v6073, 4294901760
    %v6075 = vsub.f32 %v6073, %v6074
    %v6076 = vand.u32 %v6075, 4294901760
    %6077 = vmatpush1.msra.mxu0 %v6076
    %v6078 = vand.u32 %v3062, 4294901760
    %v6079 = vsub.f32 %v3062, %v6078
    %v6080 = vand.u32 %v6079, 4294901760
    %v6081 = vsub.f32 %v6079, %v6080
    %v6082 = vand.u32 %v6081, 4294901760
    %6083 = vmatprep.subr.mxu0 %v6082
    %v6084 = vand.u32 %v3061, 4294901760
    %v6085 = vsub.f32 %v3061, %v6084
    %v6086 = vand.u32 %v6085, 4294901760
    %v6087 = vsub.f32 %v6085, %v6086
    %v6088 = vand.u32 %v6087, 4294901760
    %6089 = vmatpush1.msra.mxu0 %v6088
    %v6090 = vand.u32 %v3065, 4294901760
    %v6091 = vsub.f32 %v3065, %v6090
    %v6092 = vand.u32 %v6091, 4294901760
    %v6093 = vsub.f32 %v6091, %v6092
    %v6094 = vand.u32 %v6093, 4294901760
    %6095 = vmatprep.subr.mxu0 %v6094
    %v6096 = vand.u32 %v3064, 4294901760
    %v6097 = vsub.f32 %v3064, %v6096
    %v6098 = vand.u32 %v6097, 4294901760
    %v6099 = vsub.f32 %v6097, %v6098
    %v6100 = vand.u32 %v6099, 4294901760
    %6101 = vmatpush1.msra.mxu0 %v6100
    %v6102 = vand.u32 %v3068, 4294901760
    %v6103 = vsub.f32 %v3068, %v6102
    %v6104 = vand.u32 %v6103, 4294901760
    %v6105 = vsub.f32 %v6103, %v6104
    %v6106 = vand.u32 %v6105, 4294901760
    %6107 = vmatprep.subr.mxu0 %v6106
    %v6108 = vand.u32 %v3067, 4294901760
    %v6109 = vsub.f32 %v3067, %v6108
    %v6110 = vand.u32 %v6109, 4294901760
    %v6111 = vsub.f32 %v6109, %v6110
    %v6112 = vand.u32 %v6111, 4294901760
    %6113 = vmatpush1.msra.mxu0 %v6112
    %v6114 = vand.u32 %v3071, 4294901760
    %v6115 = vsub.f32 %v3071, %v6114
    %v6116 = vand.u32 %v6115, 4294901760
    %v6117 = vsub.f32 %v6115, %v6116
    %v6118 = vand.u32 %v6117, 4294901760
    %6119 = vmatprep.subr.mxu0 %v6118
    %v6120 = vand.u32 %v3070, 4294901760
    %v6121 = vsub.f32 %v3070, %v6120
    %v6122 = vand.u32 %v6121, 4294901760
    %v6123 = vsub.f32 %v6121, %v6122
    %v6124 = vand.u32 %v6123, 4294901760
    %6125 = vmatpush1.msra.mxu0 %v6124
    %v6126 = vand.u32 %v3074, 4294901760
    %v6127 = vsub.f32 %v3074, %v6126
    %v6128 = vand.u32 %v6127, 4294901760
    %v6129 = vsub.f32 %v6127, %v6128
    %v6130 = vand.u32 %v6129, 4294901760
    %6131 = vmatprep.subr.mxu0 %v6130
    %v6132 = vand.u32 %v3073, 4294901760
    %v6133 = vsub.f32 %v3073, %v6132
    %v6134 = vand.u32 %v6133, 4294901760
    %v6135 = vsub.f32 %v6133, %v6134
    %v6136 = vand.u32 %v6135, 4294901760
    %6137 = vmatpush1.msra.mxu0 %v6136
    %v6138 = vand.u32 %v3077, 4294901760
    %v6139 = vsub.f32 %v3077, %v6138
    %v6140 = vand.u32 %v6139, 4294901760
    %v6141 = vsub.f32 %v6139, %v6140
    %v6142 = vand.u32 %v6141, 4294901760
    %6143 = vmatprep.subr.mxu0 %v6142
    %v6144 = vand.u32 %v3076, 4294901760
    %v6145 = vsub.f32 %v3076, %v6144
    %v6146 = vand.u32 %v6145, 4294901760
    %v6147 = vsub.f32 %v6145, %v6146
    %v6148 = vand.u32 %v6147, 4294901760
    %6149 = vmatpush1.msra.mxu0 %v6148
    %v6150 = vand.u32 %v3080, 4294901760
    %v6151 = vsub.f32 %v3080, %v6150
    %v6152 = vand.u32 %v6151, 4294901760
    %v6153 = vsub.f32 %v6151, %v6152
    %v6154 = vand.u32 %v6153, 4294901760
    %6155 = vmatprep.subr.mxu0 %v6154
    %v6156 = vand.u32 %v3079, 4294901760
    %v6157 = vsub.f32 %v3079, %v6156
    %v6158 = vand.u32 %v6157, 4294901760
    %v6159 = vsub.f32 %v6157, %v6158
    %v6160 = vand.u32 %v6159, 4294901760
    %6161 = vmatpush1.msra.mxu0 %v6160
    %v6162 = vand.u32 %v3083, 4294901760
    %v6163 = vsub.f32 %v3083, %v6162
    %v6164 = vand.u32 %v6163, 4294901760
    %v6165 = vsub.f32 %v6163, %v6164
    %v6166 = vand.u32 %v6165, 4294901760
    %6167 = vmatprep.subr.mxu0 %v6166
    %v6168 = vand.u32 %v3082, 4294901760
    %v6169 = vsub.f32 %v3082, %v6168
    %v6170 = vand.u32 %v6169, 4294901760
    %v6171 = vsub.f32 %v6169, %v6170
    %v6172 = vand.u32 %v6171, 4294901760
    %6173 = vmatpush1.msra.mxu0 %v6172
    %v6174 = vand.u32 %v3086, 4294901760
    %v6175 = vsub.f32 %v3086, %v6174
    %v6176 = vand.u32 %v6175, 4294901760
    %v6177 = vsub.f32 %v6175, %v6176
    %v6178 = vand.u32 %v6177, 4294901760
    %6179 = vmatprep.subr.mxu0 %v6178
    %v6180 = vand.u32 %v3085, 4294901760
    %v6181 = vsub.f32 %v3085, %v6180
    %v6182 = vand.u32 %v6181, 4294901760
    %v6183 = vsub.f32 %v6181, %v6182
    %v6184 = vand.u32 %v6183, 4294901760
    %6185 = vmatpush1.msra.mxu0 %v6184
    %v6186 = vand.u32 %v3089, 4294901760
    %v6187 = vsub.f32 %v3089, %v6186
    %v6188 = vand.u32 %v6187, 4294901760
    %v6189 = vsub.f32 %v6187, %v6188
    %v6190 = vand.u32 %v6189, 4294901760
    %6191 = vmatprep.subr.mxu0 %v6190
    %v6192 = vand.u32 %v3088, 4294901760
    %v6193 = vsub.f32 %v3088, %v6192
    %v6194 = vand.u32 %v6193, 4294901760
    %v6195 = vsub.f32 %v6193, %v6194
    %v6196 = vand.u32 %v6195, 4294901760
    %6197 = vmatpush1.msra.mxu0 %v6196
    %v6198 = vand.u32 %v3092, 4294901760
    %v6199 = vsub.f32 %v3092, %v6198
    %v6200 = vand.u32 %v6199, 4294901760
    %v6201 = vsub.f32 %v6199, %v6200
    %v6202 = vand.u32 %v6201, 4294901760
    %6203 = vmatprep.subr.mxu0 %v6202
    %v6204 = vand.u32 %v3091, 4294901760
    %v6205 = vsub.f32 %v3091, %v6204
    %v6206 = vand.u32 %v6205, 4294901760
    %v6207 = vsub.f32 %v6205, %v6206
    %v6208 = vand.u32 %v6207, 4294901760
    %6209 = vmatpush1.msra.mxu0 %v6208
    %v6210 = vand.u32 %v3095, 4294901760
    %v6211 = vsub.f32 %v3095, %v6210
    %v6212 = vand.u32 %v6211, 4294901760
    %v6213 = vsub.f32 %v6211, %v6212
    %v6214 = vand.u32 %v6213, 4294901760
    %6215 = vmatprep.subr.mxu0 %v6214
    %v6216 = vand.u32 %v3094, 4294901760
    %v6217 = vsub.f32 %v3094, %v6216
    %v6218 = vand.u32 %v6217, 4294901760
    %v6219 = vsub.f32 %v6217, %v6218
    %v6220 = vand.u32 %v6219, 4294901760
    %6221 = vmatpush1.msra.mxu0 %v6220
    %v6222 = vand.u32 %v3098, 4294901760
    %v6223 = vsub.f32 %v3098, %v6222
    %v6224 = vand.u32 %v6223, 4294901760
    %v6225 = vsub.f32 %v6223, %v6224
    %v6226 = vand.u32 %v6225, 4294901760
    %6227 = vmatprep.subr.mxu0 %v6226
    %v6228 = vand.u32 %v3097, 4294901760
    %v6229 = vsub.f32 %v3097, %v6228
    %v6230 = vand.u32 %v6229, 4294901760
    %v6231 = vsub.f32 %v6229, %v6230
    %v6232 = vand.u32 %v6231, 4294901760
    %6233 = vmatpush1.msra.mxu0 %v6232
    %v6234 = vand.u32 %v3101, 4294901760
    %v6235 = vsub.f32 %v3101, %v6234
    %v6236 = vand.u32 %v6235, 4294901760
    %v6237 = vsub.f32 %v6235, %v6236
    %v6238 = vand.u32 %v6237, 4294901760
    %6239 = vmatprep.subr.mxu0 %v6238
    %v6240 = vand.u32 %v3100, 4294901760
    %v6241 = vsub.f32 %v3100, %v6240
    %v6242 = vand.u32 %v6241, 4294901760
    %v6243 = vsub.f32 %v6241, %v6242
    %v6244 = vand.u32 %v6243, 4294901760
    %6245 = vmatpush1.msra.mxu0 %v6244
    %6246 = vmatprep.subr.mxu0 0.0
    %6247 = vmatpush1.msra.mxu0 0.0
    %6248 = vmatprep.subr.mxu0 0.0
    %6249 = vmatpush1.msra.mxu0 0.0
    %6250 = vmatprep.subr.mxu0 0.0
    %6251 = vmatpush1.msra.mxu0 0.0
    %6252 = vmatprep.subr.mxu0 0.0
    %6253 = vmatpush1.msra.mxu0 0.0
    %6254 = vmatprep.subr.mxu0 0.0
    %6255 = vmatpush1.msra.mxu0 0.0
    %6256 = vmatprep.subr.mxu0 0.0
    %6257 = vmatpush1.msra.mxu0 0.0
    %6258 = vmatprep.subr.mxu0 0.0
    %6259 = vmatpush1.msra.mxu0 0.0
    %6260 = vmatprep.subr.mxu0 0.0
    %6261 = vmatpush1.msra.mxu0 0.0
    %6262 = vmatprep.subr.mxu0 0.0
    %6263 = vmatpush1.msra.mxu0 0.0
    %6264 = vmatprep.subr.mxu0 0.0
    %6265 = vmatpush1.msra.mxu0 0.0
    %6266 = vmatprep.subr.mxu0 0.0
    %6267 = vmatpush1.msra.mxu0 0.0
    %6268 = vmatprep.subr.mxu0 0.0
    %6269 = vmatpush1.msra.mxu0 0.0
    %6270 = vmatprep.subr.mxu0 0.0
    %6271 = vmatpush1.msra.mxu0 0.0
    %6272 = vmatprep.subr.mxu0 0.0
    %6273 = vmatpush1.msra.mxu0 0.0
    %6274 = vmatprep.subr.mxu0 0.0
    %6275 = vmatpush1.msra.mxu0 0.0
    %6276 = vmatprep.subr.mxu0 0.0
    %6277 = vmatpush1.msra.mxu0 0.0
    %6278 = vmatprep.mubr.f32.mxu0 0.0
    %v6279 = vand.u32 %v5945, 4294901760
    %6280 = vmatmul.mubr.f32.gmra.mrb[0].mxu0 %v6279
    %v6281 = vpop.f32.mrb[0].mxu0
    %v6282 = vadd.f32 %v6050, %v6281
    %v6283 = vpop.f32.mrb[0].mxu0
    %v6284 = vadd.f32 %v6052, %v6283
    %6285 = vdwg.mxu0
    %v6286 = vand.u32 %v3056, 4294901760
    %v6287 = vsub.f32 %v3056, %v6286
    %6288 = vmatprep.subr.mxu0 %v6287
    %v6289 = vand.u32 %v3055, 4294901760
    %v6290 = vsub.f32 %v3055, %v6289
    %6291 = vmatpush1.msra.mxu0 %v6290
    %v6292 = vand.u32 %v3059, 4294901760
    %v6293 = vsub.f32 %v3059, %v6292
    %6294 = vmatprep.subr.mxu0 %v6293
    %v6295 = vand.u32 %v3058, 4294901760
    %v6296 = vsub.f32 %v3058, %v6295
    %6297 = vmatpush1.msra.mxu0 %v6296
    %v6298 = vand.u32 %v3062, 4294901760
    %v6299 = vsub.f32 %v3062, %v6298
    %6300 = vmatprep.subr.mxu0 %v6299
    %v6301 = vand.u32 %v3061, 4294901760
    %v6302 = vsub.f32 %v3061, %v6301
    %6303 = vmatpush1.msra.mxu0 %v6302
    %v6304 = vand.u32 %v3065, 4294901760
    %v6305 = vsub.f32 %v3065, %v6304
    %6306 = vmatprep.subr.mxu0 %v6305
    %v6307 = vand.u32 %v3064, 4294901760
    %v6308 = vsub.f32 %v3064, %v6307
    %6309 = vmatpush1.msra.mxu0 %v6308
    %v6310 = vand.u32 %v3068, 4294901760
    %v6311 = vsub.f32 %v3068, %v6310
    %6312 = vmatprep.subr.mxu0 %v6311
    %v6313 = vand.u32 %v3067, 4294901760
    %v6314 = vsub.f32 %v3067, %v6313
    %6315 = vmatpush1.msra.mxu0 %v6314
    %v6316 = vand.u32 %v3071, 4294901760
    %v6317 = vsub.f32 %v3071, %v6316
    %6318 = vmatprep.subr.mxu0 %v6317
    %v6319 = vand.u32 %v3070, 4294901760
    %v6320 = vsub.f32 %v3070, %v6319
    %6321 = vmatpush1.msra.mxu0 %v6320
    %v6322 = vand.u32 %v3074, 4294901760
    %v6323 = vsub.f32 %v3074, %v6322
    %6324 = vmatprep.subr.mxu0 %v6323
    %v6325 = vand.u32 %v3073, 4294901760
    %v6326 = vsub.f32 %v3073, %v6325
    %6327 = vmatpush1.msra.mxu0 %v6326
    %v6328 = vand.u32 %v3077, 4294901760
    %v6329 = vsub.f32 %v3077, %v6328
    %6330 = vmatprep.subr.mxu0 %v6329
    %v6331 = vand.u32 %v3076, 4294901760
    %v6332 = vsub.f32 %v3076, %v6331
    %6333 = vmatpush1.msra.mxu0 %v6332
    %v6334 = vand.u32 %v3080, 4294901760
    %v6335 = vsub.f32 %v3080, %v6334
    %6336 = vmatprep.subr.mxu0 %v6335
    %v6337 = vand.u32 %v3079, 4294901760
    %v6338 = vsub.f32 %v3079, %v6337
    %6339 = vmatpush1.msra.mxu0 %v6338
    %v6340 = vand.u32 %v3083, 4294901760
    %v6341 = vsub.f32 %v3083, %v6340
    %6342 = vmatprep.subr.mxu0 %v6341
    %v6343 = vand.u32 %v3082, 4294901760
    %v6344 = vsub.f32 %v3082, %v6343
    %6345 = vmatpush1.msra.mxu0 %v6344
    %v6346 = vand.u32 %v3086, 4294901760
    %v6347 = vsub.f32 %v3086, %v6346
    %6348 = vmatprep.subr.mxu0 %v6347
    %v6349 = vand.u32 %v3085, 4294901760
    %v6350 = vsub.f32 %v3085, %v6349
    %6351 = vmatpush1.msra.mxu0 %v6350
    %v6352 = vand.u32 %v3089, 4294901760
    %v6353 = vsub.f32 %v3089, %v6352
    %6354 = vmatprep.subr.mxu0 %v6353
    %v6355 = vand.u32 %v3088, 4294901760
    %v6356 = vsub.f32 %v3088, %v6355
    %6357 = vmatpush1.msra.mxu0 %v6356
    %v6358 = vand.u32 %v3092, 4294901760
    %v6359 = vsub.f32 %v3092, %v6358
    %6360 = vmatprep.subr.mxu0 %v6359
    %v6361 = vand.u32 %v3091, 4294901760
    %v6362 = vsub.f32 %v3091, %v6361
    %6363 = vmatpush1.msra.mxu0 %v6362
    %v6364 = vand.u32 %v3095, 4294901760
    %v6365 = vsub.f32 %v3095, %v6364
    %6366 = vmatprep.subr.mxu0 %v6365
    %v6367 = vand.u32 %v3094, 4294901760
    %v6368 = vsub.f32 %v3094, %v6367
    %6369 = vmatpush1.msra.mxu0 %v6368
    %v6370 = vand.u32 %v3098, 4294901760
    %v6371 = vsub.f32 %v3098, %v6370
    %6372 = vmatprep.subr.mxu0 %v6371
    %v6373 = vand.u32 %v3097, 4294901760
    %v6374 = vsub.f32 %v3097, %v6373
    %6375 = vmatpush1.msra.mxu0 %v6374
    %v6376 = vand.u32 %v3101, 4294901760
    %v6377 = vsub.f32 %v3101, %v6376
    %6378 = vmatprep.subr.mxu0 %v6377
    %v6379 = vand.u32 %v3100, 4294901760
    %v6380 = vsub.f32 %v3100, %v6379
    %6381 = vmatpush1.msra.mxu0 %v6380
    %6382 = vmatprep.subr.mxu0 0.0
    %6383 = vmatpush1.msra.mxu0 0.0
    %6384 = vmatprep.subr.mxu0 0.0
    %6385 = vmatpush1.msra.mxu0 0.0
    %6386 = vmatprep.subr.mxu0 0.0
    %6387 = vmatpush1.msra.mxu0 0.0
    %6388 = vmatprep.subr.mxu0 0.0
    %6389 = vmatpush1.msra.mxu0 0.0
    %6390 = vmatprep.subr.mxu0 0.0
    %6391 = vmatpush1.msra.mxu0 0.0
    %6392 = vmatprep.subr.mxu0 0.0
    %6393 = vmatpush1.msra.mxu0 0.0
    %6394 = vmatprep.subr.mxu0 0.0
    %6395 = vmatpush1.msra.mxu0 0.0
    %6396 = vmatprep.subr.mxu0 0.0
    %6397 = vmatpush1.msra.mxu0 0.0
    %6398 = vmatprep.subr.mxu0 0.0
    %6399 = vmatpush1.msra.mxu0 0.0
    %6400 = vmatprep.subr.mxu0 0.0
    %6401 = vmatpush1.msra.mxu0 0.0
    %6402 = vmatprep.subr.mxu0 0.0
    %6403 = vmatpush1.msra.mxu0 0.0
    %6404 = vmatprep.subr.mxu0 0.0
    %6405 = vmatpush1.msra.mxu0 0.0
    %6406 = vmatprep.subr.mxu0 0.0
    %6407 = vmatpush1.msra.mxu0 0.0
    %6408 = vmatprep.subr.mxu0 0.0
    %6409 = vmatpush1.msra.mxu0 0.0
    %6410 = vmatprep.subr.mxu0 0.0
    %6411 = vmatpush1.msra.mxu0 0.0
    %6412 = vmatprep.subr.mxu0 0.0
    %6413 = vmatpush1.msra.mxu0 0.0
    %6414 = vmatprep.mubr.f32.mxu0 0.0
    %v6415 = vand.u32 %v5945, 4294901760
    %v6416 = vsub.f32 %v5945, %v6415
    %6417 = vmatmul.mubr.f32.gmra.mrb[0].mxu0 %v6416
    %v6418 = vpop.f32.mrb[0].mxu0
    %v6419 = vadd.f32 %v6282, %v6418
    %v6420 = vpop.f32.mrb[0].mxu0
    %v6421 = vadd.f32 %v6284, %v6420
    %6422 = vdwg.mxu0
    %v6423 = vand.u32 %v3056, 4294901760
    %6424 = vmatprep.subr.mxu0 %v6423
    %v6425 = vand.u32 %v3055, 4294901760
    %6426 = vmatpush1.msra.mxu0 %v6425
    %v6427 = vand.u32 %v3059, 4294901760
    %6428 = vmatprep.subr.mxu0 %v6427
    %v6429 = vand.u32 %v3058, 4294901760
    %6430 = vmatpush1.msra.mxu0 %v6429
    %v6431 = vand.u32 %v3062, 4294901760
    %6432 = vmatprep.subr.mxu0 %v6431
    %v6433 = vand.u32 %v3061, 4294901760
    %6434 = vmatpush1.msra.mxu0 %v6433
    %v6435 = vand.u32 %v3065, 4294901760
    %6436 = vmatprep.subr.mxu0 %v6435
    %v6437 = vand.u32 %v3064, 4294901760
    %6438 = vmatpush1.msra.mxu0 %v6437
    %v6439 = vand.u32 %v3068, 4294901760
    %6440 = vmatprep.subr.mxu0 %v6439
    %v6441 = vand.u32 %v3067, 4294901760
    %6442 = vmatpush1.msra.mxu0 %v6441
    %v6443 = vand.u32 %v3071, 4294901760
    %6444 = vmatprep.subr.mxu0 %v6443
    %v6445 = vand.u32 %v3070, 4294901760
    %6446 = vmatpush1.msra.mxu0 %v6445
    %v6447 = vand.u32 %v3074, 4294901760
    %6448 = vmatprep.subr.mxu0 %v6447
    %v6449 = vand.u32 %v3073, 4294901760
    %6450 = vmatpush1.msra.mxu0 %v6449
    %v6451 = vand.u32 %v3077, 4294901760
    %6452 = vmatprep.subr.mxu0 %v6451
    %v6453 = vand.u32 %v3076, 4294901760
    %6454 = vmatpush1.msra.mxu0 %v6453
    %v6455 = vand.u32 %v3080, 4294901760
    %6456 = vmatprep.subr.mxu0 %v6455
    %v6457 = vand.u32 %v3079, 4294901760
    %6458 = vmatpush1.msra.mxu0 %v6457
    %v6459 = vand.u32 %v3083, 4294901760
    %6460 = vmatprep.subr.mxu0 %v6459
    %v6461 = vand.u32 %v3082, 4294901760
    %6462 = vmatpush1.msra.mxu0 %v6461
    %v6463 = vand.u32 %v3086, 4294901760
    %6464 = vmatprep.subr.mxu0 %v6463
    %v6465 = vand.u32 %v3085, 4294901760
    %6466 = vmatpush1.msra.mxu0 %v6465
    %v6467 = vand.u32 %v3089, 4294901760
    %6468 = vmatprep.subr.mxu0 %v6467
    %v6469 = vand.u32 %v3088, 4294901760
    %6470 = vmatpush1.msra.mxu0 %v6469
    %v6471 = vand.u32 %v3092, 4294901760
    %6472 = vmatprep.subr.mxu0 %v6471
    %v6473 = vand.u32 %v3091, 4294901760
    %6474 = vmatpush1.msra.mxu0 %v6473
    %v6475 = vand.u32 %v3095, 4294901760
    %6476 = vmatprep.subr.mxu0 %v6475
    %v6477 = vand.u32 %v3094, 4294901760
    %6478 = vmatpush1.msra.mxu0 %v6477
    %v6479 = vand.u32 %v3098, 4294901760
    %6480 = vmatprep.subr.mxu0 %v6479
    %v6481 = vand.u32 %v3097, 4294901760
    %6482 = vmatpush1.msra.mxu0 %v6481
    %v6483 = vand.u32 %v3101, 4294901760
    %6484 = vmatprep.subr.mxu0 %v6483
    %v6485 = vand.u32 %v3100, 4294901760
    %6486 = vmatpush1.msra.mxu0 %v6485
    %6487 = vmatprep.subr.mxu0 0.0
    %6488 = vmatpush1.msra.mxu0 0.0
    %6489 = vmatprep.subr.mxu0 0.0
    %6490 = vmatpush1.msra.mxu0 0.0
    %6491 = vmatprep.subr.mxu0 0.0
    %6492 = vmatpush1.msra.mxu0 0.0
    %6493 = vmatprep.subr.mxu0 0.0
    %6494 = vmatpush1.msra.mxu0 0.0
    %6495 = vmatprep.subr.mxu0 0.0
    %6496 = vmatpush1.msra.mxu0 0.0
    %6497 = vmatprep.subr.mxu0 0.0
    %6498 = vmatpush1.msra.mxu0 0.0
    %6499 = vmatprep.subr.mxu0 0.0
    %6500 = vmatpush1.msra.mxu0 0.0
    %6501 = vmatprep.subr.mxu0 0.0
    %6502 = vmatpush1.msra.mxu0 0.0
    %6503 = vmatprep.subr.mxu0 0.0
    %6504 = vmatpush1.msra.mxu0 0.0
    %6505 = vmatprep.subr.mxu0 0.0
    %6506 = vmatpush1.msra.mxu0 0.0
    %6507 = vmatprep.subr.mxu0 0.0
    %6508 = vmatpush1.msra.mxu0 0.0
    %6509 = vmatprep.subr.mxu0 0.0
    %6510 = vmatpush1.msra.mxu0 0.0
    %6511 = vmatprep.subr.mxu0 0.0
    %6512 = vmatpush1.msra.mxu0 0.0
    %6513 = vmatprep.subr.mxu0 0.0
    %6514 = vmatpush1.msra.mxu0 0.0
    %6515 = vmatprep.subr.mxu0 0.0
    %6516 = vmatpush1.msra.mxu0 0.0
    %6517 = vmatprep.subr.mxu0 0.0
    %6518 = vmatpush1.msra.mxu0 0.0
    %6519 = vmatprep.mubr.f32.mxu0 0.0
    %v6520 = vand.u32 %v5945, 4294901760
    %v6521 = vsub.f32 %v5945, %v6520
    %v6522 = vand.u32 %v6521, 4294901760
    %6523 = vmatmul.mubr.f32.gmra.mrb[0].mxu0 %v6522
    %v6524 = vpop.f32.mrb[0].mxu0
    %v6525 = vadd.f32 %v6419, %v6524
    %v6526 = vpop.f32.mrb[0].mxu0
    %v6527 = vadd.f32 %v6421, %v6526
    %6528 = vdwg.mxu0
    %v6529 = vand.u32 %v3056, 4294901760
    %v6530 = vsub.f32 %v3056, %v6529
    %v6531 = vand.u32 %v6530, 4294901760
    %6532 = vmatprep.subr.mxu0 %v6531
    %v6533 = vand.u32 %v3055, 4294901760
    %v6534 = vsub.f32 %v3055, %v6533
    %v6535 = vand.u32 %v6534, 4294901760
    %6536 = vmatpush1.msra.mxu0 %v6535
    %v6537 = vand.u32 %v3059, 4294901760
    %v6538 = vsub.f32 %v3059, %v6537
    %v6539 = vand.u32 %v6538, 4294901760
    %6540 = vmatprep.subr.mxu0 %v6539
    %v6541 = vand.u32 %v3058, 4294901760
    %v6542 = vsub.f32 %v3058, %v6541
    %v6543 = vand.u32 %v6542, 4294901760
    %6544 = vmatpush1.msra.mxu0 %v6543
    %v6545 = vand.u32 %v3062, 4294901760
    %v6546 = vsub.f32 %v3062, %v6545
    %v6547 = vand.u32 %v6546, 4294901760
    %6548 = vmatprep.subr.mxu0 %v6547
    %v6549 = vand.u32 %v3061, 4294901760
    %v6550 = vsub.f32 %v3061, %v6549
    %v6551 = vand.u32 %v6550, 4294901760
    %6552 = vmatpush1.msra.mxu0 %v6551
    %v6553 = vand.u32 %v3065, 4294901760
    %v6554 = vsub.f32 %v3065, %v6553
    %v6555 = vand.u32 %v6554, 4294901760
    %6556 = vmatprep.subr.mxu0 %v6555
    %v6557 = vand.u32 %v3064, 4294901760
    %v6558 = vsub.f32 %v3064, %v6557
    %v6559 = vand.u32 %v6558, 4294901760
    %6560 = vmatpush1.msra.mxu0 %v6559
    %v6561 = vand.u32 %v3068, 4294901760
    %v6562 = vsub.f32 %v3068, %v6561
    %v6563 = vand.u32 %v6562, 4294901760
    %6564 = vmatprep.subr.mxu0 %v6563
    %v6565 = vand.u32 %v3067, 4294901760
    %v6566 = vsub.f32 %v3067, %v6565
    %v6567 = vand.u32 %v6566, 4294901760
    %6568 = vmatpush1.msra.mxu0 %v6567
    %v6569 = vand.u32 %v3071, 4294901760
    %v6570 = vsub.f32 %v3071, %v6569
    %v6571 = vand.u32 %v6570, 4294901760
    %6572 = vmatprep.subr.mxu0 %v6571
    %v6573 = vand.u32 %v3070, 4294901760
    %v6574 = vsub.f32 %v3070, %v6573
    %v6575 = vand.u32 %v6574, 4294901760
    %6576 = vmatpush1.msra.mxu0 %v6575
    %v6577 = vand.u32 %v3074, 4294901760
    %v6578 = vsub.f32 %v3074, %v6577
    %v6579 = vand.u32 %v6578, 4294901760
    %6580 = vmatprep.subr.mxu0 %v6579
    %v6581 = vand.u32 %v3073, 4294901760
    %v6582 = vsub.f32 %v3073, %v6581
    %v6583 = vand.u32 %v6582, 4294901760
    %6584 = vmatpush1.msra.mxu0 %v6583
    %v6585 = vand.u32 %v3077, 4294901760
    %v6586 = vsub.f32 %v3077, %v6585
    %v6587 = vand.u32 %v6586, 4294901760
    %6588 = vmatprep.subr.mxu0 %v6587
    %v6589 = vand.u32 %v3076, 4294901760
    %v6590 = vsub.f32 %v3076, %v6589
    %v6591 = vand.u32 %v6590, 4294901760
    %6592 = vmatpush1.msra.mxu0 %v6591
    %v6593 = vand.u32 %v3080, 4294901760
    %v6594 = vsub.f32 %v3080, %v6593
    %v6595 = vand.u32 %v6594, 4294901760
    %6596 = vmatprep.subr.mxu0 %v6595
    %v6597 = vand.u32 %v3079, 4294901760
    %v6598 = vsub.f32 %v3079, %v6597
    %v6599 = vand.u32 %v6598, 4294901760
    %6600 = vmatpush1.msra.mxu0 %v6599
    %v6601 = vand.u32 %v3083, 4294901760
    %v6602 = vsub.f32 %v3083, %v6601
    %v6603 = vand.u32 %v6602, 4294901760
    %6604 = vmatprep.subr.mxu0 %v6603
    %v6605 = vand.u32 %v3082, 4294901760
    %v6606 = vsub.f32 %v3082, %v6605
    %v6607 = vand.u32 %v6606, 4294901760
    %6608 = vmatpush1.msra.mxu0 %v6607
    %v6609 = vand.u32 %v3086, 4294901760
    %v6610 = vsub.f32 %v3086, %v6609
    %v6611 = vand.u32 %v6610, 4294901760
    %6612 = vmatprep.subr.mxu0 %v6611
    %v6613 = vand.u32 %v3085, 4294901760
    %v6614 = vsub.f32 %v3085, %v6613
    %v6615 = vand.u32 %v6614, 4294901760
    %6616 = vmatpush1.msra.mxu0 %v6615
    %v6617 = vand.u32 %v3089, 4294901760
    %v6618 = vsub.f32 %v3089, %v6617
    %v6619 = vand.u32 %v6618, 4294901760
    %6620 = vmatprep.subr.mxu0 %v6619
    %v6621 = vand.u32 %v3088, 4294901760
    %v6622 = vsub.f32 %v3088, %v6621
    %v6623 = vand.u32 %v6622, 4294901760
    %6624 = vmatpush1.msra.mxu0 %v6623
    %v6625 = vand.u32 %v3092, 4294901760
    %v6626 = vsub.f32 %v3092, %v6625
    %v6627 = vand.u32 %v6626, 4294901760
    %6628 = vmatprep.subr.mxu0 %v6627
    %v6629 = vand.u32 %v3091, 4294901760
    %v6630 = vsub.f32 %v3091, %v6629
    %v6631 = vand.u32 %v6630, 4294901760
    %6632 = vmatpush1.msra.mxu0 %v6631
    %v6633 = vand.u32 %v3095, 4294901760
    %v6634 = vsub.f32 %v3095, %v6633
    %v6635 = vand.u32 %v6634, 4294901760
    %6636 = vmatprep.subr.mxu0 %v6635
    %v6637 = vand.u32 %v3094, 4294901760
    %v6638 = vsub.f32 %v3094, %v6637
    %v6639 = vand.u32 %v6638, 4294901760
    %6640 = vmatpush1.msra.mxu0 %v6639
    %v6641 = vand.u32 %v3098, 4294901760
    %v6642 = vsub.f32 %v3098, %v6641
    %v6643 = vand.u32 %v6642, 4294901760
    %6644 = vmatprep.subr.mxu0 %v6643
    %v6645 = vand.u32 %v3097, 4294901760
    %v6646 = vsub.f32 %v3097, %v6645
    %v6647 = vand.u32 %v6646, 4294901760
    %6648 = vmatpush1.msra.mxu0 %v6647
    %v6649 = vand.u32 %v3101, 4294901760
    %v6650 = vsub.f32 %v3101, %v6649
    %v6651 = vand.u32 %v6650, 4294901760
    %6652 = vmatprep.subr.mxu0 %v6651
    %v6653 = vand.u32 %v3100, 4294901760
    %v6654 = vsub.f32 %v3100, %v6653
    %v6655 = vand.u32 %v6654, 4294901760
    %6656 = vmatpush1.msra.mxu0 %v6655
    %6657 = vmatprep.subr.mxu0 0.0
    %6658 = vmatpush1.msra.mxu0 0.0
    %6659 = vmatprep.subr.mxu0 0.0
    %6660 = vmatpush1.msra.mxu0 0.0
    %6661 = vmatprep.subr.mxu0 0.0
    %6662 = vmatpush1.msra.mxu0 0.0
    %6663 = vmatprep.subr.mxu0 0.0
    %6664 = vmatpush1.msra.mxu0 0.0
    %6665 = vmatprep.subr.mxu0 0.0
    %6666 = vmatpush1.msra.mxu0 0.0
    %6667 = vmatprep.subr.mxu0 0.0
    %6668 = vmatpush1.msra.mxu0 0.0
    %6669 = vmatprep.subr.mxu0 0.0
    %6670 = vmatpush1.msra.mxu0 0.0
    %6671 = vmatprep.subr.mxu0 0.0
    %6672 = vmatpush1.msra.mxu0 0.0
    %6673 = vmatprep.subr.mxu0 0.0
    %6674 = vmatpush1.msra.mxu0 0.0
    %6675 = vmatprep.subr.mxu0 0.0
    %6676 = vmatpush1.msra.mxu0 0.0
    %6677 = vmatprep.subr.mxu0 0.0
    %6678 = vmatpush1.msra.mxu0 0.0
    %6679 = vmatprep.subr.mxu0 0.0
    %6680 = vmatpush1.msra.mxu0 0.0
    %6681 = vmatprep.subr.mxu0 0.0
    %6682 = vmatpush1.msra.mxu0 0.0
    %6683 = vmatprep.subr.mxu0 0.0
    %6684 = vmatpush1.msra.mxu0 0.0
    %6685 = vmatprep.subr.mxu0 0.0
    %6686 = vmatpush1.msra.mxu0 0.0
    %6687 = vmatprep.subr.mxu0 0.0
    %6688 = vmatpush1.msra.mxu0 0.0
    %6689 = vmatprep.mubr.f32.mxu0 0.0
    %v6690 = vand.u32 %v5945, 4294901760
    %6691 = vmatmul.mubr.f32.gmra.mrb[0].mxu0 %v6690
    %v6692 = vpop.f32.mrb[0].mxu0
    %v6693 = vadd.f32 %v6525, %v6692
    %v6694 = vpop.f32.mrb[0].mxu0
    %v6695 = vadd.f32 %v6527, %v6694
    %6696 = vdwg.mxu0
    %v6697 = vand.u32 %v3056, 4294901760
    %6698 = vmatprep.subr.mxu0 %v6697
    %v6699 = vand.u32 %v3055, 4294901760
    %6700 = vmatpush1.msra.mxu0 %v6699
    %v6701 = vand.u32 %v3059, 4294901760
    %6702 = vmatprep.subr.mxu0 %v6701
    %v6703 = vand.u32 %v3058, 4294901760
    %6704 = vmatpush1.msra.mxu0 %v6703
    %v6705 = vand.u32 %v3062, 4294901760
    %6706 = vmatprep.subr.mxu0 %v6705
    %v6707 = vand.u32 %v3061, 4294901760
    %6708 = vmatpush1.msra.mxu0 %v6707
    %v6709 = vand.u32 %v3065, 4294901760
    %6710 = vmatprep.subr.mxu0 %v6709
    %v6711 = vand.u32 %v3064, 4294901760
    %6712 = vmatpush1.msra.mxu0 %v6711
    %v6713 = vand.u32 %v3068, 4294901760
    %6714 = vmatprep.subr.mxu0 %v6713
    %v6715 = vand.u32 %v3067, 4294901760
    %6716 = vmatpush1.msra.mxu0 %v6715
    %v6717 = vand.u32 %v3071, 4294901760
    %6718 = vmatprep.subr.mxu0 %v6717
    %v6719 = vand.u32 %v3070, 4294901760
    %6720 = vmatpush1.msra.mxu0 %v6719
    %v6721 = vand.u32 %v3074, 4294901760
    %6722 = vmatprep.subr.mxu0 %v6721
    %v6723 = vand.u32 %v3073, 4294901760
    %6724 = vmatpush1.msra.mxu0 %v6723
    %v6725 = vand.u32 %v3077, 4294901760
    %6726 = vmatprep.subr.mxu0 %v6725
    %v6727 = vand.u32 %v3076, 4294901760
    %6728 = vmatpush1.msra.mxu0 %v6727
    %v6729 = vand.u32 %v3080, 4294901760
    %6730 = vmatprep.subr.mxu0 %v6729
    %v6731 = vand.u32 %v3079, 4294901760
    %6732 = vmatpush1.msra.mxu0 %v6731
    %v6733 = vand.u32 %v3083, 4294901760
    %6734 = vmatprep.subr.mxu0 %v6733
    %v6735 = vand.u32 %v3082, 4294901760
    %6736 = vmatpush1.msra.mxu0 %v6735
    %v6737 = vand.u32 %v3086, 4294901760
    %6738 = vmatprep.subr.mxu0 %v6737
    %v6739 = vand.u32 %v3085, 4294901760
    %6740 = vmatpush1.msra.mxu0 %v6739
    %v6741 = vand.u32 %v3089, 4294901760
    %6742 = vmatprep.subr.mxu0 %v6741
    %v6743 = vand.u32 %v3088, 4294901760
    %6744 = vmatpush1.msra.mxu0 %v6743
    %v6745 = vand.u32 %v3092, 4294901760
    %6746 = vmatprep.subr.mxu0 %v6745
    %v6747 = vand.u32 %v3091, 4294901760
    %6748 = vmatpush1.msra.mxu0 %v6747
    %v6749 = vand.u32 %v3095, 4294901760
    %6750 = vmatprep.subr.mxu0 %v6749
    %v6751 = vand.u32 %v3094, 4294901760
    %6752 = vmatpush1.msra.mxu0 %v6751
    %v6753 = vand.u32 %v3098, 4294901760
    %6754 = vmatprep.subr.mxu0 %v6753
    %v6755 = vand.u32 %v3097, 4294901760
    %6756 = vmatpush1.msra.mxu0 %v6755
    %v6757 = vand.u32 %v3101, 4294901760
    %6758 = vmatprep.subr.mxu0 %v6757
    %v6759 = vand.u32 %v3100, 4294901760
    %6760 = vmatpush1.msra.mxu0 %v6759
    %6761 = vmatprep.subr.mxu0 0.0
    %6762 = vmatpush1.msra.mxu0 0.0
    %6763 = vmatprep.subr.mxu0 0.0
    %6764 = vmatpush1.msra.mxu0 0.0
    %6765 = vmatprep.subr.mxu0 0.0
    %6766 = vmatpush1.msra.mxu0 0.0
    %6767 = vmatprep.subr.mxu0 0.0
    %6768 = vmatpush1.msra.mxu0 0.0
    %6769 = vmatprep.subr.mxu0 0.0
    %6770 = vmatpush1.msra.mxu0 0.0
    %6771 = vmatprep.subr.mxu0 0.0
    %6772 = vmatpush1.msra.mxu0 0.0
    %6773 = vmatprep.subr.mxu0 0.0
    %6774 = vmatpush1.msra.mxu0 0.0
    %6775 = vmatprep.subr.mxu0 0.0
    %6776 = vmatpush1.msra.mxu0 0.0
    %6777 = vmatprep.subr.mxu0 0.0
    %6778 = vmatpush1.msra.mxu0 0.0
    %6779 = vmatprep.subr.mxu0 0.0
    %6780 = vmatpush1.msra.mxu0 0.0
    %6781 = vmatprep.subr.mxu0 0.0
    %6782 = vmatpush1.msra.mxu0 0.0
    %6783 = vmatprep.subr.mxu0 0.0
    %6784 = vmatpush1.msra.mxu0 0.0
    %6785 = vmatprep.subr.mxu0 0.0
    %6786 = vmatpush1.msra.mxu0 0.0
    %6787 = vmatprep.subr.mxu0 0.0
    %6788 = vmatpush1.msra.mxu0 0.0
    %6789 = vmatprep.subr.mxu0 0.0
    %6790 = vmatpush1.msra.mxu0 0.0
    %6791 = vmatprep.subr.mxu0 0.0
    %6792 = vmatpush1.msra.mxu0 0.0
    %6793 = vmatprep.mubr.f32.mxu0 0.0
    %v6794 = vand.u32 %v5945, 4294901760
    %6795 = vmatmul.mubr.f32.gmra.mrb[0].mxu0 %v6794
    %v6796 = vpop.f32.mrb[0].mxu0
    %v6797 = vadd.f32 %v6693, %v6796
    %v6798 = vpop.f32.mrb[0].mxu0
    %v6799 = vadd.f32 %v6695, %v6798
    %6800 = vdwg.mxu0
    %6801 = vmatprep.subr.mxu0 0.0
    %v6802 = vand.u32 %v3057, 4294901760
    %6803 = vmatpush1.msra.mxu0 %v6802
    %6804 = vmatprep.subr.mxu0 0.0
    %v6805 = vand.u32 %v3060, 4294901760
    %6806 = vmatpush1.msra.mxu0 %v6805
    %6807 = vmatprep.subr.mxu0 0.0
    %v6808 = vand.u32 %v3063, 4294901760
    %6809 = vmatpush1.msra.mxu0 %v6808
    %6810 = vmatprep.subr.mxu0 0.0
    %v6811 = vand.u32 %v3066, 4294901760
    %6812 = vmatpush1.msra.mxu0 %v6811
    %6813 = vmatprep.subr.mxu0 0.0
    %v6814 = vand.u32 %v3069, 4294901760
    %6815 = vmatpush1.msra.mxu0 %v6814
    %6816 = vmatprep.subr.mxu0 0.0
    %v6817 = vand.u32 %v3072, 4294901760
    %6818 = vmatpush1.msra.mxu0 %v6817
    %6819 = vmatprep.subr.mxu0 0.0
    %v6820 = vand.u32 %v3075, 4294901760
    %6821 = vmatpush1.msra.mxu0 %v6820
    %6822 = vmatprep.subr.mxu0 0.0
    %v6823 = vand.u32 %v3078, 4294901760
    %6824 = vmatpush1.msra.mxu0 %v6823
    %6825 = vmatprep.subr.mxu0 0.0
    %v6826 = vand.u32 %v3081, 4294901760
    %6827 = vmatpush1.msra.mxu0 %v6826
    %6828 = vmatprep.subr.mxu0 0.0
    %v6829 = vand.u32 %v3084, 4294901760
    %6830 = vmatpush1.msra.mxu0 %v6829
    %6831 = vmatprep.subr.mxu0 0.0
    %v6832 = vand.u32 %v3087, 4294901760
    %6833 = vmatpush1.msra.mxu0 %v6832
    %6834 = vmatprep.subr.mxu0 0.0
    %v6835 = vand.u32 %v3090, 4294901760
    %6836 = vmatpush1.msra.mxu0 %v6835
    %6837 = vmatprep.subr.mxu0 0.0
    %v6838 = vand.u32 %v3093, 4294901760
    %6839 = vmatpush1.msra.mxu0 %v6838
    %6840 = vmatprep.subr.mxu0 0.0
    %v6841 = vand.u32 %v3096, 4294901760
    %6842 = vmatpush1.msra.mxu0 %v6841
    %6843 = vmatprep.subr.mxu0 0.0
    %v6844 = vand.u32 %v3099, 4294901760
    %6845 = vmatpush1.msra.mxu0 %v6844
    %6846 = vmatprep.subr.mxu0 0.0
    %v6847 = vand.u32 %v3102, 4294901760
    %6848 = vmatpush1.msra.mxu0 %v6847
    %6849 = vmatprep.subr.mxu0 0.0
    %6850 = vmatpush1.msra.mxu0 0.0
    %6851 = vmatprep.subr.mxu0 0.0
    %6852 = vmatpush1.msra.mxu0 0.0
    %6853 = vmatprep.subr.mxu0 0.0
    %6854 = vmatpush1.msra.mxu0 0.0
    %6855 = vmatprep.subr.mxu0 0.0
    %6856 = vmatpush1.msra.mxu0 0.0
    %6857 = vmatprep.subr.mxu0 0.0
    %6858 = vmatpush1.msra.mxu0 0.0
    %6859 = vmatprep.subr.mxu0 0.0
    %6860 = vmatpush1.msra.mxu0 0.0
    %6861 = vmatprep.subr.mxu0 0.0
    %6862 = vmatpush1.msra.mxu0 0.0
    %6863 = vmatprep.subr.mxu0 0.0
    %6864 = vmatpush1.msra.mxu0 0.0
    %6865 = vmatprep.subr.mxu0 0.0
    %6866 = vmatpush1.msra.mxu0 0.0
    %6867 = vmatprep.subr.mxu0 0.0
    %6868 = vmatpush1.msra.mxu0 0.0
    %6869 = vmatprep.subr.mxu0 0.0
    %6870 = vmatpush1.msra.mxu0 0.0
    %6871 = vmatprep.subr.mxu0 0.0
    %6872 = vmatpush1.msra.mxu0 0.0
    %6873 = vmatprep.subr.mxu0 0.0
    %6874 = vmatpush1.msra.mxu0 0.0
    %6875 = vmatprep.subr.mxu0 0.0
    %6876 = vmatpush1.msra.mxu0 0.0
    %6877 = vmatprep.subr.mxu0 0.0
    %6878 = vmatpush1.msra.mxu0 0.0
    %6879 = vmatprep.subr.mxu0 0.0
    %6880 = vmatpush1.msra.mxu0 0.0
    %6881 = vmatprep.mubr.f32.mxu0 0.0
    %v6882 = vand.u32 %v5945, 4294901760
    %v6883 = vsub.f32 %v5945, %v6882
    %v6884 = vand.u32 %v6883, 4294901760
    %v6885 = vsub.f32 %v6883, %v6884
    %v6886 = vand.u32 %v6885, 4294901760
    %6887 = vmatmul.mubr.f32.gmra.mrb[0].mxu0 %v6886
    %v6888 = vpop.f32.mrb[0].mxu0
    %v6889 = vadd.f32 0.0, %v6888
    %v6890 = vpop.f32.mrb[0].mxu0
    %6891 = vdwg.mxu0
    %6892 = vmatprep.subr.mxu0 0.0
    %v6893 = vand.u32 %v3057, 4294901760
    %v6894 = vsub.f32 %v3057, %v6893
    %v6895 = vand.u32 %v6894, 4294901760
    %v6896 = vsub.f32 %v6894, %v6895
    %v6897 = vand.u32 %v6896, 4294901760
    %6898 = vmatpush1.msra.mxu0 %v6897
    %6899 = vmatprep.subr.mxu0 0.0
    %v6900 = vand.u32 %v3060, 4294901760
    %v6901 = vsub.f32 %v3060, %v6900
    %v6902 = vand.u32 %v6901, 4294901760
    %v6903 = vsub.f32 %v6901, %v6902
    %v6904 = vand.u32 %v6903, 4294901760
    %6905 = vmatpush1.msra.mxu0 %v6904
    %6906 = vmatprep.subr.mxu0 0.0
    %v6907 = vand.u32 %v3063, 4294901760
    %v6908 = vsub.f32 %v3063, %v6907
    %v6909 = vand.u32 %v6908, 4294901760
    %v6910 = vsub.f32 %v6908, %v6909
    %v6911 = vand.u32 %v6910, 4294901760
    %6912 = vmatpush1.msra.mxu0 %v6911
    %6913 = vmatprep.subr.mxu0 0.0
    %v6914 = vand.u32 %v3066, 4294901760
    %v6915 = vsub.f32 %v3066, %v6914
    %v6916 = vand.u32 %v6915, 4294901760
    %v6917 = vsub.f32 %v6915, %v6916
    %v6918 = vand.u32 %v6917, 4294901760
    %6919 = vmatpush1.msra.mxu0 %v6918
    %6920 = vmatprep.subr.mxu0 0.0
    %v6921 = vand.u32 %v3069, 4294901760
    %v6922 = vsub.f32 %v3069, %v6921
    %v6923 = vand.u32 %v6922, 4294901760
    %v6924 = vsub.f32 %v6922, %v6923
    %v6925 = vand.u32 %v6924, 4294901760
    %6926 = vmatpush1.msra.mxu0 %v6925
    %6927 = vmatprep.subr.mxu0 0.0
    %v6928 = vand.u32 %v3072, 4294901760
    %v6929 = vsub.f32 %v3072, %v6928
    %v6930 = vand.u32 %v6929, 4294901760
    %v6931 = vsub.f32 %v6929, %v6930
    %v6932 = vand.u32 %v6931, 4294901760
    %6933 = vmatpush1.msra.mxu0 %v6932
    %6934 = vmatprep.subr.mxu0 0.0
    %v6935 = vand.u32 %v3075, 4294901760
    %v6936 = vsub.f32 %v3075, %v6935
    %v6937 = vand.u32 %v6936, 4294901760
    %v6938 = vsub.f32 %v6936, %v6937
    %v6939 = vand.u32 %v6938, 4294901760
    %6940 = vmatpush1.msra.mxu0 %v6939
    %6941 = vmatprep.subr.mxu0 0.0
    %v6942 = vand.u32 %v3078, 4294901760
    %v6943 = vsub.f32 %v3078, %v6942
    %v6944 = vand.u32 %v6943, 4294901760
    %v6945 = vsub.f32 %v6943, %v6944
    %v6946 = vand.u32 %v6945, 4294901760
    %6947 = vmatpush1.msra.mxu0 %v6946
    %6948 = vmatprep.subr.mxu0 0.0
    %v6949 = vand.u32 %v3081, 4294901760
    %v6950 = vsub.f32 %v3081, %v6949
    %v6951 = vand.u32 %v6950, 4294901760
    %v6952 = vsub.f32 %v6950, %v6951
    %v6953 = vand.u32 %v6952, 4294901760
    %6954 = vmatpush1.msra.mxu0 %v6953
    %6955 = vmatprep.subr.mxu0 0.0
    %v6956 = vand.u32 %v3084, 4294901760
    %v6957 = vsub.f32 %v3084, %v6956
    %v6958 = vand.u32 %v6957, 4294901760
    %v6959 = vsub.f32 %v6957, %v6958
    %v6960 = vand.u32 %v6959, 4294901760
    %6961 = vmatpush1.msra.mxu0 %v6960
    %6962 = vmatprep.subr.mxu0 0.0
    %v6963 = vand.u32 %v3087, 4294901760
    %v6964 = vsub.f32 %v3087, %v6963
    %v6965 = vand.u32 %v6964, 4294901760
    %v6966 = vsub.f32 %v6964, %v6965
    %v6967 = vand.u32 %v6966, 4294901760
    %6968 = vmatpush1.msra.mxu0 %v6967
    %6969 = vmatprep.subr.mxu0 0.0
    %v6970 = vand.u32 %v3090, 4294901760
    %v6971 = vsub.f32 %v3090, %v6970
    %v6972 = vand.u32 %v6971, 4294901760
    %v6973 = vsub.f32 %v6971, %v6972
    %v6974 = vand.u32 %v6973, 4294901760
    %6975 = vmatpush1.msra.mxu0 %v6974
    %6976 = vmatprep.subr.mxu0 0.0
    %v6977 = vand.u32 %v3093, 4294901760
    %v6978 = vsub.f32 %v3093, %v6977
    %v6979 = vand.u32 %v6978, 4294901760
    %v6980 = vsub.f32 %v6978, %v6979
    %v6981 = vand.u32 %v6980, 4294901760
    %6982 = vmatpush1.msra.mxu0 %v6981
    %6983 = vmatprep.subr.mxu0 0.0
    %v6984 = vand.u32 %v3096, 4294901760
    %v6985 = vsub.f32 %v3096, %v6984
    %v6986 = vand.u32 %v6985, 4294901760
    %v6987 = vsub.f32 %v6985, %v6986
    %v6988 = vand.u32 %v6987, 4294901760
    %6989 = vmatpush1.msra.mxu0 %v6988
    %6990 = vmatprep.subr.mxu0 0.0
    %v6991 = vand.u32 %v3099, 4294901760
    %v6992 = vsub.f32 %v3099, %v6991
    %v6993 = vand.u32 %v6992, 4294901760
    %v6994 = vsub.f32 %v6992, %v6993
    %v6995 = vand.u32 %v6994, 4294901760
    %6996 = vmatpush1.msra.mxu0 %v6995
    %6997 = vmatprep.subr.mxu0 0.0
    %v6998 = vand.u32 %v3102, 4294901760
    %v6999 = vsub.f32 %v3102, %v6998
    %v7000 = vand.u32 %v6999, 4294901760
    %v7001 = vsub.f32 %v6999, %v7000
    %v7002 = vand.u32 %v7001, 4294901760
    %7003 = vmatpush1.msra.mxu0 %v7002
    %7004 = vmatprep.subr.mxu0 0.0
    %7005 = vmatpush1.msra.mxu0 0.0
    %7006 = vmatprep.subr.mxu0 0.0
    %7007 = vmatpush1.msra.mxu0 0.0
    %7008 = vmatprep.subr.mxu0 0.0
    %7009 = vmatpush1.msra.mxu0 0.0
    %7010 = vmatprep.subr.mxu0 0.0
    %7011 = vmatpush1.msra.mxu0 0.0
    %7012 = vmatprep.subr.mxu0 0.0
    %7013 = vmatpush1.msra.mxu0 0.0
    %7014 = vmatprep.subr.mxu0 0.0
    %7015 = vmatpush1.msra.mxu0 0.0
    %7016 = vmatprep.subr.mxu0 0.0
    %7017 = vmatpush1.msra.mxu0 0.0
    %7018 = vmatprep.subr.mxu0 0.0
    %7019 = vmatpush1.msra.mxu0 0.0
    %7020 = vmatprep.subr.mxu0 0.0
    %7021 = vmatpush1.msra.mxu0 0.0
    %7022 = vmatprep.subr.mxu0 0.0
    %7023 = vmatpush1.msra.mxu0 0.0
    %7024 = vmatprep.subr.mxu0 0.0
    %7025 = vmatpush1.msra.mxu0 0.0
    %7026 = vmatprep.subr.mxu0 0.0
    %7027 = vmatpush1.msra.mxu0 0.0
    %7028 = vmatprep.subr.mxu0 0.0
    %7029 = vmatpush1.msra.mxu0 0.0
    %7030 = vmatprep.subr.mxu0 0.0
    %7031 = vmatpush1.msra.mxu0 0.0
    %7032 = vmatprep.subr.mxu0 0.0
    %7033 = vmatpush1.msra.mxu0 0.0
    %7034 = vmatprep.subr.mxu0 0.0
    %7035 = vmatpush1.msra.mxu0 0.0
    %7036 = vmatprep.mubr.f32.mxu0 0.0
    %v7037 = vand.u32 %v5945, 4294901760
    %7038 = vmatmul.mubr.f32.gmra.mrb[0].mxu0 %v7037
    %v7039 = vpop.f32.mrb[0].mxu0
    %v7040 = vadd.f32 %v6889, %v7039
    %v7041 = vpop.f32.mrb[0].mxu0
    %7042 = vdwg.mxu0
    %7043 = vmatprep.subr.mxu0 0.0
    %v7044 = vand.u32 %v3057, 4294901760
    %v7045 = vsub.f32 %v3057, %v7044
    %7046 = vmatpush1.msra.mxu0 %v7045
    %7047 = vmatprep.subr.mxu0 0.0
    %v7048 = vand.u32 %v3060, 4294901760
    %v7049 = vsub.f32 %v3060, %v7048
    %7050 = vmatpush1.msra.mxu0 %v7049
    %7051 = vmatprep.subr.mxu0 0.0
    %v7052 = vand.u32 %v3063, 4294901760
    %v7053 = vsub.f32 %v3063, %v7052
    %7054 = vmatpush1.msra.mxu0 %v7053
    %7055 = vmatprep.subr.mxu0 0.0
    %v7056 = vand.u32 %v3066, 4294901760
    %v7057 = vsub.f32 %v3066, %v7056
    %7058 = vmatpush1.msra.mxu0 %v7057
    %7059 = vmatprep.subr.mxu0 0.0
    %v7060 = vand.u32 %v3069, 4294901760
    %v7061 = vsub.f32 %v3069, %v7060
    %7062 = vmatpush1.msra.mxu0 %v7061
    %7063 = vmatprep.subr.mxu0 0.0
    %v7064 = vand.u32 %v3072, 4294901760
    %v7065 = vsub.f32 %v3072, %v7064
    %7066 = vmatpush1.msra.mxu0 %v7065
    %7067 = vmatprep.subr.mxu0 0.0
    %v7068 = vand.u32 %v3075, 4294901760
    %v7069 = vsub.f32 %v3075, %v7068
    %7070 = vmatpush1.msra.mxu0 %v7069
    %7071 = vmatprep.subr.mxu0 0.0
    %v7072 = vand.u32 %v3078, 4294901760
    %v7073 = vsub.f32 %v3078, %v7072
    %7074 = vmatpush1.msra.mxu0 %v7073
    %7075 = vmatprep.subr.mxu0 0.0
    %v7076 = vand.u32 %v3081, 4294901760
    %v7077 = vsub.f32 %v3081, %v7076
    %7078 = vmatpush1.msra.mxu0 %v7077
    %7079 = vmatprep.subr.mxu0 0.0
    %v7080 = vand.u32 %v3084, 4294901760
    %v7081 = vsub.f32 %v3084, %v7080
    %7082 = vmatpush1.msra.mxu0 %v7081
    %7083 = vmatprep.subr.mxu0 0.0
    %v7084 = vand.u32 %v3087, 4294901760
    %v7085 = vsub.f32 %v3087, %v7084
    %7086 = vmatpush1.msra.mxu0 %v7085
    %7087 = vmatprep.subr.mxu0 0.0
    %v7088 = vand.u32 %v3090, 4294901760
    %v7089 = vsub.f32 %v3090, %v7088
    %7090 = vmatpush1.msra.mxu0 %v7089
    %7091 = vmatprep.subr.mxu0 0.0
    %v7092 = vand.u32 %v3093, 4294901760
    %v7093 = vsub.f32 %v3093, %v7092
    %7094 = vmatpush1.msra.mxu0 %v7093
    %7095 = vmatprep.subr.mxu0 0.0
    %v7096 = vand.u32 %v3096, 4294901760
    %v7097 = vsub.f32 %v3096, %v7096
    %7098 = vmatpush1.msra.mxu0 %v7097
    %7099 = vmatprep.subr.mxu0 0.0
    %v7100 = vand.u32 %v3099, 4294901760
    %v7101 = vsub.f32 %v3099, %v7100
    %7102 = vmatpush1.msra.mxu0 %v7101
    %7103 = vmatprep.subr.mxu0 0.0
    %v7104 = vand.u32 %v3102, 4294901760
    %v7105 = vsub.f32 %v3102, %v7104
    %7106 = vmatpush1.msra.mxu0 %v7105
    %7107 = vmatprep.subr.mxu0 0.0
    %7108 = vmatpush1.msra.mxu0 0.0
    %7109 = vmatprep.subr.mxu0 0.0
    %7110 = vmatpush1.msra.mxu0 0.0
    %7111 = vmatprep.subr.mxu0 0.0
    %7112 = vmatpush1.msra.mxu0 0.0
    %7113 = vmatprep.subr.mxu0 0.0
    %7114 = vmatpush1.msra.mxu0 0.0
    %7115 = vmatprep.subr.mxu0 0.0
    %7116 = vmatpush1.msra.mxu0 0.0
    %7117 = vmatprep.subr.mxu0 0.0
    %7118 = vmatpush1.msra.mxu0 0.0
    %7119 = vmatprep.subr.mxu0 0.0
    %7120 = vmatpush1.msra.mxu0 0.0
    %7121 = vmatprep.subr.mxu0 0.0
    %7122 = vmatpush1.msra.mxu0 0.0
    %7123 = vmatprep.subr.mxu0 0.0
    %7124 = vmatpush1.msra.mxu0 0.0
    %7125 = vmatprep.subr.mxu0 0.0
    %7126 = vmatpush1.msra.mxu0 0.0
    %7127 = vmatprep.subr.mxu0 0.0
    %7128 = vmatpush1.msra.mxu0 0.0
    %7129 = vmatprep.subr.mxu0 0.0
    %7130 = vmatpush1.msra.mxu0 0.0
    %7131 = vmatprep.subr.mxu0 0.0
    %7132 = vmatpush1.msra.mxu0 0.0
    %7133 = vmatprep.subr.mxu0 0.0
    %7134 = vmatpush1.msra.mxu0 0.0
    %7135 = vmatprep.subr.mxu0 0.0
    %7136 = vmatpush1.msra.mxu0 0.0
    %7137 = vmatprep.subr.mxu0 0.0
    %7138 = vmatpush1.msra.mxu0 0.0
    %7139 = vmatprep.mubr.f32.mxu0 0.0
    %v7140 = vand.u32 %v5945, 4294901760
    %v7141 = vsub.f32 %v5945, %v7140
    %7142 = vmatmul.mubr.f32.gmra.mrb[0].mxu0 %v7141
    %v7143 = vpop.f32.mrb[0].mxu0
    %v7144 = vadd.f32 %v7040, %v7143
    %v7145 = vpop.f32.mrb[0].mxu0
    %7146 = vdwg.mxu0
    %7147 = vmatprep.subr.mxu0 0.0
    %v7148 = vand.u32 %v3057, 4294901760
    %7149 = vmatpush1.msra.mxu0 %v7148
    %7150 = vmatprep.subr.mxu0 0.0
    %v7151 = vand.u32 %v3060, 4294901760
    %7152 = vmatpush1.msra.mxu0 %v7151
    %7153 = vmatprep.subr.mxu0 0.0
    %v7154 = vand.u32 %v3063, 4294901760
    %7155 = vmatpush1.msra.mxu0 %v7154
    %7156 = vmatprep.subr.mxu0 0.0
    %v7157 = vand.u32 %v3066, 4294901760
    %7158 = vmatpush1.msra.mxu0 %v7157
    %7159 = vmatprep.subr.mxu0 0.0
    %v7160 = vand.u32 %v3069, 4294901760
    %7161 = vmatpush1.msra.mxu0 %v7160
    %7162 = vmatprep.subr.mxu0 0.0
    %v7163 = vand.u32 %v3072, 4294901760
    %7164 = vmatpush1.msra.mxu0 %v7163
    %7165 = vmatprep.subr.mxu0 0.0
    %v7166 = vand.u32 %v3075, 4294901760
    %7167 = vmatpush1.msra.mxu0 %v7166
    %7168 = vmatprep.subr.mxu0 0.0
    %v7169 = vand.u32 %v3078, 4294901760
    %7170 = vmatpush1.msra.mxu0 %v7169
    %7171 = vmatprep.subr.mxu0 0.0
    %v7172 = vand.u32 %v3081, 4294901760
    %7173 = vmatpush1.msra.mxu0 %v7172
    %7174 = vmatprep.subr.mxu0 0.0
    %v7175 = vand.u32 %v3084, 4294901760
    %7176 = vmatpush1.msra.mxu0 %v7175
    %7177 = vmatprep.subr.mxu0 0.0
    %v7178 = vand.u32 %v3087, 4294901760
    %7179 = vmatpush1.msra.mxu0 %v7178
    %7180 = vmatprep.subr.mxu0 0.0
    %v7181 = vand.u32 %v3090, 4294901760
    %7182 = vmatpush1.msra.mxu0 %v7181
    %7183 = vmatprep.subr.mxu0 0.0
    %v7184 = vand.u32 %v3093, 4294901760
    %7185 = vmatpush1.msra.mxu0 %v7184
    %7186 = vmatprep.subr.mxu0 0.0
    %v7187 = vand.u32 %v3096, 4294901760
    %7188 = vmatpush1.msra.mxu0 %v7187
    %7189 = vmatprep.subr.mxu0 0.0
    %v7190 = vand.u32 %v3099, 4294901760
    %7191 = vmatpush1.msra.mxu0 %v7190
    %7192 = vmatprep.subr.mxu0 0.0
    %v7193 = vand.u32 %v3102, 4294901760
    %7194 = vmatpush1.msra.mxu0 %v7193
    %7195 = vmatprep.subr.mxu0 0.0
    %7196 = vmatpush1.msra.mxu0 0.0
    %7197 = vmatprep.subr.mxu0 0.0
    %7198 = vmatpush1.msra.mxu0 0.0
    %7199 = vmatprep.subr.mxu0 0.0
    %7200 = vmatpush1.msra.mxu0 0.0
    %7201 = vmatprep.subr.mxu0 0.0
    %7202 = vmatpush1.msra.mxu0 0.0
    %7203 = vmatprep.subr.mxu0 0.0
    %7204 = vmatpush1.msra.mxu0 0.0
    %7205 = vmatprep.subr.mxu0 0.0
    %7206 = vmatpush1.msra.mxu0 0.0
    %7207 = vmatprep.subr.mxu0 0.0
    %7208 = vmatpush1.msra.mxu0 0.0
    %7209 = vmatprep.subr.mxu0 0.0
    %7210 = vmatpush1.msra.mxu0 0.0
    %7211 = vmatprep.subr.mxu0 0.0
    %7212 = vmatpush1.msra.mxu0 0.0
    %7213 = vmatprep.subr.mxu0 0.0
    %7214 = vmatpush1.msra.mxu0 0.0
    %7215 = vmatprep.subr.mxu0 0.0
    %7216 = vmatpush1.msra.mxu0 0.0
    %7217 = vmatprep.subr.mxu0 0.0
    %7218 = vmatpush1.msra.mxu0 0.0
    %7219 = vmatprep.subr.mxu0 0.0
    %7220 = vmatpush1.msra.mxu0 0.0
    %7221 = vmatprep.subr.mxu0 0.0
    %7222 = vmatpush1.msra.mxu0 0.0
    %7223 = vmatprep.subr.mxu0 0.0
    %7224 = vmatpush1.msra.mxu0 0.0
    %7225 = vmatprep.subr.mxu0 0.0
    %7226 = vmatpush1.msra.mxu0 0.0
    %7227 = vmatprep.mubr.f32.mxu0 0.0
    %v7228 = vand.u32 %v5945, 4294901760
    %v7229 = vsub.f32 %v5945, %v7228
    %v7230 = vand.u32 %v7229, 4294901760
    %7231 = vmatmul.mubr.f32.gmra.mrb[0].mxu0 %v7230
    %v7232 = vpop.f32.mrb[0].mxu0
    %v7233 = vadd.f32 %v7144, %v7232
    %v7234 = vpop.f32.mrb[0].mxu0
    %7235 = vdwg.mxu0
    %7236 = vmatprep.subr.mxu0 0.0
    %v7237 = vand.u32 %v3057, 4294901760
    %v7238 = vsub.f32 %v3057, %v7237
    %v7239 = vand.u32 %v7238, 4294901760
    %7240 = vmatpush1.msra.mxu0 %v7239
    %7241 = vmatprep.subr.mxu0 0.0
    %v7242 = vand.u32 %v3060, 4294901760
    %v7243 = vsub.f32 %v3060, %v7242
    %v7244 = vand.u32 %v7243, 4294901760
    %7245 = vmatpush1.msra.mxu0 %v7244
    %7246 = vmatprep.subr.mxu0 0.0
    %v7247 = vand.u32 %v3063, 4294901760
    %v7248 = vsub.f32 %v3063, %v7247
    %v7249 = vand.u32 %v7248, 4294901760
    %7250 = vmatpush1.msra.mxu0 %v7249
    %7251 = vmatprep.subr.mxu0 0.0
    %v7252 = vand.u32 %v3066, 4294901760
    %v7253 = vsub.f32 %v3066, %v7252
    %v7254 = vand.u32 %v7253, 4294901760
    %7255 = vmatpush1.msra.mxu0 %v7254
    %7256 = vmatprep.subr.mxu0 0.0
    %v7257 = vand.u32 %v3069, 4294901760
    %v7258 = vsub.f32 %v3069, %v7257
    %v7259 = vand.u32 %v7258, 4294901760
    %7260 = vmatpush1.msra.mxu0 %v7259
    %7261 = vmatprep.subr.mxu0 0.0
    %v7262 = vand.u32 %v3072, 4294901760
    %v7263 = vsub.f32 %v3072, %v7262
    %v7264 = vand.u32 %v7263, 4294901760
    %7265 = vmatpush1.msra.mxu0 %v7264
    %7266 = vmatprep.subr.mxu0 0.0
    %v7267 = vand.u32 %v3075, 4294901760
    %v7268 = vsub.f32 %v3075, %v7267
    %v7269 = vand.u32 %v7268, 4294901760
    %7270 = vmatpush1.msra.mxu0 %v7269
    %7271 = vmatprep.subr.mxu0 0.0
    %v7272 = vand.u32 %v3078, 4294901760
    %v7273 = vsub.f32 %v3078, %v7272
    %v7274 = vand.u32 %v7273, 4294901760
    %7275 = vmatpush1.msra.mxu0 %v7274
    %7276 = vmatprep.subr.mxu0 0.0
    %v7277 = vand.u32 %v3081, 4294901760
    %v7278 = vsub.f32 %v3081, %v7277
    %v7279 = vand.u32 %v7278, 4294901760
    %7280 = vmatpush1.msra.mxu0 %v7279
    %7281 = vmatprep.subr.mxu0 0.0
    %v7282 = vand.u32 %v3084, 4294901760
    %v7283 = vsub.f32 %v3084, %v7282
    %v7284 = vand.u32 %v7283, 4294901760
    %7285 = vmatpush1.msra.mxu0 %v7284
    %7286 = vmatprep.subr.mxu0 0.0
    %v7287 = vand.u32 %v3087, 4294901760
    %v7288 = vsub.f32 %v3087, %v7287
    %v7289 = vand.u32 %v7288, 4294901760
    %7290 = vmatpush1.msra.mxu0 %v7289
    %7291 = vmatprep.subr.mxu0 0.0
    %v7292 = vand.u32 %v3090, 4294901760
    %v7293 = vsub.f32 %v3090, %v7292
    %v7294 = vand.u32 %v7293, 4294901760
    %7295 = vmatpush1.msra.mxu0 %v7294
    %7296 = vmatprep.subr.mxu0 0.0
    %v7297 = vand.u32 %v3093, 4294901760
    %v7298 = vsub.f32 %v3093, %v7297
    %v7299 = vand.u32 %v7298, 4294901760
    %7300 = vmatpush1.msra.mxu0 %v7299
    %7301 = vmatprep.subr.mxu0 0.0
    %v7302 = vand.u32 %v3096, 4294901760
    %v7303 = vsub.f32 %v3096, %v7302
    %v7304 = vand.u32 %v7303, 4294901760
    %7305 = vmatpush1.msra.mxu0 %v7304
    %7306 = vmatprep.subr.mxu0 0.0
    %v7307 = vand.u32 %v3099, 4294901760
    %v7308 = vsub.f32 %v3099, %v7307
    %v7309 = vand.u32 %v7308, 4294901760
    %7310 = vmatpush1.msra.mxu0 %v7309
    %7311 = vmatprep.subr.mxu0 0.0
    %v7312 = vand.u32 %v3102, 4294901760
    %v7313 = vsub.f32 %v3102, %v7312
    %v7314 = vand.u32 %v7313, 4294901760
    %7315 = vmatpush1.msra.mxu0 %v7314
    %7316 = vmatprep.subr.mxu0 0.0
    %7317 = vmatpush1.msra.mxu0 0.0
    %7318 = vmatprep.subr.mxu0 0.0
    %7319 = vmatpush1.msra.mxu0 0.0
    %7320 = vmatprep.subr.mxu0 0.0
    %7321 = vmatpush1.msra.mxu0 0.0
    %7322 = vmatprep.subr.mxu0 0.0
    %7323 = vmatpush1.msra.mxu0 0.0
    %7324 = vmatprep.subr.mxu0 0.0
    %7325 = vmatpush1.msra.mxu0 0.0
    %7326 = vmatprep.subr.mxu0 0.0
    %7327 = vmatpush1.msra.mxu0 0.0
    %7328 = vmatprep.subr.mxu0 0.0
    %7329 = vmatpush1.msra.mxu0 0.0
    %7330 = vmatprep.subr.mxu0 0.0
    %7331 = vmatpush1.msra.mxu0 0.0
    %7332 = vmatprep.subr.mxu0 0.0
    %7333 = vmatpush1.msra.mxu0 0.0
    %7334 = vmatprep.subr.mxu0 0.0
    %7335 = vmatpush1.msra.mxu0 0.0
    %7336 = vmatprep.subr.mxu0 0.0
    %7337 = vmatpush1.msra.mxu0 0.0
    %7338 = vmatprep.subr.mxu0 0.0
    %7339 = vmatpush1.msra.mxu0 0.0
    %7340 = vmatprep.subr.mxu0 0.0
    %7341 = vmatpush1.msra.mxu0 0.0
    %7342 = vmatprep.subr.mxu0 0.0
    %7343 = vmatpush1.msra.mxu0 0.0
    %7344 = vmatprep.subr.mxu0 0.0
    %7345 = vmatpush1.msra.mxu0 0.0
    %7346 = vmatprep.subr.mxu0 0.0
    %7347 = vmatpush1.msra.mxu0 0.0
    %7348 = vmatprep.mubr.f32.mxu0 0.0
    %v7349 = vand.u32 %v5945, 4294901760
    %7350 = vmatmul.mubr.f32.gmra.mrb[0].mxu0 %v7349
    %v7351 = vpop.f32.mrb[0].mxu0
    %v7352 = vadd.f32 %v7233, %v7351
    %v7353 = vpop.f32.mrb[0].mxu0
    %7354 = vdwg.mxu0
    %7355 = vmatprep.subr.mxu0 0.0
    %v7356 = vand.u32 %v3057, 4294901760
    %7357 = vmatpush1.msra.mxu0 %v7356
    %7358 = vmatprep.subr.mxu0 0.0
    %v7359 = vand.u32 %v3060, 4294901760
    %7360 = vmatpush1.msra.mxu0 %v7359
    %7361 = vmatprep.subr.mxu0 0.0
    %v7362 = vand.u32 %v3063, 4294901760
    %7363 = vmatpush1.msra.mxu0 %v7362
    %7364 = vmatprep.subr.mxu0 0.0
    %v7365 = vand.u32 %v3066, 4294901760
    %7366 = vmatpush1.msra.mxu0 %v7365
    %7367 = vmatprep.subr.mxu0 0.0
    %v7368 = vand.u32 %v3069, 4294901760
    %7369 = vmatpush1.msra.mxu0 %v7368
    %7370 = vmatprep.subr.mxu0 0.0
    %v7371 = vand.u32 %v3072, 4294901760
    %7372 = vmatpush1.msra.mxu0 %v7371
    %7373 = vmatprep.subr.mxu0 0.0
    %v7374 = vand.u32 %v3075, 4294901760
    %7375 = vmatpush1.msra.mxu0 %v7374
    %7376 = vmatprep.subr.mxu0 0.0
    %v7377 = vand.u32 %v3078, 4294901760
    %7378 = vmatpush1.msra.mxu0 %v7377
    %7379 = vmatprep.subr.mxu0 0.0
    %v7380 = vand.u32 %v3081, 4294901760
    %7381 = vmatpush1.msra.mxu0 %v7380
    %7382 = vmatprep.subr.mxu0 0.0
    %v7383 = vand.u32 %v3084, 4294901760
    %7384 = vmatpush1.msra.mxu0 %v7383
    %7385 = vmatprep.subr.mxu0 0.0
    %v7386 = vand.u32 %v3087, 4294901760
    %7387 = vmatpush1.msra.mxu0 %v7386
    %7388 = vmatprep.subr.mxu0 0.0
    %v7389 = vand.u32 %v3090, 4294901760
    %7390 = vmatpush1.msra.mxu0 %v7389
    %7391 = vmatprep.subr.mxu0 0.0
    %v7392 = vand.u32 %v3093, 4294901760
    %7393 = vmatpush1.msra.mxu0 %v7392
    %7394 = vmatprep.subr.mxu0 0.0
    %v7395 = vand.u32 %v3096, 4294901760
    %7396 = vmatpush1.msra.mxu0 %v7395
    %7397 = vmatprep.subr.mxu0 0.0
    %v7398 = vand.u32 %v3099, 4294901760
    %7399 = vmatpush1.msra.mxu0 %v7398
    %7400 = vmatprep.subr.mxu0 0.0
    %v7401 = vand.u32 %v3102, 4294901760
    %7402 = vmatpush1.msra.mxu0 %v7401
    %7403 = vmatprep.subr.mxu0 0.0
    %7404 = vmatpush1.msra.mxu0 0.0
    %7405 = vmatprep.subr.mxu0 0.0
    %7406 = vmatpush1.msra.mxu0 0.0
    %7407 = vmatprep.subr.mxu0 0.0
    %7408 = vmatpush1.msra.mxu0 0.0
    %7409 = vmatprep.subr.mxu0 0.0
    %7410 = vmatpush1.msra.mxu0 0.0
    %7411 = vmatprep.subr.mxu0 0.0
    %7412 = vmatpush1.msra.mxu0 0.0
    %7413 = vmatprep.subr.mxu0 0.0
    %7414 = vmatpush1.msra.mxu0 0.0
    %7415 = vmatprep.subr.mxu0 0.0
    %7416 = vmatpush1.msra.mxu0 0.0
    %7417 = vmatprep.subr.mxu0 0.0
    %7418 = vmatpush1.msra.mxu0 0.0
    %7419 = vmatprep.subr.mxu0 0.0
    %7420 = vmatpush1.msra.mxu0 0.0
    %7421 = vmatprep.subr.mxu0 0.0
    %7422 = vmatpush1.msra.mxu0 0.0
    %7423 = vmatprep.subr.mxu0 0.0
    %7424 = vmatpush1.msra.mxu0 0.0
    %7425 = vmatprep.subr.mxu0 0.0
    %7426 = vmatpush1.msra.mxu0 0.0
    %7427 = vmatprep.subr.mxu0 0.0
    %7428 = vmatpush1.msra.mxu0 0.0
    %7429 = vmatprep.subr.mxu0 0.0
    %7430 = vmatpush1.msra.mxu0 0.0
    %7431 = vmatprep.subr.mxu0 0.0
    %7432 = vmatpush1.msra.mxu0 0.0
    %7433 = vmatprep.subr.mxu0 0.0
    %7434 = vmatpush1.msra.mxu0 0.0
    %7435 = vmatprep.mubr.f32.mxu0 0.0
    %v7436 = vand.u32 %v5945, 4294901760
    %7437 = vmatmul.mubr.f32.gmra.mrb[0].mxu0 %v7436
    %v7438 = vpop.f32.mrb[0].mxu0
    %v7439 = vadd.f32 %v7352, %v7438
    %v7440 = vpop.f32.mrb[0].mxu0
    %7441 = vdwg.mxu0
    %v7445 = vcombine.low %v6797, %v6799
    %v7447 = vunpack.c.l.s4 1983009808
    %v7448 = vunpack.c.0.s8 %v7447
    %v7449 = vlaneseq
    %v7450 = vshrl.u32 %v7449, 7
    %v7451 = vsub.s32 %v7448, %v7450
    %v7452 = vrot.slane %v7445, %v7451
    %v7454 = vunpack.c.l.s4 1983009808
    %v7455 = vunpack.c.0.s8 %v7454
    %v7456 = vlaneseq
    %v7457 = vshrl.u32 %v7456, 7
    %v7458 = vsub.s32 %v7455, %v7457
    %v7459 = vrot.slane %v7439, %v7458
    %v7460 = vcombine.low %v7452, %v7459
    %v7462 = vmul.f32 %v2554, %v7460
    %7463 = vst [vmem:[#allocation8] sm:$0x3f] %v7462
    // Predicated region
    $region26: #{tpu_custom_call.1} parent=1 // pred_check
      _
    $region27: #{tpu_custom_call.1} parent=1 // pred_check_branch
      %7465 = sbr.rel (0) target = $region29
    $region28: #{tpu_custom_call.1} parent=1 // pred_region
      %s7467 = ssub.s32 256, 256
      %7468 = vsyncadd [#allocation4], %s7467
      %s7469 = sshll.u32 [#allocation7], 4
      %s7470 = int_to_ptr.vmem [resolvable:$true] %s7469
      %7475 = dma.vmem_to_hbm [thread:$0]  %s7470, 256, %s4, [#allocation4], 128, 128, 8
    $region29: #{tpu_custom_call.1} parent=1 // pred_fallthru
      _
    // Predicated region
    $region30: #{tpu_custom_call.1} parent=1 // pred_check
      _
    $region31: #{tpu_custom_call.1} parent=1 // pred_check_branch
      %7477 = sbr.rel (0) target = $region33
    $region32: #{tpu_custom_call.1} parent=1 // pred_region
      %s7479 = ssub.s32 96, 96
      %7480 = vsyncadd [#allocation9], %s7479
      %s7482 = sshll.u32 [#allocation8], 4
      %s7483 = int_to_ptr.vmem [resolvable:$true] %s7482
      %7485 = dma.vmem_to_hbm [thread:$0]  %s7483, 96, %s5, [#allocation9]
    $region33: #{tpu_custom_call.1} parent=1 // pred_fallthru
      _
    // Predicated region
    $region34: #{tpu_custom_call.1} parent=1 // pred_check
      _
    $region35: #{tpu_custom_call.1} parent=1 // pred_check_branch
      %7487 = sbr.rel (0) target = $region37
    $region36: #{tpu_custom_call.1} parent=1 // pred_region
      %7488 = dma.done [#allocation4], 256
    $region37: #{tpu_custom_call.1} parent=1 // pred_fallthru
      _
    // Predicated region
    $region38: #{tpu_custom_call.1} parent=1 // pred_check
      _
    $region39: #{tpu_custom_call.1} parent=1 // pred_check_branch
      %7490 = sbr.rel (0) target = $region41
    $region40: #{tpu_custom_call.1} parent=1 // pred_region
      %7491 = dma.done [#allocation9], 96
    $region41: #{tpu_custom_call.1} parent=1 // pred_fallthru
      _
    %7492 = vsyncpa [#allocation3], 1
    %7493 = vsyncpa [#allocation6], 1
    %7494 = vsyncpa [#allocation4], 1
    %7495 = vsyncpa [#allocation9], 1

</llo_original>
